<compile_context>
chip_gen: v5e
topology: v5e:2x2
jax: 0.10.0
libtpu: 0.0.40
codegen_flags: <defaults>
</compile_context>

<pallas_src>
import jax
import jax.numpy as jnp
from jax import lax
from jax.experimental import pallas as pl
from jax.experimental.pallas import tpu as pltpu

LANE = 128


def _rup(v, m):
    return (v + m - 1) // m * m


def _pick_hblock(h, w, target_rows=64):
    """Largest divisor of h with ~target_rows flattened rows per block."""
    hb = max(1, min(h, target_rows // max(w, 1)))
    while h % hb:
        hb -= 1
    return hb


# ------------------------------------------------------------------ kernel --
def _make_bottleneck_kernel(h, w, c1p, cmid_p, c2p, hb, add):
    hw = h * w
    mb = hb * w                 # flattened rows per block (whole image rows)
    nblk = h // hb
    inv6 = 1.0 / 6.0

    def hswish(v):              # x * relu6(x+3)/6  ==  x * clip(x/6 + .5, 0, 1)
        return v * jnp.clip(v * inv6 + 0.5, 0.0, 1.0)

    def kernel(x_ref, w1_ref, s1_ref, b1_ref, w2_ref, s2_ref, b2_ref,
               o_ref, panel_ref):
        # x_ref: (H, W, C1p) bf16      panel_ref: (H*W, 9*Cmid_p) bf16 scratch
        # o_ref: (H, W, C2p) f32

        # Zero the two border row-bands of the im2col panel (top band of the
        # di=0 taps, bottom band of the di=2 taps).  Every other panel row is
        # fully overwritten by the aligned scatter below.
        zband = jnp.zeros((w, cmid_p), jnp.bfloat16)
        for dj in range(3):
            t_top, t_bot = 0 * 3 + dj, 2 * 3 + dj
            panel_ref[0:w, t_top * cmid_p:(t_top + 1) * cmid_p] = zband
            panel_ref[hw - w:hw, t_bot * cmid_p:(t_bot + 1) * cmid_p] = zband

        # Column-validity masks for the +-1 width shifts (hoisted).
        col = lax.broadcasted_iota(jnp.int32, (mb, 1), 0) % w
        ok_left = col >= 1          # reading the left  neighbour (dj = 0)
        ok_right = col <= w - 2     # reading the right neighbour (dj = 2)

        # ---- stage 1: 1x1 conv + folded BN + Hardswish, scattered straight
        #      into the 3x3 im2col panel (no HBM round-trip, no y scratch). ---
        for b in range(nblk):
            r0 = b * mb
            xm = x_ref[b * hb:(b + 1) * hb].reshape(mb, c1p)         # bf16
            z = jnp.dot(xm, w1_ref[...], preferred_element_type=jnp.float32)
            z = hswish(z * s1_ref[...] + b1_ref[...])                # f32
            for dj in range(3):
                sj = dj - 1
                if sj == 0:
                    yb = z.astype(jnp.bfloat16)
                else:
                    # result[r] = z[r + sj]; block-local wrap rows land on
                    # col==0 / col==W-1 which the mask zeroes anyway.
                    yy = pltpu.roll(z, (-sj) % mb, axis=0)
                    yy = jnp.where(ok_left if sj < 0 else ok_right, yy, 0.0)
                    yb = yy.astype(jnp.bfloat16)
                for di in range(3):
                    t = di * 3 + dj
                    d0 = r0 - (di - 1) * w        # row offsets are multiples
                    lo, hi = max(d0, 0), min(d0 + mb, hw)   # of W -> aligned
                    if lo < hi:
                        panel_ref[lo:hi, t * cmid_p:(t + 1) * cmid_p] = \
                            yb[lo - d0:hi - d0, :]

        # ---- stage 2: 3x3 conv as ONE K = 9*Cmid matmul per row block,
        #      folded BN + Hardswish (+ residual), direct lane-dense store. ---
        for b in range(nblk):
            r0 = b * mb
            pm = panel_ref[r0:r0 + mb, :]                            # bf16
            z = jnp.dot(pm, w2_ref[...], preferred_element_type=jnp.float32)
            z = hswish(z * s2_ref[...] + b2_ref[...])
            if add:
                res = x_ref[b * hb:(b + 1) * hb].reshape(mb, c1p)
                z = z + res.astype(jnp.float32)
            o_ref[b * hb:(b + 1) * hb] = z.reshape(hb, w, c2p).astype(o_ref.dtype)

    return kernel


# ----------------------------------------------------------------- wrapper --
def bottleneck_fused_nhwc(params, x_nhwc, out_dtype=jnp.float32):
    """Fused Bottleneck: hswish(BN(conv1x1)) -> hswish(BN(conv3x3)) [+ x]."""
    n, h, w, c1 = x_nhwc.shape
    cv1, cv2 = params['cv1'], params['cv2']
    assert cv1['k'] == 1 and cv2['k'] == 3 and cv2['p'] == 1
    cmid = cv1['w'].shape[-1]
    c2 = cv2['w'].shape[-1]
    add = bool(params['add'])
    if add:
        assert c1 == c2

    c1p, cmid_p, c2p = _rup(c1, LANE), _rup(cmid, LANE), _rup(c2, LANE)
    hb = _pick_hblock(h, w)
    hw = h * w

    # Channel pad + bf16 cast (single fused XLA pass; weights folded with BN).
    xb = jnp.pad(x_nhwc, ((0, 0), (0, 0), (0, 0), (0, c1p - c1))
                 ).astype(jnp.bfloat16)
    w1 = jnp.pad(cv1['w'].reshape(c1, cmid),
                 ((0, c1p - c1), (0, cmid_p - cmid))).astype(jnp.bfloat16)
    s1 = jnp.pad(cv1['scale'], (0, cmid_p - cmid)).reshape(1, cmid_p).astype(jnp.float32)
    b1 = jnp.pad(cv1['bias'], (0, cmid_p - cmid)).reshape(1, cmid_p).astype(jnp.float32)
    # (3,3,Cmid,C2) -> (9*Cmid, C2): rows ordered (di, dj, ci) == panel columns.
    w2 = jnp.pad(cv2['w'], ((0, 0), (0, 0), (0, cmid_p - cmid), (0, c2p - c2))
                 ).reshape(9 * cmid_p, c2p).astype(jnp.bfloat16)
    s2 = jnp.pad(cv2['scale'], (0, c2p - c2)).reshape(1, c2p).astype(jnp.float32)
    b2 = jnp.pad(cv2['bias'], (0, c2p - c2)).reshape(1, c2p).astype(jnp.float32)

    kernel = _make_bottleneck_kernel(h, w, c1p, cmid_p, c2p, hb, add)

    out = pl.pallas_call(
        kernel,
        grid=(n,),
        in_specs=[
            pl.BlockSpec((None, h, w, c1p), lambda b: (b, 0, 0, 0)),   # x
            pl.BlockSpec((c1p, cmid_p), lambda b: (0, 0)),             # w1
            pl.BlockSpec((1, cmid_p), lambda b: (0, 0)),               # scale1
            pl.BlockSpec((1, cmid_p), lambda b: (0, 0)),               # bias1
            pl.BlockSpec((9 * cmid_p, c2p), lambda b: (0, 0)),         # w2
            pl.BlockSpec((1, c2p), lambda b: (0, 0)),                  # scale2
            pl.BlockSpec((1, c2p), lambda b: (0, 0)),                  # bias2
        ],
        out_specs=pl.BlockSpec((None, h, w, c2p), lambda b: (b, 0, 0, 0)),
        out_shape=jax.ShapeDtypeStruct((n, h, w, c2p), out_dtype),
        scratch_shapes=[pltpu.VMEM((hw, 9 * cmid_p), jnp.bfloat16)],   # im2col
        compiler_params=pltpu.CompilerParams(
            dimension_semantics=("parallel",)),
    )(xb, w1, s1, b1, w2, s2, b2)
    return out[..., :c2] if c2p != c2 else out


def bottleneck_apply(params, x_nchw):
    # NCHW (PyTorch) interface.  The NHWC transpose fuses with the channel
    # pad + bf16 cast; production callers should use bottleneck_fused_nhwc
    # directly and stay NHWC end-to-end to avoid the relayouts entirely.
    x = jnp.transpose(x_nchw, (0, 2, 3, 1))
    y = bottleneck_fused_nhwc(params, x)
    return jnp.transpose(y, (0, 3, 1, 2))


# ------------------------------------------------------------------ params --
class KeyGen:
    def __init__(self, key):
        self.key = key

    def __call__(self):
        self.key, sub = jax.random.split(self.key)
        return sub


def init_conv_bn(kg, c1, c2, k):
    """Conv2d(bias=True) + BatchNorm2d folded to (w, scale, bias)."""
    w = jax.random.normal(kg(), (k, k, c1, c2), jnp.float32) / jnp.sqrt(k * k * c1)
    b = 0.05 * jax.random.normal(kg(), (c2,), jnp.float32)
    gamma = 1.0 + 0.1 * jax.random.normal(kg(), (c2,), jnp.float32)
    beta = 0.1 * jax.random.normal(kg(), (c2,), jnp.float32)
    mean = 0.1 * jax.random.normal(kg(), (c2,), jnp.float32)
    var = 1.0 + 0.1 * jnp.abs(jax.random.normal(kg(), (c2,), jnp.float32))
    scale = gamma / jnp.sqrt(var + 1e-5)
    return dict(w=w, scale=scale, bias=beta - mean * scale + b * scale,
                k=k, p=(k - 1) // 2)


def init_bottleneck(key, c1, c2, shortcut=True, e=0.5):
    kg = KeyGen(key)
    c_ = int(c2 * e)
    return dict(cv1=init_conv_bn(kg, c1, c_, 1),
                cv2=init_conv_bn(kg, c_, c2, 3),
                add=shortcut and c1 == c2)


# --------------------------------------------------------------- reference --
def _reference(params, x_nchw):
    """Pure-JAX (XLA conv) reference using the same bf16 operand rounding."""
    x = jnp.transpose(x_nchw, (0, 2, 3, 1)).astype(jnp.bfloat16)
    cv1, cv2 = params['cv1'], params['cv2']
    y = lax.conv_general_dilated(
        x, cv1['w'].astype(jnp.bfloat16), (1, 1), 'VALID',
        dimension_numbers=('NHWC', 'HWIO', 'NHWC'),
        preferred_element_type=jnp.float32)
    y = y * cv1['scale'] + cv1['bias']
    y = y * jnp.clip(y * (1.0 / 6.0) + 0.5, 0.0, 1.0)
    z = lax.conv_general_dilated(
        y.astype(jnp.bfloat16), cv2['w'].astype(jnp.bfloat16), (1, 1),
        ((1, 1), (1, 1)),
        dimension_numbers=('NHWC', 'HWIO', 'NHWC'),
        preferred_element_type=jnp.float32)
    z = z * cv2['scale'] + cv2['bias']
    z = z * jnp.clip(z * (1.0 / 6.0) + 0.5, 0.0, 1.0)
    if params['add']:
        z = z + x.astype(jnp.float32)
    return jnp.transpose(z, (0, 3, 1, 2))


# -------------------------------------------------------------------- main --
if __name__ == "__main__":
    key = jax.random.PRNGKey(0)
    pkey, xkey = jax.random.split(key)

    c1 = c2 = 256                                   # c_ = 128 (e = 0.5)
    params = init_bottleneck(pkey, c1, c2, shortcut=True, e=0.5)
    x = jax.random.normal(xkey, (2, c1, 16, 16), jnp.float32)     # NCHW

    fwd = jax.jit(lambda inp: bottleneck_apply(params, inp))
    out = jax.block_until_ready(fwd(x))

    assert out.shape == (2, c2, 16, 16) and out.dtype == jnp.float32
    assert bool(jnp.all(jnp.isfinite(out)))

    ref = jax.block_until_ready(_reference(params, x))
    assert bool(jnp.allclose(out, ref, atol=5e-2, rtol=5e-2)), \
        float(jnp.max(jnp.abs(out - ref)))

    print("KERNEL_OK")
</pallas_src>

<mosaic_0001>
module attributes {stable_mosaic.version = 11 : i64} {
  func.func @kernel(%arg0: i32, %arg1: memref<1x16x16x256xbf16, #tpu.memory_space<vmem>>, %arg2: memref<256x128xbf16, #tpu.memory_space<vmem>>, %arg3: memref<1x128xf32, #tpu.memory_space<vmem>>, %arg4: memref<1x128xf32, #tpu.memory_space<vmem>>, %arg5: memref<1152x256xbf16, #tpu.memory_space<vmem>>, %arg6: memref<1x256xf32, #tpu.memory_space<vmem>>, %arg7: memref<1x256xf32, #tpu.memory_space<vmem>>, %arg8: memref<1x16x16x256xf32, #tpu.memory_space<vmem>>, %arg9: memref<256x1152xbf16, #tpu.memory_space<vmem>>) attributes {dimension_semantics = [#tpu.dimension_semantics<parallel>], iteration_bounds = array<i64: 2>, scalar_prefetch = 0 : i64, scratch_operands = 1 : i64, tpu.core_type = #tpu.core_type<tc>, window_params = [{transform_indices = @transform_0, window_bounds = array<i64: 1, 16, 16, 256>}, {pipeline_mode = #tpu.pipeline_mode<synchronous>, transform_indices = @transform_1, window_bounds = array<i64: 256, 128>}, {pipeline_mode = #tpu.pipeline_mode<synchronous>, transform_indices = @transform_2, window_bounds = array<i64: 1, 128>}, {pipeline_mode = #tpu.pipeline_mode<synchronous>, transform_indices = @transform_3, window_bounds = array<i64: 1, 128>}, {pipeline_mode = #tpu.pipeline_mode<synchronous>, transform_indices = @transform_4, window_bounds = array<i64: 1152, 256>}, {pipeline_mode = #tpu.pipeline_mode<synchronous>, transform_indices = @transform_5, window_bounds = array<i64: 1, 256>}, {pipeline_mode = #tpu.pipeline_mode<synchronous>, transform_indices = @transform_6, window_bounds = array<i64: 1, 256>}, {transform_indices = @transform_7, window_bounds = array<i64: 1, 16, 16, 256>}]} {
    %cst = arith.constant 0.000000e+00 : bf16
    %0 = vector.broadcast %cst : bf16 to vector<16x128xbf16>
    %c0 = arith.constant 0 : index
    %c0_0 = arith.constant 0 : index
    %1 = vector.load %arg9[%c0, %c0_0] : memref<256x1152xbf16, #tpu.memory_space<vmem>>, vector<16x128xbf16>
    tpu.vector_store %arg9[%c0, %c0_0], %0 {strides = array<i32>} : memref<256x1152xbf16, #tpu.memory_space<vmem>>, vector<16x128xbf16>,
    %c240 = arith.constant 240 : index
    %c768 = arith.constant 768 : index
    %2 = vector.load %arg9[%c240, %c768] : memref<256x1152xbf16, #tpu.memory_space<vmem>>, vector<16x128xbf16>
    tpu.vector_store %arg9[%c240, %c768], %0 {strides = array<i32>} : memref<256x1152xbf16, #tpu.memory_space<vmem>>, vector<16x128xbf16>,
    %c0_1 = arith.constant 0 : index
    %c128 = arith.constant 128 : index
    %3 = vector.load %arg9[%c0_1, %c128] : memref<256x1152xbf16, #tpu.memory_space<vmem>>, vector<16x128xbf16>
    tpu.vector_store %arg9[%c0_1, %c128], %0 {strides = array<i32>} : memref<256x1152xbf16, #tpu.memory_space<vmem>>, vector<16x128xbf16>,
    %c240_2 = arith.constant 240 : index
    %c896 = arith.constant 896 : index
    %4 = vector.load %arg9[%c240_2, %c896] : memref<256x1152xbf16, #tpu.memory_space<vmem>>, vector<16x128xbf16>
    tpu.vector_store %arg9[%c240_2, %c896], %0 {strides = array<i32>} : memref<256x1152xbf16, #tpu.memory_space<vmem>>, vector<16x128xbf16>,
    %c0_3 = arith.constant 0 : index
    %c256 = arith.constant 256 : index
    %5 = vector.load %arg9[%c0_3, %c256] : memref<256x1152xbf16, #tpu.memory_space<vmem>>, vector<16x128xbf16>
    tpu.vector_store %arg9[%c0_3, %c256], %0 {strides = array<i32>} : memref<256x1152xbf16, #tpu.memory_space<vmem>>, vector<16x128xbf16>,
    %c240_4 = arith.constant 240 : index
    %c1024 = arith.constant 1024 : index
    %6 = vector.load %arg9[%c240_4, %c1024] : memref<256x1152xbf16, #tpu.memory_space<vmem>>, vector<16x128xbf16>
    tpu.vector_store %arg9[%c240_4, %c1024], %0 {strides = array<i32>} : memref<256x1152xbf16, #tpu.memory_space<vmem>>, vector<16x128xbf16>,
    %7 = tpu.iota {dimensions = array<i32: 0>} : vector<64x1xi32>
    %c16_i32 = arith.constant 16 : i32
    %c0_i32 = arith.constant 0 : i32
    %8 = arith.cmpi eq, %c16_i32, %c0_i32 : i32
    %c1_i32 = arith.constant 1 : i32
    %9 = arith.select %8, %c1_i32, %c16_i32 : i32
    %10 = vector.broadcast %9 : i32 to vector<64x1xi32>
    %11 = arith.remsi %7, %10 : vector<64x1xi32>
    %c0_i32_5 = arith.constant 0 : i32
    %12 = vector.broadcast %c0_i32_5 : i32 to vector<64x1xi32>
    %13 = arith.cmpi ne, %11, %12 : vector<64x1xi32>
    %c0_i32_6 = arith.constant 0 : i32
    %14 = vector.broadcast %c0_i32_6 : i32 to vector<64x1xi32>
    %15 = arith.cmpi slt, %11, %14 : vector<64x1xi32>
    %c0_i32_7 = arith.constant 0 : i32
    %16 = arith.cmpi slt, %9, %c0_i32_7 : i32
    %17 = vector.broadcast %16 : i1 to vector<64x1xi1>
    %18 = vector.broadcast %17 : vector<64x1xi1> to vector<64x1xi1>
    %19 = arith.xori %15, %18 : vector<64x1xi1>
    %20 = arith.andi %19, %13 : vector<64x1xi1>
    %21 = vector.broadcast %9 : i32 to vector<64x1xi32>
    %22 = arith.addi %11, %21 : vector<64x1xi32>
    %23 = arith.select %20, %22, %11 : vector<64x1xi1>, vector<64x1xi32>
    %c1_i32_8 = arith.constant 1 : i32
    %24 = vector.broadcast %c1_i32_8 : i32 to vector<64x1xi32>
    %25 = arith.cmpi sge, %23, %24 : vector<64x1xi32>
    %c14_i32 = arith.constant 14 : i32
    %26 = vector.broadcast %c14_i32 : i32 to vector<64x1xi32>
    %27 = arith.cmpi sle, %23, %26 : vector<64x1xi32>
    %c0_9 = arith.constant 0 : index
    %c0_10 = arith.constant 0 : index
    %c0_11 = arith.constant 0 : index
    %c0_12 = arith.constant 0 : index
    %28 = vector.load %arg1[%c0_9, %c0_10, %c0_11, %c0_12] : memref<1x16x16x256xbf16, #tpu.memory_space<vmem>>, vector<1x4x16x256xbf16>
    %29 = vector.shape_cast %28 : vector<1x4x16x256xbf16> to vector<4x16x256xbf16>
    %30 = vector.shape_cast %29 : vector<4x16x256xbf16> to vector<64x256xbf16>
    %c0_13 = arith.constant 0 : index
    %c0_14 = arith.constant 0 : index
    %31 = vector.load %arg2[%c0_13, %c0_14] : memref<256x128xbf16, #tpu.memory_space<vmem>>, vector<256x128xbf16>
    %cst_15 = arith.constant dense<0.000000e+00> : vector<64x128xf32>
    %32 = tpu.matmul %30, %31, %cst_15 {dimension_numbers = #tpu.dot_dimension_numbers<[1], [0], [0], [1], [0, 0, 1, 1], [], []>} : vector<64x256xbf16>, vector<256x128xbf16>, vector<64x128xf32> -> vector<64x128xf32>
    %c0_16 = arith.constant 0 : index
    %c0_17 = arith.constant 0 : index
    %33 = vector.load %arg3[%c0_16, %c0_17] : memref<1x128xf32, #tpu.memory_space<vmem>>, vector<1x128xf32>
    %34 = vector.broadcast %33 : vector<1x128xf32> to vector<64x128xf32>
    %35 = arith.mulf %32, %34 : vector<64x128xf32>
    %c0_18 = arith.constant 0 : index
    %c0_19 = arith.constant 0 : index
    %36 = vector.load %arg4[%c0_18, %c0_19] : memref<1x128xf32, #tpu.memory_space<vmem>>, vector<1x128xf32>
    %37 = vector.broadcast %36 : vector<1x128xf32> to vector<64x128xf32>
    %38 = arith.addf %35, %37 : vector<64x128xf32>
    %cst_20 = arith.constant 0.166666672 : f32
    %39 = vector.broadcast %cst_20 : f32 to vector<64x128xf32>
    %40 = arith.mulf %38, %39 : vector<64x128xf32>
    %cst_21 = arith.constant 5.000000e-01 : f32
    %41 = vector.broadcast %cst_21 : f32 to vector<64x128xf32>
    %42 = arith.addf %40, %41 : vector<64x128xf32>
    %cst_22 = arith.constant 0.000000e+00 : f32
    %cst_23 = arith.constant 1.000000e+00 : f32
    %43 = vector.broadcast %cst_22 : f32 to vector<64x128xf32>
    %44 = arith.maximumf %43, %42 : vector<64x128xf32>
    %45 = vector.broadcast %cst_23 : f32 to vector<64x128xf32>
    %46 = arith.minimumf %45, %44 : vector<64x128xf32>
    %47 = arith.mulf %38, %46 : vector<64x128xf32>
    %c1_i32_24 = arith.constant 1 : i32
    %48 = tpu.dynamic_rotate %47 by %c1_i32_24 dim 0 : vector<64x128xf32>, i32 -> vector<64x128xf32>
    %cst_25 = arith.constant 0.000000e+00 : f32
    %49 = vector.shape_cast %25 : vector<64x1xi1> to vector<64x1xi1>
    %50 = vector.broadcast %49 : vector<64x1xi1> to vector<64x128xi1>
    %51 = vector.broadcast %cst_25 : f32 to vector<64x128xf32>
    %52 = arith.select %50, %48, %51 : vector<64x128xi1>, vector<64x128xf32>
    %53 = arith.truncf %52 : vector<64x128xf32> to vector<64x128xbf16>
    %c16 = arith.constant 16 : index
    %c0_26 = arith.constant 0 : index
    %54 = vector.load %arg9[%c16, %c0_26] : memref<256x1152xbf16, #tpu.memory_space<vmem>>, vector<64x128xbf16>
    tpu.vector_store %arg9[%c16, %c0_26], %53 {strides = array<i32>} : memref<256x1152xbf16, #tpu.memory_space<vmem>>, vector<64x128xbf16>,
    %c0_27 = arith.constant 0 : index
    %c384 = arith.constant 384 : index
    %55 = vector.load %arg9[%c0_27, %c384] : memref<256x1152xbf16, #tpu.memory_space<vmem>>, vector<64x128xbf16>
    tpu.vector_store %arg9[%c0_27, %c384], %53 {strides = array<i32>} : memref<256x1152xbf16, #tpu.memory_space<vmem>>, vector<64x128xbf16>,
    %56 = vector.extract_strided_slice %53 {offsets = [16, 0], sizes = [48, 128], strides = [1, 1]} : vector<64x128xbf16> to vector<48x128xbf16>
    %c0_28 = arith.constant 0 : index
    %c768_29 = arith.constant 768 : index
    %57 = vector.load %arg9[%c0_28, %c768_29] : memref<256x1152xbf16, #tpu.memory_space<vmem>>, vector<48x128xbf16>
    tpu.vector_store %arg9[%c0_28, %c768_29], %56 {strides = array<i32>} : memref<256x1152xbf16, #tpu.memory_space<vmem>>, vector<48x128xbf16>,
    %58 = arith.truncf %47 : vector<64x128xf32> to vector<64x128xbf16>
    %c16_30 = arith.constant 16 : index
    %c128_31 = arith.constant 128 : index
    %59 = vector.load %arg9[%c16_30, %c128_31] : memref<256x1152xbf16, #tpu.memory_space<vmem>>, vector<64x128xbf16>
    tpu.vector_store %arg9[%c16_30, %c128_31], %58 {strides = array<i32>} : memref<256x1152xbf16, #tpu.memory_space<vmem>>, vector<64x128xbf16>,
    %c0_32 = arith.constant 0 : index
    %c512 = arith.constant 512 : index
    %60 = vector.load %arg9[%c0_32, %c512] : memref<256x1152xbf16, #tpu.memory_space<vmem>>, vector<64x128xbf16>
    tpu.vector_store %arg9[%c0_32, %c512], %58 {strides = array<i32>} : memref<256x1152xbf16, #tpu.memory_space<vmem>>, vector<64x128xbf16>,
    %61 = vector.extract_strided_slice %58 {offsets = [16, 0], sizes = [48, 128], strides = [1, 1]} : vector<64x128xbf16> to vector<48x128xbf16>
    %c0_33 = arith.constant 0 : index
    %c896_34 = arith.constant 896 : index
    %62 = vector.load %arg9[%c0_33, %c896_34] : memref<256x1152xbf16, #tpu.memory_space<vmem>>, vector<48x128xbf16>
    tpu.vector_store %arg9[%c0_33, %c896_34], %61 {strides = array<i32>} : memref<256x1152xbf16, #tpu.memory_space<vmem>>, vector<48x128xbf16>,
    %c63_i32 = arith.constant 63 : i32
    %63 = tpu.dynamic_rotate %47 by %c63_i32 dim 0 : vector<64x128xf32>, i32 -> vector<64x128xf32>
    %cst_35 = arith.constant 0.000000e+00 : f32
    %64 = vector.shape_cast %27 : vector<64x1xi1> to vector<64x1xi1>
    %65 = vector.broadcast %64 : vector<64x1xi1> to vector<64x128xi1>
    %66 = vector.broadcast %cst_35 : f32 to vector<64x128xf32>
    %67 = arith.select %65, %63, %66 : vector<64x128xi1>, vector<64x128xf32>
    %68 = arith.truncf %67 : vector<64x128xf32> to vector<64x128xbf16>
    %c16_36 = arith.constant 16 : index
    %c256_37 = arith.constant 256 : index
    %69 = vector.load %arg9[%c16_36, %c256_37] : memref<256x1152xbf16, #tpu.memory_space<vmem>>, vector<64x128xbf16>
    tpu.vector_store %arg9[%c16_36, %c256_37], %68 {strides = array<i32>} : memref<256x1152xbf16, #tpu.memory_space<vmem>>, vector<64x128xbf16>,
    %c0_38 = arith.constant 0 : index
    %c640 = arith.constant 640 : index
    %70 = vector.load %arg9[%c0_38, %c640] : memref<256x1152xbf16, #tpu.memory_space<vmem>>, vector<64x128xbf16>
    tpu.vector_store %arg9[%c0_38, %c640], %68 {strides = array<i32>} : memref<256x1152xbf16, #tpu.memory_space<vmem>>, vector<64x128xbf16>,
    %71 = vector.extract_strided_slice %68 {offsets = [16, 0], sizes = [48, 128], strides = [1, 1]} : vector<64x128xbf16> to vector<48x128xbf16>
    %c0_39 = arith.constant 0 : index
    %c1024_40 = arith.constant 1024 : index
    %72 = vector.load %arg9[%c0_39, %c1024_40] : memref<256x1152xbf16, #tpu.memory_space<vmem>>, vector<48x128xbf16>
    tpu.vector_store %arg9[%c0_39, %c1024_40], %71 {strides = array<i32>} : memref<256x1152xbf16, #tpu.memory_space<vmem>>, vector<48x128xbf16>,
    %c0_41 = arith.constant 0 : index
    %c4 = arith.constant 4 : index
    %c0_42 = arith.constant 0 : index
    %c0_43 = arith.constant 0 : index
    %73 = vector.load %arg1[%c0_41, %c4, %c0_42, %c0_43] : memref<1x16x16x256xbf16, #tpu.memory_space<vmem>>, vector<1x4x16x256xbf16>
    %74 = vector.shape_cast %73 : vector<1x4x16x256xbf16> to vector<4x16x256xbf16>
    %75 = vector.shape_cast %74 : vector<4x16x256xbf16> to vector<64x256xbf16>
    %c0_44 = arith.constant 0 : index
    %c0_45 = arith.constant 0 : index
    %76 = vector.load %arg2[%c0_44, %c0_45] : memref<256x128xbf16, #tpu.memory_space<vmem>>, vector<256x128xbf16>
    %cst_46 = arith.constant dense<0.000000e+00> : vector<64x128xf32>
    %77 = tpu.matmul %75, %76, %cst_46 {dimension_numbers = #tpu.dot_dimension_numbers<[1], [0], [0], [1], [0, 0, 1, 1], [], []>} : vector<64x256xbf16>, vector<256x128xbf16>, vector<64x128xf32> -> vector<64x128xf32>
    %c0_47 = arith.constant 0 : index
    %c0_48 = arith.constant 0 : index
    %78 = vector.load %arg3[%c0_47, %c0_48] : memref<1x128xf32, #tpu.memory_space<vmem>>, vector<1x128xf32>
    %79 = vector.broadcast %78 : vector<1x128xf32> to vector<64x128xf32>
    %80 = arith.mulf %77, %79 : vector<64x128xf32>
    %c0_49 = arith.constant 0 : index
    %c0_50 = arith.constant 0 : index
    %81 = vector.load %arg4[%c0_49, %c0_50] : memref<1x128xf32, #tpu.memory_space<vmem>>, vector<1x128xf32>
    %82 = vector.broadcast %81 : vector<1x128xf32> to vector<64x128xf32>
    %83 = arith.addf %80, %82 : vector<64x128xf32>
    %cst_51 = arith.constant 0.166666672 : f32
    %84 = vector.broadcast %cst_51 : f32 to vector<64x128xf32>
    %85 = arith.mulf %83, %84 : vector<64x128xf32>
    %cst_52 = arith.constant 5.000000e-01 : f32
    %86 = vector.broadcast %cst_52 : f32 to vector<64x128xf32>
    %87 = arith.addf %85, %86 : vector<64x128xf32>
    %cst_53 = arith.constant 0.000000e+00 : f32
    %cst_54 = arith.constant 1.000000e+00 : f32
    %88 = vector.broadcast %cst_53 : f32 to vector<64x128xf32>
    %89 = arith.maximumf %88, %87 : vector<64x128xf32>
    %90 = vector.broadcast %cst_54 : f32 to vector<64x128xf32>
    %91 = arith.minimumf %90, %89 : vector<64x128xf32>
    %92 = arith.mulf %83, %91 : vector<64x128xf32>
    %c1_i32_55 = arith.constant 1 : i32
    %93 = tpu.dynamic_rotate %92 by %c1_i32_55 dim 0 : vector<64x128xf32>, i32 -> vector<64x128xf32>
    %cst_56 = arith.constant 0.000000e+00 : f32
    %94 = vector.shape_cast %25 : vector<64x1xi1> to vector<64x1xi1>
    %95 = vector.broadcast %94 : vector<64x1xi1> to vector<64x128xi1>
    %96 = vector.broadcast %cst_56 : f32 to vector<64x128xf32>
    %97 = arith.select %95, %93, %96 : vector<64x128xi1>, vector<64x128xf32>
    %98 = arith.truncf %97 : vector<64x128xf32> to vector<64x128xbf16>
    %c80 = arith.constant 80 : index
    %c0_57 = arith.constant 0 : index
    %99 = vector.load %arg9[%c80, %c0_57] : memref<256x1152xbf16, #tpu.memory_space<vmem>>, vector<64x128xbf16>
    tpu.vector_store %arg9[%c80, %c0_57], %98 {strides = array<i32>} : memref<256x1152xbf16, #tpu.memory_space<vmem>>, vector<64x128xbf16>,
    %c64 = arith.constant 64 : index
    %c384_58 = arith.constant 384 : index
    %100 = vector.load %arg9[%c64, %c384_58] : memref<256x1152xbf16, #tpu.memory_space<vmem>>, vector<64x128xbf16>
    tpu.vector_store %arg9[%c64, %c384_58], %98 {strides = array<i32>} : memref<256x1152xbf16, #tpu.memory_space<vmem>>, vector<64x128xbf16>,
    %c48 = arith.constant 48 : index
    %c768_59 = arith.constant 768 : index
    %101 = vector.load %arg9[%c48, %c768_59] : memref<256x1152xbf16, #tpu.memory_space<vmem>>, vector<64x128xbf16>
    tpu.vector_store %arg9[%c48, %c768_59], %98 {strides = array<i32>} : memref<256x1152xbf16, #tpu.memory_space<vmem>>, vector<64x128xbf16>,
    %102 = arith.truncf %92 : vector<64x128xf32> to vector<64x128xbf16>
    %c80_60 = arith.constant 80 : index
    %c128_61 = arith.constant 128 : index
    %103 = vector.load %arg9[%c80_60, %c128_61] : memref<256x1152xbf16, #tpu.memory_space<vmem>>, vector<64x128xbf16>
    tpu.vector_store %arg9[%c80_60, %c128_61], %102 {strides = array<i32>} : memref<256x1152xbf16, #tpu.memory_space<vmem>>, vector<64x128xbf16>,
    %c64_62 = arith.constant 64 : index
    %c512_63 = arith.constant 512 : index
    %104 = vector.load %arg9[%c64_62, %c512_63] : memref<256x1152xbf16, #tpu.memory_space<vmem>>, vector<64x128xbf16>
    tpu.vector_store %arg9[%c64_62, %c512_63], %102 {strides = array<i32>} : memref<256x1152xbf16, #tpu.memory_space<vmem>>, vector<64x128xbf16>,
    %c48_64 = arith.constant 48 : index
    %c896_65 = arith.constant 896 : index
    %105 = vector.load %arg9[%c48_64, %c896_65] : memref<256x1152xbf16, #tpu.memory_space<vmem>>, vector<64x128xbf16>
    tpu.vector_store %arg9[%c48_64, %c896_65], %102 {strides = array<i32>} : memref<256x1152xbf16, #tpu.memory_space<vmem>>, vector<64x128xbf16>,
    %c63_i32_66 = arith.constant 63 : i32
    %106 = tpu.dynamic_rotate %92 by %c63_i32_66 dim 0 : vector<64x128xf32>, i32 -> vector<64x128xf32>
    %cst_67 = arith.constant 0.000000e+00 : f32
    %107 = vector.shape_cast %27 : vector<64x1xi1> to vector<64x1xi1>
    %108 = vector.broadcast %107 : vector<64x1xi1> to vector<64x128xi1>
    %109 = vector.broadcast %cst_67 : f32 to vector<64x128xf32>
    %110 = arith.select %108, %106, %109 : vector<64x128xi1>, vector<64x128xf32>
    %111 = arith.truncf %110 : vector<64x128xf32> to vector<64x128xbf16>
    %c80_68 = arith.constant 80 : index
    %c256_69 = arith.constant 256 : index
    %112 = vector.load %arg9[%c80_68, %c256_69] : memref<256x1152xbf16, #tpu.memory_space<vmem>>, vector<64x128xbf16>
    tpu.vector_store %arg9[%c80_68, %c256_69], %111 {strides = array<i32>} : memref<256x1152xbf16, #tpu.memory_space<vmem>>, vector<64x128xbf16>,
    %c64_70 = arith.constant 64 : index
    %c640_71 = arith.constant 640 : index
    %113 = vector.load %arg9[%c64_70, %c640_71] : memref<256x1152xbf16, #tpu.memory_space<vmem>>, vector<64x128xbf16>
    tpu.vector_store %arg9[%c64_70, %c640_71], %111 {strides = array<i32>} : memref<256x1152xbf16, #tpu.memory_space<vmem>>, vector<64x128xbf16>,
    %c48_72 = arith.constant 48 : index
    %c1024_73 = arith.constant 1024 : index
    %114 = vector.load %arg9[%c48_72, %c1024_73] : memref<256x1152xbf16, #tpu.memory_space<vmem>>, vector<64x128xbf16>
    tpu.vector_store %arg9[%c48_72, %c1024_73], %111 {strides = array<i32>} : memref<256x1152xbf16, #tpu.memory_space<vmem>>, vector<64x128xbf16>,
    %c0_74 = arith.constant 0 : index
    %c8 = arith.constant 8 : index
    %c0_75 = arith.constant 0 : index
    %c0_76 = arith.constant 0 : index
    %115 = vector.load %arg1[%c0_74, %c8, %c0_75, %c0_76] : memref<1x16x16x256xbf16, #tpu.memory_space<vmem>>, vector<1x4x16x256xbf16>
    %116 = vector.shape_cast %115 : vector<1x4x16x256xbf16> to vector<4x16x256xbf16>
    %117 = vector.shape_cast %116 : vector<4x16x256xbf16> to vector<64x256xbf16>
    %c0_77 = arith.constant 0 : index
    %c0_78 = arith.constant 0 : index
    %118 = vector.load %arg2[%c0_77, %c0_78] : memref<256x128xbf16, #tpu.memory_space<vmem>>, vector<256x128xbf16>
    %cst_79 = arith.constant dense<0.000000e+00> : vector<64x128xf32>
    %119 = tpu.matmul %117, %118, %cst_79 {dimension_numbers = #tpu.dot_dimension_numbers<[1], [0], [0], [1], [0, 0, 1, 1], [], []>} : vector<64x256xbf16>, vector<256x128xbf16>, vector<64x128xf32> -> vector<64x128xf32>
    %c0_80 = arith.constant 0 : index
    %c0_81 = arith.constant 0 : index
    %120 = vector.load %arg3[%c0_80, %c0_81] : memref<1x128xf32, #tpu.memory_space<vmem>>, vector<1x128xf32>
    %121 = vector.broadcast %120 : vector<1x128xf32> to vector<64x128xf32>
    %122 = arith.mulf %119, %121 : vector<64x128xf32>
    %c0_82 = arith.constant 0 : index
    %c0_83 = arith.constant 0 : index
    %123 = vector.load %arg4[%c0_82, %c0_83] : memref<1x128xf32, #tpu.memory_space<vmem>>, vector<1x128xf32>
    %124 = vector.broadcast %123 : vector<1x128xf32> to vector<64x128xf32>
    %125 = arith.addf %122, %124 : vector<64x128xf32>
    %cst_84 = arith.constant 0.166666672 : f32
    %126 = vector.broadcast %cst_84 : f32 to vector<64x128xf32>
    %127 = arith.mulf %125, %126 : vector<64x128xf32>
    %cst_85 = arith.constant 5.000000e-01 : f32
    %128 = vector.broadcast %cst_85 : f32 to vector<64x128xf32>
    %129 = arith.addf %127, %128 : vector<64x128xf32>
    %cst_86 = arith.constant 0.000000e+00 : f32
    %cst_87 = arith.constant 1.000000e+00 : f32
    %130 = vector.broadcast %cst_86 : f32 to vector<64x128xf32>
    %131 = arith.maximumf %130, %129 : vector<64x128xf32>
    %132 = vector.broadcast %cst_87 : f32 to vector<64x128xf32>
    %133 = arith.minimumf %132, %131 : vector<64x128xf32>
    %134 = arith.mulf %125, %133 : vector<64x128xf32>
    %c1_i32_88 = arith.constant 1 : i32
    %135 = tpu.dynamic_rotate %134 by %c1_i32_88 dim 0 : vector<64x128xf32>, i32 -> vector<64x128xf32>
    %cst_89 = arith.constant 0.000000e+00 : f32
    %136 = vector.shape_cast %25 : vector<64x1xi1> to vector<64x1xi1>
    %137 = vector.broadcast %136 : vector<64x1xi1> to vector<64x128xi1>
    %138 = vector.broadcast %cst_89 : f32 to vector<64x128xf32>
    %139 = arith.select %137, %135, %138 : vector<64x128xi1>, vector<64x128xf32>
    %140 = arith.truncf %139 : vector<64x128xf32> to vector<64x128xbf16>
    %c144 = arith.constant 144 : index
    %c0_90 = arith.constant 0 : index
    %141 = vector.load %arg9[%c144, %c0_90] : memref<256x1152xbf16, #tpu.memory_space<vmem>>, vector<64x128xbf16>
    tpu.vector_store %arg9[%c144, %c0_90], %140 {strides = array<i32>} : memref<256x1152xbf16, #tpu.memory_space<vmem>>, vector<64x128xbf16>,
    %c128_91 = arith.constant 128 : index
    %c384_92 = arith.constant 384 : index
    %142 = vector.load %arg9[%c128_91, %c384_92] : memref<256x1152xbf16, #tpu.memory_space<vmem>>, vector<64x128xbf16>
    tpu.vector_store %arg9[%c128_91, %c384_92], %140 {strides = array<i32>} : memref<256x1152xbf16, #tpu.memory_space<vmem>>, vector<64x128xbf16>,
    %c112 = arith.constant 112 : index
    %c768_93 = arith.constant 768 : index
    %143 = vector.load %arg9[%c112, %c768_93] : memref<256x1152xbf16, #tpu.memory_space<vmem>>, vector<64x128xbf16>
    tpu.vector_store %arg9[%c112, %c768_93], %140 {strides = array<i32>} : memref<256x1152xbf16, #tpu.memory_space<vmem>>, vector<64x128xbf16>,
    %144 = arith.truncf %134 : vector<64x128xf32> to vector<64x128xbf16>
    %c144_94 = arith.constant 144 : index
    %c128_95 = arith.constant 128 : index
    %145 = vector.load %arg9[%c144_94, %c128_95] : memref<256x1152xbf16, #tpu.memory_space<vmem>>, vector<64x128xbf16>
    tpu.vector_store %arg9[%c144_94, %c128_95], %144 {strides = array<i32>} : memref<256x1152xbf16, #tpu.memory_space<vmem>>, vector<64x128xbf16>,
    %c128_96 = arith.constant 128 : index
    %c512_97 = arith.constant 512 : index
    %146 = vector.load %arg9[%c128_96, %c512_97] : memref<256x1152xbf16, #tpu.memory_space<vmem>>, vector<64x128xbf16>
    tpu.vector_store %arg9[%c128_96, %c512_97], %144 {strides = array<i32>} : memref<256x1152xbf16, #tpu.memory_space<vmem>>, vector<64x128xbf16>,
    %c112_98 = arith.constant 112 : index
    %c896_99 = arith.constant 896 : index
    %147 = vector.load %arg9[%c112_98, %c896_99] : memref<256x1152xbf16, #tpu.memory_space<vmem>>, vector<64x128xbf16>
    tpu.vector_store %arg9[%c112_98, %c896_99], %144 {strides = array<i32>} : memref<256x1152xbf16, #tpu.memory_space<vmem>>, vector<64x128xbf16>,
    %c63_i32_100 = arith.constant 63 : i32
    %148 = tpu.dynamic_rotate %134 by %c63_i32_100 dim 0 : vector<64x128xf32>, i32 -> vector<64x128xf32>
    %cst_101 = arith.constant 0.000000e+00 : f32
    %149 = vector.shape_cast %27 : vector<64x1xi1> to vector<64x1xi1>
    %150 = vector.broadcast %149 : vector<64x1xi1> to vector<64x128xi1>
    %151 = vector.broadcast %cst_101 : f32 to vector<64x128xf32>
    %152 = arith.select %150, %148, %151 : vector<64x128xi1>, vector<64x128xf32>
    %153 = arith.truncf %152 : vector<64x128xf32> to vector<64x128xbf16>
    %c144_102 = arith.constant 144 : index
    %c256_103 = arith.constant 256 : index
    %154 = vector.load %arg9[%c144_102, %c256_103] : memref<256x1152xbf16, #tpu.memory_space<vmem>>, vector<64x128xbf16>
    tpu.vector_store %arg9[%c144_102, %c256_103], %153 {strides = array<i32>} : memref<256x1152xbf16, #tpu.memory_space<vmem>>, vector<64x128xbf16>,
    %c128_104 = arith.constant 128 : index
    %c640_105 = arith.constant 640 : index
    %155 = vector.load %arg9[%c128_104, %c640_105] : memref<256x1152xbf16, #tpu.memory_space<vmem>>, vector<64x128xbf16>
    tpu.vector_store %arg9[%c128_104, %c640_105], %153 {strides = array<i32>} : memref<256x1152xbf16, #tpu.memory_space<vmem>>, vector<64x128xbf16>,
    %c112_106 = arith.constant 112 : index
    %c1024_107 = arith.constant 1024 : index
    %156 = vector.load %arg9[%c112_106, %c1024_107] : memref<256x1152xbf16, #tpu.memory_space<vmem>>, vector<64x128xbf16>
    tpu.vector_store %arg9[%c112_106, %c1024_107], %153 {strides = array<i32>} : memref<256x1152xbf16, #tpu.memory_space<vmem>>, vector<64x128xbf16>,
    %c0_108 = arith.constant 0 : index
    %c12 = arith.constant 12 : index
    %c0_109 = arith.constant 0 : index
    %c0_110 = arith.constant 0 : index
    %157 = vector.load %arg1[%c0_108, %c12, %c0_109, %c0_110] : memref<1x16x16x256xbf16, #tpu.memory_space<vmem>>, vector<1x4x16x256xbf16>
    %158 = vector.shape_cast %157 : vector<1x4x16x256xbf16> to vector<4x16x256xbf16>
    %159 = vector.shape_cast %158 : vector<4x16x256xbf16> to vector<64x256xbf16>
    %c0_111 = arith.constant 0 : index
    %c0_112 = arith.constant 0 : index
    %160 = vector.load %arg2[%c0_111, %c0_112] : memref<256x128xbf16, #tpu.memory_space<vmem>>, vector<256x128xbf16>
    %cst_113 = arith.constant dense<0.000000e+00> : vector<64x128xf32>
    %161 = tpu.matmul %159, %160, %cst_113 {dimension_numbers = #tpu.dot_dimension_numbers<[1], [0], [0], [1], [0, 0, 1, 1], [], []>} : vector<64x256xbf16>, vector<256x128xbf16>, vector<64x128xf32> -> vector<64x128xf32>
    %c0_114 = arith.constant 0 : index
    %c0_115 = arith.constant 0 : index
    %162 = vector.load %arg3[%c0_114, %c0_115] : memref<1x128xf32, #tpu.memory_space<vmem>>, vector<1x128xf32>
    %163 = vector.broadcast %162 : vector<1x128xf32> to vector<64x128xf32>
    %164 = arith.mulf %161, %163 : vector<64x128xf32>
    %c0_116 = arith.constant 0 : index
    %c0_117 = arith.constant 0 : index
    %165 = vector.load %arg4[%c0_116, %c0_117] : memref<1x128xf32, #tpu.memory_space<vmem>>, vector<1x128xf32>
    %166 = vector.broadcast %165 : vector<1x128xf32> to vector<64x128xf32>
    %167 = arith.addf %164, %166 : vector<64x128xf32>
    %cst_118 = arith.constant 0.166666672 : f32
    %168 = vector.broadcast %cst_118 : f32 to vector<64x128xf32>
    %169 = arith.mulf %167, %168 : vector<64x128xf32>
    %cst_119 = arith.constant 5.000000e-01 : f32
    %170 = vector.broadcast %cst_119 : f32 to vector<64x128xf32>
    %171 = arith.addf %169, %170 : vector<64x128xf32>
    %cst_120 = arith.constant 0.000000e+00 : f32
    %cst_121 = arith.constant 1.000000e+00 : f32
    %172 = vector.broadcast %cst_120 : f32 to vector<64x128xf32>
    %173 = arith.maximumf %172, %171 : vector<64x128xf32>
    %174 = vector.broadcast %cst_121 : f32 to vector<64x128xf32>
    %175 = arith.minimumf %174, %173 : vector<64x128xf32>
    %176 = arith.mulf %167, %175 : vector<64x128xf32>
    %c1_i32_122 = arith.constant 1 : i32
    %177 = tpu.dynamic_rotate %176 by %c1_i32_122 dim 0 : vector<64x128xf32>, i32 -> vector<64x128xf32>
    %cst_123 = arith.constant 0.000000e+00 : f32
    %178 = vector.shape_cast %25 : vector<64x1xi1> to vector<64x1xi1>
    %179 = vector.broadcast %178 : vector<64x1xi1> to vector<64x128xi1>
    %180 = vector.broadcast %cst_123 : f32 to vector<64x128xf32>
    %181 = arith.select %179, %177, %180 : vector<64x128xi1>, vector<64x128xf32>
    %182 = arith.truncf %181 : vector<64x128xf32> to vector<64x128xbf16>
    %183 = vector.extract_strided_slice %182 {offsets = [0, 0], sizes = [48, 128], strides = [1, 1]} : vector<64x128xbf16> to vector<48x128xbf16>
    %c208 = arith.constant 208 : index
    %c0_124 = arith.constant 0 : index
    %184 = vector.load %arg9[%c208, %c0_124] : memref<256x1152xbf16, #tpu.memory_space<vmem>>, vector<48x128xbf16>
    tpu.vector_store %arg9[%c208, %c0_124], %183 {strides = array<i32>} : memref<256x1152xbf16, #tpu.memory_space<vmem>>, vector<48x128xbf16>,
    %c192 = arith.constant 192 : index
    %c384_125 = arith.constant 384 : index
    %185 = vector.load %arg9[%c192, %c384_125] : memref<256x1152xbf16, #tpu.memory_space<vmem>>, vector<64x128xbf16>
    tpu.vector_store %arg9[%c192, %c384_125], %182 {strides = array<i32>} : memref<256x1152xbf16, #tpu.memory_space<vmem>>, vector<64x128xbf16>,
    %c176 = arith.constant 176 : index
    %c768_126 = arith.constant 768 : index
    %186 = vector.load %arg9[%c176, %c768_126] : memref<256x1152xbf16, #tpu.memory_space<vmem>>, vector<64x128xbf16>
    tpu.vector_store %arg9[%c176, %c768_126], %182 {strides = array<i32>} : memref<256x1152xbf16, #tpu.memory_space<vmem>>, vector<64x128xbf16>,
    %187 = arith.truncf %176 : vector<64x128xf32> to vector<64x128xbf16>
    %188 = vector.extract_strided_slice %187 {offsets = [0, 0], sizes = [48, 128], strides = [1, 1]} : vector<64x128xbf16> to vector<48x128xbf16>
    %c208_127 = arith.constant 208 : index
    %c128_128 = arith.constant 128 : index
    %189 = vector.load %arg9[%c208_127, %c128_128] : memref<256x1152xbf16, #tpu.memory_space<vmem>>, vector<48x128xbf16>
    tpu.vector_store %arg9[%c208_127, %c128_128], %188 {strides = array<i32>} : memref<256x1152xbf16, #tpu.memory_space<vmem>>, vector<48x128xbf16>,
    %c192_129 = arith.constant 192 : index
    %c512_130 = arith.constant 512 : index
    %190 = vector.load %arg9[%c192_129, %c512_130] : memref<256x1152xbf16, #tpu.memory_space<vmem>>, vector<64x128xbf16>
    tpu.vector_store %arg9[%c192_129, %c512_130], %187 {strides = array<i32>} : memref<256x1152xbf16, #tpu.memory_space<vmem>>, vector<64x128xbf16>,
    %c176_131 = arith.constant 176 : index
    %c896_132 = arith.constant 896 : index
    %191 = vector.load %arg9[%c176_131, %c896_132] : memref<256x1152xbf16, #tpu.memory_space<vmem>>, vector<64x128xbf16>
    tpu.vector_store %arg9[%c176_131, %c896_132], %187 {strides = array<i32>} : memref<256x1152xbf16, #tpu.memory_space<vmem>>, vector<64x128xbf16>,
    %c63_i32_133 = arith.constant 63 : i32
    %192 = tpu.dynamic_rotate %176 by %c63_i32_133 dim 0 : vector<64x128xf32>, i32 -> vector<64x128xf32>
    %cst_134 = arith.constant 0.000000e+00 : f32
    %193 = vector.shape_cast %27 : vector<64x1xi1> to vector<64x1xi1>
    %194 = vector.broadcast %193 : vector<64x1xi1> to vector<64x128xi1>
    %195 = vector.broadcast %cst_134 : f32 to vector<64x128xf32>
    %196 = arith.select %194, %192, %195 : vector<64x128xi1>, vector<64x128xf32>
    %197 = arith.truncf %196 : vector<64x128xf32> to vector<64x128xbf16>
    %198 = vector.extract_strided_slice %197 {offsets = [0, 0], sizes = [48, 128], strides = [1, 1]} : vector<64x128xbf16> to vector<48x128xbf16>
    %c208_135 = arith.constant 208 : index
    %c256_136 = arith.constant 256 : index
    %199 = vector.load %arg9[%c208_135, %c256_136] : memref<256x1152xbf16, #tpu.memory_space<vmem>>, vector<48x128xbf16>
    tpu.vector_store %arg9[%c208_135, %c256_136], %198 {strides = array<i32>} : memref<256x1152xbf16, #tpu.memory_space<vmem>>, vector<48x128xbf16>,
    %c192_137 = arith.constant 192 : index
    %c640_138 = arith.constant 640 : index
    %200 = vector.load %arg9[%c192_137, %c640_138] : memref<256x1152xbf16, #tpu.memory_space<vmem>>, vector<64x128xbf16>
    tpu.vector_store %arg9[%c192_137, %c640_138], %197 {strides = array<i32>} : memref<256x1152xbf16, #tpu.memory_space<vmem>>, vector<64x128xbf16>,
    %c176_139 = arith.constant 176 : index
    %c1024_140 = arith.constant 1024 : index
    %201 = vector.load %arg9[%c176_139, %c1024_140] : memref<256x1152xbf16, #tpu.memory_space<vmem>>, vector<64x128xbf16>
    tpu.vector_store %arg9[%c176_139, %c1024_140], %197 {strides = array<i32>} : memref<256x1152xbf16, #tpu.memory_space<vmem>>, vector<64x128xbf16>,
    %c0_141 = arith.constant 0 : index
    %c0_142 = arith.constant 0 : index
    %202 = vector.load %arg9[%c0_141, %c0_142] : memref<256x1152xbf16, #tpu.memory_space<vmem>>, vector<64x1152xbf16>
    %c0_143 = arith.constant 0 : index
    %c0_144 = arith.constant 0 : index
    %203 = vector.load %arg5[%c0_143, %c0_144] : memref<1152x256xbf16, #tpu.memory_space<vmem>>, vector<1152x256xbf16>
    %cst_145 = arith.constant dense<0.000000e+00> : vector<64x256xf32>
    %204 = tpu.matmul %202, %203, %cst_145 {dimension_numbers = #tpu.dot_dimension_numbers<[1], [0], [0], [1], [0, 0, 1, 1], [], []>} : vector<64x1152xbf16>, vector<1152x256xbf16>, vector<64x256xf32> -> vector<64x256xf32>
    %c0_146 = arith.constant 0 : index
    %c0_147 = arith.constant 0 : index
    %205 = vector.load %arg6[%c0_146, %c0_147] : memref<1x256xf32, #tpu.memory_space<vmem>>, vector<1x256xf32>
    %206 = vector.broadcast %205 : vector<1x256xf32> to vector<64x256xf32>
    %207 = arith.mulf %204, %206 : vector<64x256xf32>
    %c0_148 = arith.constant 0 : index
    %c0_149 = arith.constant 0 : index
    %208 = vector.load %arg7[%c0_148, %c0_149] : memref<1x256xf32, #tpu.memory_space<vmem>>, vector<1x256xf32>
    %209 = vector.broadcast %208 : vector<1x256xf32> to vector<64x256xf32>
    %210 = arith.addf %207, %209 : vector<64x256xf32>
    %cst_150 = arith.constant 0.166666672 : f32
    %211 = vector.broadcast %cst_150 : f32 to vector<64x256xf32>
    %212 = arith.mulf %210, %211 : vector<64x256xf32>
    %cst_151 = arith.constant 5.000000e-01 : f32
    %213 = vector.broadcast %cst_151 : f32 to vector<64x256xf32>
    %214 = arith.addf %212, %213 : vector<64x256xf32>
    %cst_152 = arith.constant 0.000000e+00 : f32
    %cst_153 = arith.constant 1.000000e+00 : f32
    %215 = vector.broadcast %cst_152 : f32 to vector<64x256xf32>
    %216 = arith.maximumf %215, %214 : vector<64x256xf32>
    %217 = vector.broadcast %cst_153 : f32 to vector<64x256xf32>
    %218 = arith.minimumf %217, %216 : vector<64x256xf32>
    %219 = arith.mulf %210, %218 : vector<64x256xf32>
    %c0_154 = arith.constant 0 : index
    %c0_155 = arith.constant 0 : index
    %c0_156 = arith.constant 0 : index
    %c0_157 = arith.constant 0 : index
    %220 = vector.load %arg1[%c0_154, %c0_155, %c0_156, %c0_157] : memref<1x16x16x256xbf16, #tpu.memory_space<vmem>>, vector<1x4x16x256xbf16>
    %221 = vector.shape_cast %220 : vector<1x4x16x256xbf16> to vector<4x16x256xbf16>
    %222 = vector.shape_cast %221 : vector<4x16x256xbf16> to vector<64x256xbf16>
    %223 = arith.extf %222 : vector<64x256xbf16> to vector<64x256xf32>
    %224 = arith.addf %219, %223 : vector<64x256xf32>
    %225 = vector.shape_cast %224 : vector<64x256xf32> to vector<4x16x256xf32>
    %c0_158 = arith.constant 0 : index
    %c0_159 = arith.constant 0 : index
    %c0_160 = arith.constant 0 : index
    %c0_161 = arith.constant 0 : index
    %226 = vector.load %arg8[%c0_158, %c0_159, %c0_160, %c0_161] : memref<1x16x16x256xf32, #tpu.memory_space<vmem>>, vector<1x4x16x256xf32>
    %227 = vector.shape_cast %226 : vector<1x4x16x256xf32> to vector<4x16x256xf32>
    %228 = vector.shape_cast %225 : vector<4x16x256xf32> to vector<1x4x16x256xf32>
    tpu.vector_store %arg8[%c0_158, %c0_159, %c0_160, %c0_161], %228 {strides = array<i32>} : memref<1x16x16x256xf32, #tpu.memory_space<vmem>>, vector<1x4x16x256xf32>,
    %c64_162 = arith.constant 64 : index
    %c0_163 = arith.constant 0 : index
    %229 = vector.load %arg9[%c64_162, %c0_163] : memref<256x1152xbf16, #tpu.memory_space<vmem>>, vector<64x1152xbf16>
    %c0_164 = arith.constant 0 : index
    %c0_165 = arith.constant 0 : index
    %230 = vector.load %arg5[%c0_164, %c0_165] : memref<1152x256xbf16, #tpu.memory_space<vmem>>, vector<1152x256xbf16>
    %cst_166 = arith.constant dense<0.000000e+00> : vector<64x256xf32>
    %231 = tpu.matmul %229, %230, %cst_166 {dimension_numbers = #tpu.dot_dimension_numbers<[1], [0], [0], [1], [0, 0, 1, 1], [], []>} : vector<64x1152xbf16>, vector<1152x256xbf16>, vector<64x256xf32> -> vector<64x256xf32>
    %c0_167 = arith.constant 0 : index
    %c0_168 = arith.constant 0 : index
    %232 = vector.load %arg6[%c0_167, %c0_168] : memref<1x256xf32, #tpu.memory_space<vmem>>, vector<1x256xf32>
    %233 = vector.broadcast %232 : vector<1x256xf32> to vector<64x256xf32>
    %234 = arith.mulf %231, %233 : vector<64x256xf32>
    %c0_169 = arith.constant 0 : index
    %c0_170 = arith.constant 0 : index
    %235 = vector.load %arg7[%c0_169, %c0_170] : memref<1x256xf32, #tpu.memory_space<vmem>>, vector<1x256xf32>
    %236 = vector.broadcast %235 : vector<1x256xf32> to vector<64x256xf32>
    %237 = arith.addf %234, %236 : vector<64x256xf32>
    %cst_171 = arith.constant 0.166666672 : f32
    %238 = vector.broadcast %cst_171 : f32 to vector<64x256xf32>
    %239 = arith.mulf %237, %238 : vector<64x256xf32>
    %cst_172 = arith.constant 5.000000e-01 : f32
    %240 = vector.broadcast %cst_172 : f32 to vector<64x256xf32>
    %241 = arith.addf %239, %240 : vector<64x256xf32>
    %cst_173 = arith.constant 0.000000e+00 : f32
    %cst_174 = arith.constant 1.000000e+00 : f32
    %242 = vector.broadcast %cst_173 : f32 to vector<64x256xf32>
    %243 = arith.maximumf %242, %241 : vector<64x256xf32>
    %244 = vector.broadcast %cst_174 : f32 to vector<64x256xf32>
    %245 = arith.minimumf %244, %243 : vector<64x256xf32>
    %246 = arith.mulf %237, %245 : vector<64x256xf32>
    %c0_175 = arith.constant 0 : index
    %c4_176 = arith.constant 4 : index
    %c0_177 = arith.constant 0 : index
    %c0_178 = arith.constant 0 : index
    %247 = vector.load %arg1[%c0_175, %c4_176, %c0_177, %c0_178] : memref<1x16x16x256xbf16, #tpu.memory_space<vmem>>, vector<1x4x16x256xbf16>
    %248 = vector.shape_cast %247 : vector<1x4x16x256xbf16> to vector<4x16x256xbf16>
    %249 = vector.shape_cast %248 : vector<4x16x256xbf16> to vector<64x256xbf16>
    %250 = arith.extf %249 : vector<64x256xbf16> to vector<64x256xf32>
    %251 = arith.addf %246, %250 : vector<64x256xf32>
    %252 = vector.shape_cast %251 : vector<64x256xf32> to vector<4x16x256xf32>
    %c0_179 = arith.constant 0 : index
    %c4_180 = arith.constant 4 : index
    %c0_181 = arith.constant 0 : index
    %c0_182 = arith.constant 0 : index
    %253 = vector.load %arg8[%c0_179, %c4_180, %c0_181, %c0_182] : memref<1x16x16x256xf32, #tpu.memory_space<vmem>>, vector<1x4x16x256xf32>
    %254 = vector.shape_cast %253 : vector<1x4x16x256xf32> to vector<4x16x256xf32>
    %255 = vector.shape_cast %252 : vector<4x16x256xf32> to vector<1x4x16x256xf32>
    tpu.vector_store %arg8[%c0_179, %c4_180, %c0_181, %c0_182], %255 {strides = array<i32>} : memref<1x16x16x256xf32, #tpu.memory_space<vmem>>, vector<1x4x16x256xf32>,
    %c128_183 = arith.constant 128 : index
    %c0_184 = arith.constant 0 : index
    %256 = vector.load %arg9[%c128_183, %c0_184] : memref<256x1152xbf16, #tpu.memory_space<vmem>>, vector<64x1152xbf16>
    %c0_185 = arith.constant 0 : index
    %c0_186 = arith.constant 0 : index
    %257 = vector.load %arg5[%c0_185, %c0_186] : memref<1152x256xbf16, #tpu.memory_space<vmem>>, vector<1152x256xbf16>
    %cst_187 = arith.constant dense<0.000000e+00> : vector<64x256xf32>
    %258 = tpu.matmul %256, %257, %cst_187 {dimension_numbers = #tpu.dot_dimension_numbers<[1], [0], [0], [1], [0, 0, 1, 1], [], []>} : vector<64x1152xbf16>, vector<1152x256xbf16>, vector<64x256xf32> -> vector<64x256xf32>
    %c0_188 = arith.constant 0 : index
    %c0_189 = arith.constant 0 : index
    %259 = vector.load %arg6[%c0_188, %c0_189] : memref<1x256xf32, #tpu.memory_space<vmem>>, vector<1x256xf32>
    %260 = vector.broadcast %259 : vector<1x256xf32> to vector<64x256xf32>
    %261 = arith.mulf %258, %260 : vector<64x256xf32>
    %c0_190 = arith.constant 0 : index
    %c0_191 = arith.constant 0 : index
    %262 = vector.load %arg7[%c0_190, %c0_191] : memref<1x256xf32, #tpu.memory_space<vmem>>, vector<1x256xf32>
    %263 = vector.broadcast %262 : vector<1x256xf32> to vector<64x256xf32>
    %264 = arith.addf %261, %263 : vector<64x256xf32>
    %cst_192 = arith.constant 0.166666672 : f32
    %265 = vector.broadcast %cst_192 : f32 to vector<64x256xf32>
    %266 = arith.mulf %264, %265 : vector<64x256xf32>
    %cst_193 = arith.constant 5.000000e-01 : f32
    %267 = vector.broadcast %cst_193 : f32 to vector<64x256xf32>
    %268 = arith.addf %266, %267 : vector<64x256xf32>
    %cst_194 = arith.constant 0.000000e+00 : f32
    %cst_195 = arith.constant 1.000000e+00 : f32
    %269 = vector.broadcast %cst_194 : f32 to vector<64x256xf32>
    %270 = arith.maximumf %269, %268 : vector<64x256xf32>
    %271 = vector.broadcast %cst_195 : f32 to vector<64x256xf32>
    %272 = arith.minimumf %271, %270 : vector<64x256xf32>
    %273 = arith.mulf %264, %272 : vector<64x256xf32>
    %c0_196 = arith.constant 0 : index
    %c8_197 = arith.constant 8 : index
    %c0_198 = arith.constant 0 : index
    %c0_199 = arith.constant 0 : index
    %274 = vector.load %arg1[%c0_196, %c8_197, %c0_198, %c0_199] : memref<1x16x16x256xbf16, #tpu.memory_space<vmem>>, vector<1x4x16x256xbf16>
    %275 = vector.shape_cast %274 : vector<1x4x16x256xbf16> to vector<4x16x256xbf16>
    %276 = vector.shape_cast %275 : vector<4x16x256xbf16> to vector<64x256xbf16>
    %277 = arith.extf %276 : vector<64x256xbf16> to vector<64x256xf32>
    %278 = arith.addf %273, %277 : vector<64x256xf32>
    %279 = vector.shape_cast %278 : vector<64x256xf32> to vector<4x16x256xf32>
    %c0_200 = arith.constant 0 : index
    %c8_201 = arith.constant 8 : index
    %c0_202 = arith.constant 0 : index
    %c0_203 = arith.constant 0 : index
    %280 = vector.load %arg8[%c0_200, %c8_201, %c0_202, %c0_203] : memref<1x16x16x256xf32, #tpu.memory_space<vmem>>, vector<1x4x16x256xf32>
    %281 = vector.shape_cast %280 : vector<1x4x16x256xf32> to vector<4x16x256xf32>
    %282 = vector.shape_cast %279 : vector<4x16x256xf32> to vector<1x4x16x256xf32>
    tpu.vector_store %arg8[%c0_200, %c8_201, %c0_202, %c0_203], %282 {strides = array<i32>} : memref<1x16x16x256xf32, #tpu.memory_space<vmem>>, vector<1x4x16x256xf32>,
    %c192_204 = arith.constant 192 : index
    %c0_205 = arith.constant 0 : index
    %283 = vector.load %arg9[%c192_204, %c0_205] : memref<256x1152xbf16, #tpu.memory_space<vmem>>, vector<64x1152xbf16>
    %c0_206 = arith.constant 0 : index
    %c0_207 = arith.constant 0 : index
    %284 = vector.load %arg5[%c0_206, %c0_207] : memref<1152x256xbf16, #tpu.memory_space<vmem>>, vector<1152x256xbf16>
    %cst_208 = arith.constant dense<0.000000e+00> : vector<64x256xf32>
    %285 = tpu.matmul %283, %284, %cst_208 {dimension_numbers = #tpu.dot_dimension_numbers<[1], [0], [0], [1], [0, 0, 1, 1], [], []>} : vector<64x1152xbf16>, vector<1152x256xbf16>, vector<64x256xf32> -> vector<64x256xf32>
    %c0_209 = arith.constant 0 : index
    %c0_210 = arith.constant 0 : index
    %286 = vector.load %arg6[%c0_209, %c0_210] : memref<1x256xf32, #tpu.memory_space<vmem>>, vector<1x256xf32>
    %287 = vector.broadcast %286 : vector<1x256xf32> to vector<64x256xf32>
    %288 = arith.mulf %285, %287 : vector<64x256xf32>
    %c0_211 = arith.constant 0 : index
    %c0_212 = arith.constant 0 : index
    %289 = vector.load %arg7[%c0_211, %c0_212] : memref<1x256xf32, #tpu.memory_space<vmem>>, vector<1x256xf32>
    %290 = vector.broadcast %289 : vector<1x256xf32> to vector<64x256xf32>
    %291 = arith.addf %288, %290 : vector<64x256xf32>
    %cst_213 = arith.constant 0.166666672 : f32
    %292 = vector.broadcast %cst_213 : f32 to vector<64x256xf32>
    %293 = arith.mulf %291, %292 : vector<64x256xf32>
    %cst_214 = arith.constant 5.000000e-01 : f32
    %294 = vector.broadcast %cst_214 : f32 to vector<64x256xf32>
    %295 = arith.addf %293, %294 : vector<64x256xf32>
    %cst_215 = arith.constant 0.000000e+00 : f32
    %cst_216 = arith.constant 1.000000e+00 : f32
    %296 = vector.broadcast %cst_215 : f32 to vector<64x256xf32>
    %297 = arith.maximumf %296, %295 : vector<64x256xf32>
    %298 = vector.broadcast %cst_216 : f32 to vector<64x256xf32>
    %299 = arith.minimumf %298, %297 : vector<64x256xf32>
    %300 = arith.mulf %291, %299 : vector<64x256xf32>
    %c0_217 = arith.constant 0 : index
    %c12_218 = arith.constant 12 : index
    %c0_219 = arith.constant 0 : index
    %c0_220 = arith.constant 0 : index
    %301 = vector.load %arg1[%c0_217, %c12_218, %c0_219, %c0_220] : memref<1x16x16x256xbf16, #tpu.memory_space<vmem>>, vector<1x4x16x256xbf16>
    %302 = vector.shape_cast %301 : vector<1x4x16x256xbf16> to vector<4x16x256xbf16>
    %303 = vector.shape_cast %302 : vector<4x16x256xbf16> to vector<64x256xbf16>
    %304 = arith.extf %303 : vector<64x256xbf16> to vector<64x256xf32>
    %305 = arith.addf %300, %304 : vector<64x256xf32>
    %306 = vector.shape_cast %305 : vector<64x256xf32> to vector<4x16x256xf32>
    %c0_221 = arith.constant 0 : index
    %c12_222 = arith.constant 12 : index
    %c0_223 = arith.constant 0 : index
    %c0_224 = arith.constant 0 : index
    %307 = vector.load %arg8[%c0_221, %c12_222, %c0_223, %c0_224] : memref<1x16x16x256xf32, #tpu.memory_space<vmem>>, vector<1x4x16x256xf32>
    %308 = vector.shape_cast %307 : vector<1x4x16x256xf32> to vector<4x16x256xf32>
    %309 = vector.shape_cast %306 : vector<4x16x256xf32> to vector<1x4x16x256xf32>
    tpu.vector_store %arg8[%c0_221, %c12_222, %c0_223, %c0_224], %309 {strides = array<i32>} : memref<1x16x16x256xf32, #tpu.memory_space<vmem>>, vector<1x4x16x256xf32>,
    return
  }
  func.func @transform_0(%arg0: i32) -> (i32, i32, i32, i32) {
    %c0_i32 = arith.constant 0 : i32
    %c0_i32_0 = arith.constant 0 : i32
    %c0_i32_1 = arith.constant 0 : i32
    %c0_i32_2 = arith.constant 0 : i32
    return %arg0, %c0_i32, %c0_i32_0, %c0_i32_1 : i32, i32, i32, i32
  }
  func.func @transform_1(%arg0: i32) -> (i32, i32) {
    %c0_i32 = arith.constant 0 : i32
    %c0_i32_0 = arith.constant 0 : i32
    %c0_i32_1 = arith.constant 0 : i32
    return %c0_i32, %c0_i32_0 : i32, i32
  }
  func.func @transform_2(%arg0: i32) -> (i32, i32) {
    %c0_i32 = arith.constant 0 : i32
    %c0_i32_0 = arith.constant 0 : i32
    %c0_i32_1 = arith.constant 0 : i32
    return %c0_i32, %c0_i32_0 : i32, i32
  }
  func.func @transform_3(%arg0: i32) -> (i32, i32) {
    %c0_i32 = arith.constant 0 : i32
    %c0_i32_0 = arith.constant 0 : i32
    %c0_i32_1 = arith.constant 0 : i32
    return %c0_i32, %c0_i32_0 : i32, i32
  }
  func.func @transform_4(%arg0: i32) -> (i32, i32) {
    %c0_i32 = arith.constant 0 : i32
    %c0_i32_0 = arith.constant 0 : i32
    %c0_i32_1 = arith.constant 0 : i32
    return %c0_i32, %c0_i32_0 : i32, i32
  }
  func.func @transform_5(%arg0: i32) -> (i32, i32) {
    %c0_i32 = arith.constant 0 : i32
    %c0_i32_0 = arith.constant 0 : i32
    %c0_i32_1 = arith.constant 0 : i32
    return %c0_i32, %c0_i32_0 : i32, i32
  }
  func.func @transform_6(%arg0: i32) -> (i32, i32) {
    %c0_i32 = arith.constant 0 : i32
    %c0_i32_0 = arith.constant 0 : i32
    %c0_i32_1 = arith.constant 0 : i32
    return %c0_i32, %c0_i32_0 : i32, i32
  }
  func.func @transform_7(%arg0: i32) -> (i32, i32, i32, i32) {
    %c0_i32 = arith.constant 0 : i32
    %c0_i32_0 = arith.constant 0 : i32
    %c0_i32_1 = arith.constant 0 : i32
    %c0_i32_2 = arith.constant 0 : i32
    return %arg0, %c0_i32, %c0_i32_0, %c0_i32_1 : i32, i32, i32, i32
  }
}

</mosaic_0001>

<llo_original>
// kernel: _lambda_.1
$region0: #{_lambda_.1}
  #allocation0 [shape = 'u32[]', space=smem, size = 0x4, offset = 0x4, fixed_abs, tag = 'smem constant byte address 0x4 - core index']
  #allocation1 [shape = 'u32[72,128]{1,0:T(1,128)}', space=vmem, size = 0x9000, scoped, tag = 'internal scratch']
  #allocation2 [shape = 'bf16[256,1152]{1,0:T(8,128)(2,1)}', space=vmem, size = 0x90000, scoped, tag = 'scratch operand']
  %s0 = inlined_call_operand.vmem [shape: bf16[2,16,16,256], index: 0, kind: input, shape index: {}]
  %s1 = inlined_call_operand.vmem [shape: bf16[256,128], index: 1, kind: input, shape index: {}]
  %s2 = inlined_call_operand.vmem [shape: f32[1,128], index: 2, kind: input, shape index: {}]
  %s3 = inlined_call_operand.vmem [shape: f32[1,128], index: 3, kind: input, shape index: {}]
  %s4 = inlined_call_operand.vmem [shape: bf16[1152,256], index: 4, kind: input, shape index: {}]
  %s5 = inlined_call_operand.vmem [shape: f32[1,256], index: 5, kind: input, shape index: {}]
  %s6 = inlined_call_operand.vmem [shape: f32[1,256], index: 6, kind: input, shape index: {}]
  %s7 = inlined_call_operand.hbm [shape: f32[2,16,16,256], index: 7, kind: output, shape index: {}]
  %s8 = sld [smem:[#allocation0]]
  $region61: #{_lambda_.1} parent=0
    _
  %s10 = ssub.s32 1, %s8
  %s11 = scalar_select 0, %s10, %s8
  $region1: #{_lambda_.1} parent=0
    #allocation3 [shape = 'u8[524288]{0}', space=vmem, size = 0x80000, scoped, tag = 'output window, operand 0']
    #allocation4 [shape = 's32[2]{0}', space=sflag, size = 0x8, scoped, tag = 'scoped memory for _lambda_.1']
    %12 = vsyncpa [#allocation4], 0
    %s13 = scalar_lea.sflag [#allocation4], 1
    %14 = vsyncpa %s13, 0
    loop: start=0, step=1, limit=4
    $region2: #{_lambda_.1} parent=1 // loop_pre_header
      _
    $region3: #{_lambda_.1} parent=1 // loop_header
      %s16 = sphi 0, %s20
      %p17 = scmp.ge.s32.totalorder %s16, 4
      %s26 = sphi 0, %s28
      %s29 = sphi 0, %s26
      %s30 = sphi 0, %s29
      %s46 = sphi 0, %s30
      %s50 = sphi 0, %s50
      %s52 = sphi 0, %s50
      %s53 = sphi 0, %s52
      %s67 = sphi 0, %s53
      %s71 = sphi 0, %s71
      %s73 = sphi 0, %s71
      %s74 = sphi 0, %s73
      %s88 = sphi 0, %s74
      %s92 = sphi 0, %s92
      %s94 = sphi 0, %s92
      %s95 = sphi 0, %s94
      %s109 = sphi 0, %s95
      %s113 = sphi 0, %s113
      %s115 = sphi 0, %s113
      %s116 = sphi 0, %s115
      %s130 = sphi 0, %s116
      %s134 = sphi 0, %s134
      %s136 = sphi 0, %s134
      %s137 = sphi 0, %s136
      %s151 = sphi 0, %s137
      %s155 = sphi 0, %s155
      %s157 = sphi 0, %s155
      %s158 = sphi 0, %s157
      %s172 = sphi 0, %s158
      %s178 = sphi 0, %s180
      %s181 = sphi 0, %s178
      %s182 = sphi 0, %s181
      %s198 = sphi 0, %s182
    $region4: #{_lambda_.1} parent=1 // loop_header_branch
      %19 = sbr.rel (%p17) target = $region8
    $region5: #{_lambda_.1} parent=1 // loop_body
      %s21 = ssub.s32 %s16, 1
      %s22 = ssub.s32 %s16, 2
      %s23 = sadd.s32 %s16, 1
      %s24 = ssub.s32 %s16, %s23
      %p25 = scmp.eq.s32.totalorder %s24, 0
      %s27 = sadd.s32 %s26, 1
      %s28 = scalar_select %p25, %s26, %s27
      %p31 = pneg %p25
      %p32 = scmp.eq.s32.totalorder %s16, 1
      %p33 = por %p31, %p32
      %p34 = scmp.ne.s32.totalorder %s26, %s29
      %p35 = scmp.eq.s32.totalorder %s16, 0
      %p36 = por %p34, %p35
      %p37 = scmp.ne.s32.totalorder %s26, %s29
      %p38 = scmp.eq.s32.totalorder %s21, 1
      %p39 = por %p37, %p38
      %p40 = scmp.ne.s32.totalorder %s29, %s30
      %p41 = scmp.eq.s32.totalorder %s21, 0
      %p42 = por %p40, %p41
      %p43 = scmp.ne.s32.totalorder %s29, %s30
      %p44 = scmp.eq.s32.totalorder %s22, 1
      %p45 = por %p43, %p44
      %p47 = scmp.ne.s32.totalorder %s30, %s46
      %p48 = scmp.eq.s32.totalorder %s22, 0
      %p49 = por %p47, %p48
      %s51 = sadd.s32 %s50, 1
      %p54 = scmp.eq.s32.totalorder %s16, 1
      %p55 = scmp.ne.s32.totalorder %s50, %s52
      %p56 = scmp.eq.s32.totalorder %s16, 0
      %p57 = por %p55, %p56
      %p58 = scmp.ne.s32.totalorder %s50, %s52
      %p59 = scmp.eq.s32.totalorder %s21, 1
      %p60 = por %p58, %p59
      %p61 = scmp.ne.s32.totalorder %s52, %s53
      %p62 = scmp.eq.s32.totalorder %s21, 0
      %p63 = por %p61, %p62
      %p64 = scmp.ne.s32.totalorder %s52, %s53
      %p65 = scmp.eq.s32.totalorder %s22, 1
      %p66 = por %p64, %p65
      %p68 = scmp.ne.s32.totalorder %s53, %s67
      %p69 = scmp.eq.s32.totalorder %s22, 0
      %p70 = por %p68, %p69
      %s72 = sadd.s32 %s71, 1
      %p75 = scmp.eq.s32.totalorder %s16, 1
      %p76 = scmp.ne.s32.totalorder %s71, %s73
      %p77 = scmp.eq.s32.totalorder %s16, 0
      %p78 = por %p76, %p77
      %p79 = scmp.ne.s32.totalorder %s71, %s73
      %p80 = scmp.eq.s32.totalorder %s21, 1
      %p81 = por %p79, %p80
      %p82 = scmp.ne.s32.totalorder %s73, %s74
      %p83 = scmp.eq.s32.totalorder %s21, 0
      %p84 = por %p82, %p83
      %p85 = scmp.ne.s32.totalorder %s73, %s74
      %p86 = scmp.eq.s32.totalorder %s22, 1
      %p87 = por %p85, %p86
      %p89 = scmp.ne.s32.totalorder %s74, %s88
      %p90 = scmp.eq.s32.totalorder %s22, 0
      %p91 = por %p89, %p90
      %s93 = sadd.s32 %s92, 1
      %p96 = scmp.eq.s32.totalorder %s16, 1
      %p97 = scmp.ne.s32.totalorder %s92, %s94
      %p98 = scmp.eq.s32.totalorder %s16, 0
      %p99 = por %p97, %p98
      %p100 = scmp.ne.s32.totalorder %s92, %s94
      %p101 = scmp.eq.s32.totalorder %s21, 1
      %p102 = por %p100, %p101
      %p103 = scmp.ne.s32.totalorder %s94, %s95
      %p104 = scmp.eq.s32.totalorder %s21, 0
      %p105 = por %p103, %p104
      %p106 = scmp.ne.s32.totalorder %s94, %s95
      %p107 = scmp.eq.s32.totalorder %s22, 1
      %p108 = por %p106, %p107
      %p110 = scmp.ne.s32.totalorder %s95, %s109
      %p111 = scmp.eq.s32.totalorder %s22, 0
      %p112 = por %p110, %p111
      %s114 = sadd.s32 %s113, 1
      %p117 = scmp.eq.s32.totalorder %s16, 1
      %p118 = scmp.ne.s32.totalorder %s113, %s115
      %p119 = scmp.eq.s32.totalorder %s16, 0
      %p120 = por %p118, %p119
      %p121 = scmp.ne.s32.totalorder %s113, %s115
      %p122 = scmp.eq.s32.totalorder %s21, 1
      %p123 = por %p121, %p122
      %p124 = scmp.ne.s32.totalorder %s115, %s116
      %p125 = scmp.eq.s32.totalorder %s21, 0
      %p126 = por %p124, %p125
      %p127 = scmp.ne.s32.totalorder %s115, %s116
      %p128 = scmp.eq.s32.totalorder %s22, 1
      %p129 = por %p127, %p128
      %p131 = scmp.ne.s32.totalorder %s116, %s130
      %p132 = scmp.eq.s32.totalorder %s22, 0
      %p133 = por %p131, %p132
      %s135 = sadd.s32 %s134, 1
      %p138 = scmp.eq.s32.totalorder %s16, 1
      %p139 = scmp.ne.s32.totalorder %s134, %s136
      %p140 = scmp.eq.s32.totalorder %s16, 0
      %p141 = por %p139, %p140
      %p142 = scmp.ne.s32.totalorder %s134, %s136
      %p143 = scmp.eq.s32.totalorder %s21, 1
      %p144 = por %p142, %p143
      %p145 = scmp.ne.s32.totalorder %s136, %s137
      %p146 = scmp.eq.s32.totalorder %s21, 0
      %p147 = por %p145, %p146
      %p148 = scmp.ne.s32.totalorder %s136, %s137
      %p149 = scmp.eq.s32.totalorder %s22, 1
      %p150 = por %p148, %p149
      %p152 = scmp.ne.s32.totalorder %s137, %s151
      %p153 = scmp.eq.s32.totalorder %s22, 0
      %p154 = por %p152, %p153
      %s156 = sadd.s32 %s155, 1
      %p159 = scmp.eq.s32.totalorder %s16, 1
      %p160 = scmp.ne.s32.totalorder %s155, %s157
      %p161 = scmp.eq.s32.totalorder %s16, 0
      %p162 = por %p160, %p161
      %p163 = scmp.ne.s32.totalorder %s155, %s157
      %p164 = scmp.eq.s32.totalorder %s21, 1
      %p165 = por %p163, %p164
      %p166 = scmp.ne.s32.totalorder %s157, %s158
      %p167 = scmp.eq.s32.totalorder %s21, 0
      %p168 = por %p166, %p167
      %p169 = scmp.ne.s32.totalorder %s157, %s158
      %p170 = scmp.eq.s32.totalorder %s22, 1
      %p171 = por %p169, %p170
      %p173 = scmp.ne.s32.totalorder %s158, %s172
      %p174 = scmp.eq.s32.totalorder %s22, 0
      %p175 = por %p173, %p174
      %s176 = ssub.s32 %s16, %s23
      %p177 = scmp.eq.s32.totalorder %s176, 0
      %s179 = sadd.s32 %s178, 1
      %s180 = scalar_select %p177, %s178, %s179
      %p183 = pneg %p177
      %p184 = scmp.eq.s32.totalorder %s16, 1
      %p185 = por %p183, %p184
      %p186 = scmp.ne.s32.totalorder %s178, %s181
      %p187 = scmp.eq.s32.totalorder %s16, 0
      %p188 = por %p186, %p187
      %p189 = scmp.ne.s32.totalorder %s178, %s181
      %p190 = scmp.eq.s32.totalorder %s21, 1
      %p191 = por %p189, %p190
      %p192 = scmp.ne.s32.totalorder %s181, %s182
      %p193 = scmp.eq.s32.totalorder %s21, 0
      %p194 = por %p192, %p193
      %p195 = scmp.ne.s32.totalorder %s181, %s182
      %p196 = scmp.eq.s32.totalorder %s22, 1
      %p197 = por %p195, %p196
      %p199 = scmp.ne.s32.totalorder %s182, %s198
      %p200 = scmp.eq.s32.totalorder %s22, 0
      %p201 = por %p199, %p200
      %p202 = scmp.le.s32.totalorder 1, %s16
      %p203 = scmp.lt.s32.totalorder %s16, 3
      %p204 = pnand %p202, %p203
      %p205 = pneg %p204
      // Predicated region
      $region9: #{_lambda_.1} parent=5 // pred_check
        _
      $region10: #{_lambda_.1} parent=5 // pred_check_branch
        %207 = sbr.rel (%p204) target = $region12
      $region11: #{_lambda_.1} parent=5 // pred_region
        %s208 = ssub.s32 %s16, 1
        // Predicated region
        $region13: #{_lambda_.1} parent=11 // pred_check
          %p209 = pneg %p63
        $region14: #{_lambda_.1} parent=11 // pred_check_branch
          %211 = sbr.rel (%p209) target = $region16
        $region15: #{_lambda_.1} parent=11 // pred_region
          _
        $region16: #{_lambda_.1} parent=11 // pred_fallthru
          _
        // Predicated region
        $region17: #{_lambda_.1} parent=11 // pred_check
          %p212 = pneg %p84
        $region18: #{_lambda_.1} parent=11 // pred_check_branch
          %214 = sbr.rel (%p212) target = $region20
        $region19: #{_lambda_.1} parent=11 // pred_region
          _
        $region20: #{_lambda_.1} parent=11 // pred_fallthru
          _
        // Predicated region
        $region21: #{_lambda_.1} parent=11 // pred_check
          %p215 = pneg %p105
        $region22: #{_lambda_.1} parent=11 // pred_check_branch
          %217 = sbr.rel (%p215) target = $region24
        $region23: #{_lambda_.1} parent=11 // pred_region
          _
        $region24: #{_lambda_.1} parent=11 // pred_fallthru
          _
        // Predicated region
        $region25: #{_lambda_.1} parent=11 // pred_check
          %p218 = pneg %p126
        $region26: #{_lambda_.1} parent=11 // pred_check_branch
          %220 = sbr.rel (%p218) target = $region28
        $region27: #{_lambda_.1} parent=11 // pred_region
          _
        $region28: #{_lambda_.1} parent=11 // pred_fallthru
          _
        // Predicated region
        $region29: #{_lambda_.1} parent=11 // pred_check
          %p221 = pneg %p147
        $region30: #{_lambda_.1} parent=11 // pred_check_branch
          %223 = sbr.rel (%p221) target = $region32
        $region31: #{_lambda_.1} parent=11 // pred_region
          _
        $region32: #{_lambda_.1} parent=11 // pred_fallthru
          _
        // Predicated region
        $region33: #{_lambda_.1} parent=11 // pred_check
          %p224 = pneg %p168
        $region34: #{_lambda_.1} parent=11 // pred_check_branch
          %226 = sbr.rel (%p224) target = $region36
        $region35: #{_lambda_.1} parent=11 // pred_region
          _
        $region36: #{_lambda_.1} parent=11 // pred_fallthru
          _
      $region12: #{_lambda_.1} parent=5 // pred_fallthru
        _
      %p227 = scmp.lt.s32.totalorder %s16, 2
      // Predicated region
      $region37: #{_lambda_.1} parent=5 // pred_check
        %p228 = pneg %p227
      $region38: #{_lambda_.1} parent=5 // pred_check_branch
        %230 = sbr.rel (%p228) target = $region40
      $region39: #{_lambda_.1} parent=5 // pred_region
        // Predicated region
        $region41: #{_lambda_.1} parent=39 // pred_check
          %p231 = pneg %p36
        $region42: #{_lambda_.1} parent=39 // pred_check_branch
          %233 = sbr.rel (%p231) target = $region44
        $region43: #{_lambda_.1} parent=39 // pred_region
          %p234 = scmp.lt.s32.totalorder %s16, 1
          %s235 = scalar_select %p234, %s16, 1
          %s236 = smul.addr %s235, 64
          %s237 = smul.addr %s236, 4
          %s238 = scalar_lea.vmem %s0, %s237
        $region44: #{_lambda_.1} parent=39 // pred_fallthru
          _
      $region40: #{_lambda_.1} parent=5 // pred_fallthru
        _
      %p239 = scmp.le.s32.totalorder 1, %s16
      %p240 = scmp.lt.s32.totalorder %s16, 3
      %p241 = pnand %p239, %p240
      %p242 = pneg %p241
      // Predicated region
      $region45: #{_lambda_.1} parent=5 // pred_check
        _
      $region46: #{_lambda_.1} parent=5 // pred_check_branch
        %244 = sbr.rel (%p241) target = $region48
      $region47: #{_lambda_.1} parent=5 // pred_region
        %s245 = ssub.s32 %s16, 1
        %p246 = scmp.lt.s32.totalorder %s21, 1
        %s247 = scalar_select %p246, %s21, 1
        %s248 = smul.addr %s247, 64
        %s249 = smul.addr %s248, 4
        %s250 = scalar_lea.vmem %s0, %s249
        %p251 = pneg %p42
        %p252 = pneg %p39
        %p253 = pneg %p63
        %p254 = pneg %p60
        %p255 = pneg %p84
        %p256 = pneg %p81
        %p257 = pneg %p105
        %p258 = pneg %p102
        %p259 = pneg %p126
        %p260 = pneg %p123
        %p261 = pneg %p147
        %p262 = pneg %p144
        %p263 = pneg %p168
        %p264 = pneg %p165
        %p265 = pneg %p194
        %p266 = pneg %p191
        %s267 = sand.u32 %s181, 1
        %s268 = scalar_lea.sflag [#allocation4], %s267
        %s269 = sand.u32 %s181, 1
        %s270 = smul.addr %s269, 512
        %s271 = scalar_lea.vmem [#allocation3], %s270
        %p272 = scmp.lt.s32.totalorder %s21, 1
        %s273 = scalar_select %p272, %s21, 1
        %s274 = smul.addr %s273, 64
        %s275 = smul.addr %s274, 4
        %s276 = scalar_lea.vmem %s0, %s275
        %278 = vst [vmem:[#allocation2] sm:$0xf] 0
        %279 = vst [vmem:[#allocation2 + $0x24] sm:$0xf] 0
        %280 = vst [vmem:[#allocation2 + $0x450] sm:$0xf] 0
        %281 = vst [vmem:[#allocation2 + $0x474] sm:$0xf] 0
        %282 = vst [vmem:[#allocation2 + $0x4] sm:$0xf] 0
        %283 = vst [vmem:[#allocation2 + $0x28] sm:$0xf] 0
        %284 = vst [vmem:[#allocation2 + $0x454] sm:$0xf] 0
        %285 = vst [vmem:[#allocation2 + $0x478] sm:$0xf] 0
        %286 = vst [vmem:[#allocation2 + $0x8] sm:$0xf] 0
        %287 = vst [vmem:[#allocation2 + $0x2c] sm:$0xf] 0
        %288 = vst [vmem:[#allocation2 + $0x458] sm:$0xf] 0
        %289 = vst [vmem:[#allocation2 + $0x47c] sm:$0xf] 0
        %v290 = vlaneseq
        %v291 = vshrl.u32 %v290, 7
        %v292 = vadd.s32 %v291, 8
        %v293 = vadd.s32 %v291, 16
        %v294 = vadd.s32 %v291, 24
        %v295 = vadd.s32 %v291, 32
        %v296 = vadd.s32 %v291, 40
        %v297 = vadd.s32 %v291, 48
        %v298 = vadd.s32 %v291, 56
        %vm299 = vcmp.lt.s32.totalorder %v291, 0
        %v300 = vsub.s32 0, %v291
        %v301 = vsel %vm299, %v300, %v291
        %v302 = vshrl.u32 %v301, 4
        %v303 = vand.u32 %v301, 15
        %v304 = vsub.s32 0, %v303
        %v305 = vsel %vm299, %v304, %v303
        %vm306 = vcmp.lt.s32.totalorder %v292, 0
        %v307 = vsub.s32 0, %v292
        %v308 = vsel %vm306, %v307, %v292
        %v309 = vshrl.u32 %v308, 4
        %v310 = vand.u32 %v308, 15
        %v311 = vsub.s32 0, %v310
        %v312 = vsel %vm306, %v311, %v310
        %vm313 = vcmp.lt.s32.totalorder %v293, 0
        %v314 = vsub.s32 0, %v293
        %v315 = vsel %vm313, %v314, %v293
        %v316 = vshrl.u32 %v315, 4
        %v317 = vand.u32 %v315, 15
        %v318 = vsub.s32 0, %v317
        %v319 = vsel %vm313, %v318, %v317
        %vm320 = vcmp.lt.s32.totalorder %v294, 0
        %v321 = vsub.s32 0, %v294
        %v322 = vsel %vm320, %v321, %v294
        %v323 = vshrl.u32 %v322, 4
        %v324 = vand.u32 %v322, 15
        %v325 = vsub.s32 0, %v324
        %v326 = vsel %vm320, %v325, %v324
        %vm327 = vcmp.lt.s32.totalorder %v295, 0
        %v328 = vsub.s32 0, %v295
        %v329 = vsel %vm327, %v328, %v295
        %v330 = vshrl.u32 %v329, 4
        %v331 = vand.u32 %v329, 15
        %v332 = vsub.s32 0, %v331
        %v333 = vsel %vm327, %v332, %v331
        %vm334 = vcmp.lt.s32.totalorder %v296, 0
        %v335 = vsub.s32 0, %v296
        %v336 = vsel %vm334, %v335, %v296
        %v337 = vshrl.u32 %v336, 4
        %v338 = vand.u32 %v336, 15
        %v339 = vsub.s32 0, %v338
        %v340 = vsel %vm334, %v339, %v338
        %vm341 = vcmp.lt.s32.totalorder %v297, 0
        %v342 = vsub.s32 0, %v297
        %v343 = vsel %vm341, %v342, %v297
        %v344 = vshrl.u32 %v343, 4
        %v345 = vand.u32 %v343, 15
        %v346 = vsub.s32 0, %v345
        %v347 = vsel %vm341, %v346, %v345
        %vm348 = vcmp.lt.s32.totalorder %v298, 0
        %v349 = vsub.s32 0, %v298
        %v350 = vsel %vm348, %v349, %v298
        %v351 = vshrl.u32 %v350, 4
        %v352 = vand.u32 %v350, 15
        %v353 = vsub.s32 0, %v352
        %v354 = vsel %vm348, %v353, %v352
        %vm355 = vcmp.ne.s32.totalorder %v305, 0
        %vm356 = vcmp.ne.s32.totalorder %v312, 0
        %vm357 = vcmp.ne.s32.totalorder %v319, 0
        %vm358 = vcmp.ne.s32.totalorder %v326, 0
        %vm359 = vcmp.ne.s32.totalorder %v333, 0
        %vm360 = vcmp.ne.s32.totalorder %v340, 0
        %vm361 = vcmp.ne.s32.totalorder %v347, 0
        %vm362 = vcmp.ne.s32.totalorder %v354, 0
        %vm363 = vcmp.lt.s32.totalorder %v305, 0
        %vm364 = vcmp.lt.s32.totalorder %v312, 0
        %vm365 = vcmp.lt.s32.totalorder %v319, 0
        %vm366 = vcmp.lt.s32.totalorder %v326, 0
        %vm367 = vcmp.lt.s32.totalorder %v333, 0
        %vm368 = vcmp.lt.s32.totalorder %v340, 0
        %vm369 = vcmp.lt.s32.totalorder %v347, 0
        %vm370 = vcmp.lt.s32.totalorder %v354, 0
        %vm371 = vmand %vm363, %vm355
        %vm372 = vmand %vm364, %vm356
        %vm373 = vmand %vm365, %vm357
        %vm374 = vmand %vm366, %vm358
        %vm375 = vmand %vm367, %vm359
        %vm376 = vmand %vm368, %vm360
        %vm377 = vmand %vm369, %vm361
        %vm378 = vmand %vm370, %vm362
        %v379 = vadd.s32 %v305, 16
        %v380 = vadd.s32 %v312, 16
        %v381 = vadd.s32 %v319, 16
        %v382 = vadd.s32 %v326, 16
        %v383 = vadd.s32 %v333, 16
        %v384 = vadd.s32 %v340, 16
        %v385 = vadd.s32 %v347, 16
        %v386 = vadd.s32 %v354, 16
        %v387 = vsel %vm371, %v379, %v305
        %v388 = vsel %vm372, %v380, %v312
        %v389 = vsel %vm373, %v381, %v319
        %v390 = vsel %vm374, %v382, %v326
        %v391 = vsel %vm375, %v383, %v333
        %v392 = vsel %vm376, %v384, %v340
        %v393 = vsel %vm377, %v385, %v347
        %v394 = vsel %vm378, %v386, %v354
        %vm395 = vcmp.ge.s32.totalorder %v387, 1
        %vm396 = vcmp.ge.s32.totalorder %v388, 1
        %vm397 = vcmp.ge.s32.totalorder %v389, 1
        %vm398 = vcmp.ge.s32.totalorder %v390, 1
        %vm399 = vcmp.ge.s32.totalorder %v391, 1
        %vm400 = vcmp.ge.s32.totalorder %v392, 1
        %vm401 = vcmp.ge.s32.totalorder %v393, 1
        %vm402 = vcmp.ge.s32.totalorder %v394, 1
        %vm403 = vcmp.le.s32.totalorder %v387, 14
        %vm404 = vcmp.le.s32.totalorder %v388, 14
        %vm405 = vcmp.le.s32.totalorder %v389, 14
        %vm406 = vcmp.le.s32.totalorder %v390, 14
        %vm407 = vcmp.le.s32.totalorder %v391, 14
        %vm408 = vcmp.le.s32.totalorder %v392, 14
        %vm409 = vcmp.le.s32.totalorder %v393, 14
        %vm410 = vcmp.le.s32.totalorder %v394, 14
        %v411 = vld [vmem:[%s276] sm:$0xff]
        %v412 = vld [vmem:[%s276 + $0x8] sm:$0xff]
        %v413 = vld [vmem:[%s276 + $0x10] sm:$0xff]
        %v414 = vld [vmem:[%s276 + $0x18] sm:$0xff]
        %v415 = vld [vmem:[%s276 + $0x20] sm:$0xff]
        %v416 = vld [vmem:[%s276 + $0x28] sm:$0xff]
        %v417 = vld [vmem:[%s276 + $0x30] sm:$0xff]
        %v418 = vld [vmem:[%s276 + $0x38] sm:$0xff]
        %v419 = vld [vmem:[%s1] sm:$0xf]
        %v420 = vld [vmem:[%s1 + $0x4] sm:$0xf]
        %v421 = vld [vmem:[%s1 + $0x8] sm:$0xf]
        %v422 = vld [vmem:[%s1 + $0xc] sm:$0xf]
        %v423 = vld [vmem:[%s1 + $0x10] sm:$0xf]
        %v424 = vld [vmem:[%s1 + $0x14] sm:$0xf]
        %v425 = vld [vmem:[%s1 + $0x18] sm:$0xf]
        %v426 = vld [vmem:[%s1 + $0x1c] sm:$0xf]
        %v427 = vld [vmem:[%s1 + $0x20] sm:$0xf]
        %v428 = vld [vmem:[%s1 + $0x24] sm:$0xf]
        %v429 = vld [vmem:[%s1 + $0x28] sm:$0xf]
        %v430 = vld [vmem:[%s1 + $0x2c] sm:$0xf]
        %v431 = vld [vmem:[%s1 + $0x30] sm:$0xf]
        %v432 = vld [vmem:[%s1 + $0x34] sm:$0xf]
        %v433 = vld [vmem:[%s1 + $0x38] sm:$0xf]
        %v434 = vld [vmem:[%s1 + $0x3c] sm:$0xf]
        %v435 = vld [vmem:[%s1 + $0x40] sm:$0xf]
        %v436 = vld [vmem:[%s1 + $0x44] sm:$0xf]
        %v437 = vld [vmem:[%s1 + $0x48] sm:$0xf]
        %v438 = vld [vmem:[%s1 + $0x4c] sm:$0xf]
        %v439 = vld [vmem:[%s1 + $0x50] sm:$0xf]
        %v440 = vld [vmem:[%s1 + $0x54] sm:$0xf]
        %v441 = vld [vmem:[%s1 + $0x58] sm:$0xf]
        %v442 = vld [vmem:[%s1 + $0x5c] sm:$0xf]
        %v443 = vld [vmem:[%s1 + $0x60] sm:$0xf]
        %v444 = vld [vmem:[%s1 + $0x64] sm:$0xf]
        %v445 = vld [vmem:[%s1 + $0x68] sm:$0xf]
        %v446 = vld [vmem:[%s1 + $0x6c] sm:$0xf]
        %v447 = vld [vmem:[%s1 + $0x70] sm:$0xf]
        %v448 = vld [vmem:[%s1 + $0x74] sm:$0xf]
        %v449 = vld [vmem:[%s1 + $0x78] sm:$0xf]
        %v450 = vld [vmem:[%s1 + $0x7c] sm:$0xf]
        %v459 = vunpack.c.l.b16 %v411
        %v460 = vunpack.c.h.b16 %v411
        %v461 = vunpack.c.l.b16 %v412
        %v462 = vunpack.c.h.b16 %v412
        %v463 = vunpack.c.l.b16 %v413
        %v464 = vunpack.c.h.b16 %v413
        %v465 = vunpack.c.l.b16 %v414
        %v466 = vunpack.c.h.b16 %v414
        %v467 = vunpack.c.l.b16 %v415
        %v468 = vunpack.c.h.b16 %v415
        %v469 = vunpack.c.l.b16 %v416
        %v470 = vunpack.c.h.b16 %v416
        %v471 = vunpack.c.l.b16 %v417
        %v472 = vunpack.c.h.b16 %v417
        %v473 = vunpack.c.l.b16 %v418
        %v474 = vunpack.c.h.b16 %v418
        %v475 = vpack.c.b16 %v461, %v459
        %v476 = vpack.c.b16 %v462, %v460
        %v477 = vpack.c.b16 %v465, %v463
        %v478 = vpack.c.b16 %v466, %v464
        %v479 = vpack.c.b16 %v469, %v467
        %v480 = vpack.c.b16 %v470, %v468
        %v481 = vpack.c.b16 %v473, %v471
        %v482 = vpack.c.b16 %v474, %v472
        %v523 = vunpack.c.l.b16 %v419
        %v524 = vunpack.c.l.b16 %v420
        %v525 = vunpack.c.l.b16 %v421
        %v526 = vunpack.c.l.b16 %v422
        %v527 = vunpack.c.l.b16 %v423
        %v528 = vunpack.c.l.b16 %v424
        %v529 = vunpack.c.l.b16 %v425
        %v530 = vunpack.c.l.b16 %v426
        %v531 = vunpack.c.l.b16 %v427
        %v532 = vunpack.c.l.b16 %v428
        %v533 = vunpack.c.l.b16 %v429
        %v534 = vunpack.c.l.b16 %v430
        %v535 = vunpack.c.l.b16 %v431
        %v536 = vunpack.c.l.b16 %v432
        %v537 = vunpack.c.l.b16 %v433
        %v538 = vunpack.c.l.b16 %v434
        %v539 = vunpack.c.l.b16 %v435
        %v540 = vunpack.c.l.b16 %v436
        %v541 = vunpack.c.l.b16 %v437
        %v542 = vunpack.c.l.b16 %v438
        %v543 = vunpack.c.l.b16 %v439
        %v544 = vunpack.c.l.b16 %v440
        %v545 = vunpack.c.l.b16 %v441
        %v546 = vunpack.c.l.b16 %v442
        %v547 = vunpack.c.l.b16 %v443
        %v548 = vunpack.c.l.b16 %v444
        %v549 = vunpack.c.l.b16 %v445
        %v550 = vunpack.c.l.b16 %v446
        %v551 = vunpack.c.l.b16 %v447
        %v552 = vunpack.c.l.b16 %v448
        %v553 = vunpack.c.l.b16 %v449
        %v554 = vunpack.c.l.b16 %v450
        %v555 = vpack.c.b16 %v524, %v523
        %v556 = vpack.c.b16 %v526, %v525
        %v557 = vpack.c.b16 %v528, %v527
        %v558 = vpack.c.b16 %v530, %v529
        %v559 = vpack.c.b16 %v532, %v531
        %v560 = vpack.c.b16 %v534, %v533
        %v561 = vpack.c.b16 %v536, %v535
        %v562 = vpack.c.b16 %v538, %v537
        %v563 = vpack.c.b16 %v540, %v539
        %v564 = vpack.c.b16 %v542, %v541
        %v565 = vpack.c.b16 %v544, %v543
        %v566 = vpack.c.b16 %v546, %v545
        %v567 = vpack.c.b16 %v548, %v547
        %v568 = vpack.c.b16 %v550, %v549
        %v569 = vpack.c.b16 %v552, %v551
        %v570 = vpack.c.b16 %v554, %v553
        %587 = vmatpush.bf16.msra.mxu0 %v562
        %588 = vmatpush.bf16.msra.mxu0 %v561
        %589 = vmatpush.bf16.msra.mxu0 %v560
        %590 = vmatpush.bf16.msra.mxu0 %v559
        %591 = vmatpush.bf16.msra.mxu0 %v558
        %592 = vmatpush.bf16.msra.mxu0 %v557
        %593 = vmatpush.bf16.msra.mxu0 %v556
        %594 = vmatpush.bf16.msra.mxu0 %v555
        %595 = vmatmul.bf16.gmra.mxu0 %v475
        %v596 = vpop.f32.mrf.mxu0
        %v597 = vadd.f32 0.0, %v596
        %v598 = vpop.f32.mrf.mxu0
        %v599 = vadd.f32 0.0, %v598
        %600 = vmatmul.bf16.gmra.mxu0 %v477
        %v601 = vpop.f32.mrf.mxu0
        %v602 = vadd.f32 0.0, %v601
        %v603 = vpop.f32.mrf.mxu0
        %v604 = vadd.f32 0.0, %v603
        %605 = vmatmul.bf16.gmra.mxu0 %v479
        %v606 = vpop.f32.mrf.mxu0
        %v607 = vadd.f32 0.0, %v606
        %v608 = vpop.f32.mrf.mxu0
        %v609 = vadd.f32 0.0, %v608
        %610 = vmatmul.bf16.gmra.mxu0 %v481
        %v611 = vpop.f32.mrf.mxu0
        %v612 = vadd.f32 0.0, %v611
        %v613 = vpop.f32.mrf.mxu0
        %v614 = vadd.f32 0.0, %v613
        %615 = vdwg.mxu0
        %616 = vmatpush.bf16.msra.mxu0 %v570
        %617 = vmatpush.bf16.msra.mxu0 %v569
        %618 = vmatpush.bf16.msra.mxu0 %v568
        %619 = vmatpush.bf16.msra.mxu0 %v567
        %620 = vmatpush.bf16.msra.mxu0 %v566
        %621 = vmatpush.bf16.msra.mxu0 %v565
        %622 = vmatpush.bf16.msra.mxu0 %v564
        %623 = vmatpush.bf16.msra.mxu0 %v563
        %624 = vmatmul.bf16.gmra.mxu0 %v476
        %v625 = vpop.f32.mrf.mxu0
        %v626 = vadd.f32 %v597, %v625
        %v627 = vpop.f32.mrf.mxu0
        %v628 = vadd.f32 %v599, %v627
        %629 = vmatmul.bf16.gmra.mxu0 %v478
        %v630 = vpop.f32.mrf.mxu0
        %v631 = vadd.f32 %v602, %v630
        %v632 = vpop.f32.mrf.mxu0
        %v633 = vadd.f32 %v604, %v632
        %634 = vmatmul.bf16.gmra.mxu0 %v480
        %v635 = vpop.f32.mrf.mxu0
        %v636 = vadd.f32 %v607, %v635
        %v637 = vpop.f32.mrf.mxu0
        %v638 = vadd.f32 %v609, %v637
        %639 = vmatmul.bf16.gmra.mxu0 %v482
        %v640 = vpop.f32.mrf.mxu0
        %v641 = vadd.f32 %v612, %v640
        %v642 = vpop.f32.mrf.mxu0
        %v643 = vadd.f32 %v614, %v642
        %644 = vdwg.mxu0
        %v645 = vld [vmem:[%s2] sm:$0x1]
        %v647 = vperm.slane %v645, 0
        %v649 = vmul.f32 %v626, %v647
        %v650 = vmul.f32 %v628, %v647
        %v651 = vmul.f32 %v631, %v647
        %v652 = vmul.f32 %v633, %v647
        %v653 = vmul.f32 %v636, %v647
        %v654 = vmul.f32 %v638, %v647
        %v655 = vmul.f32 %v641, %v647
        %v656 = vmul.f32 %v643, %v647
        %v657 = vld [vmem:[%s3] sm:$0x1]
        %v659 = vperm.slane %v657, 0
        %v661 = vadd.f32 %v649, %v659
        %v662 = vadd.f32 %v650, %v659
        %v663 = vadd.f32 %v651, %v659
        %v664 = vadd.f32 %v652, %v659
        %v665 = vadd.f32 %v653, %v659
        %v666 = vadd.f32 %v654, %v659
        %v667 = vadd.f32 %v655, %v659
        %v668 = vadd.f32 %v656, %v659
        %v669 = vmul.f32 %v661, 0.16666667
        %v670 = vmul.f32 %v662, 0.16666667
        %v671 = vmul.f32 %v663, 0.16666667
        %v672 = vmul.f32 %v664, 0.16666667
        %v673 = vmul.f32 %v665, 0.16666667
        %v674 = vmul.f32 %v666, 0.16666667
        %v675 = vmul.f32 %v667, 0.16666667
        %v676 = vmul.f32 %v668, 0.16666667
        %v677 = vadd.f32 %v669, 0.5
        %v678 = vadd.f32 %v670, 0.5
        %v679 = vadd.f32 %v671, 0.5
        %v680 = vadd.f32 %v672, 0.5
        %v681 = vadd.f32 %v673, 0.5
        %v682 = vadd.f32 %v674, 0.5
        %v683 = vadd.f32 %v675, 0.5
        %v684 = vadd.f32 %v676, 0.5
        %v685 = vmax.f32 %v677, 0.0
        %v686 = vmax.f32 %v678, 0.0
        %v687 = vmax.f32 %v679, 0.0
        %v688 = vmax.f32 %v680, 0.0
        %v689 = vmax.f32 %v681, 0.0
        %v690 = vmax.f32 %v682, 0.0
        %v691 = vmax.f32 %v683, 0.0
        %v692 = vmax.f32 %v684, 0.0
        %v693 = vmin.f32 %v685, 1.0
        %v694 = vmin.f32 %v686, 1.0
        %v695 = vmin.f32 %v687, 1.0
        %v696 = vmin.f32 %v688, 1.0
        %v697 = vmin.f32 %v689, 1.0
        %v698 = vmin.f32 %v690, 1.0
        %v699 = vmin.f32 %v691, 1.0
        %v700 = vmin.f32 %v692, 1.0
        %v701 = vmul.f32 %v661, %v693
        %v702 = vmul.f32 %v662, %v694
        %v703 = vmul.f32 %v663, %v695
        %v704 = vmul.f32 %v664, %v696
        %v705 = vmul.f32 %v665, %v697
        %v706 = vmul.f32 %v666, %v698
        %v707 = vmul.f32 %v667, %v699
        %v708 = vmul.f32 %v668, %v700
        %v709 = vrot.slane %v701, 7
        %v710 = vrot.slane %v702, 7
        %v711 = vrot.slane %v703, 7
        %v712 = vrot.slane %v704, 7
        %v713 = vrot.slane %v705, 7
        %v714 = vrot.slane %v706, 7
        %v715 = vrot.slane %v707, 7
        %v716 = vrot.slane %v708, 7
        %vm717 = vcmp.lt.s32.totalorder %v291, 1
        %v718 = vsel %vm717, %v715, %v716
        %v719 = vsel %vm717, %v714, %v715
        %v720 = vsel %vm717, %v713, %v714
        %v721 = vsel %vm717, %v712, %v713
        %v722 = vsel %vm717, %v711, %v712
        %v723 = vsel %vm717, %v710, %v711
        %v724 = vsel %vm717, %v709, %v710
        %v725 = vsel %vm717, %v716, %v709
        %v726 = vsel %vm395, 1, 0
        %v727 = vsel %vm396, 1, 0
        %v728 = vsel %vm397, 1, 0
        %v729 = vsel %vm398, 1, 0
        %v730 = vsel %vm399, 1, 0
        %v731 = vsel %vm400, 1, 0
        %v732 = vsel %vm401, 1, 0
        %v733 = vsel %vm402, 1, 0
        %vm734 = vcmp.eq.s32.totalorder %v726, 1
        %vm735 = vcmp.eq.s32.totalorder %v727, 1
        %vm736 = vcmp.eq.s32.totalorder %v728, 1
        %vm737 = vcmp.eq.s32.totalorder %v729, 1
        %vm738 = vcmp.eq.s32.totalorder %v730, 1
        %vm739 = vcmp.eq.s32.totalorder %v731, 1
        %vm740 = vcmp.eq.s32.totalorder %v732, 1
        %vm741 = vcmp.eq.s32.totalorder %v733, 1
        %v742 = vsel %vm734, %v725, 0.0
        %v743 = vsel %vm735, %v724, 0.0
        %v744 = vsel %vm736, %v723, 0.0
        %v745 = vsel %vm737, %v722, 0.0
        %v746 = vsel %vm738, %v721, 0.0
        %v747 = vsel %vm739, %v720, 0.0
        %v748 = vsel %vm740, %v719, 0.0
        %v749 = vsel %vm741, %v718, 0.0
        %v750 = vpack.c.bf16 %v742, %v742
        %v751 = vpack.c.bf16 %v743, %v743
        %v752 = vpack.c.bf16 %v744, %v744
        %v753 = vpack.c.bf16 %v745, %v745
        %v754 = vpack.c.bf16 %v746, %v746
        %v755 = vpack.c.bf16 %v747, %v747
        %v756 = vpack.c.bf16 %v748, %v748
        %v757 = vpack.c.bf16 %v749, %v749
        %758 = vst [vmem:[#allocation2 + $0x48] sm:$0xf] %v750
        %759 = vst [vmem:[#allocation2 + $0x6c] sm:$0xf] %v751
        %760 = vst [vmem:[#allocation2 + $0x90] sm:$0xf] %v752
        %761 = vst [vmem:[#allocation2 + $0xb4] sm:$0xf] %v753
        %762 = vst [vmem:[#allocation2 + $0xd8] sm:$0xf] %v754
        %763 = vst [vmem:[#allocation2 + $0xfc] sm:$0xf] %v755
        %764 = vst [vmem:[#allocation2 + $0x120] sm:$0xf] %v756
        %765 = vst [vmem:[#allocation2 + $0x144] sm:$0xf] %v757
        %766 = vst [vmem:[#allocation2 + $0xc] sm:$0xf] %v750
        %767 = vst [vmem:[#allocation2 + $0x30] sm:$0xf] %v751
        %768 = vst [vmem:[#allocation2 + $0x54] sm:$0xf] %v752
        %769 = vst [vmem:[#allocation2 + $0x78] sm:$0xf] %v753
        %770 = vst [vmem:[#allocation2 + $0x9c] sm:$0xf] %v754
        %771 = vst [vmem:[#allocation2 + $0xc0] sm:$0xf] %v755
        %772 = vst [vmem:[#allocation2 + $0xe4] sm:$0xf] %v756
        %773 = vst [vmem:[#allocation2 + $0x108] sm:$0xf] %v757
        %774 = vst [vmem:[#allocation2 + $0x18] sm:$0xf] %v752
        %775 = vst [vmem:[#allocation2 + $0x3c] sm:$0xf] %v753
        %776 = vst [vmem:[#allocation2 + $0x60] sm:$0xf] %v754
        %777 = vst [vmem:[#allocation2 + $0x84] sm:$0xf] %v755
        %778 = vst [vmem:[#allocation2 + $0xa8] sm:$0xf] %v756
        %779 = vst [vmem:[#allocation2 + $0xcc] sm:$0xf] %v757
        %v780 = vpack.c.bf16 %v701, %v701
        %v781 = vpack.c.bf16 %v702, %v702
        %v782 = vpack.c.bf16 %v703, %v703
        %v783 = vpack.c.bf16 %v704, %v704
        %v784 = vpack.c.bf16 %v705, %v705
        %v785 = vpack.c.bf16 %v706, %v706
        %v786 = vpack.c.bf16 %v707, %v707
        %v787 = vpack.c.bf16 %v708, %v708
        %788 = vst [vmem:[#allocation2 + $0x4c] sm:$0xf] %v780
        %789 = vst [vmem:[#allocation2 + $0x70] sm:$0xf] %v781
        %790 = vst [vmem:[#allocation2 + $0x94] sm:$0xf] %v782
        %791 = vst [vmem:[#allocation2 + $0xb8] sm:$0xf] %v783
        %792 = vst [vmem:[#allocation2 + $0xdc] sm:$0xf] %v784
        %793 = vst [vmem:[#allocation2 + $0x100] sm:$0xf] %v785
        %794 = vst [vmem:[#allocation2 + $0x124] sm:$0xf] %v786
        %795 = vst [vmem:[#allocation2 + $0x148] sm:$0xf] %v787
        %796 = vst [vmem:[#allocation2 + $0x10] sm:$0xf] %v780
        %797 = vst [vmem:[#allocation2 + $0x34] sm:$0xf] %v781
        %798 = vst [vmem:[#allocation2 + $0x58] sm:$0xf] %v782
        %799 = vst [vmem:[#allocation2 + $0x7c] sm:$0xf] %v783
        %800 = vst [vmem:[#allocation2 + $0xa0] sm:$0xf] %v784
        %801 = vst [vmem:[#allocation2 + $0xc4] sm:$0xf] %v785
        %802 = vst [vmem:[#allocation2 + $0xe8] sm:$0xf] %v786
        %803 = vst [vmem:[#allocation2 + $0x10c] sm:$0xf] %v787
        %804 = vst [vmem:[#allocation2 + $0x1c] sm:$0xf] %v782
        %805 = vst [vmem:[#allocation2 + $0x40] sm:$0xf] %v783
        %806 = vst [vmem:[#allocation2 + $0x64] sm:$0xf] %v784
        %807 = vst [vmem:[#allocation2 + $0x88] sm:$0xf] %v785
        %808 = vst [vmem:[#allocation2 + $0xac] sm:$0xf] %v786
        %809 = vst [vmem:[#allocation2 + $0xd0] sm:$0xf] %v787
        %v810 = vrot.slane %v701, 1
        %v811 = vrot.slane %v702, 1
        %v812 = vrot.slane %v703, 1
        %v813 = vrot.slane %v704, 1
        %v814 = vrot.slane %v705, 1
        %v815 = vrot.slane %v706, 1
        %v816 = vrot.slane %v707, 1
        %v817 = vrot.slane %v708, 1
        %vm818 = vcmp.lt.s32.totalorder %v291, 7
        %v819 = vsel %vm818, %v816, %v817
        %v820 = vsel %vm818, %v815, %v816
        %v821 = vsel %vm818, %v814, %v815
        %v822 = vsel %vm818, %v813, %v814
        %v823 = vsel %vm818, %v812, %v813
        %v824 = vsel %vm818, %v811, %v812
        %v825 = vsel %vm818, %v810, %v811
        %v826 = vsel %vm818, %v817, %v810
        %v827 = vsel %vm403, 1, 0
        %v828 = vsel %vm404, 1, 0
        %v829 = vsel %vm405, 1, 0
        %v830 = vsel %vm406, 1, 0
        %v831 = vsel %vm407, 1, 0
        %v832 = vsel %vm408, 1, 0
        %v833 = vsel %vm409, 1, 0
        %v834 = vsel %vm410, 1, 0
        %vm835 = vcmp.eq.s32.totalorder %v827, 1
        %vm836 = vcmp.eq.s32.totalorder %v828, 1
        %vm837 = vcmp.eq.s32.totalorder %v829, 1
        %vm838 = vcmp.eq.s32.totalorder %v830, 1
        %vm839 = vcmp.eq.s32.totalorder %v831, 1
        %vm840 = vcmp.eq.s32.totalorder %v832, 1
        %vm841 = vcmp.eq.s32.totalorder %v833, 1
        %vm842 = vcmp.eq.s32.totalorder %v834, 1
        %v843 = vsel %vm835, %v825, 0.0
        %v844 = vsel %vm836, %v824, 0.0
        %v845 = vsel %vm837, %v823, 0.0
        %v846 = vsel %vm838, %v822, 0.0
        %v847 = vsel %vm839, %v821, 0.0
        %v848 = vsel %vm840, %v820, 0.0
        %v849 = vsel %vm841, %v819, 0.0
        %v850 = vsel %vm842, %v826, 0.0
        %v851 = vpack.c.bf16 %v843, %v843
        %v852 = vpack.c.bf16 %v844, %v844
        %v853 = vpack.c.bf16 %v845, %v845
        %v854 = vpack.c.bf16 %v846, %v846
        %v855 = vpack.c.bf16 %v847, %v847
        %v856 = vpack.c.bf16 %v848, %v848
        %v857 = vpack.c.bf16 %v849, %v849
        %v858 = vpack.c.bf16 %v850, %v850
        %859 = vst [vmem:[#allocation2 + $0x50] sm:$0xf] %v851
        %860 = vst [vmem:[#allocation2 + $0x74] sm:$0xf] %v852
        %861 = vst [vmem:[#allocation2 + $0x98] sm:$0xf] %v853
        %862 = vst [vmem:[#allocation2 + $0xbc] sm:$0xf] %v854
        %863 = vst [vmem:[#allocation2 + $0xe0] sm:$0xf] %v855
        %864 = vst [vmem:[#allocation2 + $0x104] sm:$0xf] %v856
        %865 = vst [vmem:[#allocation2 + $0x128] sm:$0xf] %v857
        %866 = vst [vmem:[#allocation2 + $0x14c] sm:$0xf] %v858
        %867 = vst [vmem:[#allocation2 + $0x14] sm:$0xf] %v851
        %868 = vst [vmem:[#allocation2 + $0x38] sm:$0xf] %v852
        %869 = vst [vmem:[#allocation2 + $0x5c] sm:$0xf] %v853
        %870 = vst [vmem:[#allocation2 + $0x80] sm:$0xf] %v854
        %871 = vst [vmem:[#allocation2 + $0xa4] sm:$0xf] %v855
        %872 = vst [vmem:[#allocation2 + $0xc8] sm:$0xf] %v856
        %873 = vst [vmem:[#allocation2 + $0xec] sm:$0xf] %v857
        %874 = vst [vmem:[#allocation2 + $0x110] sm:$0xf] %v858
        %875 = vst [vmem:[#allocation2 + $0x20] sm:$0xf] %v853
        %876 = vst [vmem:[#allocation2 + $0x44] sm:$0xf] %v854
        %877 = vst [vmem:[#allocation2 + $0x68] sm:$0xf] %v855
        %878 = vst [vmem:[#allocation2 + $0x8c] sm:$0xf] %v856
        %879 = vst [vmem:[#allocation2 + $0xb0] sm:$0xf] %v857
        %880 = vst [vmem:[#allocation2 + $0xd4] sm:$0xf] %v858
        %s881 = scalar_lea.vmem %s276, 64
        %v882 = vld [vmem:[%s881] sm:$0xff]
        %v883 = vld [vmem:[%s881 + $0x8] sm:$0xff]
        %v884 = vld [vmem:[%s881 + $0x10] sm:$0xff]
        %v885 = vld [vmem:[%s881 + $0x18] sm:$0xff]
        %v886 = vld [vmem:[%s881 + $0x20] sm:$0xff]
        %v887 = vld [vmem:[%s881 + $0x28] sm:$0xff]
        %v888 = vld [vmem:[%s881 + $0x30] sm:$0xff]
        %v889 = vld [vmem:[%s881 + $0x38] sm:$0xff]
        %v890 = vld [vmem:[%s1] sm:$0xf]
        %v891 = vld [vmem:[%s1 + $0x4] sm:$0xf]
        %v892 = vld [vmem:[%s1 + $0x8] sm:$0xf]
        %v893 = vld [vmem:[%s1 + $0xc] sm:$0xf]
        %v894 = vld [vmem:[%s1 + $0x10] sm:$0xf]
        %v895 = vld [vmem:[%s1 + $0x14] sm:$0xf]
        %v896 = vld [vmem:[%s1 + $0x18] sm:$0xf]
        %v897 = vld [vmem:[%s1 + $0x1c] sm:$0xf]
        %v898 = vld [vmem:[%s1 + $0x20] sm:$0xf]
        %v899 = vld [vmem:[%s1 + $0x24] sm:$0xf]
        %v900 = vld [vmem:[%s1 + $0x28] sm:$0xf]
        %v901 = vld [vmem:[%s1 + $0x2c] sm:$0xf]
        %v902 = vld [vmem:[%s1 + $0x30] sm:$0xf]
        %v903 = vld [vmem:[%s1 + $0x34] sm:$0xf]
        %v904 = vld [vmem:[%s1 + $0x38] sm:$0xf]
        %v905 = vld [vmem:[%s1 + $0x3c] sm:$0xf]
        %v906 = vld [vmem:[%s1 + $0x40] sm:$0xf]
        %v907 = vld [vmem:[%s1 + $0x44] sm:$0xf]
        %v908 = vld [vmem:[%s1 + $0x48] sm:$0xf]
        %v909 = vld [vmem:[%s1 + $0x4c] sm:$0xf]
        %v910 = vld [vmem:[%s1 + $0x50] sm:$0xf]
        %v911 = vld [vmem:[%s1 + $0x54] sm:$0xf]
        %v912 = vld [vmem:[%s1 + $0x58] sm:$0xf]
        %v913 = vld [vmem:[%s1 + $0x5c] sm:$0xf]
        %v914 = vld [vmem:[%s1 + $0x60] sm:$0xf]
        %v915 = vld [vmem:[%s1 + $0x64] sm:$0xf]
        %v916 = vld [vmem:[%s1 + $0x68] sm:$0xf]
        %v917 = vld [vmem:[%s1 + $0x6c] sm:$0xf]
        %v918 = vld [vmem:[%s1 + $0x70] sm:$0xf]
        %v919 = vld [vmem:[%s1 + $0x74] sm:$0xf]
        %v920 = vld [vmem:[%s1 + $0x78] sm:$0xf]
        %v921 = vld [vmem:[%s1 + $0x7c] sm:$0xf]
        %v930 = vunpack.c.l.b16 %v882
        %v931 = vunpack.c.h.b16 %v882
        %v932 = vunpack.c.l.b16 %v883
        %v933 = vunpack.c.h.b16 %v883
        %v934 = vunpack.c.l.b16 %v884
        %v935 = vunpack.c.h.b16 %v884
        %v936 = vunpack.c.l.b16 %v885
        %v937 = vunpack.c.h.b16 %v885
        %v938 = vunpack.c.l.b16 %v886
        %v939 = vunpack.c.h.b16 %v886
        %v940 = vunpack.c.l.b16 %v887
        %v941 = vunpack.c.h.b16 %v887
        %v942 = vunpack.c.l.b16 %v888
        %v943 = vunpack.c.h.b16 %v888
        %v944 = vunpack.c.l.b16 %v889
        %v945 = vunpack.c.h.b16 %v889
        %v946 = vpack.c.b16 %v932, %v930
        %v947 = vpack.c.b16 %v933, %v931
        %v948 = vpack.c.b16 %v936, %v934
        %v949 = vpack.c.b16 %v937, %v935
        %v950 = vpack.c.b16 %v940, %v938
        %v951 = vpack.c.b16 %v941, %v939
        %v952 = vpack.c.b16 %v944, %v942
        %v953 = vpack.c.b16 %v945, %v943
        %v994 = vunpack.c.l.b16 %v890
        %v995 = vunpack.c.l.b16 %v891
        %v996 = vunpack.c.l.b16 %v892
        %v997 = vunpack.c.l.b16 %v893
        %v998 = vunpack.c.l.b16 %v894
        %v999 = vunpack.c.l.b16 %v895
        %v1000 = vunpack.c.l.b16 %v896
        %v1001 = vunpack.c.l.b16 %v897
        %v1002 = vunpack.c.l.b16 %v898
        %v1003 = vunpack.c.l.b16 %v899
        %v1004 = vunpack.c.l.b16 %v900
        %v1005 = vunpack.c.l.b16 %v901
        %v1006 = vunpack.c.l.b16 %v902
        %v1007 = vunpack.c.l.b16 %v903
        %v1008 = vunpack.c.l.b16 %v904
        %v1009 = vunpack.c.l.b16 %v905
        %v1010 = vunpack.c.l.b16 %v906
        %v1011 = vunpack.c.l.b16 %v907
        %v1012 = vunpack.c.l.b16 %v908
        %v1013 = vunpack.c.l.b16 %v909
        %v1014 = vunpack.c.l.b16 %v910
        %v1015 = vunpack.c.l.b16 %v911
        %v1016 = vunpack.c.l.b16 %v912
        %v1017 = vunpack.c.l.b16 %v913
        %v1018 = vunpack.c.l.b16 %v914
        %v1019 = vunpack.c.l.b16 %v915
        %v1020 = vunpack.c.l.b16 %v916
        %v1021 = vunpack.c.l.b16 %v917
        %v1022 = vunpack.c.l.b16 %v918
        %v1023 = vunpack.c.l.b16 %v919
        %v1024 = vunpack.c.l.b16 %v920
        %v1025 = vunpack.c.l.b16 %v921
        %v1026 = vpack.c.b16 %v995, %v994
        %v1027 = vpack.c.b16 %v997, %v996
        %v1028 = vpack.c.b16 %v999, %v998
        %v1029 = vpack.c.b16 %v1001, %v1000
        %v1030 = vpack.c.b16 %v1003, %v1002
        %v1031 = vpack.c.b16 %v1005, %v1004
        %v1032 = vpack.c.b16 %v1007, %v1006
        %v1033 = vpack.c.b16 %v1009, %v1008
        %v1034 = vpack.c.b16 %v1011, %v1010
        %v1035 = vpack.c.b16 %v1013, %v1012
        %v1036 = vpack.c.b16 %v1015, %v1014
        %v1037 = vpack.c.b16 %v1017, %v1016
        %v1038 = vpack.c.b16 %v1019, %v1018
        %v1039 = vpack.c.b16 %v1021, %v1020
        %v1040 = vpack.c.b16 %v1023, %v1022
        %v1041 = vpack.c.b16 %v1025, %v1024
        %1058 = vmatpush.bf16.msra.mxu0 %v1033
        %1059 = vmatpush.bf16.msra.mxu0 %v1032
        %1060 = vmatpush.bf16.msra.mxu0 %v1031
        %1061 = vmatpush.bf16.msra.mxu0 %v1030
        %1062 = vmatpush.bf16.msra.mxu0 %v1029
        %1063 = vmatpush.bf16.msra.mxu0 %v1028
        %1064 = vmatpush.bf16.msra.mxu0 %v1027
        %1065 = vmatpush.bf16.msra.mxu0 %v1026
        %1066 = vmatmul.bf16.gmra.mxu0 %v946
        %v1067 = vpop.f32.mrf.mxu0
        %v1068 = vadd.f32 0.0, %v1067
        %v1069 = vpop.f32.mrf.mxu0
        %v1070 = vadd.f32 0.0, %v1069
        %1071 = vmatmul.bf16.gmra.mxu0 %v948
        %v1072 = vpop.f32.mrf.mxu0
        %v1073 = vadd.f32 0.0, %v1072
        %v1074 = vpop.f32.mrf.mxu0
        %v1075 = vadd.f32 0.0, %v1074
        %1076 = vmatmul.bf16.gmra.mxu0 %v950
        %v1077 = vpop.f32.mrf.mxu0
        %v1078 = vadd.f32 0.0, %v1077
        %v1079 = vpop.f32.mrf.mxu0
        %v1080 = vadd.f32 0.0, %v1079
        %1081 = vmatmul.bf16.gmra.mxu0 %v952
        %v1082 = vpop.f32.mrf.mxu0
        %v1083 = vadd.f32 0.0, %v1082
        %v1084 = vpop.f32.mrf.mxu0
        %v1085 = vadd.f32 0.0, %v1084
        %1086 = vdwg.mxu0
        %1087 = vmatpush.bf16.msra.mxu0 %v1041
        %1088 = vmatpush.bf16.msra.mxu0 %v1040
        %1089 = vmatpush.bf16.msra.mxu0 %v1039
        %1090 = vmatpush.bf16.msra.mxu0 %v1038
        %1091 = vmatpush.bf16.msra.mxu0 %v1037
        %1092 = vmatpush.bf16.msra.mxu0 %v1036
        %1093 = vmatpush.bf16.msra.mxu0 %v1035
        %1094 = vmatpush.bf16.msra.mxu0 %v1034
        %1095 = vmatmul.bf16.gmra.mxu0 %v947
        %v1096 = vpop.f32.mrf.mxu0
        %v1097 = vadd.f32 %v1068, %v1096
        %v1098 = vpop.f32.mrf.mxu0
        %v1099 = vadd.f32 %v1070, %v1098
        %1100 = vmatmul.bf16.gmra.mxu0 %v949
        %v1101 = vpop.f32.mrf.mxu0
        %v1102 = vadd.f32 %v1073, %v1101
        %v1103 = vpop.f32.mrf.mxu0
        %v1104 = vadd.f32 %v1075, %v1103
        %1105 = vmatmul.bf16.gmra.mxu0 %v951
        %v1106 = vpop.f32.mrf.mxu0
        %v1107 = vadd.f32 %v1078, %v1106
        %v1108 = vpop.f32.mrf.mxu0
        %v1109 = vadd.f32 %v1080, %v1108
        %1110 = vmatmul.bf16.gmra.mxu0 %v953
        %v1111 = vpop.f32.mrf.mxu0
        %v1112 = vadd.f32 %v1083, %v1111
        %v1113 = vpop.f32.mrf.mxu0
        %v1114 = vadd.f32 %v1085, %v1113
        %1115 = vdwg.mxu0
        %v1116 = vld [vmem:[%s2] sm:$0x1]
        %v1118 = vperm.slane %v1116, 0
        %v1120 = vmul.f32 %v1097, %v1118
        %v1121 = vmul.f32 %v1099, %v1118
        %v1122 = vmul.f32 %v1102, %v1118
        %v1123 = vmul.f32 %v1104, %v1118
        %v1124 = vmul.f32 %v1107, %v1118
        %v1125 = vmul.f32 %v1109, %v1118
        %v1126 = vmul.f32 %v1112, %v1118
        %v1127 = vmul.f32 %v1114, %v1118
        %v1128 = vld [vmem:[%s3] sm:$0x1]
        %v1130 = vperm.slane %v1128, 0
        %v1132 = vadd.f32 %v1120, %v1130
        %v1133 = vadd.f32 %v1121, %v1130
        %v1134 = vadd.f32 %v1122, %v1130
        %v1135 = vadd.f32 %v1123, %v1130
        %v1136 = vadd.f32 %v1124, %v1130
        %v1137 = vadd.f32 %v1125, %v1130
        %v1138 = vadd.f32 %v1126, %v1130
        %v1139 = vadd.f32 %v1127, %v1130
        %v1140 = vmul.f32 %v1132, 0.16666667
        %v1141 = vmul.f32 %v1133, 0.16666667
        %v1142 = vmul.f32 %v1134, 0.16666667
        %v1143 = vmul.f32 %v1135, 0.16666667
        %v1144 = vmul.f32 %v1136, 0.16666667
        %v1145 = vmul.f32 %v1137, 0.16666667
        %v1146 = vmul.f32 %v1138, 0.16666667
        %v1147 = vmul.f32 %v1139, 0.16666667
        %v1148 = vadd.f32 %v1140, 0.5
        %v1149 = vadd.f32 %v1141, 0.5
        %v1150 = vadd.f32 %v1142, 0.5
        %v1151 = vadd.f32 %v1143, 0.5
        %v1152 = vadd.f32 %v1144, 0.5
        %v1153 = vadd.f32 %v1145, 0.5
        %v1154 = vadd.f32 %v1146, 0.5
        %v1155 = vadd.f32 %v1147, 0.5
        %v1156 = vmax.f32 %v1148, 0.0
        %v1157 = vmax.f32 %v1149, 0.0
        %v1158 = vmax.f32 %v1150, 0.0
        %v1159 = vmax.f32 %v1151, 0.0
        %v1160 = vmax.f32 %v1152, 0.0
        %v1161 = vmax.f32 %v1153, 0.0
        %v1162 = vmax.f32 %v1154, 0.0
        %v1163 = vmax.f32 %v1155, 0.0
        %v1164 = vmin.f32 %v1156, 1.0
        %v1165 = vmin.f32 %v1157, 1.0
        %v1166 = vmin.f32 %v1158, 1.0
        %v1167 = vmin.f32 %v1159, 1.0
        %v1168 = vmin.f32 %v1160, 1.0
        %v1169 = vmin.f32 %v1161, 1.0
        %v1170 = vmin.f32 %v1162, 1.0
        %v1171 = vmin.f32 %v1163, 1.0
        %v1172 = vmul.f32 %v1132, %v1164
        %v1173 = vmul.f32 %v1133, %v1165
        %v1174 = vmul.f32 %v1134, %v1166
        %v1175 = vmul.f32 %v1135, %v1167
        %v1176 = vmul.f32 %v1136, %v1168
        %v1177 = vmul.f32 %v1137, %v1169
        %v1178 = vmul.f32 %v1138, %v1170
        %v1179 = vmul.f32 %v1139, %v1171
        %v1180 = vrot.slane %v1172, 7
        %v1181 = vrot.slane %v1173, 7
        %v1182 = vrot.slane %v1174, 7
        %v1183 = vrot.slane %v1175, 7
        %v1184 = vrot.slane %v1176, 7
        %v1185 = vrot.slane %v1177, 7
        %v1186 = vrot.slane %v1178, 7
        %v1187 = vrot.slane %v1179, 7
        %v1188 = vsel %vm717, %v1186, %v1187
        %v1189 = vsel %vm717, %v1185, %v1186
        %v1190 = vsel %vm717, %v1184, %v1185
        %v1191 = vsel %vm717, %v1183, %v1184
        %v1192 = vsel %vm717, %v1182, %v1183
        %v1193 = vsel %vm717, %v1181, %v1182
        %v1194 = vsel %vm717, %v1180, %v1181
        %v1195 = vsel %vm717, %v1187, %v1180
        %v1196 = vsel %vm734, %v1195, 0.0
        %v1197 = vsel %vm735, %v1194, 0.0
        %v1198 = vsel %vm736, %v1193, 0.0
        %v1199 = vsel %vm737, %v1192, 0.0
        %v1200 = vsel %vm738, %v1191, 0.0
        %v1201 = vsel %vm739, %v1190, 0.0
        %v1202 = vsel %vm740, %v1189, 0.0
        %v1203 = vsel %vm741, %v1188, 0.0
        %v1204 = vpack.c.bf16 %v1196, %v1196
        %v1205 = vpack.c.bf16 %v1197, %v1197
        %v1206 = vpack.c.bf16 %v1198, %v1198
        %v1207 = vpack.c.bf16 %v1199, %v1199
        %v1208 = vpack.c.bf16 %v1200, %v1200
        %v1209 = vpack.c.bf16 %v1201, %v1201
        %v1210 = vpack.c.bf16 %v1202, %v1202
        %v1211 = vpack.c.bf16 %v1203, %v1203
        %1212 = vst [vmem:[#allocation2 + $0x168] sm:$0xf] %v1204
        %1213 = vst [vmem:[#allocation2 + $0x18c] sm:$0xf] %v1205
        %1214 = vst [vmem:[#allocation2 + $0x1b0] sm:$0xf] %v1206
        %1215 = vst [vmem:[#allocation2 + $0x1d4] sm:$0xf] %v1207
        %1216 = vst [vmem:[#allocation2 + $0x1f8] sm:$0xf] %v1208
        %1217 = vst [vmem:[#allocation2 + $0x21c] sm:$0xf] %v1209
        %1218 = vst [vmem:[#allocation2 + $0x240] sm:$0xf] %v1210
        %1219 = vst [vmem:[#allocation2 + $0x264] sm:$0xf] %v1211
        %1220 = vst [vmem:[#allocation2 + $0x12c] sm:$0xf] %v1204
        %1221 = vst [vmem:[#allocation2 + $0x150] sm:$0xf] %v1205
        %1222 = vst [vmem:[#allocation2 + $0x174] sm:$0xf] %v1206
        %1223 = vst [vmem:[#allocation2 + $0x198] sm:$0xf] %v1207
        %1224 = vst [vmem:[#allocation2 + $0x1bc] sm:$0xf] %v1208
        %1225 = vst [vmem:[#allocation2 + $0x1e0] sm:$0xf] %v1209
        %1226 = vst [vmem:[#allocation2 + $0x204] sm:$0xf] %v1210
        %1227 = vst [vmem:[#allocation2 + $0x228] sm:$0xf] %v1211
        %1228 = vst [vmem:[#allocation2 + $0xf0] sm:$0xf] %v1204
        %1229 = vst [vmem:[#allocation2 + $0x114] sm:$0xf] %v1205
        %1230 = vst [vmem:[#allocation2 + $0x138] sm:$0xf] %v1206
        %1231 = vst [vmem:[#allocation2 + $0x15c] sm:$0xf] %v1207
        %1232 = vst [vmem:[#allocation2 + $0x180] sm:$0xf] %v1208
        %1233 = vst [vmem:[#allocation2 + $0x1a4] sm:$0xf] %v1209
        %1234 = vst [vmem:[#allocation2 + $0x1c8] sm:$0xf] %v1210
        %1235 = vst [vmem:[#allocation2 + $0x1ec] sm:$0xf] %v1211
        %v1236 = vpack.c.bf16 %v1172, %v1172
        %v1237 = vpack.c.bf16 %v1173, %v1173
        %v1238 = vpack.c.bf16 %v1174, %v1174
        %v1239 = vpack.c.bf16 %v1175, %v1175
        %v1240 = vpack.c.bf16 %v1176, %v1176
        %v1241 = vpack.c.bf16 %v1177, %v1177
        %v1242 = vpack.c.bf16 %v1178, %v1178
        %v1243 = vpack.c.bf16 %v1179, %v1179
        %1244 = vst [vmem:[#allocation2 + $0x16c] sm:$0xf] %v1236
        %1245 = vst [vmem:[#allocation2 + $0x190] sm:$0xf] %v1237
        %1246 = vst [vmem:[#allocation2 + $0x1b4] sm:$0xf] %v1238
        %1247 = vst [vmem:[#allocation2 + $0x1d8] sm:$0xf] %v1239
        %1248 = vst [vmem:[#allocation2 + $0x1fc] sm:$0xf] %v1240
        %1249 = vst [vmem:[#allocation2 + $0x220] sm:$0xf] %v1241
        %1250 = vst [vmem:[#allocation2 + $0x244] sm:$0xf] %v1242
        %1251 = vst [vmem:[#allocation2 + $0x268] sm:$0xf] %v1243
        %1252 = vst [vmem:[#allocation2 + $0x130] sm:$0xf] %v1236
        %1253 = vst [vmem:[#allocation2 + $0x154] sm:$0xf] %v1237
        %1254 = vst [vmem:[#allocation2 + $0x178] sm:$0xf] %v1238
        %1255 = vst [vmem:[#allocation2 + $0x19c] sm:$0xf] %v1239
        %1256 = vst [vmem:[#allocation2 + $0x1c0] sm:$0xf] %v1240
        %1257 = vst [vmem:[#allocation2 + $0x1e4] sm:$0xf] %v1241
        %1258 = vst [vmem:[#allocation2 + $0x208] sm:$0xf] %v1242
        %1259 = vst [vmem:[#allocation2 + $0x22c] sm:$0xf] %v1243
        %1260 = vst [vmem:[#allocation2 + $0xf4] sm:$0xf] %v1236
        %1261 = vst [vmem:[#allocation2 + $0x118] sm:$0xf] %v1237
        %1262 = vst [vmem:[#allocation2 + $0x13c] sm:$0xf] %v1238
        %1263 = vst [vmem:[#allocation2 + $0x160] sm:$0xf] %v1239
        %1264 = vst [vmem:[#allocation2 + $0x184] sm:$0xf] %v1240
        %1265 = vst [vmem:[#allocation2 + $0x1a8] sm:$0xf] %v1241
        %1266 = vst [vmem:[#allocation2 + $0x1cc] sm:$0xf] %v1242
        %1267 = vst [vmem:[#allocation2 + $0x1f0] sm:$0xf] %v1243
        %v1268 = vrot.slane %v1172, 1
        %v1269 = vrot.slane %v1173, 1
        %v1270 = vrot.slane %v1174, 1
        %v1271 = vrot.slane %v1175, 1
        %v1272 = vrot.slane %v1176, 1
        %v1273 = vrot.slane %v1177, 1
        %v1274 = vrot.slane %v1178, 1
        %v1275 = vrot.slane %v1179, 1
        %v1276 = vsel %vm818, %v1274, %v1275
        %v1277 = vsel %vm818, %v1273, %v1274
        %v1278 = vsel %vm818, %v1272, %v1273
        %v1279 = vsel %vm818, %v1271, %v1272
        %v1280 = vsel %vm818, %v1270, %v1271
        %v1281 = vsel %vm818, %v1269, %v1270
        %v1282 = vsel %vm818, %v1268, %v1269
        %v1283 = vsel %vm818, %v1275, %v1268
        %v1284 = vsel %vm835, %v1282, 0.0
        %v1285 = vsel %vm836, %v1281, 0.0
        %v1286 = vsel %vm837, %v1280, 0.0
        %v1287 = vsel %vm838, %v1279, 0.0
        %v1288 = vsel %vm839, %v1278, 0.0
        %v1289 = vsel %vm840, %v1277, 0.0
        %v1290 = vsel %vm841, %v1276, 0.0
        %v1291 = vsel %vm842, %v1283, 0.0
        %v1292 = vpack.c.bf16 %v1284, %v1284
        %v1293 = vpack.c.bf16 %v1285, %v1285
        %v1294 = vpack.c.bf16 %v1286, %v1286
        %v1295 = vpack.c.bf16 %v1287, %v1287
        %v1296 = vpack.c.bf16 %v1288, %v1288
        %v1297 = vpack.c.bf16 %v1289, %v1289
        %v1298 = vpack.c.bf16 %v1290, %v1290
        %v1299 = vpack.c.bf16 %v1291, %v1291
        %1300 = vst [vmem:[#allocation2 + $0x170] sm:$0xf] %v1292
        %1301 = vst [vmem:[#allocation2 + $0x194] sm:$0xf] %v1293
        %1302 = vst [vmem:[#allocation2 + $0x1b8] sm:$0xf] %v1294
        %1303 = vst [vmem:[#allocation2 + $0x1dc] sm:$0xf] %v1295
        %1304 = vst [vmem:[#allocation2 + $0x200] sm:$0xf] %v1296
        %1305 = vst [vmem:[#allocation2 + $0x224] sm:$0xf] %v1297
        %1306 = vst [vmem:[#allocation2 + $0x248] sm:$0xf] %v1298
        %1307 = vst [vmem:[#allocation2 + $0x26c] sm:$0xf] %v1299
        %1308 = vst [vmem:[#allocation2 + $0x134] sm:$0xf] %v1292
        %1309 = vst [vmem:[#allocation2 + $0x158] sm:$0xf] %v1293
        %1310 = vst [vmem:[#allocation2 + $0x17c] sm:$0xf] %v1294
        %1311 = vst [vmem:[#allocation2 + $0x1a0] sm:$0xf] %v1295
        %1312 = vst [vmem:[#allocation2 + $0x1c4] sm:$0xf] %v1296
        %1313 = vst [vmem:[#allocation2 + $0x1e8] sm:$0xf] %v1297
        %1314 = vst [vmem:[#allocation2 + $0x20c] sm:$0xf] %v1298
        %1315 = vst [vmem:[#allocation2 + $0x230] sm:$0xf] %v1299
        %1316 = vst [vmem:[#allocation2 + $0xf8] sm:$0xf] %v1292
        %1317 = vst [vmem:[#allocation2 + $0x11c] sm:$0xf] %v1293
        %1318 = vst [vmem:[#allocation2 + $0x140] sm:$0xf] %v1294
        %1319 = vst [vmem:[#allocation2 + $0x164] sm:$0xf] %v1295
        %1320 = vst [vmem:[#allocation2 + $0x188] sm:$0xf] %v1296
        %1321 = vst [vmem:[#allocation2 + $0x1ac] sm:$0xf] %v1297
        %1322 = vst [vmem:[#allocation2 + $0x1d0] sm:$0xf] %v1298
        %1323 = vst [vmem:[#allocation2 + $0x1f4] sm:$0xf] %v1299
        %s1324 = scalar_lea.vmem %s276, 128
        %v1325 = vld [vmem:[%s1324] sm:$0xff]
        %v1326 = vld [vmem:[%s1324 + $0x8] sm:$0xff]
        %v1327 = vld [vmem:[%s1324 + $0x10] sm:$0xff]
        %v1328 = vld [vmem:[%s1324 + $0x18] sm:$0xff]
        %v1329 = vld [vmem:[%s1324 + $0x20] sm:$0xff]
        %v1330 = vld [vmem:[%s1324 + $0x28] sm:$0xff]
        %v1331 = vld [vmem:[%s1324 + $0x30] sm:$0xff]
        %v1332 = vld [vmem:[%s1324 + $0x38] sm:$0xff]
        %v1333 = vld [vmem:[%s1] sm:$0xf]
        %v1334 = vld [vmem:[%s1 + $0x4] sm:$0xf]
        %v1335 = vld [vmem:[%s1 + $0x8] sm:$0xf]
        %v1336 = vld [vmem:[%s1 + $0xc] sm:$0xf]
        %v1337 = vld [vmem:[%s1 + $0x10] sm:$0xf]
        %v1338 = vld [vmem:[%s1 + $0x14] sm:$0xf]
        %v1339 = vld [vmem:[%s1 + $0x18] sm:$0xf]
        %v1340 = vld [vmem:[%s1 + $0x1c] sm:$0xf]
        %v1341 = vld [vmem:[%s1 + $0x20] sm:$0xf]
        %v1342 = vld [vmem:[%s1 + $0x24] sm:$0xf]
        %v1343 = vld [vmem:[%s1 + $0x28] sm:$0xf]
        %v1344 = vld [vmem:[%s1 + $0x2c] sm:$0xf]
        %v1345 = vld [vmem:[%s1 + $0x30] sm:$0xf]
        %v1346 = vld [vmem:[%s1 + $0x34] sm:$0xf]
        %v1347 = vld [vmem:[%s1 + $0x38] sm:$0xf]
        %v1348 = vld [vmem:[%s1 + $0x3c] sm:$0xf]
        %v1349 = vld [vmem:[%s1 + $0x40] sm:$0xf]
        %v1350 = vld [vmem:[%s1 + $0x44] sm:$0xf]
        %v1351 = vld [vmem:[%s1 + $0x48] sm:$0xf]
        %v1352 = vld [vmem:[%s1 + $0x4c] sm:$0xf]
        %v1353 = vld [vmem:[%s1 + $0x50] sm:$0xf]
        %v1354 = vld [vmem:[%s1 + $0x54] sm:$0xf]
        %v1355 = vld [vmem:[%s1 + $0x58] sm:$0xf]
        %v1356 = vld [vmem:[%s1 + $0x5c] sm:$0xf]
        %v1357 = vld [vmem:[%s1 + $0x60] sm:$0xf]
        %v1358 = vld [vmem:[%s1 + $0x64] sm:$0xf]
        %v1359 = vld [vmem:[%s1 + $0x68] sm:$0xf]
        %v1360 = vld [vmem:[%s1 + $0x6c] sm:$0xf]
        %v1361 = vld [vmem:[%s1 + $0x70] sm:$0xf]
        %v1362 = vld [vmem:[%s1 + $0x74] sm:$0xf]
        %v1363 = vld [vmem:[%s1 + $0x78] sm:$0xf]
        %v1364 = vld [vmem:[%s1 + $0x7c] sm:$0xf]
        %v1373 = vunpack.c.l.b16 %v1325
        %v1374 = vunpack.c.h.b16 %v1325
        %v1375 = vunpack.c.l.b16 %v1326
        %v1376 = vunpack.c.h.b16 %v1326
        %v1377 = vunpack.c.l.b16 %v1327
        %v1378 = vunpack.c.h.b16 %v1327
        %v1379 = vunpack.c.l.b16 %v1328
        %v1380 = vunpack.c.h.b16 %v1328
        %v1381 = vunpack.c.l.b16 %v1329
        %v1382 = vunpack.c.h.b16 %v1329
        %v1383 = vunpack.c.l.b16 %v1330
        %v1384 = vunpack.c.h.b16 %v1330
        %v1385 = vunpack.c.l.b16 %v1331
        %v1386 = vunpack.c.h.b16 %v1331
        %v1387 = vunpack.c.l.b16 %v1332
        %v1388 = vunpack.c.h.b16 %v1332
        %v1389 = vpack.c.b16 %v1375, %v1373
        %v1390 = vpack.c.b16 %v1376, %v1374
        %v1391 = vpack.c.b16 %v1379, %v1377
        %v1392 = vpack.c.b16 %v1380, %v1378
        %v1393 = vpack.c.b16 %v1383, %v1381
        %v1394 = vpack.c.b16 %v1384, %v1382
        %v1395 = vpack.c.b16 %v1387, %v1385
        %v1396 = vpack.c.b16 %v1388, %v1386
        %v1437 = vunpack.c.l.b16 %v1333
        %v1438 = vunpack.c.l.b16 %v1334
        %v1439 = vunpack.c.l.b16 %v1335
        %v1440 = vunpack.c.l.b16 %v1336
        %v1441 = vunpack.c.l.b16 %v1337
        %v1442 = vunpack.c.l.b16 %v1338
        %v1443 = vunpack.c.l.b16 %v1339
        %v1444 = vunpack.c.l.b16 %v1340
        %v1445 = vunpack.c.l.b16 %v1341
        %v1446 = vunpack.c.l.b16 %v1342
        %v1447 = vunpack.c.l.b16 %v1343
        %v1448 = vunpack.c.l.b16 %v1344
        %v1449 = vunpack.c.l.b16 %v1345
        %v1450 = vunpack.c.l.b16 %v1346
        %v1451 = vunpack.c.l.b16 %v1347
        %v1452 = vunpack.c.l.b16 %v1348
        %v1453 = vunpack.c.l.b16 %v1349
        %v1454 = vunpack.c.l.b16 %v1350
        %v1455 = vunpack.c.l.b16 %v1351
        %v1456 = vunpack.c.l.b16 %v1352
        %v1457 = vunpack.c.l.b16 %v1353
        %v1458 = vunpack.c.l.b16 %v1354
        %v1459 = vunpack.c.l.b16 %v1355
        %v1460 = vunpack.c.l.b16 %v1356
        %v1461 = vunpack.c.l.b16 %v1357
        %v1462 = vunpack.c.l.b16 %v1358
        %v1463 = vunpack.c.l.b16 %v1359
        %v1464 = vunpack.c.l.b16 %v1360
        %v1465 = vunpack.c.l.b16 %v1361
        %v1466 = vunpack.c.l.b16 %v1362
        %v1467 = vunpack.c.l.b16 %v1363
        %v1468 = vunpack.c.l.b16 %v1364
        %v1469 = vpack.c.b16 %v1438, %v1437
        %v1470 = vpack.c.b16 %v1440, %v1439
        %v1471 = vpack.c.b16 %v1442, %v1441
        %v1472 = vpack.c.b16 %v1444, %v1443
        %v1473 = vpack.c.b16 %v1446, %v1445
        %v1474 = vpack.c.b16 %v1448, %v1447
        %v1475 = vpack.c.b16 %v1450, %v1449
        %v1476 = vpack.c.b16 %v1452, %v1451
        %v1477 = vpack.c.b16 %v1454, %v1453
        %v1478 = vpack.c.b16 %v1456, %v1455
        %v1479 = vpack.c.b16 %v1458, %v1457
        %v1480 = vpack.c.b16 %v1460, %v1459
        %v1481 = vpack.c.b16 %v1462, %v1461
        %v1482 = vpack.c.b16 %v1464, %v1463
        %v1483 = vpack.c.b16 %v1466, %v1465
        %v1484 = vpack.c.b16 %v1468, %v1467
        %1501 = vmatpush.bf16.msra.mxu0 %v1476
        %1502 = vmatpush.bf16.msra.mxu0 %v1475
        %1503 = vmatpush.bf16.msra.mxu0 %v1474
        %1504 = vmatpush.bf16.msra.mxu0 %v1473
        %1505 = vmatpush.bf16.msra.mxu0 %v1472
        %1506 = vmatpush.bf16.msra.mxu0 %v1471
        %1507 = vmatpush.bf16.msra.mxu0 %v1470
        %1508 = vmatpush.bf16.msra.mxu0 %v1469
        %1509 = vmatmul.bf16.gmra.mxu0 %v1389
        %v1510 = vpop.f32.mrf.mxu0
        %v1511 = vadd.f32 0.0, %v1510
        %v1512 = vpop.f32.mrf.mxu0
        %v1513 = vadd.f32 0.0, %v1512
        %1514 = vmatmul.bf16.gmra.mxu0 %v1391
        %v1515 = vpop.f32.mrf.mxu0
        %v1516 = vadd.f32 0.0, %v1515
        %v1517 = vpop.f32.mrf.mxu0
        %v1518 = vadd.f32 0.0, %v1517
        %1519 = vmatmul.bf16.gmra.mxu0 %v1393
        %v1520 = vpop.f32.mrf.mxu0
        %v1521 = vadd.f32 0.0, %v1520
        %v1522 = vpop.f32.mrf.mxu0
        %v1523 = vadd.f32 0.0, %v1522
        %1524 = vmatmul.bf16.gmra.mxu0 %v1395
        %v1525 = vpop.f32.mrf.mxu0
        %v1526 = vadd.f32 0.0, %v1525
        %v1527 = vpop.f32.mrf.mxu0
        %v1528 = vadd.f32 0.0, %v1527
        %1529 = vdwg.mxu0
        %1530 = vmatpush.bf16.msra.mxu0 %v1484
        %1531 = vmatpush.bf16.msra.mxu0 %v1483
        %1532 = vmatpush.bf16.msra.mxu0 %v1482
        %1533 = vmatpush.bf16.msra.mxu0 %v1481
        %1534 = vmatpush.bf16.msra.mxu0 %v1480
        %1535 = vmatpush.bf16.msra.mxu0 %v1479
        %1536 = vmatpush.bf16.msra.mxu0 %v1478
        %1537 = vmatpush.bf16.msra.mxu0 %v1477
        %1538 = vmatmul.bf16.gmra.mxu0 %v1390
        %v1539 = vpop.f32.mrf.mxu0
        %v1540 = vadd.f32 %v1511, %v1539
        %v1541 = vpop.f32.mrf.mxu0
        %v1542 = vadd.f32 %v1513, %v1541
        %1543 = vmatmul.bf16.gmra.mxu0 %v1392
        %v1544 = vpop.f32.mrf.mxu0
        %v1545 = vadd.f32 %v1516, %v1544
        %v1546 = vpop.f32.mrf.mxu0
        %v1547 = vadd.f32 %v1518, %v1546
        %1548 = vmatmul.bf16.gmra.mxu0 %v1394
        %v1549 = vpop.f32.mrf.mxu0
        %v1550 = vadd.f32 %v1521, %v1549
        %v1551 = vpop.f32.mrf.mxu0
        %v1552 = vadd.f32 %v1523, %v1551
        %1553 = vmatmul.bf16.gmra.mxu0 %v1396
        %v1554 = vpop.f32.mrf.mxu0
        %v1555 = vadd.f32 %v1526, %v1554
        %v1556 = vpop.f32.mrf.mxu0
        %v1557 = vadd.f32 %v1528, %v1556
        %1558 = vdwg.mxu0
        %v1559 = vld [vmem:[%s2] sm:$0x1]
        %v1561 = vperm.slane %v1559, 0
        %v1563 = vmul.f32 %v1540, %v1561
        %v1564 = vmul.f32 %v1542, %v1561
        %v1565 = vmul.f32 %v1545, %v1561
        %v1566 = vmul.f32 %v1547, %v1561
        %v1567 = vmul.f32 %v1550, %v1561
        %v1568 = vmul.f32 %v1552, %v1561
        %v1569 = vmul.f32 %v1555, %v1561
        %v1570 = vmul.f32 %v1557, %v1561
        %v1571 = vld [vmem:[%s3] sm:$0x1]
        %v1573 = vperm.slane %v1571, 0
        %v1575 = vadd.f32 %v1563, %v1573
        %v1576 = vadd.f32 %v1564, %v1573
        %v1577 = vadd.f32 %v1565, %v1573
        %v1578 = vadd.f32 %v1566, %v1573
        %v1579 = vadd.f32 %v1567, %v1573
        %v1580 = vadd.f32 %v1568, %v1573
        %v1581 = vadd.f32 %v1569, %v1573
        %v1582 = vadd.f32 %v1570, %v1573
        %v1583 = vmul.f32 %v1575, 0.16666667
        %v1584 = vmul.f32 %v1576, 0.16666667
        %v1585 = vmul.f32 %v1577, 0.16666667
        %v1586 = vmul.f32 %v1578, 0.16666667
        %v1587 = vmul.f32 %v1579, 0.16666667
        %v1588 = vmul.f32 %v1580, 0.16666667
        %v1589 = vmul.f32 %v1581, 0.16666667
        %v1590 = vmul.f32 %v1582, 0.16666667
        %v1591 = vadd.f32 %v1583, 0.5
        %v1592 = vadd.f32 %v1584, 0.5
        %v1593 = vadd.f32 %v1585, 0.5
        %v1594 = vadd.f32 %v1586, 0.5
        %v1595 = vadd.f32 %v1587, 0.5
        %v1596 = vadd.f32 %v1588, 0.5
        %v1597 = vadd.f32 %v1589, 0.5
        %v1598 = vadd.f32 %v1590, 0.5
        %v1599 = vmax.f32 %v1591, 0.0
        %v1600 = vmax.f32 %v1592, 0.0
        %v1601 = vmax.f32 %v1593, 0.0
        %v1602 = vmax.f32 %v1594, 0.0
        %v1603 = vmax.f32 %v1595, 0.0
        %v1604 = vmax.f32 %v1596, 0.0
        %v1605 = vmax.f32 %v1597, 0.0
        %v1606 = vmax.f32 %v1598, 0.0
        %v1607 = vmin.f32 %v1599, 1.0
        %v1608 = vmin.f32 %v1600, 1.0
        %v1609 = vmin.f32 %v1601, 1.0
        %v1610 = vmin.f32 %v1602, 1.0
        %v1611 = vmin.f32 %v1603, 1.0
        %v1612 = vmin.f32 %v1604, 1.0
        %v1613 = vmin.f32 %v1605, 1.0
        %v1614 = vmin.f32 %v1606, 1.0
        %v1615 = vmul.f32 %v1575, %v1607
        %v1616 = vmul.f32 %v1576, %v1608
        %v1617 = vmul.f32 %v1577, %v1609
        %v1618 = vmul.f32 %v1578, %v1610
        %v1619 = vmul.f32 %v1579, %v1611
        %v1620 = vmul.f32 %v1580, %v1612
        %v1621 = vmul.f32 %v1581, %v1613
        %v1622 = vmul.f32 %v1582, %v1614
        %v1623 = vrot.slane %v1615, 7
        %v1624 = vrot.slane %v1616, 7
        %v1625 = vrot.slane %v1617, 7
        %v1626 = vrot.slane %v1618, 7
        %v1627 = vrot.slane %v1619, 7
        %v1628 = vrot.slane %v1620, 7
        %v1629 = vrot.slane %v1621, 7
        %v1630 = vrot.slane %v1622, 7
        %v1631 = vsel %vm717, %v1629, %v1630
        %v1632 = vsel %vm717, %v1628, %v1629
        %v1633 = vsel %vm717, %v1627, %v1628
        %v1634 = vsel %vm717, %v1626, %v1627
        %v1635 = vsel %vm717, %v1625, %v1626
        %v1636 = vsel %vm717, %v1624, %v1625
        %v1637 = vsel %vm717, %v1623, %v1624
        %v1638 = vsel %vm717, %v1630, %v1623
        %v1639 = vsel %vm734, %v1638, 0.0
        %v1640 = vsel %vm735, %v1637, 0.0
        %v1641 = vsel %vm736, %v1636, 0.0
        %v1642 = vsel %vm737, %v1635, 0.0
        %v1643 = vsel %vm738, %v1634, 0.0
        %v1644 = vsel %vm739, %v1633, 0.0
        %v1645 = vsel %vm740, %v1632, 0.0
        %v1646 = vsel %vm741, %v1631, 0.0
        %v1647 = vpack.c.bf16 %v1639, %v1639
        %v1648 = vpack.c.bf16 %v1640, %v1640
        %v1649 = vpack.c.bf16 %v1641, %v1641
        %v1650 = vpack.c.bf16 %v1642, %v1642
        %v1651 = vpack.c.bf16 %v1643, %v1643
        %v1652 = vpack.c.bf16 %v1644, %v1644
        %v1653 = vpack.c.bf16 %v1645, %v1645
        %v1654 = vpack.c.bf16 %v1646, %v1646
        %1655 = vst [vmem:[#allocation2 + $0x288] sm:$0xf] %v1647
        %1656 = vst [vmem:[#allocation2 + $0x2ac] sm:$0xf] %v1648
        %1657 = vst [vmem:[#allocation2 + $0x2d0] sm:$0xf] %v1649
        %1658 = vst [vmem:[#allocation2 + $0x2f4] sm:$0xf] %v1650
        %1659 = vst [vmem:[#allocation2 + $0x318] sm:$0xf] %v1651
        %1660 = vst [vmem:[#allocation2 + $0x33c] sm:$0xf] %v1652
        %1661 = vst [vmem:[#allocation2 + $0x360] sm:$0xf] %v1653
        %1662 = vst [vmem:[#allocation2 + $0x384] sm:$0xf] %v1654
        %1663 = vst [vmem:[#allocation2 + $0x24c] sm:$0xf] %v1647
        %1664 = vst [vmem:[#allocation2 + $0x270] sm:$0xf] %v1648
        %1665 = vst [vmem:[#allocation2 + $0x294] sm:$0xf] %v1649
        %1666 = vst [vmem:[#allocation2 + $0x2b8] sm:$0xf] %v1650
        %1667 = vst [vmem:[#allocation2 + $0x2dc] sm:$0xf] %v1651
        %1668 = vst [vmem:[#allocation2 + $0x300] sm:$0xf] %v1652
        %1669 = vst [vmem:[#allocation2 + $0x324] sm:$0xf] %v1653
        %1670 = vst [vmem:[#allocation2 + $0x348] sm:$0xf] %v1654
        %1671 = vst [vmem:[#allocation2 + $0x210] sm:$0xf] %v1647
        %1672 = vst [vmem:[#allocation2 + $0x234] sm:$0xf] %v1648
        %1673 = vst [vmem:[#allocation2 + $0x258] sm:$0xf] %v1649
        %1674 = vst [vmem:[#allocation2 + $0x27c] sm:$0xf] %v1650
        %1675 = vst [vmem:[#allocation2 + $0x2a0] sm:$0xf] %v1651
        %1676 = vst [vmem:[#allocation2 + $0x2c4] sm:$0xf] %v1652
        %1677 = vst [vmem:[#allocation2 + $0x2e8] sm:$0xf] %v1653
        %1678 = vst [vmem:[#allocation2 + $0x30c] sm:$0xf] %v1654
        %v1679 = vpack.c.bf16 %v1615, %v1615
        %v1680 = vpack.c.bf16 %v1616, %v1616
        %v1681 = vpack.c.bf16 %v1617, %v1617
        %v1682 = vpack.c.bf16 %v1618, %v1618
        %v1683 = vpack.c.bf16 %v1619, %v1619
        %v1684 = vpack.c.bf16 %v1620, %v1620
        %v1685 = vpack.c.bf16 %v1621, %v1621
        %v1686 = vpack.c.bf16 %v1622, %v1622
        %1687 = vst [vmem:[#allocation2 + $0x28c] sm:$0xf] %v1679
        %1688 = vst [vmem:[#allocation2 + $0x2b0] sm:$0xf] %v1680
        %1689 = vst [vmem:[#allocation2 + $0x2d4] sm:$0xf] %v1681
        %1690 = vst [vmem:[#allocation2 + $0x2f8] sm:$0xf] %v1682
        %1691 = vst [vmem:[#allocation2 + $0x31c] sm:$0xf] %v1683
        %1692 = vst [vmem:[#allocation2 + $0x340] sm:$0xf] %v1684
        %1693 = vst [vmem:[#allocation2 + $0x364] sm:$0xf] %v1685
        %1694 = vst [vmem:[#allocation2 + $0x388] sm:$0xf] %v1686
        %1695 = vst [vmem:[#allocation2 + $0x250] sm:$0xf] %v1679
        %1696 = vst [vmem:[#allocation2 + $0x274] sm:$0xf] %v1680
        %1697 = vst [vmem:[#allocation2 + $0x298] sm:$0xf] %v1681
        %1698 = vst [vmem:[#allocation2 + $0x2bc] sm:$0xf] %v1682
        %1699 = vst [vmem:[#allocation2 + $0x2e0] sm:$0xf] %v1683
        %1700 = vst [vmem:[#allocation2 + $0x304] sm:$0xf] %v1684
        %1701 = vst [vmem:[#allocation2 + $0x328] sm:$0xf] %v1685
        %1702 = vst [vmem:[#allocation2 + $0x34c] sm:$0xf] %v1686
        %1703 = vst [vmem:[#allocation2 + $0x214] sm:$0xf] %v1679
        %1704 = vst [vmem:[#allocation2 + $0x238] sm:$0xf] %v1680
        %1705 = vst [vmem:[#allocation2 + $0x25c] sm:$0xf] %v1681
        %1706 = vst [vmem:[#allocation2 + $0x280] sm:$0xf] %v1682
        %1707 = vst [vmem:[#allocation2 + $0x2a4] sm:$0xf] %v1683
        %1708 = vst [vmem:[#allocation2 + $0x2c8] sm:$0xf] %v1684
        %1709 = vst [vmem:[#allocation2 + $0x2ec] sm:$0xf] %v1685
        %1710 = vst [vmem:[#allocation2 + $0x310] sm:$0xf] %v1686
        %v1711 = vrot.slane %v1615, 1
        %v1712 = vrot.slane %v1616, 1
        %v1713 = vrot.slane %v1617, 1
        %v1714 = vrot.slane %v1618, 1
        %v1715 = vrot.slane %v1619, 1
        %v1716 = vrot.slane %v1620, 1
        %v1717 = vrot.slane %v1621, 1
        %v1718 = vrot.slane %v1622, 1
        %v1719 = vsel %vm818, %v1717, %v1718
        %v1720 = vsel %vm818, %v1716, %v1717
        %v1721 = vsel %vm818, %v1715, %v1716
        %v1722 = vsel %vm818, %v1714, %v1715
        %v1723 = vsel %vm818, %v1713, %v1714
        %v1724 = vsel %vm818, %v1712, %v1713
        %v1725 = vsel %vm818, %v1711, %v1712
        %v1726 = vsel %vm818, %v1718, %v1711
        %v1727 = vsel %vm835, %v1725, 0.0
        %v1728 = vsel %vm836, %v1724, 0.0
        %v1729 = vsel %vm837, %v1723, 0.0
        %v1730 = vsel %vm838, %v1722, 0.0
        %v1731 = vsel %vm839, %v1721, 0.0
        %v1732 = vsel %vm840, %v1720, 0.0
        %v1733 = vsel %vm841, %v1719, 0.0
        %v1734 = vsel %vm842, %v1726, 0.0
        %v1735 = vpack.c.bf16 %v1727, %v1727
        %v1736 = vpack.c.bf16 %v1728, %v1728
        %v1737 = vpack.c.bf16 %v1729, %v1729
        %v1738 = vpack.c.bf16 %v1730, %v1730
        %v1739 = vpack.c.bf16 %v1731, %v1731
        %v1740 = vpack.c.bf16 %v1732, %v1732
        %v1741 = vpack.c.bf16 %v1733, %v1733
        %v1742 = vpack.c.bf16 %v1734, %v1734
        %1743 = vst [vmem:[#allocation2 + $0x290] sm:$0xf] %v1735
        %1744 = vst [vmem:[#allocation2 + $0x2b4] sm:$0xf] %v1736
        %1745 = vst [vmem:[#allocation2 + $0x2d8] sm:$0xf] %v1737
        %1746 = vst [vmem:[#allocation2 + $0x2fc] sm:$0xf] %v1738
        %1747 = vst [vmem:[#allocation2 + $0x320] sm:$0xf] %v1739
        %1748 = vst [vmem:[#allocation2 + $0x344] sm:$0xf] %v1740
        %1749 = vst [vmem:[#allocation2 + $0x368] sm:$0xf] %v1741
        %1750 = vst [vmem:[#allocation2 + $0x38c] sm:$0xf] %v1742
        %1751 = vst [vmem:[#allocation2 + $0x254] sm:$0xf] %v1735
        %1752 = vst [vmem:[#allocation2 + $0x278] sm:$0xf] %v1736
        %1753 = vst [vmem:[#allocation2 + $0x29c] sm:$0xf] %v1737
        %1754 = vst [vmem:[#allocation2 + $0x2c0] sm:$0xf] %v1738
        %1755 = vst [vmem:[#allocation2 + $0x2e4] sm:$0xf] %v1739
        %1756 = vst [vmem:[#allocation2 + $0x308] sm:$0xf] %v1740
        %1757 = vst [vmem:[#allocation2 + $0x32c] sm:$0xf] %v1741
        %1758 = vst [vmem:[#allocation2 + $0x350] sm:$0xf] %v1742
        %1759 = vst [vmem:[#allocation2 + $0x218] sm:$0xf] %v1735
        %1760 = vst [vmem:[#allocation2 + $0x23c] sm:$0xf] %v1736
        %1761 = vst [vmem:[#allocation2 + $0x260] sm:$0xf] %v1737
        %1762 = vst [vmem:[#allocation2 + $0x284] sm:$0xf] %v1738
        %1763 = vst [vmem:[#allocation2 + $0x2a8] sm:$0xf] %v1739
        %1764 = vst [vmem:[#allocation2 + $0x2cc] sm:$0xf] %v1740
        %1765 = vst [vmem:[#allocation2 + $0x2f0] sm:$0xf] %v1741
        %1766 = vst [vmem:[#allocation2 + $0x314] sm:$0xf] %v1742
        %s1767 = scalar_lea.vmem %s276, 192
        %v1768 = vld [vmem:[%s1767] sm:$0xff]
        %v1769 = vld [vmem:[%s1767 + $0x8] sm:$0xff]
        %v1770 = vld [vmem:[%s1767 + $0x10] sm:$0xff]
        %v1771 = vld [vmem:[%s1767 + $0x18] sm:$0xff]
        %v1772 = vld [vmem:[%s1767 + $0x20] sm:$0xff]
        %v1773 = vld [vmem:[%s1767 + $0x28] sm:$0xff]
        %v1774 = vld [vmem:[%s1767 + $0x30] sm:$0xff]
        %v1775 = vld [vmem:[%s1767 + $0x38] sm:$0xff]
        %v1776 = vld [vmem:[%s1] sm:$0xf]
        %v1777 = vld [vmem:[%s1 + $0x4] sm:$0xf]
        %v1778 = vld [vmem:[%s1 + $0x8] sm:$0xf]
        %v1779 = vld [vmem:[%s1 + $0xc] sm:$0xf]
        %v1780 = vld [vmem:[%s1 + $0x10] sm:$0xf]
        %v1781 = vld [vmem:[%s1 + $0x14] sm:$0xf]
        %v1782 = vld [vmem:[%s1 + $0x18] sm:$0xf]
        %v1783 = vld [vmem:[%s1 + $0x1c] sm:$0xf]
        %v1784 = vld [vmem:[%s1 + $0x20] sm:$0xf]
        %v1785 = vld [vmem:[%s1 + $0x24] sm:$0xf]
        %v1786 = vld [vmem:[%s1 + $0x28] sm:$0xf]
        %v1787 = vld [vmem:[%s1 + $0x2c] sm:$0xf]
        %v1788 = vld [vmem:[%s1 + $0x30] sm:$0xf]
        %v1789 = vld [vmem:[%s1 + $0x34] sm:$0xf]
        %v1790 = vld [vmem:[%s1 + $0x38] sm:$0xf]
        %v1791 = vld [vmem:[%s1 + $0x3c] sm:$0xf]
        %v1792 = vld [vmem:[%s1 + $0x40] sm:$0xf]
        %v1793 = vld [vmem:[%s1 + $0x44] sm:$0xf]
        %v1794 = vld [vmem:[%s1 + $0x48] sm:$0xf]
        %v1795 = vld [vmem:[%s1 + $0x4c] sm:$0xf]
        %v1796 = vld [vmem:[%s1 + $0x50] sm:$0xf]
        %v1797 = vld [vmem:[%s1 + $0x54] sm:$0xf]
        %v1798 = vld [vmem:[%s1 + $0x58] sm:$0xf]
        %v1799 = vld [vmem:[%s1 + $0x5c] sm:$0xf]
        %v1800 = vld [vmem:[%s1 + $0x60] sm:$0xf]
        %v1801 = vld [vmem:[%s1 + $0x64] sm:$0xf]
        %v1802 = vld [vmem:[%s1 + $0x68] sm:$0xf]
        %v1803 = vld [vmem:[%s1 + $0x6c] sm:$0xf]
        %v1804 = vld [vmem:[%s1 + $0x70] sm:$0xf]
        %v1805 = vld [vmem:[%s1 + $0x74] sm:$0xf]
        %v1806 = vld [vmem:[%s1 + $0x78] sm:$0xf]
        %v1807 = vld [vmem:[%s1 + $0x7c] sm:$0xf]
        %v1816 = vunpack.c.l.b16 %v1768
        %v1817 = vunpack.c.h.b16 %v1768
        %v1818 = vunpack.c.l.b16 %v1769
        %v1819 = vunpack.c.h.b16 %v1769
        %v1820 = vunpack.c.l.b16 %v1770
        %v1821 = vunpack.c.h.b16 %v1770
        %v1822 = vunpack.c.l.b16 %v1771
        %v1823 = vunpack.c.h.b16 %v1771
        %v1824 = vunpack.c.l.b16 %v1772
        %v1825 = vunpack.c.h.b16 %v1772
        %v1826 = vunpack.c.l.b16 %v1773
        %v1827 = vunpack.c.h.b16 %v1773
        %v1828 = vunpack.c.l.b16 %v1774
        %v1829 = vunpack.c.h.b16 %v1774
        %v1830 = vunpack.c.l.b16 %v1775
        %v1831 = vunpack.c.h.b16 %v1775
        %v1832 = vpack.c.b16 %v1818, %v1816
        %v1833 = vpack.c.b16 %v1819, %v1817
        %v1834 = vpack.c.b16 %v1822, %v1820
        %v1835 = vpack.c.b16 %v1823, %v1821
        %v1836 = vpack.c.b16 %v1826, %v1824
        %v1837 = vpack.c.b16 %v1827, %v1825
        %v1838 = vpack.c.b16 %v1830, %v1828
        %v1839 = vpack.c.b16 %v1831, %v1829
        %v1880 = vunpack.c.l.b16 %v1776
        %v1881 = vunpack.c.l.b16 %v1777
        %v1882 = vunpack.c.l.b16 %v1778
        %v1883 = vunpack.c.l.b16 %v1779
        %v1884 = vunpack.c.l.b16 %v1780
        %v1885 = vunpack.c.l.b16 %v1781
        %v1886 = vunpack.c.l.b16 %v1782
        %v1887 = vunpack.c.l.b16 %v1783
        %v1888 = vunpack.c.l.b16 %v1784
        %v1889 = vunpack.c.l.b16 %v1785
        %v1890 = vunpack.c.l.b16 %v1786
        %v1891 = vunpack.c.l.b16 %v1787
        %v1892 = vunpack.c.l.b16 %v1788
        %v1893 = vunpack.c.l.b16 %v1789
        %v1894 = vunpack.c.l.b16 %v1790
        %v1895 = vunpack.c.l.b16 %v1791
        %v1896 = vunpack.c.l.b16 %v1792
        %v1897 = vunpack.c.l.b16 %v1793
        %v1898 = vunpack.c.l.b16 %v1794
        %v1899 = vunpack.c.l.b16 %v1795
        %v1900 = vunpack.c.l.b16 %v1796
        %v1901 = vunpack.c.l.b16 %v1797
        %v1902 = vunpack.c.l.b16 %v1798
        %v1903 = vunpack.c.l.b16 %v1799
        %v1904 = vunpack.c.l.b16 %v1800
        %v1905 = vunpack.c.l.b16 %v1801
        %v1906 = vunpack.c.l.b16 %v1802
        %v1907 = vunpack.c.l.b16 %v1803
        %v1908 = vunpack.c.l.b16 %v1804
        %v1909 = vunpack.c.l.b16 %v1805
        %v1910 = vunpack.c.l.b16 %v1806
        %v1911 = vunpack.c.l.b16 %v1807
        %v1912 = vpack.c.b16 %v1881, %v1880
        %v1913 = vpack.c.b16 %v1883, %v1882
        %v1914 = vpack.c.b16 %v1885, %v1884
        %v1915 = vpack.c.b16 %v1887, %v1886
        %v1916 = vpack.c.b16 %v1889, %v1888
        %v1917 = vpack.c.b16 %v1891, %v1890
        %v1918 = vpack.c.b16 %v1893, %v1892
        %v1919 = vpack.c.b16 %v1895, %v1894
        %v1920 = vpack.c.b16 %v1897, %v1896
        %v1921 = vpack.c.b16 %v1899, %v1898
        %v1922 = vpack.c.b16 %v1901, %v1900
        %v1923 = vpack.c.b16 %v1903, %v1902
        %v1924 = vpack.c.b16 %v1905, %v1904
        %v1925 = vpack.c.b16 %v1907, %v1906
        %v1926 = vpack.c.b16 %v1909, %v1908
        %v1927 = vpack.c.b16 %v1911, %v1910
        %1944 = vmatpush.bf16.msra.mxu0 %v1919
        %1945 = vmatpush.bf16.msra.mxu0 %v1918
        %1946 = vmatpush.bf16.msra.mxu0 %v1917
        %1947 = vmatpush.bf16.msra.mxu0 %v1916
        %1948 = vmatpush.bf16.msra.mxu0 %v1915
        %1949 = vmatpush.bf16.msra.mxu0 %v1914
        %1950 = vmatpush.bf16.msra.mxu0 %v1913
        %1951 = vmatpush.bf16.msra.mxu0 %v1912
        %1952 = vmatmul.bf16.gmra.mxu0 %v1832
        %v1953 = vpop.f32.mrf.mxu0
        %v1954 = vadd.f32 0.0, %v1953
        %v1955 = vpop.f32.mrf.mxu0
        %v1956 = vadd.f32 0.0, %v1955
        %1957 = vmatmul.bf16.gmra.mxu0 %v1834
        %v1958 = vpop.f32.mrf.mxu0
        %v1959 = vadd.f32 0.0, %v1958
        %v1960 = vpop.f32.mrf.mxu0
        %v1961 = vadd.f32 0.0, %v1960
        %1962 = vmatmul.bf16.gmra.mxu0 %v1836
        %v1963 = vpop.f32.mrf.mxu0
        %v1964 = vadd.f32 0.0, %v1963
        %v1965 = vpop.f32.mrf.mxu0
        %v1966 = vadd.f32 0.0, %v1965
        %1967 = vmatmul.bf16.gmra.mxu0 %v1838
        %v1968 = vpop.f32.mrf.mxu0
        %v1969 = vadd.f32 0.0, %v1968
        %v1970 = vpop.f32.mrf.mxu0
        %v1971 = vadd.f32 0.0, %v1970
        %1972 = vdwg.mxu0
        %1973 = vmatpush.bf16.msra.mxu0 %v1927
        %1974 = vmatpush.bf16.msra.mxu0 %v1926
        %1975 = vmatpush.bf16.msra.mxu0 %v1925
        %1976 = vmatpush.bf16.msra.mxu0 %v1924
        %1977 = vmatpush.bf16.msra.mxu0 %v1923
        %1978 = vmatpush.bf16.msra.mxu0 %v1922
        %1979 = vmatpush.bf16.msra.mxu0 %v1921
        %1980 = vmatpush.bf16.msra.mxu0 %v1920
        %1981 = vmatmul.bf16.gmra.mxu0 %v1833
        %v1982 = vpop.f32.mrf.mxu0
        %v1983 = vadd.f32 %v1954, %v1982
        %v1984 = vpop.f32.mrf.mxu0
        %v1985 = vadd.f32 %v1956, %v1984
        %1986 = vmatmul.bf16.gmra.mxu0 %v1835
        %v1987 = vpop.f32.mrf.mxu0
        %v1988 = vadd.f32 %v1959, %v1987
        %v1989 = vpop.f32.mrf.mxu0
        %v1990 = vadd.f32 %v1961, %v1989
        %1991 = vmatmul.bf16.gmra.mxu0 %v1837
        %v1992 = vpop.f32.mrf.mxu0
        %v1993 = vadd.f32 %v1964, %v1992
        %v1994 = vpop.f32.mrf.mxu0
        %v1995 = vadd.f32 %v1966, %v1994
        %1996 = vmatmul.bf16.gmra.mxu0 %v1839
        %v1997 = vpop.f32.mrf.mxu0
        %v1998 = vadd.f32 %v1969, %v1997
        %v1999 = vpop.f32.mrf.mxu0
        %v2000 = vadd.f32 %v1971, %v1999
        %2001 = vdwg.mxu0
        %v2002 = vld [vmem:[%s2] sm:$0x1]
        %v2004 = vperm.slane %v2002, 0
        %v2006 = vmul.f32 %v1983, %v2004
        %v2007 = vmul.f32 %v1985, %v2004
        %v2008 = vmul.f32 %v1988, %v2004
        %v2009 = vmul.f32 %v1990, %v2004
        %v2010 = vmul.f32 %v1993, %v2004
        %v2011 = vmul.f32 %v1995, %v2004
        %v2012 = vmul.f32 %v1998, %v2004
        %v2013 = vmul.f32 %v2000, %v2004
        %v2014 = vld [vmem:[%s3] sm:$0x1]
        %v2016 = vperm.slane %v2014, 0
        %v2018 = vadd.f32 %v2006, %v2016
        %v2019 = vadd.f32 %v2007, %v2016
        %v2020 = vadd.f32 %v2008, %v2016
        %v2021 = vadd.f32 %v2009, %v2016
        %v2022 = vadd.f32 %v2010, %v2016
        %v2023 = vadd.f32 %v2011, %v2016
        %v2024 = vadd.f32 %v2012, %v2016
        %v2025 = vadd.f32 %v2013, %v2016
        %v2026 = vmul.f32 %v2018, 0.16666667
        %v2027 = vmul.f32 %v2019, 0.16666667
        %v2028 = vmul.f32 %v2020, 0.16666667
        %v2029 = vmul.f32 %v2021, 0.16666667
        %v2030 = vmul.f32 %v2022, 0.16666667
        %v2031 = vmul.f32 %v2023, 0.16666667
        %v2032 = vmul.f32 %v2024, 0.16666667
        %v2033 = vmul.f32 %v2025, 0.16666667
        %v2034 = vadd.f32 %v2026, 0.5
        %v2035 = vadd.f32 %v2027, 0.5
        %v2036 = vadd.f32 %v2028, 0.5
        %v2037 = vadd.f32 %v2029, 0.5
        %v2038 = vadd.f32 %v2030, 0.5
        %v2039 = vadd.f32 %v2031, 0.5
        %v2040 = vadd.f32 %v2032, 0.5
        %v2041 = vadd.f32 %v2033, 0.5
        %v2042 = vmax.f32 %v2034, 0.0
        %v2043 = vmax.f32 %v2035, 0.0
        %v2044 = vmax.f32 %v2036, 0.0
        %v2045 = vmax.f32 %v2037, 0.0
        %v2046 = vmax.f32 %v2038, 0.0
        %v2047 = vmax.f32 %v2039, 0.0
        %v2048 = vmax.f32 %v2040, 0.0
        %v2049 = vmax.f32 %v2041, 0.0
        %v2050 = vmin.f32 %v2042, 1.0
        %v2051 = vmin.f32 %v2043, 1.0
        %v2052 = vmin.f32 %v2044, 1.0
        %v2053 = vmin.f32 %v2045, 1.0
        %v2054 = vmin.f32 %v2046, 1.0
        %v2055 = vmin.f32 %v2047, 1.0
        %v2056 = vmin.f32 %v2048, 1.0
        %v2057 = vmin.f32 %v2049, 1.0
        %v2058 = vmul.f32 %v2018, %v2050
        %v2059 = vmul.f32 %v2019, %v2051
        %v2060 = vmul.f32 %v2020, %v2052
        %v2061 = vmul.f32 %v2021, %v2053
        %v2062 = vmul.f32 %v2022, %v2054
        %v2063 = vmul.f32 %v2023, %v2055
        %v2064 = vmul.f32 %v2024, %v2056
        %v2065 = vmul.f32 %v2025, %v2057
        %v2066 = vrot.slane %v2058, 7
        %v2067 = vrot.slane %v2059, 7
        %v2068 = vrot.slane %v2060, 7
        %v2069 = vrot.slane %v2061, 7
        %v2070 = vrot.slane %v2062, 7
        %v2071 = vrot.slane %v2063, 7
        %v2072 = vrot.slane %v2064, 7
        %v2073 = vrot.slane %v2065, 7
        %v2074 = vsel %vm717, %v2072, %v2073
        %v2075 = vsel %vm717, %v2071, %v2072
        %v2076 = vsel %vm717, %v2070, %v2071
        %v2077 = vsel %vm717, %v2069, %v2070
        %v2078 = vsel %vm717, %v2068, %v2069
        %v2079 = vsel %vm717, %v2067, %v2068
        %v2080 = vsel %vm717, %v2066, %v2067
        %v2081 = vsel %vm717, %v2073, %v2066
        %v2082 = vsel %vm734, %v2081, 0.0
        %v2083 = vsel %vm735, %v2080, 0.0
        %v2084 = vsel %vm736, %v2079, 0.0
        %v2085 = vsel %vm737, %v2078, 0.0
        %v2086 = vsel %vm738, %v2077, 0.0
        %v2087 = vsel %vm739, %v2076, 0.0
        %v2088 = vsel %vm740, %v2075, 0.0
        %v2089 = vsel %vm741, %v2074, 0.0
        %v2090 = vpack.c.bf16 %v2082, %v2082
        %v2091 = vpack.c.bf16 %v2083, %v2083
        %v2092 = vpack.c.bf16 %v2084, %v2084
        %v2093 = vpack.c.bf16 %v2085, %v2085
        %v2094 = vpack.c.bf16 %v2086, %v2086
        %v2095 = vpack.c.bf16 %v2087, %v2087
        %v2096 = vpack.c.bf16 %v2088, %v2088
        %v2097 = vpack.c.bf16 %v2089, %v2089
        %2098 = vst [vmem:[#allocation2 + $0x3a8] sm:$0xf] %v2090
        %2099 = vst [vmem:[#allocation2 + $0x3cc] sm:$0xf] %v2091
        %2100 = vst [vmem:[#allocation2 + $0x3f0] sm:$0xf] %v2092
        %2101 = vst [vmem:[#allocation2 + $0x414] sm:$0xf] %v2093
        %2102 = vst [vmem:[#allocation2 + $0x438] sm:$0xf] %v2094
        %2103 = vst [vmem:[#allocation2 + $0x45c] sm:$0xf] %v2095
        %2104 = vst [vmem:[#allocation2 + $0x36c] sm:$0xf] %v2090
        %2105 = vst [vmem:[#allocation2 + $0x390] sm:$0xf] %v2091
        %2106 = vst [vmem:[#allocation2 + $0x3b4] sm:$0xf] %v2092
        %2107 = vst [vmem:[#allocation2 + $0x3d8] sm:$0xf] %v2093
        %2108 = vst [vmem:[#allocation2 + $0x3fc] sm:$0xf] %v2094
        %2109 = vst [vmem:[#allocation2 + $0x420] sm:$0xf] %v2095
        %2110 = vst [vmem:[#allocation2 + $0x444] sm:$0xf] %v2096
        %2111 = vst [vmem:[#allocation2 + $0x468] sm:$0xf] %v2097
        %2112 = vst [vmem:[#allocation2 + $0x330] sm:$0xf] %v2090
        %2113 = vst [vmem:[#allocation2 + $0x354] sm:$0xf] %v2091
        %2114 = vst [vmem:[#allocation2 + $0x378] sm:$0xf] %v2092
        %2115 = vst [vmem:[#allocation2 + $0x39c] sm:$0xf] %v2093
        %2116 = vst [vmem:[#allocation2 + $0x3c0] sm:$0xf] %v2094
        %2117 = vst [vmem:[#allocation2 + $0x3e4] sm:$0xf] %v2095
        %2118 = vst [vmem:[#allocation2 + $0x408] sm:$0xf] %v2096
        %2119 = vst [vmem:[#allocation2 + $0x42c] sm:$0xf] %v2097
        %v2120 = vpack.c.bf16 %v2058, %v2058
        %v2121 = vpack.c.bf16 %v2059, %v2059
        %v2122 = vpack.c.bf16 %v2060, %v2060
        %v2123 = vpack.c.bf16 %v2061, %v2061
        %v2124 = vpack.c.bf16 %v2062, %v2062
        %v2125 = vpack.c.bf16 %v2063, %v2063
        %v2126 = vpack.c.bf16 %v2064, %v2064
        %v2127 = vpack.c.bf16 %v2065, %v2065
        %2128 = vst [vmem:[#allocation2 + $0x3ac] sm:$0xf] %v2120
        %2129 = vst [vmem:[#allocation2 + $0x3d0] sm:$0xf] %v2121
        %2130 = vst [vmem:[#allocation2 + $0x3f4] sm:$0xf] %v2122
        %2131 = vst [vmem:[#allocation2 + $0x418] sm:$0xf] %v2123
        %2132 = vst [vmem:[#allocation2 + $0x43c] sm:$0xf] %v2124
        %2133 = vst [vmem:[#allocation2 + $0x460] sm:$0xf] %v2125
        %2134 = vst [vmem:[#allocation2 + $0x370] sm:$0xf] %v2120
        %2135 = vst [vmem:[#allocation2 + $0x394] sm:$0xf] %v2121
        %2136 = vst [vmem:[#allocation2 + $0x3b8] sm:$0xf] %v2122
        %2137 = vst [vmem:[#allocation2 + $0x3dc] sm:$0xf] %v2123
        %2138 = vst [vmem:[#allocation2 + $0x400] sm:$0xf] %v2124
        %2139 = vst [vmem:[#allocation2 + $0x424] sm:$0xf] %v2125
        %2140 = vst [vmem:[#allocation2 + $0x448] sm:$0xf] %v2126
        %2141 = vst [vmem:[#allocation2 + $0x46c] sm:$0xf] %v2127
        %2142 = vst [vmem:[#allocation2 + $0x334] sm:$0xf] %v2120
        %2143 = vst [vmem:[#allocation2 + $0x358] sm:$0xf] %v2121
        %2144 = vst [vmem:[#allocation2 + $0x37c] sm:$0xf] %v2122
        %2145 = vst [vmem:[#allocation2 + $0x3a0] sm:$0xf] %v2123
        %2146 = vst [vmem:[#allocation2 + $0x3c4] sm:$0xf] %v2124
        %2147 = vst [vmem:[#allocation2 + $0x3e8] sm:$0xf] %v2125
        %2148 = vst [vmem:[#allocation2 + $0x40c] sm:$0xf] %v2126
        %2149 = vst [vmem:[#allocation2 + $0x430] sm:$0xf] %v2127
        %v2150 = vrot.slane %v2058, 1
        %v2151 = vrot.slane %v2059, 1
        %v2152 = vrot.slane %v2060, 1
        %v2153 = vrot.slane %v2061, 1
        %v2154 = vrot.slane %v2062, 1
        %v2155 = vrot.slane %v2063, 1
        %v2156 = vrot.slane %v2064, 1
        %v2157 = vrot.slane %v2065, 1
        %v2158 = vsel %vm818, %v2156, %v2157
        %v2159 = vsel %vm818, %v2155, %v2156
        %v2160 = vsel %vm818, %v2154, %v2155
        %v2161 = vsel %vm818, %v2153, %v2154
        %v2162 = vsel %vm818, %v2152, %v2153
        %v2163 = vsel %vm818, %v2151, %v2152
        %v2164 = vsel %vm818, %v2150, %v2151
        %v2165 = vsel %vm818, %v2157, %v2150
        %v2166 = vsel %vm835, %v2164, 0.0
        %v2167 = vsel %vm836, %v2163, 0.0
        %v2168 = vsel %vm837, %v2162, 0.0
        %v2169 = vsel %vm838, %v2161, 0.0
        %v2170 = vsel %vm839, %v2160, 0.0
        %v2171 = vsel %vm840, %v2159, 0.0
        %v2172 = vsel %vm841, %v2158, 0.0
        %v2173 = vsel %vm842, %v2165, 0.0
        %v2174 = vpack.c.bf16 %v2166, %v2166
        %v2175 = vpack.c.bf16 %v2167, %v2167
        %v2176 = vpack.c.bf16 %v2168, %v2168
        %v2177 = vpack.c.bf16 %v2169, %v2169
        %v2178 = vpack.c.bf16 %v2170, %v2170
        %v2179 = vpack.c.bf16 %v2171, %v2171
        %v2180 = vpack.c.bf16 %v2172, %v2172
        %v2181 = vpack.c.bf16 %v2173, %v2173
        %2182 = vst [vmem:[#allocation2 + $0x3b0] sm:$0xf] %v2174
        %2183 = vst [vmem:[#allocation2 + $0x3d4] sm:$0xf] %v2175
        %2184 = vst [vmem:[#allocation2 + $0x3f8] sm:$0xf] %v2176
        %2185 = vst [vmem:[#allocation2 + $0x41c] sm:$0xf] %v2177
        %2186 = vst [vmem:[#allocation2 + $0x440] sm:$0xf] %v2178
        %2187 = vst [vmem:[#allocation2 + $0x464] sm:$0xf] %v2179
        %2188 = vst [vmem:[#allocation2 + $0x374] sm:$0xf] %v2174
        %2189 = vst [vmem:[#allocation2 + $0x398] sm:$0xf] %v2175
        %2190 = vst [vmem:[#allocation2 + $0x3bc] sm:$0xf] %v2176
        %2191 = vst [vmem:[#allocation2 + $0x3e0] sm:$0xf] %v2177
        %2192 = vst [vmem:[#allocation2 + $0x404] sm:$0xf] %v2178
        %2193 = vst [vmem:[#allocation2 + $0x428] sm:$0xf] %v2179
        %2194 = vst [vmem:[#allocation2 + $0x44c] sm:$0xf] %v2180
        %2195 = vst [vmem:[#allocation2 + $0x470] sm:$0xf] %v2181
        %2196 = vst [vmem:[#allocation2 + $0x338] sm:$0xf] %v2174
        %2197 = vst [vmem:[#allocation2 + $0x35c] sm:$0xf] %v2175
        %2198 = vst [vmem:[#allocation2 + $0x380] sm:$0xf] %v2176
        %2199 = vst [vmem:[#allocation2 + $0x3a4] sm:$0xf] %v2177
        %2200 = vst [vmem:[#allocation2 + $0x3c8] sm:$0xf] %v2178
        %2201 = vst [vmem:[#allocation2 + $0x3ec] sm:$0xf] %v2179
        %2202 = vst [vmem:[#allocation2 + $0x410] sm:$0xf] %v2180
        %2203 = vst [vmem:[#allocation2 + $0x434] sm:$0xf] %v2181
        %v2204 = vld [vmem:[#allocation2] sm:$0xff]
        %v2205 = vld [vmem:[#allocation2 + $0x8] sm:$0xff]
        %v2206 = vld [vmem:[#allocation2 + $0x10] sm:$0xff]
        %v2207 = vld [vmem:[#allocation2 + $0x18] sm:$0xff]
        %v2208 = vld [vmem:[#allocation2 + $0x20] sm:$0xf]
        %v2209 = vld [vmem:[#allocation2 + $0x24] sm:$0xff]
        %v2210 = vld [vmem:[#allocation2 + $0x2c] sm:$0xff]
        %v2211 = vld [vmem:[#allocation2 + $0x34] sm:$0xff]
        %v2212 = vld [vmem:[#allocation2 + $0x3c] sm:$0xff]
        %v2213 = vld [vmem:[#allocation2 + $0x44] sm:$0xf]
        %v2214 = vld [vmem:[#allocation2 + $0x48] sm:$0xff]
        %v2215 = vld [vmem:[#allocation2 + $0x50] sm:$0xff]
        %v2216 = vld [vmem:[#allocation2 + $0x58] sm:$0xff]
        %v2217 = vld [vmem:[#allocation2 + $0x60] sm:$0xff]
        %v2218 = vld [vmem:[#allocation2 + $0x68] sm:$0xf]
        %v2219 = vld [vmem:[#allocation2 + $0x6c] sm:$0xff]
        %v2220 = vld [vmem:[#allocation2 + $0x74] sm:$0xff]
        %v2221 = vld [vmem:[#allocation2 + $0x7c] sm:$0xff]
        %v2222 = vld [vmem:[#allocation2 + $0x84] sm:$0xff]
        %v2223 = vld [vmem:[#allocation2 + $0x8c] sm:$0xf]
        %v2224 = vld [vmem:[#allocation2 + $0x90] sm:$0xff]
        %v2225 = vld [vmem:[#allocation2 + $0x98] sm:$0xff]
        %v2226 = vld [vmem:[#allocation2 + $0xa0] sm:$0xff]
        %v2227 = vld [vmem:[#allocation2 + $0xa8] sm:$0xff]
        %v2228 = vld [vmem:[#allocation2 + $0xb0] sm:$0xf]
        %v2229 = vld [vmem:[#allocation2 + $0xb4] sm:$0xff]
        %v2230 = vld [vmem:[#allocation2 + $0xbc] sm:$0xff]
        %v2231 = vld [vmem:[#allocation2 + $0xc4] sm:$0xff]
        %v2232 = vld [vmem:[#allocation2 + $0xcc] sm:$0xff]
        %v2233 = vld [vmem:[#allocation2 + $0xd4] sm:$0xf]
        %v2234 = vld [vmem:[#allocation2 + $0xd8] sm:$0xff]
        %v2235 = vld [vmem:[#allocation2 + $0xe0] sm:$0xff]
        %v2236 = vld [vmem:[#allocation2 + $0xe8] sm:$0xff]
        %v2237 = vld [vmem:[#allocation2 + $0xf0] sm:$0xff]
        %v2238 = vld [vmem:[#allocation2 + $0xf8] sm:$0xf]
        %v2239 = vld [vmem:[#allocation2 + $0xfc] sm:$0xff]
        %v2240 = vld [vmem:[#allocation2 + $0x104] sm:$0xff]
        %v2241 = vld [vmem:[#allocation2 + $0x10c] sm:$0xff]
        %v2242 = vld [vmem:[#allocation2 + $0x114] sm:$0xff]
        %v2243 = vld [vmem:[#allocation2 + $0x11c] sm:$0xf]
        %v2244 = vld [vmem:[%s4] sm:$0xff]
        %v2245 = vld [vmem:[%s4 + $0x8] sm:$0xff]
        %v2246 = vld [vmem:[%s4 + $0x10] sm:$0xff]
        %v2247 = vld [vmem:[%s4 + $0x18] sm:$0xff]
        %v2248 = vld [vmem:[%s4 + $0x20] sm:$0xff]
        %v2249 = vld [vmem:[%s4 + $0x28] sm:$0xff]
        %v2250 = vld [vmem:[%s4 + $0x30] sm:$0xff]
        %v2251 = vld [vmem:[%s4 + $0x38] sm:$0xff]
        %v2252 = vld [vmem:[%s4 + $0x40] sm:$0xff]
        %v2253 = vld [vmem:[%s4 + $0x48] sm:$0xff]
        %v2254 = vld [vmem:[%s4 + $0x50] sm:$0xff]
        %v2255 = vld [vmem:[%s4 + $0x58] sm:$0xff]
        %v2256 = vld [vmem:[%s4 + $0x60] sm:$0xff]
        %v2257 = vld [vmem:[%s4 + $0x68] sm:$0xff]
        %v2258 = vld [vmem:[%s4 + $0x70] sm:$0xff]
        %v2259 = vld [vmem:[%s4 + $0x78] sm:$0xff]
        %v2260 = vld [vmem:[%s4 + $0x80] sm:$0xff]
        %v2261 = vld [vmem:[%s4 + $0x88] sm:$0xff]
        %v2262 = vld [vmem:[%s4 + $0x90] sm:$0xff]
        %v2263 = vld [vmem:[%s4 + $0x98] sm:$0xff]
        %v2264 = vld [vmem:[%s4 + $0xa0] sm:$0xff]
        %v2265 = vld [vmem:[%s4 + $0xa8] sm:$0xff]
        %v2266 = vld [vmem:[%s4 + $0xb0] sm:$0xff]
        %v2267 = vld [vmem:[%s4 + $0xb8] sm:$0xff]
        %v2268 = vld [vmem:[%s4 + $0xc0] sm:$0xff]
        %v2269 = vld [vmem:[%s4 + $0xc8] sm:$0xff]
        %v2270 = vld [vmem:[%s4 + $0xd0] sm:$0xff]
        %v2271 = vld [vmem:[%s4 + $0xd8] sm:$0xff]
        %v2272 = vld [vmem:[%s4 + $0xe0] sm:$0xff]
        %v2273 = vld [vmem:[%s4 + $0xe8] sm:$0xff]
        %v2274 = vld [vmem:[%s4 + $0xf0] sm:$0xff]
        %v2275 = vld [vmem:[%s4 + $0xf8] sm:$0xff]
        %v2276 = vld [vmem:[%s4 + $0x100] sm:$0xff]
        %v2277 = vld [vmem:[%s4 + $0x108] sm:$0xff]
        %v2278 = vld [vmem:[%s4 + $0x110] sm:$0xff]
        %v2279 = vld [vmem:[%s4 + $0x118] sm:$0xff]
        %v2280 = vld [vmem:[%s4 + $0x120] sm:$0xff]
        %v2281 = vld [vmem:[%s4 + $0x128] sm:$0xff]
        %v2282 = vld [vmem:[%s4 + $0x130] sm:$0xff]
        %v2283 = vld [vmem:[%s4 + $0x138] sm:$0xff]
        %v2284 = vld [vmem:[%s4 + $0x140] sm:$0xff]
        %v2285 = vld [vmem:[%s4 + $0x148] sm:$0xff]
        %v2286 = vld [vmem:[%s4 + $0x150] sm:$0xff]
        %v2287 = vld [vmem:[%s4 + $0x158] sm:$0xff]
        %v2288 = vld [vmem:[%s4 + $0x160] sm:$0xff]
        %v2289 = vld [vmem:[%s4 + $0x168] sm:$0xff]
        %v2290 = vld [vmem:[%s4 + $0x170] sm:$0xff]
        %v2291 = vld [vmem:[%s4 + $0x178] sm:$0xff]
        %v2292 = vld [vmem:[%s4 + $0x180] sm:$0xff]
        %v2293 = vld [vmem:[%s4 + $0x188] sm:$0xff]
        %v2294 = vld [vmem:[%s4 + $0x190] sm:$0xff]
        %v2295 = vld [vmem:[%s4 + $0x198] sm:$0xff]
        %v2296 = vld [vmem:[%s4 + $0x1a0] sm:$0xff]
        %v2297 = vld [vmem:[%s4 + $0x1a8] sm:$0xff]
        %v2298 = vld [vmem:[%s4 + $0x1b0] sm:$0xff]
        %v2299 = vld [vmem:[%s4 + $0x1b8] sm:$0xff]
        %v2300 = vld [vmem:[%s4 + $0x1c0] sm:$0xff]
        %v2301 = vld [vmem:[%s4 + $0x1c8] sm:$0xff]
        %v2302 = vld [vmem:[%s4 + $0x1d0] sm:$0xff]
        %v2303 = vld [vmem:[%s4 + $0x1d8] sm:$0xff]
        %v2304 = vld [vmem:[%s4 + $0x1e0] sm:$0xff]
        %v2305 = vld [vmem:[%s4 + $0x1e8] sm:$0xff]
        %v2306 = vld [vmem:[%s4 + $0x1f0] sm:$0xff]
        %v2307 = vld [vmem:[%s4 + $0x1f8] sm:$0xff]
        %v2308 = vld [vmem:[%s4 + $0x200] sm:$0xff]
        %v2309 = vld [vmem:[%s4 + $0x208] sm:$0xff]
        %v2310 = vld [vmem:[%s4 + $0x210] sm:$0xff]
        %v2311 = vld [vmem:[%s4 + $0x218] sm:$0xff]
        %v2312 = vld [vmem:[%s4 + $0x220] sm:$0xff]
        %v2313 = vld [vmem:[%s4 + $0x228] sm:$0xff]
        %v2314 = vld [vmem:[%s4 + $0x230] sm:$0xff]
        %v2315 = vld [vmem:[%s4 + $0x238] sm:$0xff]
        %v2316 = vld [vmem:[%s4 + $0x240] sm:$0xff]
        %v2317 = vld [vmem:[%s4 + $0x248] sm:$0xff]
        %v2318 = vld [vmem:[%s4 + $0x250] sm:$0xff]
        %v2319 = vld [vmem:[%s4 + $0x258] sm:$0xff]
        %v2320 = vld [vmem:[%s4 + $0x260] sm:$0xff]
        %v2321 = vld [vmem:[%s4 + $0x268] sm:$0xff]
        %v2322 = vld [vmem:[%s4 + $0x270] sm:$0xff]
        %v2323 = vld [vmem:[%s4 + $0x278] sm:$0xff]
        %v2324 = vld [vmem:[%s4 + $0x280] sm:$0xff]
        %v2325 = vld [vmem:[%s4 + $0x288] sm:$0xff]
        %v2326 = vld [vmem:[%s4 + $0x290] sm:$0xff]
        %v2327 = vld [vmem:[%s4 + $0x298] sm:$0xff]
        %v2328 = vld [vmem:[%s4 + $0x2a0] sm:$0xff]
        %v2329 = vld [vmem:[%s4 + $0x2a8] sm:$0xff]
        %v2330 = vld [vmem:[%s4 + $0x2b0] sm:$0xff]
        %v2331 = vld [vmem:[%s4 + $0x2b8] sm:$0xff]
        %v2332 = vld [vmem:[%s4 + $0x2c0] sm:$0xff]
        %v2333 = vld [vmem:[%s4 + $0x2c8] sm:$0xff]
        %v2334 = vld [vmem:[%s4 + $0x2d0] sm:$0xff]
        %v2335 = vld [vmem:[%s4 + $0x2d8] sm:$0xff]
        %v2336 = vld [vmem:[%s4 + $0x2e0] sm:$0xff]
        %v2337 = vld [vmem:[%s4 + $0x2e8] sm:$0xff]
        %v2338 = vld [vmem:[%s4 + $0x2f0] sm:$0xff]
        %v2339 = vld [vmem:[%s4 + $0x2f8] sm:$0xff]
        %v2340 = vld [vmem:[%s4 + $0x300] sm:$0xff]
        %v2341 = vld [vmem:[%s4 + $0x308] sm:$0xff]
        %v2342 = vld [vmem:[%s4 + $0x310] sm:$0xff]
        %v2343 = vld [vmem:[%s4 + $0x318] sm:$0xff]
        %v2344 = vld [vmem:[%s4 + $0x320] sm:$0xff]
        %v2345 = vld [vmem:[%s4 + $0x328] sm:$0xff]
        %v2346 = vld [vmem:[%s4 + $0x330] sm:$0xff]
        %v2347 = vld [vmem:[%s4 + $0x338] sm:$0xff]
        %v2348 = vld [vmem:[%s4 + $0x340] sm:$0xff]
        %v2349 = vld [vmem:[%s4 + $0x348] sm:$0xff]
        %v2350 = vld [vmem:[%s4 + $0x350] sm:$0xff]
        %v2351 = vld [vmem:[%s4 + $0x358] sm:$0xff]
        %v2352 = vld [vmem:[%s4 + $0x360] sm:$0xff]
        %v2353 = vld [vmem:[%s4 + $0x368] sm:$0xff]
        %v2354 = vld [vmem:[%s4 + $0x370] sm:$0xff]
        %v2355 = vld [vmem:[%s4 + $0x378] sm:$0xff]
        %v2356 = vld [vmem:[%s4 + $0x380] sm:$0xff]
        %v2357 = vld [vmem:[%s4 + $0x388] sm:$0xff]
        %v2358 = vld [vmem:[%s4 + $0x390] sm:$0xff]
        %v2359 = vld [vmem:[%s4 + $0x398] sm:$0xff]
        %v2360 = vld [vmem:[%s4 + $0x3a0] sm:$0xff]
        %v2361 = vld [vmem:[%s4 + $0x3a8] sm:$0xff]
        %v2362 = vld [vmem:[%s4 + $0x3b0] sm:$0xff]
        %v2363 = vld [vmem:[%s4 + $0x3b8] sm:$0xff]
        %v2364 = vld [vmem:[%s4 + $0x3c0] sm:$0xff]
        %v2365 = vld [vmem:[%s4 + $0x3c8] sm:$0xff]
        %v2366 = vld [vmem:[%s4 + $0x3d0] sm:$0xff]
        %v2367 = vld [vmem:[%s4 + $0x3d8] sm:$0xff]
        %v2368 = vld [vmem:[%s4 + $0x3e0] sm:$0xff]
        %v2369 = vld [vmem:[%s4 + $0x3e8] sm:$0xff]
        %v2370 = vld [vmem:[%s4 + $0x3f0] sm:$0xff]
        %v2371 = vld [vmem:[%s4 + $0x3f8] sm:$0xff]
        %v2372 = vld [vmem:[%s4 + $0x400] sm:$0xff]
        %v2373 = vld [vmem:[%s4 + $0x408] sm:$0xff]
        %v2374 = vld [vmem:[%s4 + $0x410] sm:$0xff]
        %v2375 = vld [vmem:[%s4 + $0x418] sm:$0xff]
        %v2376 = vld [vmem:[%s4 + $0x420] sm:$0xff]
        %v2377 = vld [vmem:[%s4 + $0x428] sm:$0xff]
        %v2378 = vld [vmem:[%s4 + $0x430] sm:$0xff]
        %v2379 = vld [vmem:[%s4 + $0x438] sm:$0xff]
        %v2380 = vld [vmem:[%s4 + $0x440] sm:$0xff]
        %v2381 = vld [vmem:[%s4 + $0x448] sm:$0xff]
        %v2382 = vld [vmem:[%s4 + $0x450] sm:$0xff]
        %v2383 = vld [vmem:[%s4 + $0x458] sm:$0xff]
        %v2384 = vld [vmem:[%s4 + $0x460] sm:$0xff]
        %v2385 = vld [vmem:[%s4 + $0x468] sm:$0xff]
        %v2386 = vld [vmem:[%s4 + $0x470] sm:$0xff]
        %v2387 = vld [vmem:[%s4 + $0x478] sm:$0xff]
        %v2428 = vunpack.c.l.b16 %v2204
        %v2429 = vunpack.c.h.b16 %v2204
        %v2430 = vunpack.c.l.b16 %v2205
        %v2431 = vunpack.c.h.b16 %v2205
        %v2432 = vunpack.c.l.b16 %v2206
        %v2433 = vunpack.c.h.b16 %v2206
        %v2434 = vunpack.c.l.b16 %v2207
        %v2435 = vunpack.c.h.b16 %v2207
        %v2436 = vunpack.c.l.b16 %v2208
        %v2437 = vunpack.c.l.b16 %v2209
        %v2438 = vunpack.c.h.b16 %v2209
        %v2439 = vunpack.c.l.b16 %v2210
        %v2440 = vunpack.c.h.b16 %v2210
        %v2441 = vunpack.c.l.b16 %v2211
        %v2442 = vunpack.c.h.b16 %v2211
        %v2443 = vunpack.c.l.b16 %v2212
        %v2444 = vunpack.c.h.b16 %v2212
        %v2445 = vunpack.c.l.b16 %v2213
        %v2446 = vunpack.c.l.b16 %v2214
        %v2447 = vunpack.c.h.b16 %v2214
        %v2448 = vunpack.c.l.b16 %v2215
        %v2449 = vunpack.c.h.b16 %v2215
        %v2450 = vunpack.c.l.b16 %v2216
        %v2451 = vunpack.c.h.b16 %v2216
        %v2452 = vunpack.c.l.b16 %v2217
        %v2453 = vunpack.c.h.b16 %v2217
        %v2454 = vunpack.c.l.b16 %v2218
        %v2455 = vunpack.c.l.b16 %v2219
        %v2456 = vunpack.c.h.b16 %v2219
        %v2457 = vunpack.c.l.b16 %v2220
        %v2458 = vunpack.c.h.b16 %v2220
        %v2459 = vunpack.c.l.b16 %v2221
        %v2460 = vunpack.c.h.b16 %v2221
        %v2461 = vunpack.c.l.b16 %v2222
        %v2462 = vunpack.c.h.b16 %v2222
        %v2463 = vunpack.c.l.b16 %v2223
        %v2464 = vunpack.c.l.b16 %v2224
        %v2465 = vunpack.c.h.b16 %v2224
        %v2466 = vunpack.c.l.b16 %v2225
        %v2467 = vunpack.c.h.b16 %v2225
        %v2468 = vunpack.c.l.b16 %v2226
        %v2469 = vunpack.c.h.b16 %v2226
        %v2470 = vunpack.c.l.b16 %v2227
        %v2471 = vunpack.c.h.b16 %v2227
        %v2472 = vunpack.c.l.b16 %v2228
        %v2473 = vunpack.c.l.b16 %v2229
        %v2474 = vunpack.c.h.b16 %v2229
        %v2475 = vunpack.c.l.b16 %v2230
        %v2476 = vunpack.c.h.b16 %v2230
        %v2477 = vunpack.c.l.b16 %v2231
        %v2478 = vunpack.c.h.b16 %v2231
        %v2479 = vunpack.c.l.b16 %v2232
        %v2480 = vunpack.c.h.b16 %v2232
        %v2481 = vunpack.c.l.b16 %v2233
        %v2482 = vunpack.c.l.b16 %v2234
        %v2483 = vunpack.c.h.b16 %v2234
        %v2484 = vunpack.c.l.b16 %v2235
        %v2485 = vunpack.c.h.b16 %v2235
        %v2486 = vunpack.c.l.b16 %v2236
        %v2487 = vunpack.c.h.b16 %v2236
        %v2488 = vunpack.c.l.b16 %v2237
        %v2489 = vunpack.c.h.b16 %v2237
        %v2490 = vunpack.c.l.b16 %v2238
        %v2491 = vunpack.c.l.b16 %v2239
        %v2492 = vunpack.c.h.b16 %v2239
        %v2493 = vunpack.c.l.b16 %v2240
        %v2494 = vunpack.c.h.b16 %v2240
        %v2495 = vunpack.c.l.b16 %v2241
        %v2496 = vunpack.c.h.b16 %v2241
        %v2497 = vunpack.c.l.b16 %v2242
        %v2498 = vunpack.c.h.b16 %v2242
        %v2499 = vunpack.c.l.b16 %v2243
        %v2500 = vpack.c.b16 %v2437, %v2428
        %v2501 = vpack.c.b16 %v2438, %v2429
        %v2502 = vpack.c.b16 %v2439, %v2430
        %v2503 = vpack.c.b16 %v2440, %v2431
        %v2504 = vpack.c.b16 %v2441, %v2432
        %v2505 = vpack.c.b16 %v2442, %v2433
        %v2506 = vpack.c.b16 %v2443, %v2434
        %v2507 = vpack.c.b16 %v2444, %v2435
        %v2508 = vpack.c.b16 %v2445, %v2436
        %v2509 = vpack.c.b16 %v2455, %v2446
        %v2510 = vpack.c.b16 %v2456, %v2447
        %v2511 = vpack.c.b16 %v2457, %v2448
        %v2512 = vpack.c.b16 %v2458, %v2449
        %v2513 = vpack.c.b16 %v2459, %v2450
        %v2514 = vpack.c.b16 %v2460, %v2451
        %v2515 = vpack.c.b16 %v2461, %v2452
        %v2516 = vpack.c.b16 %v2462, %v2453
        %v2517 = vpack.c.b16 %v2463, %v2454
        %v2518 = vpack.c.b16 %v2473, %v2464
        %v2519 = vpack.c.b16 %v2474, %v2465
        %v2520 = vpack.c.b16 %v2475, %v2466
        %v2521 = vpack.c.b16 %v2476, %v2467
        %v2522 = vpack.c.b16 %v2477, %v2468
        %v2523 = vpack.c.b16 %v2478, %v2469
        %v2524 = vpack.c.b16 %v2479, %v2470
        %v2525 = vpack.c.b16 %v2480, %v2471
        %v2526 = vpack.c.b16 %v2481, %v2472
        %v2527 = vpack.c.b16 %v2491, %v2482
        %v2528 = vpack.c.b16 %v2492, %v2483
        %v2529 = vpack.c.b16 %v2493, %v2484
        %v2530 = vpack.c.b16 %v2494, %v2485
        %v2531 = vpack.c.b16 %v2495, %v2486
        %v2532 = vpack.c.b16 %v2496, %v2487
        %v2533 = vpack.c.b16 %v2497, %v2488
        %v2534 = vpack.c.b16 %v2498, %v2489
        %v2535 = vpack.c.b16 %v2499, %v2490
        %v2716 = vunpack.c.l.b16 %v2244
        %v2717 = vunpack.c.h.b16 %v2244
        %v2718 = vunpack.c.l.b16 %v2245
        %v2719 = vunpack.c.h.b16 %v2245
        %v2720 = vunpack.c.l.b16 %v2246
        %v2721 = vunpack.c.h.b16 %v2246
        %v2722 = vunpack.c.l.b16 %v2247
        %v2723 = vunpack.c.h.b16 %v2247
        %v2724 = vunpack.c.l.b16 %v2248
        %v2725 = vunpack.c.h.b16 %v2248
        %v2726 = vunpack.c.l.b16 %v2249
        %v2727 = vunpack.c.h.b16 %v2249
        %v2728 = vunpack.c.l.b16 %v2250
        %v2729 = vunpack.c.h.b16 %v2250
        %v2730 = vunpack.c.l.b16 %v2251
        %v2731 = vunpack.c.h.b16 %v2251
        %v2732 = vunpack.c.l.b16 %v2252
        %v2733 = vunpack.c.h.b16 %v2252
        %v2734 = vunpack.c.l.b16 %v2253
        %v2735 = vunpack.c.h.b16 %v2253
        %v2736 = vunpack.c.l.b16 %v2254
        %v2737 = vunpack.c.h.b16 %v2254
        %v2738 = vunpack.c.l.b16 %v2255
        %v2739 = vunpack.c.h.b16 %v2255
        %v2740 = vunpack.c.l.b16 %v2256
        %v2741 = vunpack.c.h.b16 %v2256
        %v2742 = vunpack.c.l.b16 %v2257
        %v2743 = vunpack.c.h.b16 %v2257
        %v2744 = vunpack.c.l.b16 %v2258
        %v2745 = vunpack.c.h.b16 %v2258
        %v2746 = vunpack.c.l.b16 %v2259
        %v2747 = vunpack.c.h.b16 %v2259
        %v2748 = vunpack.c.l.b16 %v2260
        %v2749 = vunpack.c.h.b16 %v2260
        %v2750 = vunpack.c.l.b16 %v2261
        %v2751 = vunpack.c.h.b16 %v2261
        %v2752 = vunpack.c.l.b16 %v2262
        %v2753 = vunpack.c.h.b16 %v2262
        %v2754 = vunpack.c.l.b16 %v2263
        %v2755 = vunpack.c.h.b16 %v2263
        %v2756 = vunpack.c.l.b16 %v2264
        %v2757 = vunpack.c.h.b16 %v2264
        %v2758 = vunpack.c.l.b16 %v2265
        %v2759 = vunpack.c.h.b16 %v2265
        %v2760 = vunpack.c.l.b16 %v2266
        %v2761 = vunpack.c.h.b16 %v2266
        %v2762 = vunpack.c.l.b16 %v2267
        %v2763 = vunpack.c.h.b16 %v2267
        %v2764 = vunpack.c.l.b16 %v2268
        %v2765 = vunpack.c.h.b16 %v2268
        %v2766 = vunpack.c.l.b16 %v2269
        %v2767 = vunpack.c.h.b16 %v2269
        %v2768 = vunpack.c.l.b16 %v2270
        %v2769 = vunpack.c.h.b16 %v2270
        %v2770 = vunpack.c.l.b16 %v2271
        %v2771 = vunpack.c.h.b16 %v2271
        %v2772 = vunpack.c.l.b16 %v2272
        %v2773 = vunpack.c.h.b16 %v2272
        %v2774 = vunpack.c.l.b16 %v2273
        %v2775 = vunpack.c.h.b16 %v2273
        %v2776 = vunpack.c.l.b16 %v2274
        %v2777 = vunpack.c.h.b16 %v2274
        %v2778 = vunpack.c.l.b16 %v2275
        %v2779 = vunpack.c.h.b16 %v2275
        %v2780 = vunpack.c.l.b16 %v2276
        %v2781 = vunpack.c.h.b16 %v2276
        %v2782 = vunpack.c.l.b16 %v2277
        %v2783 = vunpack.c.h.b16 %v2277
        %v2784 = vunpack.c.l.b16 %v2278
        %v2785 = vunpack.c.h.b16 %v2278
        %v2786 = vunpack.c.l.b16 %v2279
        %v2787 = vunpack.c.h.b16 %v2279
        %v2788 = vunpack.c.l.b16 %v2280
        %v2789 = vunpack.c.h.b16 %v2280
        %v2790 = vunpack.c.l.b16 %v2281
        %v2791 = vunpack.c.h.b16 %v2281
        %v2792 = vunpack.c.l.b16 %v2282
        %v2793 = vunpack.c.h.b16 %v2282
        %v2794 = vunpack.c.l.b16 %v2283
        %v2795 = vunpack.c.h.b16 %v2283
        %v2796 = vunpack.c.l.b16 %v2284
        %v2797 = vunpack.c.h.b16 %v2284
        %v2798 = vunpack.c.l.b16 %v2285
        %v2799 = vunpack.c.h.b16 %v2285
        %v2800 = vunpack.c.l.b16 %v2286
        %v2801 = vunpack.c.h.b16 %v2286
        %v2802 = vunpack.c.l.b16 %v2287
        %v2803 = vunpack.c.h.b16 %v2287
        %v2804 = vunpack.c.l.b16 %v2288
        %v2805 = vunpack.c.h.b16 %v2288
        %v2806 = vunpack.c.l.b16 %v2289
        %v2807 = vunpack.c.h.b16 %v2289
        %v2808 = vunpack.c.l.b16 %v2290
        %v2809 = vunpack.c.h.b16 %v2290
        %v2810 = vunpack.c.l.b16 %v2291
        %v2811 = vunpack.c.h.b16 %v2291
        %v2812 = vunpack.c.l.b16 %v2292
        %v2813 = vunpack.c.h.b16 %v2292
        %v2814 = vunpack.c.l.b16 %v2293
        %v2815 = vunpack.c.h.b16 %v2293
        %v2816 = vunpack.c.l.b16 %v2294
        %v2817 = vunpack.c.h.b16 %v2294
        %v2818 = vunpack.c.l.b16 %v2295
        %v2819 = vunpack.c.h.b16 %v2295
        %v2820 = vunpack.c.l.b16 %v2296
        %v2821 = vunpack.c.h.b16 %v2296
        %v2822 = vunpack.c.l.b16 %v2297
        %v2823 = vunpack.c.h.b16 %v2297
        %v2824 = vunpack.c.l.b16 %v2298
        %v2825 = vunpack.c.h.b16 %v2298
        %v2826 = vunpack.c.l.b16 %v2299
        %v2827 = vunpack.c.h.b16 %v2299
        %v2828 = vunpack.c.l.b16 %v2300
        %v2829 = vunpack.c.h.b16 %v2300
        %v2830 = vunpack.c.l.b16 %v2301
        %v2831 = vunpack.c.h.b16 %v2301
        %v2832 = vunpack.c.l.b16 %v2302
        %v2833 = vunpack.c.h.b16 %v2302
        %v2834 = vunpack.c.l.b16 %v2303
        %v2835 = vunpack.c.h.b16 %v2303
        %v2836 = vunpack.c.l.b16 %v2304
        %v2837 = vunpack.c.h.b16 %v2304
        %v2838 = vunpack.c.l.b16 %v2305
        %v2839 = vunpack.c.h.b16 %v2305
        %v2840 = vunpack.c.l.b16 %v2306
        %v2841 = vunpack.c.h.b16 %v2306
        %v2842 = vunpack.c.l.b16 %v2307
        %v2843 = vunpack.c.h.b16 %v2307
        %v2844 = vunpack.c.l.b16 %v2308
        %v2845 = vunpack.c.h.b16 %v2308
        %v2846 = vunpack.c.l.b16 %v2309
        %v2847 = vunpack.c.h.b16 %v2309
        %v2848 = vunpack.c.l.b16 %v2310
        %v2849 = vunpack.c.h.b16 %v2310
        %v2850 = vunpack.c.l.b16 %v2311
        %v2851 = vunpack.c.h.b16 %v2311
        %v2852 = vunpack.c.l.b16 %v2312
        %v2853 = vunpack.c.h.b16 %v2312
        %v2854 = vunpack.c.l.b16 %v2313
        %v2855 = vunpack.c.h.b16 %v2313
        %v2856 = vunpack.c.l.b16 %v2314
        %v2857 = vunpack.c.h.b16 %v2314
        %v2858 = vunpack.c.l.b16 %v2315
        %v2859 = vunpack.c.h.b16 %v2315
        %v2860 = vunpack.c.l.b16 %v2316
        %v2861 = vunpack.c.h.b16 %v2316
        %v2862 = vunpack.c.l.b16 %v2317
        %v2863 = vunpack.c.h.b16 %v2317
        %v2864 = vunpack.c.l.b16 %v2318
        %v2865 = vunpack.c.h.b16 %v2318
        %v2866 = vunpack.c.l.b16 %v2319
        %v2867 = vunpack.c.h.b16 %v2319
        %v2868 = vunpack.c.l.b16 %v2320
        %v2869 = vunpack.c.h.b16 %v2320
        %v2870 = vunpack.c.l.b16 %v2321
        %v2871 = vunpack.c.h.b16 %v2321
        %v2872 = vunpack.c.l.b16 %v2322
        %v2873 = vunpack.c.h.b16 %v2322
        %v2874 = vunpack.c.l.b16 %v2323
        %v2875 = vunpack.c.h.b16 %v2323
        %v2876 = vunpack.c.l.b16 %v2324
        %v2877 = vunpack.c.h.b16 %v2324
        %v2878 = vunpack.c.l.b16 %v2325
        %v2879 = vunpack.c.h.b16 %v2325
        %v2880 = vunpack.c.l.b16 %v2326
        %v2881 = vunpack.c.h.b16 %v2326
        %v2882 = vunpack.c.l.b16 %v2327
        %v2883 = vunpack.c.h.b16 %v2327
        %v2884 = vunpack.c.l.b16 %v2328
        %v2885 = vunpack.c.h.b16 %v2328
        %v2886 = vunpack.c.l.b16 %v2329
        %v2887 = vunpack.c.h.b16 %v2329
        %v2888 = vunpack.c.l.b16 %v2330
        %v2889 = vunpack.c.h.b16 %v2330
        %v2890 = vunpack.c.l.b16 %v2331
        %v2891 = vunpack.c.h.b16 %v2331
        %v2892 = vunpack.c.l.b16 %v2332
        %v2893 = vunpack.c.h.b16 %v2332
        %v2894 = vunpack.c.l.b16 %v2333
        %v2895 = vunpack.c.h.b16 %v2333
        %v2896 = vunpack.c.l.b16 %v2334
        %v2897 = vunpack.c.h.b16 %v2334
        %v2898 = vunpack.c.l.b16 %v2335
        %v2899 = vunpack.c.h.b16 %v2335
        %v2900 = vunpack.c.l.b16 %v2336
        %v2901 = vunpack.c.h.b16 %v2336
        %v2902 = vunpack.c.l.b16 %v2337
        %v2903 = vunpack.c.h.b16 %v2337
        %v2904 = vunpack.c.l.b16 %v2338
        %v2905 = vunpack.c.h.b16 %v2338
        %v2906 = vunpack.c.l.b16 %v2339
        %v2907 = vunpack.c.h.b16 %v2339
        %v2908 = vunpack.c.l.b16 %v2340
        %v2909 = vunpack.c.h.b16 %v2340
        %v2910 = vunpack.c.l.b16 %v2341
        %v2911 = vunpack.c.h.b16 %v2341
        %v2912 = vunpack.c.l.b16 %v2342
        %v2913 = vunpack.c.h.b16 %v2342
        %v2914 = vunpack.c.l.b16 %v2343
        %v2915 = vunpack.c.h.b16 %v2343
        %v2916 = vunpack.c.l.b16 %v2344
        %v2917 = vunpack.c.h.b16 %v2344
        %v2918 = vunpack.c.l.b16 %v2345
        %v2919 = vunpack.c.h.b16 %v2345
        %v2920 = vunpack.c.l.b16 %v2346
        %v2921 = vunpack.c.h.b16 %v2346
        %v2922 = vunpack.c.l.b16 %v2347
        %v2923 = vunpack.c.h.b16 %v2347
        %v2924 = vunpack.c.l.b16 %v2348
        %v2925 = vunpack.c.h.b16 %v2348
        %v2926 = vunpack.c.l.b16 %v2349
        %v2927 = vunpack.c.h.b16 %v2349
        %v2928 = vunpack.c.l.b16 %v2350
        %v2929 = vunpack.c.h.b16 %v2350
        %v2930 = vunpack.c.l.b16 %v2351
        %v2931 = vunpack.c.h.b16 %v2351
        %v2932 = vunpack.c.l.b16 %v2352
        %v2933 = vunpack.c.h.b16 %v2352
        %v2934 = vunpack.c.l.b16 %v2353
        %v2935 = vunpack.c.h.b16 %v2353
        %v2936 = vunpack.c.l.b16 %v2354
        %v2937 = vunpack.c.h.b16 %v2354
        %v2938 = vunpack.c.l.b16 %v2355
        %v2939 = vunpack.c.h.b16 %v2355
        %v2940 = vunpack.c.l.b16 %v2356
        %v2941 = vunpack.c.h.b16 %v2356
        %v2942 = vunpack.c.l.b16 %v2357
        %v2943 = vunpack.c.h.b16 %v2357
        %v2944 = vunpack.c.l.b16 %v2358
        %v2945 = vunpack.c.h.b16 %v2358
        %v2946 = vunpack.c.l.b16 %v2359
        %v2947 = vunpack.c.h.b16 %v2359
        %v2948 = vunpack.c.l.b16 %v2360
        %v2949 = vunpack.c.h.b16 %v2360
        %v2950 = vunpack.c.l.b16 %v2361
        %v2951 = vunpack.c.h.b16 %v2361
        %v2952 = vunpack.c.l.b16 %v2362
        %v2953 = vunpack.c.h.b16 %v2362
        %v2954 = vunpack.c.l.b16 %v2363
        %v2955 = vunpack.c.h.b16 %v2363
        %v2956 = vunpack.c.l.b16 %v2364
        %v2957 = vunpack.c.h.b16 %v2364
        %v2958 = vunpack.c.l.b16 %v2365
        %v2959 = vunpack.c.h.b16 %v2365
        %v2960 = vunpack.c.l.b16 %v2366
        %v2961 = vunpack.c.h.b16 %v2366
        %v2962 = vunpack.c.l.b16 %v2367
        %v2963 = vunpack.c.h.b16 %v2367
        %v2964 = vunpack.c.l.b16 %v2368
        %v2965 = vunpack.c.h.b16 %v2368
        %v2966 = vunpack.c.l.b16 %v2369
        %v2967 = vunpack.c.h.b16 %v2369
        %v2968 = vunpack.c.l.b16 %v2370
        %v2969 = vunpack.c.h.b16 %v2370
        %v2970 = vunpack.c.l.b16 %v2371
        %v2971 = vunpack.c.h.b16 %v2371
        %v2972 = vunpack.c.l.b16 %v2372
        %v2973 = vunpack.c.h.b16 %v2372
        %v2974 = vunpack.c.l.b16 %v2373
        %v2975 = vunpack.c.h.b16 %v2373
        %v2976 = vunpack.c.l.b16 %v2374
        %v2977 = vunpack.c.h.b16 %v2374
        %v2978 = vunpack.c.l.b16 %v2375
        %v2979 = vunpack.c.h.b16 %v2375
        %v2980 = vunpack.c.l.b16 %v2376
        %v2981 = vunpack.c.h.b16 %v2376
        %v2982 = vunpack.c.l.b16 %v2377
        %v2983 = vunpack.c.h.b16 %v2377
        %v2984 = vunpack.c.l.b16 %v2378
        %v2985 = vunpack.c.h.b16 %v2378
        %v2986 = vunpack.c.l.b16 %v2379
        %v2987 = vunpack.c.h.b16 %v2379
        %v2988 = vunpack.c.l.b16 %v2380
        %v2989 = vunpack.c.h.b16 %v2380
        %v2990 = vunpack.c.l.b16 %v2381
        %v2991 = vunpack.c.h.b16 %v2381
        %v2992 = vunpack.c.l.b16 %v2382
        %v2993 = vunpack.c.h.b16 %v2382
        %v2994 = vunpack.c.l.b16 %v2383
        %v2995 = vunpack.c.h.b16 %v2383
        %v2996 = vunpack.c.l.b16 %v2384
        %v2997 = vunpack.c.h.b16 %v2384
        %v2998 = vunpack.c.l.b16 %v2385
        %v2999 = vunpack.c.h.b16 %v2385
        %v3000 = vunpack.c.l.b16 %v2386
        %v3001 = vunpack.c.h.b16 %v2386
        %v3002 = vunpack.c.l.b16 %v2387
        %v3003 = vunpack.c.h.b16 %v2387
        %v3004 = vpack.c.b16 %v2718, %v2716
        %v3005 = vpack.c.b16 %v2719, %v2717
        %v3006 = vpack.c.b16 %v2722, %v2720
        %v3007 = vpack.c.b16 %v2723, %v2721
        %v3008 = vpack.c.b16 %v2726, %v2724
        %v3009 = vpack.c.b16 %v2727, %v2725
        %v3010 = vpack.c.b16 %v2730, %v2728
        %v3011 = vpack.c.b16 %v2731, %v2729
        %v3012 = vpack.c.b16 %v2734, %v2732
        %v3013 = vpack.c.b16 %v2735, %v2733
        %v3014 = vpack.c.b16 %v2738, %v2736
        %v3015 = vpack.c.b16 %v2739, %v2737
        %v3016 = vpack.c.b16 %v2742, %v2740
        %v3017 = vpack.c.b16 %v2743, %v2741
        %v3018 = vpack.c.b16 %v2746, %v2744
        %v3019 = vpack.c.b16 %v2747, %v2745
        %v3020 = vpack.c.b16 %v2750, %v2748
        %v3021 = vpack.c.b16 %v2751, %v2749
        %v3022 = vpack.c.b16 %v2754, %v2752
        %v3023 = vpack.c.b16 %v2755, %v2753
        %v3024 = vpack.c.b16 %v2758, %v2756
        %v3025 = vpack.c.b16 %v2759, %v2757
        %v3026 = vpack.c.b16 %v2762, %v2760
        %v3027 = vpack.c.b16 %v2763, %v2761
        %v3028 = vpack.c.b16 %v2766, %v2764
        %v3029 = vpack.c.b16 %v2767, %v2765
        %v3030 = vpack.c.b16 %v2770, %v2768
        %v3031 = vpack.c.b16 %v2771, %v2769
        %v3032 = vpack.c.b16 %v2774, %v2772
        %v3033 = vpack.c.b16 %v2775, %v2773
        %v3034 = vpack.c.b16 %v2778, %v2776
        %v3035 = vpack.c.b16 %v2779, %v2777
        %v3036 = vpack.c.b16 %v2782, %v2780
        %v3037 = vpack.c.b16 %v2783, %v2781
        %v3038 = vpack.c.b16 %v2786, %v2784
        %v3039 = vpack.c.b16 %v2787, %v2785
        %v3040 = vpack.c.b16 %v2790, %v2788
        %v3041 = vpack.c.b16 %v2791, %v2789
        %v3042 = vpack.c.b16 %v2794, %v2792
        %v3043 = vpack.c.b16 %v2795, %v2793
        %v3044 = vpack.c.b16 %v2798, %v2796
        %v3045 = vpack.c.b16 %v2799, %v2797
        %v3046 = vpack.c.b16 %v2802, %v2800
        %v3047 = vpack.c.b16 %v2803, %v2801
        %v3048 = vpack.c.b16 %v2806, %v2804
        %v3049 = vpack.c.b16 %v2807, %v2805
        %v3050 = vpack.c.b16 %v2810, %v2808
        %v3051 = vpack.c.b16 %v2811, %v2809
        %v3052 = vpack.c.b16 %v2814, %v2812
        %v3053 = vpack.c.b16 %v2815, %v2813
        %v3054 = vpack.c.b16 %v2818, %v2816
        %v3055 = vpack.c.b16 %v2819, %v2817
        %v3056 = vpack.c.b16 %v2822, %v2820
        %v3057 = vpack.c.b16 %v2823, %v2821
        %v3058 = vpack.c.b16 %v2826, %v2824
        %v3059 = vpack.c.b16 %v2827, %v2825
        %v3060 = vpack.c.b16 %v2830, %v2828
        %v3061 = vpack.c.b16 %v2831, %v2829
        %v3062 = vpack.c.b16 %v2834, %v2832
        %v3063 = vpack.c.b16 %v2835, %v2833
        %v3064 = vpack.c.b16 %v2838, %v2836
        %v3065 = vpack.c.b16 %v2839, %v2837
        %v3066 = vpack.c.b16 %v2842, %v2840
        %v3067 = vpack.c.b16 %v2843, %v2841
        %v3068 = vpack.c.b16 %v2846, %v2844
        %v3069 = vpack.c.b16 %v2847, %v2845
        %v3070 = vpack.c.b16 %v2850, %v2848
        %v3071 = vpack.c.b16 %v2851, %v2849
        %v3072 = vpack.c.b16 %v2854, %v2852
        %v3073 = vpack.c.b16 %v2855, %v2853
        %v3074 = vpack.c.b16 %v2858, %v2856
        %v3075 = vpack.c.b16 %v2859, %v2857
        %v3076 = vpack.c.b16 %v2862, %v2860
        %v3077 = vpack.c.b16 %v2863, %v2861
        %v3078 = vpack.c.b16 %v2866, %v2864
        %v3079 = vpack.c.b16 %v2867, %v2865
        %v3080 = vpack.c.b16 %v2870, %v2868
        %v3081 = vpack.c.b16 %v2871, %v2869
        %v3082 = vpack.c.b16 %v2874, %v2872
        %v3083 = vpack.c.b16 %v2875, %v2873
        %v3084 = vpack.c.b16 %v2878, %v2876
        %v3085 = vpack.c.b16 %v2879, %v2877
        %v3086 = vpack.c.b16 %v2882, %v2880
        %v3087 = vpack.c.b16 %v2883, %v2881
        %v3088 = vpack.c.b16 %v2886, %v2884
        %v3089 = vpack.c.b16 %v2887, %v2885
        %v3090 = vpack.c.b16 %v2890, %v2888
        %v3091 = vpack.c.b16 %v2891, %v2889
        %v3092 = vpack.c.b16 %v2894, %v2892
        %v3093 = vpack.c.b16 %v2895, %v2893
        %v3094 = vpack.c.b16 %v2898, %v2896
        %v3095 = vpack.c.b16 %v2899, %v2897
        %v3096 = vpack.c.b16 %v2902, %v2900
        %v3097 = vpack.c.b16 %v2903, %v2901
        %v3098 = vpack.c.b16 %v2906, %v2904
        %v3099 = vpack.c.b16 %v2907, %v2905
        %v3100 = vpack.c.b16 %v2910, %v2908
        %v3101 = vpack.c.b16 %v2911, %v2909
        %v3102 = vpack.c.b16 %v2914, %v2912
        %v3103 = vpack.c.b16 %v2915, %v2913
        %v3104 = vpack.c.b16 %v2918, %v2916
        %v3105 = vpack.c.b16 %v2919, %v2917
        %v3106 = vpack.c.b16 %v2922, %v2920
        %v3107 = vpack.c.b16 %v2923, %v2921
        %v3108 = vpack.c.b16 %v2926, %v2924
        %v3109 = vpack.c.b16 %v2927, %v2925
        %v3110 = vpack.c.b16 %v2930, %v2928
        %v3111 = vpack.c.b16 %v2931, %v2929
        %v3112 = vpack.c.b16 %v2934, %v2932
        %v3113 = vpack.c.b16 %v2935, %v2933
        %v3114 = vpack.c.b16 %v2938, %v2936
        %v3115 = vpack.c.b16 %v2939, %v2937
        %v3116 = vpack.c.b16 %v2942, %v2940
        %v3117 = vpack.c.b16 %v2943, %v2941
        %v3118 = vpack.c.b16 %v2946, %v2944
        %v3119 = vpack.c.b16 %v2947, %v2945
        %v3120 = vpack.c.b16 %v2950, %v2948
        %v3121 = vpack.c.b16 %v2951, %v2949
        %v3122 = vpack.c.b16 %v2954, %v2952
        %v3123 = vpack.c.b16 %v2955, %v2953
        %v3124 = vpack.c.b16 %v2958, %v2956
        %v3125 = vpack.c.b16 %v2959, %v2957
        %v3126 = vpack.c.b16 %v2962, %v2960
        %v3127 = vpack.c.b16 %v2963, %v2961
        %v3128 = vpack.c.b16 %v2966, %v2964
        %v3129 = vpack.c.b16 %v2967, %v2965
        %v3130 = vpack.c.b16 %v2970, %v2968
        %v3131 = vpack.c.b16 %v2971, %v2969
        %v3132 = vpack.c.b16 %v2974, %v2972
        %v3133 = vpack.c.b16 %v2975, %v2973
        %v3134 = vpack.c.b16 %v2978, %v2976
        %v3135 = vpack.c.b16 %v2979, %v2977
        %v3136 = vpack.c.b16 %v2982, %v2980
        %v3137 = vpack.c.b16 %v2983, %v2981
        %v3138 = vpack.c.b16 %v2986, %v2984
        %v3139 = vpack.c.b16 %v2987, %v2985
        %v3140 = vpack.c.b16 %v2990, %v2988
        %v3141 = vpack.c.b16 %v2991, %v2989
        %v3142 = vpack.c.b16 %v2994, %v2992
        %v3143 = vpack.c.b16 %v2995, %v2993
        %v3144 = vpack.c.b16 %v2998, %v2996
        %v3145 = vpack.c.b16 %v2999, %v2997
        %v3146 = vpack.c.b16 %v3002, %v3000
        %v3147 = vpack.c.b16 %v3003, %v3001
        %3292 = vmatpush.bf16.msra.mxu0 %v3018
        %3293 = vmatpush.bf16.msra.mxu0 %v3016
        %3294 = vmatpush.bf16.msra.mxu0 %v3014
        %3295 = vmatpush.bf16.msra.mxu0 %v3012
        %3296 = vmatpush.bf16.msra.mxu0 %v3010
        %3297 = vmatpush.bf16.msra.mxu0 %v3008
        %3298 = vmatpush.bf16.msra.mxu0 %v3006
        %3299 = vmatpush.bf16.msra.mxu0 %v3004
        %3300 = vmatmul.bf16.gmra.mxu0 %v2500
        %v3301 = vpop.f32.mrf.mxu0
        %v3302 = vadd.f32 0.0, %v3301
        %v3303 = vpop.f32.mrf.mxu0
        %v3304 = vadd.f32 0.0, %v3303
        %3305 = vmatmul.bf16.gmra.mxu0 %v2509
        %v3306 = vpop.f32.mrf.mxu0
        %v3307 = vadd.f32 0.0, %v3306
        %v3308 = vpop.f32.mrf.mxu0
        %v3309 = vadd.f32 0.0, %v3308
        %3310 = vmatmul.bf16.gmra.mxu0 %v2518
        %v3311 = vpop.f32.mrf.mxu0
        %v3312 = vadd.f32 0.0, %v3311
        %v3313 = vpop.f32.mrf.mxu0
        %v3314 = vadd.f32 0.0, %v3313
        %3315 = vmatmul.bf16.gmra.mxu0 %v2527
        %v3316 = vpop.f32.mrf.mxu0
        %v3317 = vadd.f32 0.0, %v3316
        %v3318 = vpop.f32.mrf.mxu0
        %v3319 = vadd.f32 0.0, %v3318
        %3320 = vdwg.mxu0
        %3321 = vmatpush.bf16.msra.mxu0 %v3034
        %3322 = vmatpush.bf16.msra.mxu0 %v3032
        %3323 = vmatpush.bf16.msra.mxu0 %v3030
        %3324 = vmatpush.bf16.msra.mxu0 %v3028
        %3325 = vmatpush.bf16.msra.mxu0 %v3026
        %3326 = vmatpush.bf16.msra.mxu0 %v3024
        %3327 = vmatpush.bf16.msra.mxu0 %v3022
        %3328 = vmatpush.bf16.msra.mxu0 %v3020
        %3329 = vmatmul.bf16.gmra.mxu0 %v2501
        %v3330 = vpop.f32.mrf.mxu0
        %v3331 = vadd.f32 %v3302, %v3330
        %v3332 = vpop.f32.mrf.mxu0
        %v3333 = vadd.f32 %v3304, %v3332
        %3334 = vmatmul.bf16.gmra.mxu0 %v2510
        %v3335 = vpop.f32.mrf.mxu0
        %v3336 = vadd.f32 %v3307, %v3335
        %v3337 = vpop.f32.mrf.mxu0
        %v3338 = vadd.f32 %v3309, %v3337
        %3339 = vmatmul.bf16.gmra.mxu0 %v2519
        %v3340 = vpop.f32.mrf.mxu0
        %v3341 = vadd.f32 %v3312, %v3340
        %v3342 = vpop.f32.mrf.mxu0
        %v3343 = vadd.f32 %v3314, %v3342
        %3344 = vmatmul.bf16.gmra.mxu0 %v2528
        %v3345 = vpop.f32.mrf.mxu0
        %v3346 = vadd.f32 %v3317, %v3345
        %v3347 = vpop.f32.mrf.mxu0
        %v3348 = vadd.f32 %v3319, %v3347
        %3349 = vdwg.mxu0
        %3350 = vmatpush.bf16.msra.mxu0 %v3050
        %3351 = vmatpush.bf16.msra.mxu0 %v3048
        %3352 = vmatpush.bf16.msra.mxu0 %v3046
        %3353 = vmatpush.bf16.msra.mxu0 %v3044
        %3354 = vmatpush.bf16.msra.mxu0 %v3042
        %3355 = vmatpush.bf16.msra.mxu0 %v3040
        %3356 = vmatpush.bf16.msra.mxu0 %v3038
        %3357 = vmatpush.bf16.msra.mxu0 %v3036
        %3358 = vmatmul.bf16.gmra.mxu0 %v2502
        %v3359 = vpop.f32.mrf.mxu0
        %v3360 = vadd.f32 %v3331, %v3359
        %v3361 = vpop.f32.mrf.mxu0
        %v3362 = vadd.f32 %v3333, %v3361
        %3363 = vmatmul.bf16.gmra.mxu0 %v2511
        %v3364 = vpop.f32.mrf.mxu0
        %v3365 = vadd.f32 %v3336, %v3364
        %v3366 = vpop.f32.mrf.mxu0
        %v3367 = vadd.f32 %v3338, %v3366
        %3368 = vmatmul.bf16.gmra.mxu0 %v2520
        %v3369 = vpop.f32.mrf.mxu0
        %v3370 = vadd.f32 %v3341, %v3369
        %v3371 = vpop.f32.mrf.mxu0
        %v3372 = vadd.f32 %v3343, %v3371
        %3373 = vmatmul.bf16.gmra.mxu0 %v2529
        %v3374 = vpop.f32.mrf.mxu0
        %v3375 = vadd.f32 %v3346, %v3374
        %v3376 = vpop.f32.mrf.mxu0
        %v3377 = vadd.f32 %v3348, %v3376
        %3378 = vdwg.mxu0
        %3379 = vmatpush.bf16.msra.mxu0 %v3066
        %3380 = vmatpush.bf16.msra.mxu0 %v3064
        %3381 = vmatpush.bf16.msra.mxu0 %v3062
        %3382 = vmatpush.bf16.msra.mxu0 %v3060
        %3383 = vmatpush.bf16.msra.mxu0 %v3058
        %3384 = vmatpush.bf16.msra.mxu0 %v3056
        %3385 = vmatpush.bf16.msra.mxu0 %v3054
        %3386 = vmatpush.bf16.msra.mxu0 %v3052
        %3387 = vmatmul.bf16.gmra.mxu0 %v2503
        %v3388 = vpop.f32.mrf.mxu0
        %v3389 = vadd.f32 %v3360, %v3388
        %v3390 = vpop.f32.mrf.mxu0
        %v3391 = vadd.f32 %v3362, %v3390
        %3392 = vmatmul.bf16.gmra.mxu0 %v2512
        %v3393 = vpop.f32.mrf.mxu0
        %v3394 = vadd.f32 %v3365, %v3393
        %v3395 = vpop.f32.mrf.mxu0
        %v3396 = vadd.f32 %v3367, %v3395
        %3397 = vmatmul.bf16.gmra.mxu0 %v2521
        %v3398 = vpop.f32.mrf.mxu0
        %v3399 = vadd.f32 %v3370, %v3398
        %v3400 = vpop.f32.mrf.mxu0
        %v3401 = vadd.f32 %v3372, %v3400
        %3402 = vmatmul.bf16.gmra.mxu0 %v2530
        %v3403 = vpop.f32.mrf.mxu0
        %v3404 = vadd.f32 %v3375, %v3403
        %v3405 = vpop.f32.mrf.mxu0
        %v3406 = vadd.f32 %v3377, %v3405
        %3407 = vdwg.mxu0
        %3408 = vmatpush.bf16.msra.mxu0 %v3082
        %3409 = vmatpush.bf16.msra.mxu0 %v3080
        %3410 = vmatpush.bf16.msra.mxu0 %v3078
        %3411 = vmatpush.bf16.msra.mxu0 %v3076
        %3412 = vmatpush.bf16.msra.mxu0 %v3074
        %3413 = vmatpush.bf16.msra.mxu0 %v3072
        %3414 = vmatpush.bf16.msra.mxu0 %v3070
        %3415 = vmatpush.bf16.msra.mxu0 %v3068
        %3416 = vmatmul.bf16.gmra.mxu0 %v2504
        %v3417 = vpop.f32.mrf.mxu0
        %v3418 = vadd.f32 %v3389, %v3417
        %v3419 = vpop.f32.mrf.mxu0
        %v3420 = vadd.f32 %v3391, %v3419
        %3421 = vmatmul.bf16.gmra.mxu0 %v2513
        %v3422 = vpop.f32.mrf.mxu0
        %v3423 = vadd.f32 %v3394, %v3422
        %v3424 = vpop.f32.mrf.mxu0
        %v3425 = vadd.f32 %v3396, %v3424
        %3426 = vmatmul.bf16.gmra.mxu0 %v2522
        %v3427 = vpop.f32.mrf.mxu0
        %v3428 = vadd.f32 %v3399, %v3427
        %v3429 = vpop.f32.mrf.mxu0
        %v3430 = vadd.f32 %v3401, %v3429
        %3431 = vmatmul.bf16.gmra.mxu0 %v2531
        %v3432 = vpop.f32.mrf.mxu0
        %v3433 = vadd.f32 %v3404, %v3432
        %v3434 = vpop.f32.mrf.mxu0
        %v3435 = vadd.f32 %v3406, %v3434
        %3436 = vdwg.mxu0
        %3437 = vmatpush.bf16.msra.mxu0 %v3098
        %3438 = vmatpush.bf16.msra.mxu0 %v3096
        %3439 = vmatpush.bf16.msra.mxu0 %v3094
        %3440 = vmatpush.bf16.msra.mxu0 %v3092
        %3441 = vmatpush.bf16.msra.mxu0 %v3090
        %3442 = vmatpush.bf16.msra.mxu0 %v3088
        %3443 = vmatpush.bf16.msra.mxu0 %v3086
        %3444 = vmatpush.bf16.msra.mxu0 %v3084
        %3445 = vmatmul.bf16.gmra.mxu0 %v2505
        %v3446 = vpop.f32.mrf.mxu0
        %v3447 = vadd.f32 %v3418, %v3446
        %v3448 = vpop.f32.mrf.mxu0
        %v3449 = vadd.f32 %v3420, %v3448
        %3450 = vmatmul.bf16.gmra.mxu0 %v2514
        %v3451 = vpop.f32.mrf.mxu0
        %v3452 = vadd.f32 %v3423, %v3451
        %v3453 = vpop.f32.mrf.mxu0
        %v3454 = vadd.f32 %v3425, %v3453
        %3455 = vmatmul.bf16.gmra.mxu0 %v2523
        %v3456 = vpop.f32.mrf.mxu0
        %v3457 = vadd.f32 %v3428, %v3456
        %v3458 = vpop.f32.mrf.mxu0
        %v3459 = vadd.f32 %v3430, %v3458
        %3460 = vmatmul.bf16.gmra.mxu0 %v2532
        %v3461 = vpop.f32.mrf.mxu0
        %v3462 = vadd.f32 %v3433, %v3461
        %v3463 = vpop.f32.mrf.mxu0
        %v3464 = vadd.f32 %v3435, %v3463
        %3465 = vdwg.mxu0
        %3466 = vmatpush.bf16.msra.mxu0 %v3114
        %3467 = vmatpush.bf16.msra.mxu0 %v3112
        %3468 = vmatpush.bf16.msra.mxu0 %v3110
        %3469 = vmatpush.bf16.msra.mxu0 %v3108
        %3470 = vmatpush.bf16.msra.mxu0 %v3106
        %3471 = vmatpush.bf16.msra.mxu0 %v3104
        %3472 = vmatpush.bf16.msra.mxu0 %v3102
        %3473 = vmatpush.bf16.msra.mxu0 %v3100
        %3474 = vmatmul.bf16.gmra.mxu0 %v2506
        %v3475 = vpop.f32.mrf.mxu0
        %v3476 = vadd.f32 %v3447, %v3475
        %v3477 = vpop.f32.mrf.mxu0
        %v3478 = vadd.f32 %v3449, %v3477
        %3479 = vmatmul.bf16.gmra.mxu0 %v2515
        %v3480 = vpop.f32.mrf.mxu0
        %v3481 = vadd.f32 %v3452, %v3480
        %v3482 = vpop.f32.mrf.mxu0
        %v3483 = vadd.f32 %v3454, %v3482
        %3484 = vmatmul.bf16.gmra.mxu0 %v2524
        %v3485 = vpop.f32.mrf.mxu0
        %v3486 = vadd.f32 %v3457, %v3485
        %v3487 = vpop.f32.mrf.mxu0
        %v3488 = vadd.f32 %v3459, %v3487
        %3489 = vmatmul.bf16.gmra.mxu0 %v2533
        %v3490 = vpop.f32.mrf.mxu0
        %v3491 = vadd.f32 %v3462, %v3490
        %v3492 = vpop.f32.mrf.mxu0
        %v3493 = vadd.f32 %v3464, %v3492
        %3494 = vdwg.mxu0
        %3495 = vmatpush.bf16.msra.mxu0 %v3130
        %3496 = vmatpush.bf16.msra.mxu0 %v3128
        %3497 = vmatpush.bf16.msra.mxu0 %v3126
        %3498 = vmatpush.bf16.msra.mxu0 %v3124
        %3499 = vmatpush.bf16.msra.mxu0 %v3122
        %3500 = vmatpush.bf16.msra.mxu0 %v3120
        %3501 = vmatpush.bf16.msra.mxu0 %v3118
        %3502 = vmatpush.bf16.msra.mxu0 %v3116
        %3503 = vmatmul.bf16.gmra.mxu0 %v2507
        %v3504 = vpop.f32.mrf.mxu0
        %v3505 = vadd.f32 %v3476, %v3504
        %v3506 = vpop.f32.mrf.mxu0
        %v3507 = vadd.f32 %v3478, %v3506
        %3508 = vmatmul.bf16.gmra.mxu0 %v2516
        %v3509 = vpop.f32.mrf.mxu0
        %v3510 = vadd.f32 %v3481, %v3509
        %v3511 = vpop.f32.mrf.mxu0
        %v3512 = vadd.f32 %v3483, %v3511
        %3513 = vmatmul.bf16.gmra.mxu0 %v2525
        %v3514 = vpop.f32.mrf.mxu0
        %v3515 = vadd.f32 %v3486, %v3514
        %v3516 = vpop.f32.mrf.mxu0
        %v3517 = vadd.f32 %v3488, %v3516
        %3518 = vmatmul.bf16.gmra.mxu0 %v2534
        %v3519 = vpop.f32.mrf.mxu0
        %v3520 = vadd.f32 %v3491, %v3519
        %v3521 = vpop.f32.mrf.mxu0
        %v3522 = vadd.f32 %v3493, %v3521
        %3523 = vdwg.mxu0
        %3524 = vmatpush.bf16.msra.mxu0 %v3146
        %3525 = vmatpush.bf16.msra.mxu0 %v3144
        %3526 = vmatpush.bf16.msra.mxu0 %v3142
        %3527 = vmatpush.bf16.msra.mxu0 %v3140
        %3528 = vmatpush.bf16.msra.mxu0 %v3138
        %3529 = vmatpush.bf16.msra.mxu0 %v3136
        %3530 = vmatpush.bf16.msra.mxu0 %v3134
        %3531 = vmatpush.bf16.msra.mxu0 %v3132
        %3532 = vmatmul.bf16.gmra.mxu0 %v2508
        %v3533 = vpop.f32.mrf.mxu0
        %v3534 = vadd.f32 %v3505, %v3533
        %v3535 = vpop.f32.mrf.mxu0
        %v3536 = vadd.f32 %v3507, %v3535
        %3537 = vmatmul.bf16.gmra.mxu0 %v2517
        %v3538 = vpop.f32.mrf.mxu0
        %v3539 = vadd.f32 %v3510, %v3538
        %v3540 = vpop.f32.mrf.mxu0
        %v3541 = vadd.f32 %v3512, %v3540
        %3542 = vmatmul.bf16.gmra.mxu0 %v2526
        %v3543 = vpop.f32.mrf.mxu0
        %v3544 = vadd.f32 %v3515, %v3543
        %v3545 = vpop.f32.mrf.mxu0
        %v3546 = vadd.f32 %v3517, %v3545
        %3547 = vmatmul.bf16.gmra.mxu0 %v2535
        %v3548 = vpop.f32.mrf.mxu0
        %v3549 = vadd.f32 %v3520, %v3548
        %v3550 = vpop.f32.mrf.mxu0
        %v3551 = vadd.f32 %v3522, %v3550
        %3552 = vdwg.mxu0
        %3553 = vmatpush.bf16.msra.mxu0 %v3019
        %3554 = vmatpush.bf16.msra.mxu0 %v3017
        %3555 = vmatpush.bf16.msra.mxu0 %v3015
        %3556 = vmatpush.bf16.msra.mxu0 %v3013
        %3557 = vmatpush.bf16.msra.mxu0 %v3011
        %3558 = vmatpush.bf16.msra.mxu0 %v3009
        %3559 = vmatpush.bf16.msra.mxu0 %v3007
        %3560 = vmatpush.bf16.msra.mxu0 %v3005
        %3561 = vmatmul.bf16.gmra.mxu0 %v2500
        %v3562 = vpop.f32.mrf.mxu0
        %v3563 = vadd.f32 0.0, %v3562
        %v3564 = vpop.f32.mrf.mxu0
        %v3565 = vadd.f32 0.0, %v3564
        %3566 = vmatmul.bf16.gmra.mxu0 %v2509
        %v3567 = vpop.f32.mrf.mxu0
        %v3568 = vadd.f32 0.0, %v3567
        %v3569 = vpop.f32.mrf.mxu0
        %v3570 = vadd.f32 0.0, %v3569
        %3571 = vmatmul.bf16.gmra.mxu0 %v2518
        %v3572 = vpop.f32.mrf.mxu0
        %v3573 = vadd.f32 0.0, %v3572
        %v3574 = vpop.f32.mrf.mxu0
        %v3575 = vadd.f32 0.0, %v3574
        %3576 = vmatmul.bf16.gmra.mxu0 %v2527
        %v3577 = vpop.f32.mrf.mxu0
        %v3578 = vadd.f32 0.0, %v3577
        %v3579 = vpop.f32.mrf.mxu0
        %v3580 = vadd.f32 0.0, %v3579
        %3581 = vdwg.mxu0
        %3582 = vmatpush.bf16.msra.mxu0 %v3035
        %3583 = vmatpush.bf16.msra.mxu0 %v3033
        %3584 = vmatpush.bf16.msra.mxu0 %v3031
        %3585 = vmatpush.bf16.msra.mxu0 %v3029
        %3586 = vmatpush.bf16.msra.mxu0 %v3027
        %3587 = vmatpush.bf16.msra.mxu0 %v3025
        %3588 = vmatpush.bf16.msra.mxu0 %v3023
        %3589 = vmatpush.bf16.msra.mxu0 %v3021
        %3590 = vmatmul.bf16.gmra.mxu0 %v2501
        %v3591 = vpop.f32.mrf.mxu0
        %v3592 = vadd.f32 %v3563, %v3591
        %v3593 = vpop.f32.mrf.mxu0
        %v3594 = vadd.f32 %v3565, %v3593
        %3595 = vmatmul.bf16.gmra.mxu0 %v2510
        %v3596 = vpop.f32.mrf.mxu0
        %v3597 = vadd.f32 %v3568, %v3596
        %v3598 = vpop.f32.mrf.mxu0
        %v3599 = vadd.f32 %v3570, %v3598
        %3600 = vmatmul.bf16.gmra.mxu0 %v2519
        %v3601 = vpop.f32.mrf.mxu0
        %v3602 = vadd.f32 %v3573, %v3601
        %v3603 = vpop.f32.mrf.mxu0
        %v3604 = vadd.f32 %v3575, %v3603
        %3605 = vmatmul.bf16.gmra.mxu0 %v2528
        %v3606 = vpop.f32.mrf.mxu0
        %v3607 = vadd.f32 %v3578, %v3606
        %v3608 = vpop.f32.mrf.mxu0
        %v3609 = vadd.f32 %v3580, %v3608
        %3610 = vdwg.mxu0
        %3611 = vmatpush.bf16.msra.mxu0 %v3051
        %3612 = vmatpush.bf16.msra.mxu0 %v3049
        %3613 = vmatpush.bf16.msra.mxu0 %v3047
        %3614 = vmatpush.bf16.msra.mxu0 %v3045
        %3615 = vmatpush.bf16.msra.mxu0 %v3043
        %3616 = vmatpush.bf16.msra.mxu0 %v3041
        %3617 = vmatpush.bf16.msra.mxu0 %v3039
        %3618 = vmatpush.bf16.msra.mxu0 %v3037
        %3619 = vmatmul.bf16.gmra.mxu0 %v2502
        %v3620 = vpop.f32.mrf.mxu0
        %v3621 = vadd.f32 %v3592, %v3620
        %v3622 = vpop.f32.mrf.mxu0
        %v3623 = vadd.f32 %v3594, %v3622
        %3624 = vmatmul.bf16.gmra.mxu0 %v2511
        %v3625 = vpop.f32.mrf.mxu0
        %v3626 = vadd.f32 %v3597, %v3625
        %v3627 = vpop.f32.mrf.mxu0
        %v3628 = vadd.f32 %v3599, %v3627
        %3629 = vmatmul.bf16.gmra.mxu0 %v2520
        %v3630 = vpop.f32.mrf.mxu0
        %v3631 = vadd.f32 %v3602, %v3630
        %v3632 = vpop.f32.mrf.mxu0
        %v3633 = vadd.f32 %v3604, %v3632
        %3634 = vmatmul.bf16.gmra.mxu0 %v2529
        %v3635 = vpop.f32.mrf.mxu0
        %v3636 = vadd.f32 %v3607, %v3635
        %v3637 = vpop.f32.mrf.mxu0
        %v3638 = vadd.f32 %v3609, %v3637
        %3639 = vdwg.mxu0
        %3640 = vmatpush.bf16.msra.mxu0 %v3067
        %3641 = vmatpush.bf16.msra.mxu0 %v3065
        %3642 = vmatpush.bf16.msra.mxu0 %v3063
        %3643 = vmatpush.bf16.msra.mxu0 %v3061
        %3644 = vmatpush.bf16.msra.mxu0 %v3059
        %3645 = vmatpush.bf16.msra.mxu0 %v3057
        %3646 = vmatpush.bf16.msra.mxu0 %v3055
        %3647 = vmatpush.bf16.msra.mxu0 %v3053
        %3648 = vmatmul.bf16.gmra.mxu0 %v2503
        %v3649 = vpop.f32.mrf.mxu0
        %v3650 = vadd.f32 %v3621, %v3649
        %v3651 = vpop.f32.mrf.mxu0
        %v3652 = vadd.f32 %v3623, %v3651
        %3653 = vmatmul.bf16.gmra.mxu0 %v2512
        %v3654 = vpop.f32.mrf.mxu0
        %v3655 = vadd.f32 %v3626, %v3654
        %v3656 = vpop.f32.mrf.mxu0
        %v3657 = vadd.f32 %v3628, %v3656
        %3658 = vmatmul.bf16.gmra.mxu0 %v2521
        %v3659 = vpop.f32.mrf.mxu0
        %v3660 = vadd.f32 %v3631, %v3659
        %v3661 = vpop.f32.mrf.mxu0
        %v3662 = vadd.f32 %v3633, %v3661
        %3663 = vmatmul.bf16.gmra.mxu0 %v2530
        %v3664 = vpop.f32.mrf.mxu0
        %v3665 = vadd.f32 %v3636, %v3664
        %v3666 = vpop.f32.mrf.mxu0
        %v3667 = vadd.f32 %v3638, %v3666
        %3668 = vdwg.mxu0
        %3669 = vmatpush.bf16.msra.mxu0 %v3083
        %3670 = vmatpush.bf16.msra.mxu0 %v3081
        %3671 = vmatpush.bf16.msra.mxu0 %v3079
        %3672 = vmatpush.bf16.msra.mxu0 %v3077
        %3673 = vmatpush.bf16.msra.mxu0 %v3075
        %3674 = vmatpush.bf16.msra.mxu0 %v3073
        %3675 = vmatpush.bf16.msra.mxu0 %v3071
        %3676 = vmatpush.bf16.msra.mxu0 %v3069
        %3677 = vmatmul.bf16.gmra.mxu0 %v2504
        %v3678 = vpop.f32.mrf.mxu0
        %v3679 = vadd.f32 %v3650, %v3678
        %v3680 = vpop.f32.mrf.mxu0
        %v3681 = vadd.f32 %v3652, %v3680
        %3682 = vmatmul.bf16.gmra.mxu0 %v2513
        %v3683 = vpop.f32.mrf.mxu0
        %v3684 = vadd.f32 %v3655, %v3683
        %v3685 = vpop.f32.mrf.mxu0
        %v3686 = vadd.f32 %v3657, %v3685
        %3687 = vmatmul.bf16.gmra.mxu0 %v2522
        %v3688 = vpop.f32.mrf.mxu0
        %v3689 = vadd.f32 %v3660, %v3688
        %v3690 = vpop.f32.mrf.mxu0
        %v3691 = vadd.f32 %v3662, %v3690
        %3692 = vmatmul.bf16.gmra.mxu0 %v2531
        %v3693 = vpop.f32.mrf.mxu0
        %v3694 = vadd.f32 %v3665, %v3693
        %v3695 = vpop.f32.mrf.mxu0
        %v3696 = vadd.f32 %v3667, %v3695
        %3697 = vdwg.mxu0
        %3698 = vmatpush.bf16.msra.mxu0 %v3099
        %3699 = vmatpush.bf16.msra.mxu0 %v3097
        %3700 = vmatpush.bf16.msra.mxu0 %v3095
        %3701 = vmatpush.bf16.msra.mxu0 %v3093
        %3702 = vmatpush.bf16.msra.mxu0 %v3091
        %3703 = vmatpush.bf16.msra.mxu0 %v3089
        %3704 = vmatpush.bf16.msra.mxu0 %v3087
        %3705 = vmatpush.bf16.msra.mxu0 %v3085
        %3706 = vmatmul.bf16.gmra.mxu0 %v2505
        %v3707 = vpop.f32.mrf.mxu0
        %v3708 = vadd.f32 %v3679, %v3707
        %v3709 = vpop.f32.mrf.mxu0
        %v3710 = vadd.f32 %v3681, %v3709
        %3711 = vmatmul.bf16.gmra.mxu0 %v2514
        %v3712 = vpop.f32.mrf.mxu0
        %v3713 = vadd.f32 %v3684, %v3712
        %v3714 = vpop.f32.mrf.mxu0
        %v3715 = vadd.f32 %v3686, %v3714
        %3716 = vmatmul.bf16.gmra.mxu0 %v2523
        %v3717 = vpop.f32.mrf.mxu0
        %v3718 = vadd.f32 %v3689, %v3717
        %v3719 = vpop.f32.mrf.mxu0
        %v3720 = vadd.f32 %v3691, %v3719
        %3721 = vmatmul.bf16.gmra.mxu0 %v2532
        %v3722 = vpop.f32.mrf.mxu0
        %v3723 = vadd.f32 %v3694, %v3722
        %v3724 = vpop.f32.mrf.mxu0
        %v3725 = vadd.f32 %v3696, %v3724
        %3726 = vdwg.mxu0
        %3727 = vmatpush.bf16.msra.mxu0 %v3115
        %3728 = vmatpush.bf16.msra.mxu0 %v3113
        %3729 = vmatpush.bf16.msra.mxu0 %v3111
        %3730 = vmatpush.bf16.msra.mxu0 %v3109
        %3731 = vmatpush.bf16.msra.mxu0 %v3107
        %3732 = vmatpush.bf16.msra.mxu0 %v3105
        %3733 = vmatpush.bf16.msra.mxu0 %v3103
        %3734 = vmatpush.bf16.msra.mxu0 %v3101
        %3735 = vmatmul.bf16.gmra.mxu0 %v2506
        %v3736 = vpop.f32.mrf.mxu0
        %v3737 = vadd.f32 %v3708, %v3736
        %v3738 = vpop.f32.mrf.mxu0
        %v3739 = vadd.f32 %v3710, %v3738
        %3740 = vmatmul.bf16.gmra.mxu0 %v2515
        %v3741 = vpop.f32.mrf.mxu0
        %v3742 = vadd.f32 %v3713, %v3741
        %v3743 = vpop.f32.mrf.mxu0
        %v3744 = vadd.f32 %v3715, %v3743
        %3745 = vmatmul.bf16.gmra.mxu0 %v2524
        %v3746 = vpop.f32.mrf.mxu0
        %v3747 = vadd.f32 %v3718, %v3746
        %v3748 = vpop.f32.mrf.mxu0
        %v3749 = vadd.f32 %v3720, %v3748
        %3750 = vmatmul.bf16.gmra.mxu0 %v2533
        %v3751 = vpop.f32.mrf.mxu0
        %v3752 = vadd.f32 %v3723, %v3751
        %v3753 = vpop.f32.mrf.mxu0
        %v3754 = vadd.f32 %v3725, %v3753
        %3755 = vdwg.mxu0
        %3756 = vmatpush.bf16.msra.mxu0 %v3131
        %3757 = vmatpush.bf16.msra.mxu0 %v3129
        %3758 = vmatpush.bf16.msra.mxu0 %v3127
        %3759 = vmatpush.bf16.msra.mxu0 %v3125
        %3760 = vmatpush.bf16.msra.mxu0 %v3123
        %3761 = vmatpush.bf16.msra.mxu0 %v3121
        %3762 = vmatpush.bf16.msra.mxu0 %v3119
        %3763 = vmatpush.bf16.msra.mxu0 %v3117
        %3764 = vmatmul.bf16.gmra.mxu0 %v2507
        %v3765 = vpop.f32.mrf.mxu0
        %v3766 = vadd.f32 %v3737, %v3765
        %v3767 = vpop.f32.mrf.mxu0
        %v3768 = vadd.f32 %v3739, %v3767
        %3769 = vmatmul.bf16.gmra.mxu0 %v2516
        %v3770 = vpop.f32.mrf.mxu0
        %v3771 = vadd.f32 %v3742, %v3770
        %v3772 = vpop.f32.mrf.mxu0
        %v3773 = vadd.f32 %v3744, %v3772
        %3774 = vmatmul.bf16.gmra.mxu0 %v2525
        %v3775 = vpop.f32.mrf.mxu0
        %v3776 = vadd.f32 %v3747, %v3775
        %v3777 = vpop.f32.mrf.mxu0
        %v3778 = vadd.f32 %v3749, %v3777
        %3779 = vmatmul.bf16.gmra.mxu0 %v2534
        %v3780 = vpop.f32.mrf.mxu0
        %v3781 = vadd.f32 %v3752, %v3780
        %v3782 = vpop.f32.mrf.mxu0
        %v3783 = vadd.f32 %v3754, %v3782
        %3784 = vdwg.mxu0
        %3785 = vmatpush.bf16.msra.mxu0 %v3147
        %3786 = vmatpush.bf16.msra.mxu0 %v3145
        %3787 = vmatpush.bf16.msra.mxu0 %v3143
        %3788 = vmatpush.bf16.msra.mxu0 %v3141
        %3789 = vmatpush.bf16.msra.mxu0 %v3139
        %3790 = vmatpush.bf16.msra.mxu0 %v3137
        %3791 = vmatpush.bf16.msra.mxu0 %v3135
        %3792 = vmatpush.bf16.msra.mxu0 %v3133
        %3793 = vmatmul.bf16.gmra.mxu0 %v2508
        %v3794 = vpop.f32.mrf.mxu0
        %v3795 = vadd.f32 %v3766, %v3794
        %v3796 = vpop.f32.mrf.mxu0
        %v3797 = vadd.f32 %v3768, %v3796
        %3798 = vmatmul.bf16.gmra.mxu0 %v2517
        %v3799 = vpop.f32.mrf.mxu0
        %v3800 = vadd.f32 %v3771, %v3799
        %v3801 = vpop.f32.mrf.mxu0
        %v3802 = vadd.f32 %v3773, %v3801
        %3803 = vmatmul.bf16.gmra.mxu0 %v2526
        %v3804 = vpop.f32.mrf.mxu0
        %v3805 = vadd.f32 %v3776, %v3804
        %v3806 = vpop.f32.mrf.mxu0
        %v3807 = vadd.f32 %v3778, %v3806
        %3808 = vmatmul.bf16.gmra.mxu0 %v2535
        %v3809 = vpop.f32.mrf.mxu0
        %v3810 = vadd.f32 %v3781, %v3809
        %v3811 = vpop.f32.mrf.mxu0
        %v3812 = vadd.f32 %v3783, %v3811
        %3813 = vdwg.mxu0
        %v3814 = vld [vmem:[%s5] sm:$0x3]
        %v3816 = vperm.slane %v3814, 0
        %v3817 = vperm.slane %v3814, 1
        %v3820 = vmul.f32 %v3534, %v3816
        %v3821 = vmul.f32 %v3795, %v3817
        %v3822 = vmul.f32 %v3536, %v3816
        %v3823 = vmul.f32 %v3797, %v3817
        %v3824 = vmul.f32 %v3539, %v3816
        %v3825 = vmul.f32 %v3800, %v3817
        %v3826 = vmul.f32 %v3541, %v3816
        %v3827 = vmul.f32 %v3802, %v3817
        %v3828 = vmul.f32 %v3544, %v3816
        %v3829 = vmul.f32 %v3805, %v3817
        %v3830 = vmul.f32 %v3546, %v3816
        %v3831 = vmul.f32 %v3807, %v3817
        %v3832 = vmul.f32 %v3549, %v3816
        %v3833 = vmul.f32 %v3810, %v3817
        %v3834 = vmul.f32 %v3551, %v3816
        %v3835 = vmul.f32 %v3812, %v3817
        %v3836 = vld [vmem:[%s6] sm:$0x3]
        %v3838 = vperm.slane %v3836, 0
        %v3839 = vperm.slane %v3836, 1
        %v3842 = vadd.f32 %v3820, %v3838
        %v3843 = vadd.f32 %v3821, %v3839
        %v3844 = vadd.f32 %v3822, %v3838
        %v3845 = vadd.f32 %v3823, %v3839
        %v3846 = vadd.f32 %v3824, %v3838
        %v3847 = vadd.f32 %v3825, %v3839
        %v3848 = vadd.f32 %v3826, %v3838
        %v3849 = vadd.f32 %v3827, %v3839
        %v3850 = vadd.f32 %v3828, %v3838
        %v3851 = vadd.f32 %v3829, %v3839
        %v3852 = vadd.f32 %v3830, %v3838
        %v3853 = vadd.f32 %v3831, %v3839
        %v3854 = vadd.f32 %v3832, %v3838
        %v3855 = vadd.f32 %v3833, %v3839
        %v3856 = vadd.f32 %v3834, %v3838
        %v3857 = vadd.f32 %v3835, %v3839
        %v3858 = vmul.f32 %v3842, 0.16666667
        %v3859 = vmul.f32 %v3843, 0.16666667
        %v3860 = vmul.f32 %v3844, 0.16666667
        %v3861 = vmul.f32 %v3845, 0.16666667
        %v3862 = vmul.f32 %v3846, 0.16666667
        %v3863 = vmul.f32 %v3847, 0.16666667
        %v3864 = vmul.f32 %v3848, 0.16666667
        %v3865 = vmul.f32 %v3849, 0.16666667
        %v3866 = vmul.f32 %v3850, 0.16666667
        %v3867 = vmul.f32 %v3851, 0.16666667
        %v3868 = vmul.f32 %v3852, 0.16666667
        %v3869 = vmul.f32 %v3853, 0.16666667
        %v3870 = vmul.f32 %v3854, 0.16666667
        %v3871 = vmul.f32 %v3855, 0.16666667
        %v3872 = vmul.f32 %v3856, 0.16666667
        %v3873 = vmul.f32 %v3857, 0.16666667
        %v3874 = vadd.f32 %v3858, 0.5
        %v3875 = vadd.f32 %v3859, 0.5
        %v3876 = vadd.f32 %v3860, 0.5
        %v3877 = vadd.f32 %v3861, 0.5
        %v3878 = vadd.f32 %v3862, 0.5
        %v3879 = vadd.f32 %v3863, 0.5
        %v3880 = vadd.f32 %v3864, 0.5
        %v3881 = vadd.f32 %v3865, 0.5
        %v3882 = vadd.f32 %v3866, 0.5
        %v3883 = vadd.f32 %v3867, 0.5
        %v3884 = vadd.f32 %v3868, 0.5
        %v3885 = vadd.f32 %v3869, 0.5
        %v3886 = vadd.f32 %v3870, 0.5
        %v3887 = vadd.f32 %v3871, 0.5
        %v3888 = vadd.f32 %v3872, 0.5
        %v3889 = vadd.f32 %v3873, 0.5
        %v3890 = vmax.f32 %v3874, 0.0
        %v3891 = vmax.f32 %v3875, 0.0
        %v3892 = vmax.f32 %v3876, 0.0
        %v3893 = vmax.f32 %v3877, 0.0
        %v3894 = vmax.f32 %v3878, 0.0
        %v3895 = vmax.f32 %v3879, 0.0
        %v3896 = vmax.f32 %v3880, 0.0
        %v3897 = vmax.f32 %v3881, 0.0
        %v3898 = vmax.f32 %v3882, 0.0
        %v3899 = vmax.f32 %v3883, 0.0
        %v3900 = vmax.f32 %v3884, 0.0
        %v3901 = vmax.f32 %v3885, 0.0
        %v3902 = vmax.f32 %v3886, 0.0
        %v3903 = vmax.f32 %v3887, 0.0
        %v3904 = vmax.f32 %v3888, 0.0
        %v3905 = vmax.f32 %v3889, 0.0
        %v3906 = vmin.f32 %v3890, 1.0
        %v3907 = vmin.f32 %v3891, 1.0
        %v3908 = vmin.f32 %v3892, 1.0
        %v3909 = vmin.f32 %v3893, 1.0
        %v3910 = vmin.f32 %v3894, 1.0
        %v3911 = vmin.f32 %v3895, 1.0
        %v3912 = vmin.f32 %v3896, 1.0
        %v3913 = vmin.f32 %v3897, 1.0
        %v3914 = vmin.f32 %v3898, 1.0
        %v3915 = vmin.f32 %v3899, 1.0
        %v3916 = vmin.f32 %v3900, 1.0
        %v3917 = vmin.f32 %v3901, 1.0
        %v3918 = vmin.f32 %v3902, 1.0
        %v3919 = vmin.f32 %v3903, 1.0
        %v3920 = vmin.f32 %v3904, 1.0
        %v3921 = vmin.f32 %v3905, 1.0
        %v3922 = vmul.f32 %v3842, %v3906
        %v3923 = vmul.f32 %v3843, %v3907
        %v3924 = vmul.f32 %v3844, %v3908
        %v3925 = vmul.f32 %v3845, %v3909
        %v3926 = vmul.f32 %v3846, %v3910
        %v3927 = vmul.f32 %v3847, %v3911
        %v3928 = vmul.f32 %v3848, %v3912
        %v3929 = vmul.f32 %v3849, %v3913
        %v3930 = vmul.f32 %v3850, %v3914
        %v3931 = vmul.f32 %v3851, %v3915
        %v3932 = vmul.f32 %v3852, %v3916
        %v3933 = vmul.f32 %v3853, %v3917
        %v3934 = vmul.f32 %v3854, %v3918
        %v3935 = vmul.f32 %v3855, %v3919
        %v3936 = vmul.f32 %v3856, %v3920
        %v3937 = vmul.f32 %v3857, %v3921
        %v3938 = vld [vmem:[%s276] sm:$0xff]
        %v3939 = vld [vmem:[%s276 + $0x8] sm:$0xff]
        %v3940 = vld [vmem:[%s276 + $0x10] sm:$0xff]
        %v3941 = vld [vmem:[%s276 + $0x18] sm:$0xff]
        %v3942 = vld [vmem:[%s276 + $0x20] sm:$0xff]
        %v3943 = vld [vmem:[%s276 + $0x28] sm:$0xff]
        %v3944 = vld [vmem:[%s276 + $0x30] sm:$0xff]
        %v3945 = vld [vmem:[%s276 + $0x38] sm:$0xff]
        %v3946 = vunpack.c.l.bf16 %v3938
        %v3947 = vunpack.c.h.bf16 %v3938
        %v3948 = vunpack.c.l.bf16 %v3939
        %v3949 = vunpack.c.h.bf16 %v3939
        %v3950 = vunpack.c.l.bf16 %v3940
        %v3951 = vunpack.c.h.bf16 %v3940
        %v3952 = vunpack.c.l.bf16 %v3941
        %v3953 = vunpack.c.h.bf16 %v3941
        %v3954 = vunpack.c.l.bf16 %v3942
        %v3955 = vunpack.c.h.bf16 %v3942
        %v3956 = vunpack.c.l.bf16 %v3943
        %v3957 = vunpack.c.h.bf16 %v3943
        %v3958 = vunpack.c.l.bf16 %v3944
        %v3959 = vunpack.c.h.bf16 %v3944
        %v3960 = vunpack.c.l.bf16 %v3945
        %v3961 = vunpack.c.h.bf16 %v3945
        %v3962 = vadd.f32 %v3922, %v3946
        %v3963 = vadd.f32 %v3923, %v3947
        %v3964 = vadd.f32 %v3924, %v3948
        %v3965 = vadd.f32 %v3925, %v3949
        %v3966 = vadd.f32 %v3926, %v3950
        %v3967 = vadd.f32 %v3927, %v3951
        %v3968 = vadd.f32 %v3928, %v3952
        %v3969 = vadd.f32 %v3929, %v3953
        %v3970 = vadd.f32 %v3930, %v3954
        %v3971 = vadd.f32 %v3931, %v3955
        %v3972 = vadd.f32 %v3932, %v3956
        %v3973 = vadd.f32 %v3933, %v3957
        %v3974 = vadd.f32 %v3934, %v3958
        %v3975 = vadd.f32 %v3935, %v3959
        %v3976 = vadd.f32 %v3936, %v3960
        %v3977 = vadd.f32 %v3937, %v3961
        %3978 = vst [vmem:[%s271] sm:$0xff] %v3962
        %3979 = vst [vmem:[%s271 + $0x8] sm:$0xff] %v3963
        %3980 = vst [vmem:[%s271 + $0x10] sm:$0xff] %v3964
        %3981 = vst [vmem:[%s271 + $0x18] sm:$0xff] %v3965
        %3982 = vst [vmem:[%s271 + $0x20] sm:$0xff] %v3966
        %3983 = vst [vmem:[%s271 + $0x28] sm:$0xff] %v3967
        %3984 = vst [vmem:[%s271 + $0x30] sm:$0xff] %v3968
        %3985 = vst [vmem:[%s271 + $0x38] sm:$0xff] %v3969
        %3986 = vst [vmem:[%s271 + $0x40] sm:$0xff] %v3970
        %3987 = vst [vmem:[%s271 + $0x48] sm:$0xff] %v3971
        %3988 = vst [vmem:[%s271 + $0x50] sm:$0xff] %v3972
        %3989 = vst [vmem:[%s271 + $0x58] sm:$0xff] %v3973
        %3990 = vst [vmem:[%s271 + $0x60] sm:$0xff] %v3974
        %3991 = vst [vmem:[%s271 + $0x68] sm:$0xff] %v3975
        %3992 = vst [vmem:[%s271 + $0x70] sm:$0xff] %v3976
        %3993 = vst [vmem:[%s271 + $0x78] sm:$0xff] %v3977
        %v3994 = vld [vmem:[#allocation2 + $0x120] sm:$0xff]
        %v3995 = vld [vmem:[#allocation2 + $0x128] sm:$0xff]
        %v3996 = vld [vmem:[#allocation2 + $0x130] sm:$0xff]
        %v3997 = vld [vmem:[#allocation2 + $0x138] sm:$0xff]
        %v3998 = vld [vmem:[#allocation2 + $0x140] sm:$0xf]
        %v3999 = vld [vmem:[#allocation2 + $0x144] sm:$0xff]
        %v4000 = vld [vmem:[#allocation2 + $0x14c] sm:$0xff]
        %v4001 = vld [vmem:[#allocation2 + $0x154] sm:$0xff]
        %v4002 = vld [vmem:[#allocation2 + $0x15c] sm:$0xff]
        %v4003 = vld [vmem:[#allocation2 + $0x164] sm:$0xf]
        %v4004 = vld [vmem:[#allocation2 + $0x168] sm:$0xff]
        %v4005 = vld [vmem:[#allocation2 + $0x170] sm:$0xff]
        %v4006 = vld [vmem:[#allocation2 + $0x178] sm:$0xff]
        %v4007 = vld [vmem:[#allocation2 + $0x180] sm:$0xff]
        %v4008 = vld [vmem:[#allocation2 + $0x188] sm:$0xf]
        %v4009 = vld [vmem:[#allocation2 + $0x18c] sm:$0xff]
        %v4010 = vld [vmem:[#allocation2 + $0x194] sm:$0xff]
        %v4011 = vld [vmem:[#allocation2 + $0x19c] sm:$0xff]
        %v4012 = vld [vmem:[#allocation2 + $0x1a4] sm:$0xff]
        %v4013 = vld [vmem:[#allocation2 + $0x1ac] sm:$0xf]
        %v4014 = vld [vmem:[#allocation2 + $0x1b0] sm:$0xff]
        %v4015 = vld [vmem:[#allocation2 + $0x1b8] sm:$0xff]
        %v4016 = vld [vmem:[#allocation2 + $0x1c0] sm:$0xff]
        %v4017 = vld [vmem:[#allocation2 + $0x1c8] sm:$0xff]
        %v4018 = vld [vmem:[#allocation2 + $0x1d0] sm:$0xf]
        %v4019 = vld [vmem:[#allocation2 + $0x1d4] sm:$0xff]
        %v4020 = vld [vmem:[#allocation2 + $0x1dc] sm:$0xff]
        %v4021 = vld [vmem:[#allocation2 + $0x1e4] sm:$0xff]
        %v4022 = vld [vmem:[#allocation2 + $0x1ec] sm:$0xff]
        %v4023 = vld [vmem:[#allocation2 + $0x1f4] sm:$0xf]
        %v4024 = vld [vmem:[#allocation2 + $0x1f8] sm:$0xff]
        %v4025 = vld [vmem:[#allocation2 + $0x200] sm:$0xff]
        %v4026 = vld [vmem:[#allocation2 + $0x208] sm:$0xff]
        %v4027 = vld [vmem:[#allocation2 + $0x210] sm:$0xff]
        %v4028 = vld [vmem:[#allocation2 + $0x218] sm:$0xf]
        %v4029 = vld [vmem:[#allocation2 + $0x21c] sm:$0xff]
        %v4030 = vld [vmem:[#allocation2 + $0x224] sm:$0xff]
        %v4031 = vld [vmem:[#allocation2 + $0x22c] sm:$0xff]
        %v4032 = vld [vmem:[#allocation2 + $0x234] sm:$0xff]
        %v4033 = vld [vmem:[#allocation2 + $0x23c] sm:$0xf]
        %v4034 = vld [vmem:[%s4] sm:$0xff]
        %v4035 = vld [vmem:[%s4 + $0x8] sm:$0xff]
        %v4036 = vld [vmem:[%s4 + $0x10] sm:$0xff]
        %v4037 = vld [vmem:[%s4 + $0x18] sm:$0xff]
        %v4038 = vld [vmem:[%s4 + $0x20] sm:$0xff]
        %v4039 = vld [vmem:[%s4 + $0x28] sm:$0xff]
        %v4040 = vld [vmem:[%s4 + $0x30] sm:$0xff]
        %v4041 = vld [vmem:[%s4 + $0x38] sm:$0xff]
        %v4042 = vld [vmem:[%s4 + $0x40] sm:$0xff]
        %v4043 = vld [vmem:[%s4 + $0x48] sm:$0xff]
        %v4044 = vld [vmem:[%s4 + $0x50] sm:$0xff]
        %v4045 = vld [vmem:[%s4 + $0x58] sm:$0xff]
        %v4046 = vld [vmem:[%s4 + $0x60] sm:$0xff]
        %v4047 = vld [vmem:[%s4 + $0x68] sm:$0xff]
        %v4048 = vld [vmem:[%s4 + $0x70] sm:$0xff]
        %v4049 = vld [vmem:[%s4 + $0x78] sm:$0xff]
        %v4050 = vld [vmem:[%s4 + $0x80] sm:$0xff]
        %v4051 = vld [vmem:[%s4 + $0x88] sm:$0xff]
        %v4052 = vld [vmem:[%s4 + $0x90] sm:$0xff]
        %v4053 = vld [vmem:[%s4 + $0x98] sm:$0xff]
        %v4054 = vld [vmem:[%s4 + $0xa0] sm:$0xff]
        %v4055 = vld [vmem:[%s4 + $0xa8] sm:$0xff]
        %v4056 = vld [vmem:[%s4 + $0xb0] sm:$0xff]
        %v4057 = vld [vmem:[%s4 + $0xb8] sm:$0xff]
        %v4058 = vld [vmem:[%s4 + $0xc0] sm:$0xff]
        %v4059 = vld [vmem:[%s4 + $0xc8] sm:$0xff]
        %v4060 = vld [vmem:[%s4 + $0xd0] sm:$0xff]
        %v4061 = vld [vmem:[%s4 + $0xd8] sm:$0xff]
        %v4062 = vld [vmem:[%s4 + $0xe0] sm:$0xff]
        %v4063 = vld [vmem:[%s4 + $0xe8] sm:$0xff]
        %v4064 = vld [vmem:[%s4 + $0xf0] sm:$0xff]
        %v4065 = vld [vmem:[%s4 + $0xf8] sm:$0xff]
        %v4066 = vld [vmem:[%s4 + $0x100] sm:$0xff]
        %v4067 = vld [vmem:[%s4 + $0x108] sm:$0xff]
        %v4068 = vld [vmem:[%s4 + $0x110] sm:$0xff]
        %v4069 = vld [vmem:[%s4 + $0x118] sm:$0xff]
        %v4070 = vld [vmem:[%s4 + $0x120] sm:$0xff]
        %v4071 = vld [vmem:[%s4 + $0x128] sm:$0xff]
        %v4072 = vld [vmem:[%s4 + $0x130] sm:$0xff]
        %v4073 = vld [vmem:[%s4 + $0x138] sm:$0xff]
        %v4074 = vld [vmem:[%s4 + $0x140] sm:$0xff]
        %v4075 = vld [vmem:[%s4 + $0x148] sm:$0xff]
        %v4076 = vld [vmem:[%s4 + $0x150] sm:$0xff]
        %v4077 = vld [vmem:[%s4 + $0x158] sm:$0xff]
        %v4078 = vld [vmem:[%s4 + $0x160] sm:$0xff]
        %v4079 = vld [vmem:[%s4 + $0x168] sm:$0xff]
        %v4080 = vld [vmem:[%s4 + $0x170] sm:$0xff]
        %v4081 = vld [vmem:[%s4 + $0x178] sm:$0xff]
        %v4082 = vld [vmem:[%s4 + $0x180] sm:$0xff]
        %v4083 = vld [vmem:[%s4 + $0x188] sm:$0xff]
        %v4084 = vld [vmem:[%s4 + $0x190] sm:$0xff]
        %v4085 = vld [vmem:[%s4 + $0x198] sm:$0xff]
        %v4086 = vld [vmem:[%s4 + $0x1a0] sm:$0xff]
        %v4087 = vld [vmem:[%s4 + $0x1a8] sm:$0xff]
        %v4088 = vld [vmem:[%s4 + $0x1b0] sm:$0xff]
        %v4089 = vld [vmem:[%s4 + $0x1b8] sm:$0xff]
        %v4090 = vld [vmem:[%s4 + $0x1c0] sm:$0xff]
        %v4091 = vld [vmem:[%s4 + $0x1c8] sm:$0xff]
        %v4092 = vld [vmem:[%s4 + $0x1d0] sm:$0xff]
        %v4093 = vld [vmem:[%s4 + $0x1d8] sm:$0xff]
        %v4094 = vld [vmem:[%s4 + $0x1e0] sm:$0xff]
        %v4095 = vld [vmem:[%s4 + $0x1e8] sm:$0xff]
        %v4096 = vld [vmem:[%s4 + $0x1f0] sm:$0xff]
        %v4097 = vld [vmem:[%s4 + $0x1f8] sm:$0xff]
        %v4098 = vld [vmem:[%s4 + $0x200] sm:$0xff]
        %v4099 = vld [vmem:[%s4 + $0x208] sm:$0xff]
        %v4100 = vld [vmem:[%s4 + $0x210] sm:$0xff]
        %v4101 = vld [vmem:[%s4 + $0x218] sm:$0xff]
        %v4102 = vld [vmem:[%s4 + $0x220] sm:$0xff]
        %v4103 = vld [vmem:[%s4 + $0x228] sm:$0xff]
        %v4104 = vld [vmem:[%s4 + $0x230] sm:$0xff]
        %v4105 = vld [vmem:[%s4 + $0x238] sm:$0xff]
        %v4106 = vld [vmem:[%s4 + $0x240] sm:$0xff]
        %v4107 = vld [vmem:[%s4 + $0x248] sm:$0xff]
        %v4108 = vld [vmem:[%s4 + $0x250] sm:$0xff]
        %v4109 = vld [vmem:[%s4 + $0x258] sm:$0xff]
        %v4110 = vld [vmem:[%s4 + $0x260] sm:$0xff]
        %v4111 = vld [vmem:[%s4 + $0x268] sm:$0xff]
        %v4112 = vld [vmem:[%s4 + $0x270] sm:$0xff]
        %v4113 = vld [vmem:[%s4 + $0x278] sm:$0xff]
        %v4114 = vld [vmem:[%s4 + $0x280] sm:$0xff]
        %v4115 = vld [vmem:[%s4 + $0x288] sm:$0xff]
        %v4116 = vld [vmem:[%s4 + $0x290] sm:$0xff]
        %v4117 = vld [vmem:[%s4 + $0x298] sm:$0xff]
        %v4118 = vld [vmem:[%s4 + $0x2a0] sm:$0xff]
        %v4119 = vld [vmem:[%s4 + $0x2a8] sm:$0xff]
        %v4120 = vld [vmem:[%s4 + $0x2b0] sm:$0xff]
        %v4121 = vld [vmem:[%s4 + $0x2b8] sm:$0xff]
        %v4122 = vld [vmem:[%s4 + $0x2c0] sm:$0xff]
        %v4123 = vld [vmem:[%s4 + $0x2c8] sm:$0xff]
        %v4124 = vld [vmem:[%s4 + $0x2d0] sm:$0xff]
        %v4125 = vld [vmem:[%s4 + $0x2d8] sm:$0xff]
        %v4126 = vld [vmem:[%s4 + $0x2e0] sm:$0xff]
        %v4127 = vld [vmem:[%s4 + $0x2e8] sm:$0xff]
        %v4128 = vld [vmem:[%s4 + $0x2f0] sm:$0xff]
        %v4129 = vld [vmem:[%s4 + $0x2f8] sm:$0xff]
        %v4130 = vld [vmem:[%s4 + $0x300] sm:$0xff]
        %v4131 = vld [vmem:[%s4 + $0x308] sm:$0xff]
        %v4132 = vld [vmem:[%s4 + $0x310] sm:$0xff]
        %v4133 = vld [vmem:[%s4 + $0x318] sm:$0xff]
        %v4134 = vld [vmem:[%s4 + $0x320] sm:$0xff]
        %v4135 = vld [vmem:[%s4 + $0x328] sm:$0xff]
        %v4136 = vld [vmem:[%s4 + $0x330] sm:$0xff]
        %v4137 = vld [vmem:[%s4 + $0x338] sm:$0xff]
        %v4138 = vld [vmem:[%s4 + $0x340] sm:$0xff]
        %v4139 = vld [vmem:[%s4 + $0x348] sm:$0xff]
        %v4140 = vld [vmem:[%s4 + $0x350] sm:$0xff]
        %v4141 = vld [vmem:[%s4 + $0x358] sm:$0xff]
        %v4142 = vld [vmem:[%s4 + $0x360] sm:$0xff]
        %v4143 = vld [vmem:[%s4 + $0x368] sm:$0xff]
        %v4144 = vld [vmem:[%s4 + $0x370] sm:$0xff]
        %v4145 = vld [vmem:[%s4 + $0x378] sm:$0xff]
        %v4146 = vld [vmem:[%s4 + $0x380] sm:$0xff]
        %v4147 = vld [vmem:[%s4 + $0x388] sm:$0xff]
        %v4148 = vld [vmem:[%s4 + $0x390] sm:$0xff]
        %v4149 = vld [vmem:[%s4 + $0x398] sm:$0xff]
        %v4150 = vld [vmem:[%s4 + $0x3a0] sm:$0xff]
        %v4151 = vld [vmem:[%s4 + $0x3a8] sm:$0xff]
        %v4152 = vld [vmem:[%s4 + $0x3b0] sm:$0xff]
        %v4153 = vld [vmem:[%s4 + $0x3b8] sm:$0xff]
        %v4154 = vld [vmem:[%s4 + $0x3c0] sm:$0xff]
        %v4155 = vld [vmem:[%s4 + $0x3c8] sm:$0xff]
        %v4156 = vld [vmem:[%s4 + $0x3d0] sm:$0xff]
        %v4157 = vld [vmem:[%s4 + $0x3d8] sm:$0xff]
        %v4158 = vld [vmem:[%s4 + $0x3e0] sm:$0xff]
        %v4159 = vld [vmem:[%s4 + $0x3e8] sm:$0xff]
        %v4160 = vld [vmem:[%s4 + $0x3f0] sm:$0xff]
        %v4161 = vld [vmem:[%s4 + $0x3f8] sm:$0xff]
        %v4162 = vld [vmem:[%s4 + $0x400] sm:$0xff]
        %v4163 = vld [vmem:[%s4 + $0x408] sm:$0xff]
        %v4164 = vld [vmem:[%s4 + $0x410] sm:$0xff]
        %v4165 = vld [vmem:[%s4 + $0x418] sm:$0xff]
        %v4166 = vld [vmem:[%s4 + $0x420] sm:$0xff]
        %v4167 = vld [vmem:[%s4 + $0x428] sm:$0xff]
        %v4168 = vld [vmem:[%s4 + $0x430] sm:$0xff]
        %v4169 = vld [vmem:[%s4 + $0x438] sm:$0xff]
        %v4170 = vld [vmem:[%s4 + $0x440] sm:$0xff]
        %v4171 = vld [vmem:[%s4 + $0x448] sm:$0xff]
        %v4172 = vld [vmem:[%s4 + $0x450] sm:$0xff]
        %v4173 = vld [vmem:[%s4 + $0x458] sm:$0xff]
        %v4174 = vld [vmem:[%s4 + $0x460] sm:$0xff]
        %v4175 = vld [vmem:[%s4 + $0x468] sm:$0xff]
        %v4176 = vld [vmem:[%s4 + $0x470] sm:$0xff]
        %v4177 = vld [vmem:[%s4 + $0x478] sm:$0xff]
        %v4218 = vunpack.c.l.b16 %v3994
        %v4219 = vunpack.c.h.b16 %v3994
        %v4220 = vunpack.c.l.b16 %v3995
        %v4221 = vunpack.c.h.b16 %v3995
        %v4222 = vunpack.c.l.b16 %v3996
        %v4223 = vunpack.c.h.b16 %v3996
        %v4224 = vunpack.c.l.b16 %v3997
        %v4225 = vunpack.c.h.b16 %v3997
        %v4226 = vunpack.c.l.b16 %v3998
        %v4227 = vunpack.c.l.b16 %v3999
        %v4228 = vunpack.c.h.b16 %v3999
        %v4229 = vunpack.c.l.b16 %v4000
        %v4230 = vunpack.c.h.b16 %v4000
        %v4231 = vunpack.c.l.b16 %v4001
        %v4232 = vunpack.c.h.b16 %v4001
        %v4233 = vunpack.c.l.b16 %v4002
        %v4234 = vunpack.c.h.b16 %v4002
        %v4235 = vunpack.c.l.b16 %v4003
        %v4236 = vunpack.c.l.b16 %v4004
        %v4237 = vunpack.c.h.b16 %v4004
        %v4238 = vunpack.c.l.b16 %v4005
        %v4239 = vunpack.c.h.b16 %v4005
        %v4240 = vunpack.c.l.b16 %v4006
        %v4241 = vunpack.c.h.b16 %v4006
        %v4242 = vunpack.c.l.b16 %v4007
        %v4243 = vunpack.c.h.b16 %v4007
        %v4244 = vunpack.c.l.b16 %v4008
        %v4245 = vunpack.c.l.b16 %v4009
        %v4246 = vunpack.c.h.b16 %v4009
        %v4247 = vunpack.c.l.b16 %v4010
        %v4248 = vunpack.c.h.b16 %v4010
        %v4249 = vunpack.c.l.b16 %v4011
        %v4250 = vunpack.c.h.b16 %v4011
        %v4251 = vunpack.c.l.b16 %v4012
        %v4252 = vunpack.c.h.b16 %v4012
        %v4253 = vunpack.c.l.b16 %v4013
        %v4254 = vunpack.c.l.b16 %v4014
        %v4255 = vunpack.c.h.b16 %v4014
        %v4256 = vunpack.c.l.b16 %v4015
        %v4257 = vunpack.c.h.b16 %v4015
        %v4258 = vunpack.c.l.b16 %v4016
        %v4259 = vunpack.c.h.b16 %v4016
        %v4260 = vunpack.c.l.b16 %v4017
        %v4261 = vunpack.c.h.b16 %v4017
        %v4262 = vunpack.c.l.b16 %v4018
        %v4263 = vunpack.c.l.b16 %v4019
        %v4264 = vunpack.c.h.b16 %v4019
        %v4265 = vunpack.c.l.b16 %v4020
        %v4266 = vunpack.c.h.b16 %v4020
        %v4267 = vunpack.c.l.b16 %v4021
        %v4268 = vunpack.c.h.b16 %v4021
        %v4269 = vunpack.c.l.b16 %v4022
        %v4270 = vunpack.c.h.b16 %v4022
        %v4271 = vunpack.c.l.b16 %v4023
        %v4272 = vunpack.c.l.b16 %v4024
        %v4273 = vunpack.c.h.b16 %v4024
        %v4274 = vunpack.c.l.b16 %v4025
        %v4275 = vunpack.c.h.b16 %v4025
        %v4276 = vunpack.c.l.b16 %v4026
        %v4277 = vunpack.c.h.b16 %v4026
        %v4278 = vunpack.c.l.b16 %v4027
        %v4279 = vunpack.c.h.b16 %v4027
        %v4280 = vunpack.c.l.b16 %v4028
        %v4281 = vunpack.c.l.b16 %v4029
        %v4282 = vunpack.c.h.b16 %v4029
        %v4283 = vunpack.c.l.b16 %v4030
        %v4284 = vunpack.c.h.b16 %v4030
        %v4285 = vunpack.c.l.b16 %v4031
        %v4286 = vunpack.c.h.b16 %v4031
        %v4287 = vunpack.c.l.b16 %v4032
        %v4288 = vunpack.c.h.b16 %v4032
        %v4289 = vunpack.c.l.b16 %v4033
        %v4290 = vpack.c.b16 %v4227, %v4218
        %v4291 = vpack.c.b16 %v4228, %v4219
        %v4292 = vpack.c.b16 %v4229, %v4220
        %v4293 = vpack.c.b16 %v4230, %v4221
        %v4294 = vpack.c.b16 %v4231, %v4222
        %v4295 = vpack.c.b16 %v4232, %v4223
        %v4296 = vpack.c.b16 %v4233, %v4224
        %v4297 = vpack.c.b16 %v4234, %v4225
        %v4298 = vpack.c.b16 %v4235, %v4226
        %v4299 = vpack.c.b16 %v4245, %v4236
        %v4300 = vpack.c.b16 %v4246, %v4237
        %v4301 = vpack.c.b16 %v4247, %v4238
        %v4302 = vpack.c.b16 %v4248, %v4239
        %v4303 = vpack.c.b16 %v4249, %v4240
        %v4304 = vpack.c.b16 %v4250, %v4241
        %v4305 = vpack.c.b16 %v4251, %v4242
        %v4306 = vpack.c.b16 %v4252, %v4243
        %v4307 = vpack.c.b16 %v4253, %v4244
        %v4308 = vpack.c.b16 %v4263, %v4254
        %v4309 = vpack.c.b16 %v4264, %v4255
        %v4310 = vpack.c.b16 %v4265, %v4256
        %v4311 = vpack.c.b16 %v4266, %v4257
        %v4312 = vpack.c.b16 %v4267, %v4258
        %v4313 = vpack.c.b16 %v4268, %v4259
        %v4314 = vpack.c.b16 %v4269, %v4260
        %v4315 = vpack.c.b16 %v4270, %v4261
        %v4316 = vpack.c.b16 %v4271, %v4262
        %v4317 = vpack.c.b16 %v4281, %v4272
        %v4318 = vpack.c.b16 %v4282, %v4273
        %v4319 = vpack.c.b16 %v4283, %v4274
        %v4320 = vpack.c.b16 %v4284, %v4275
        %v4321 = vpack.c.b16 %v4285, %v4276
        %v4322 = vpack.c.b16 %v4286, %v4277
        %v4323 = vpack.c.b16 %v4287, %v4278
        %v4324 = vpack.c.b16 %v4288, %v4279
        %v4325 = vpack.c.b16 %v4289, %v4280
        %v4506 = vunpack.c.l.b16 %v4034
        %v4507 = vunpack.c.h.b16 %v4034
        %v4508 = vunpack.c.l.b16 %v4035
        %v4509 = vunpack.c.h.b16 %v4035
        %v4510 = vunpack.c.l.b16 %v4036
        %v4511 = vunpack.c.h.b16 %v4036
        %v4512 = vunpack.c.l.b16 %v4037
        %v4513 = vunpack.c.h.b16 %v4037
        %v4514 = vunpack.c.l.b16 %v4038
        %v4515 = vunpack.c.h.b16 %v4038
        %v4516 = vunpack.c.l.b16 %v4039
        %v4517 = vunpack.c.h.b16 %v4039
        %v4518 = vunpack.c.l.b16 %v4040
        %v4519 = vunpack.c.h.b16 %v4040
        %v4520 = vunpack.c.l.b16 %v4041
        %v4521 = vunpack.c.h.b16 %v4041
        %v4522 = vunpack.c.l.b16 %v4042
        %v4523 = vunpack.c.h.b16 %v4042
        %v4524 = vunpack.c.l.b16 %v4043
        %v4525 = vunpack.c.h.b16 %v4043
        %v4526 = vunpack.c.l.b16 %v4044
        %v4527 = vunpack.c.h.b16 %v4044
        %v4528 = vunpack.c.l.b16 %v4045
        %v4529 = vunpack.c.h.b16 %v4045
        %v4530 = vunpack.c.l.b16 %v4046
        %v4531 = vunpack.c.h.b16 %v4046
        %v4532 = vunpack.c.l.b16 %v4047
        %v4533 = vunpack.c.h.b16 %v4047
        %v4534 = vunpack.c.l.b16 %v4048
        %v4535 = vunpack.c.h.b16 %v4048
        %v4536 = vunpack.c.l.b16 %v4049
        %v4537 = vunpack.c.h.b16 %v4049
        %v4538 = vunpack.c.l.b16 %v4050
        %v4539 = vunpack.c.h.b16 %v4050
        %v4540 = vunpack.c.l.b16 %v4051
        %v4541 = vunpack.c.h.b16 %v4051
        %v4542 = vunpack.c.l.b16 %v4052
        %v4543 = vunpack.c.h.b16 %v4052
        %v4544 = vunpack.c.l.b16 %v4053
        %v4545 = vunpack.c.h.b16 %v4053
        %v4546 = vunpack.c.l.b16 %v4054
        %v4547 = vunpack.c.h.b16 %v4054
        %v4548 = vunpack.c.l.b16 %v4055
        %v4549 = vunpack.c.h.b16 %v4055
        %v4550 = vunpack.c.l.b16 %v4056
        %v4551 = vunpack.c.h.b16 %v4056
        %v4552 = vunpack.c.l.b16 %v4057
        %v4553 = vunpack.c.h.b16 %v4057
        %v4554 = vunpack.c.l.b16 %v4058
        %v4555 = vunpack.c.h.b16 %v4058
        %v4556 = vunpack.c.l.b16 %v4059
        %v4557 = vunpack.c.h.b16 %v4059
        %v4558 = vunpack.c.l.b16 %v4060
        %v4559 = vunpack.c.h.b16 %v4060
        %v4560 = vunpack.c.l.b16 %v4061
        %v4561 = vunpack.c.h.b16 %v4061
        %v4562 = vunpack.c.l.b16 %v4062
        %v4563 = vunpack.c.h.b16 %v4062
        %v4564 = vunpack.c.l.b16 %v4063
        %v4565 = vunpack.c.h.b16 %v4063
        %v4566 = vunpack.c.l.b16 %v4064
        %v4567 = vunpack.c.h.b16 %v4064
        %v4568 = vunpack.c.l.b16 %v4065
        %v4569 = vunpack.c.h.b16 %v4065
        %v4570 = vunpack.c.l.b16 %v4066
        %v4571 = vunpack.c.h.b16 %v4066
        %v4572 = vunpack.c.l.b16 %v4067
        %v4573 = vunpack.c.h.b16 %v4067
        %v4574 = vunpack.c.l.b16 %v4068
        %v4575 = vunpack.c.h.b16 %v4068
        %v4576 = vunpack.c.l.b16 %v4069
        %v4577 = vunpack.c.h.b16 %v4069
        %v4578 = vunpack.c.l.b16 %v4070
        %v4579 = vunpack.c.h.b16 %v4070
        %v4580 = vunpack.c.l.b16 %v4071
        %v4581 = vunpack.c.h.b16 %v4071
        %v4582 = vunpack.c.l.b16 %v4072
        %v4583 = vunpack.c.h.b16 %v4072
        %v4584 = vunpack.c.l.b16 %v4073
        %v4585 = vunpack.c.h.b16 %v4073
        %v4586 = vunpack.c.l.b16 %v4074
        %v4587 = vunpack.c.h.b16 %v4074
        %v4588 = vunpack.c.l.b16 %v4075
        %v4589 = vunpack.c.h.b16 %v4075
        %v4590 = vunpack.c.l.b16 %v4076
        %v4591 = vunpack.c.h.b16 %v4076
        %v4592 = vunpack.c.l.b16 %v4077
        %v4593 = vunpack.c.h.b16 %v4077
        %v4594 = vunpack.c.l.b16 %v4078
        %v4595 = vunpack.c.h.b16 %v4078
        %v4596 = vunpack.c.l.b16 %v4079
        %v4597 = vunpack.c.h.b16 %v4079
        %v4598 = vunpack.c.l.b16 %v4080
        %v4599 = vunpack.c.h.b16 %v4080
        %v4600 = vunpack.c.l.b16 %v4081
        %v4601 = vunpack.c.h.b16 %v4081
        %v4602 = vunpack.c.l.b16 %v4082
        %v4603 = vunpack.c.h.b16 %v4082
        %v4604 = vunpack.c.l.b16 %v4083
        %v4605 = vunpack.c.h.b16 %v4083
        %v4606 = vunpack.c.l.b16 %v4084
        %v4607 = vunpack.c.h.b16 %v4084
        %v4608 = vunpack.c.l.b16 %v4085
        %v4609 = vunpack.c.h.b16 %v4085
        %v4610 = vunpack.c.l.b16 %v4086
        %v4611 = vunpack.c.h.b16 %v4086
        %v4612 = vunpack.c.l.b16 %v4087
        %v4613 = vunpack.c.h.b16 %v4087
        %v4614 = vunpack.c.l.b16 %v4088
        %v4615 = vunpack.c.h.b16 %v4088
        %v4616 = vunpack.c.l.b16 %v4089
        %v4617 = vunpack.c.h.b16 %v4089
        %v4618 = vunpack.c.l.b16 %v4090
        %v4619 = vunpack.c.h.b16 %v4090
        %v4620 = vunpack.c.l.b16 %v4091
        %v4621 = vunpack.c.h.b16 %v4091
        %v4622 = vunpack.c.l.b16 %v4092
        %v4623 = vunpack.c.h.b16 %v4092
        %v4624 = vunpack.c.l.b16 %v4093
        %v4625 = vunpack.c.h.b16 %v4093
        %v4626 = vunpack.c.l.b16 %v4094
        %v4627 = vunpack.c.h.b16 %v4094
        %v4628 = vunpack.c.l.b16 %v4095
        %v4629 = vunpack.c.h.b16 %v4095
        %v4630 = vunpack.c.l.b16 %v4096
        %v4631 = vunpack.c.h.b16 %v4096
        %v4632 = vunpack.c.l.b16 %v4097
        %v4633 = vunpack.c.h.b16 %v4097
        %v4634 = vunpack.c.l.b16 %v4098
        %v4635 = vunpack.c.h.b16 %v4098
        %v4636 = vunpack.c.l.b16 %v4099
        %v4637 = vunpack.c.h.b16 %v4099
        %v4638 = vunpack.c.l.b16 %v4100
        %v4639 = vunpack.c.h.b16 %v4100
        %v4640 = vunpack.c.l.b16 %v4101
        %v4641 = vunpack.c.h.b16 %v4101
        %v4642 = vunpack.c.l.b16 %v4102
        %v4643 = vunpack.c.h.b16 %v4102
        %v4644 = vunpack.c.l.b16 %v4103
        %v4645 = vunpack.c.h.b16 %v4103
        %v4646 = vunpack.c.l.b16 %v4104
        %v4647 = vunpack.c.h.b16 %v4104
        %v4648 = vunpack.c.l.b16 %v4105
        %v4649 = vunpack.c.h.b16 %v4105
        %v4650 = vunpack.c.l.b16 %v4106
        %v4651 = vunpack.c.h.b16 %v4106
        %v4652 = vunpack.c.l.b16 %v4107
        %v4653 = vunpack.c.h.b16 %v4107
        %v4654 = vunpack.c.l.b16 %v4108
        %v4655 = vunpack.c.h.b16 %v4108
        %v4656 = vunpack.c.l.b16 %v4109
        %v4657 = vunpack.c.h.b16 %v4109
        %v4658 = vunpack.c.l.b16 %v4110
        %v4659 = vunpack.c.h.b16 %v4110
        %v4660 = vunpack.c.l.b16 %v4111
        %v4661 = vunpack.c.h.b16 %v4111
        %v4662 = vunpack.c.l.b16 %v4112
        %v4663 = vunpack.c.h.b16 %v4112
        %v4664 = vunpack.c.l.b16 %v4113
        %v4665 = vunpack.c.h.b16 %v4113
        %v4666 = vunpack.c.l.b16 %v4114
        %v4667 = vunpack.c.h.b16 %v4114
        %v4668 = vunpack.c.l.b16 %v4115
        %v4669 = vunpack.c.h.b16 %v4115
        %v4670 = vunpack.c.l.b16 %v4116
        %v4671 = vunpack.c.h.b16 %v4116
        %v4672 = vunpack.c.l.b16 %v4117
        %v4673 = vunpack.c.h.b16 %v4117
        %v4674 = vunpack.c.l.b16 %v4118
        %v4675 = vunpack.c.h.b16 %v4118
        %v4676 = vunpack.c.l.b16 %v4119
        %v4677 = vunpack.c.h.b16 %v4119
        %v4678 = vunpack.c.l.b16 %v4120
        %v4679 = vunpack.c.h.b16 %v4120
        %v4680 = vunpack.c.l.b16 %v4121
        %v4681 = vunpack.c.h.b16 %v4121
        %v4682 = vunpack.c.l.b16 %v4122
        %v4683 = vunpack.c.h.b16 %v4122
        %v4684 = vunpack.c.l.b16 %v4123
        %v4685 = vunpack.c.h.b16 %v4123
        %v4686 = vunpack.c.l.b16 %v4124
        %v4687 = vunpack.c.h.b16 %v4124
        %v4688 = vunpack.c.l.b16 %v4125
        %v4689 = vunpack.c.h.b16 %v4125
        %v4690 = vunpack.c.l.b16 %v4126
        %v4691 = vunpack.c.h.b16 %v4126
        %v4692 = vunpack.c.l.b16 %v4127
        %v4693 = vunpack.c.h.b16 %v4127
        %v4694 = vunpack.c.l.b16 %v4128
        %v4695 = vunpack.c.h.b16 %v4128
        %v4696 = vunpack.c.l.b16 %v4129
        %v4697 = vunpack.c.h.b16 %v4129
        %v4698 = vunpack.c.l.b16 %v4130
        %v4699 = vunpack.c.h.b16 %v4130
        %v4700 = vunpack.c.l.b16 %v4131
        %v4701 = vunpack.c.h.b16 %v4131
        %v4702 = vunpack.c.l.b16 %v4132
        %v4703 = vunpack.c.h.b16 %v4132
        %v4704 = vunpack.c.l.b16 %v4133
        %v4705 = vunpack.c.h.b16 %v4133
        %v4706 = vunpack.c.l.b16 %v4134
        %v4707 = vunpack.c.h.b16 %v4134
        %v4708 = vunpack.c.l.b16 %v4135
        %v4709 = vunpack.c.h.b16 %v4135
        %v4710 = vunpack.c.l.b16 %v4136
        %v4711 = vunpack.c.h.b16 %v4136
        %v4712 = vunpack.c.l.b16 %v4137
        %v4713 = vunpack.c.h.b16 %v4137
        %v4714 = vunpack.c.l.b16 %v4138
        %v4715 = vunpack.c.h.b16 %v4138
        %v4716 = vunpack.c.l.b16 %v4139
        %v4717 = vunpack.c.h.b16 %v4139
        %v4718 = vunpack.c.l.b16 %v4140
        %v4719 = vunpack.c.h.b16 %v4140
        %v4720 = vunpack.c.l.b16 %v4141
        %v4721 = vunpack.c.h.b16 %v4141
        %v4722 = vunpack.c.l.b16 %v4142
        %v4723 = vunpack.c.h.b16 %v4142
        %v4724 = vunpack.c.l.b16 %v4143
        %v4725 = vunpack.c.h.b16 %v4143
        %v4726 = vunpack.c.l.b16 %v4144
        %v4727 = vunpack.c.h.b16 %v4144
        %v4728 = vunpack.c.l.b16 %v4145
        %v4729 = vunpack.c.h.b16 %v4145
        %v4730 = vunpack.c.l.b16 %v4146
        %v4731 = vunpack.c.h.b16 %v4146
        %v4732 = vunpack.c.l.b16 %v4147
        %v4733 = vunpack.c.h.b16 %v4147
        %v4734 = vunpack.c.l.b16 %v4148
        %v4735 = vunpack.c.h.b16 %v4148
        %v4736 = vunpack.c.l.b16 %v4149
        %v4737 = vunpack.c.h.b16 %v4149
        %v4738 = vunpack.c.l.b16 %v4150
        %v4739 = vunpack.c.h.b16 %v4150
        %v4740 = vunpack.c.l.b16 %v4151
        %v4741 = vunpack.c.h.b16 %v4151
        %v4742 = vunpack.c.l.b16 %v4152
        %v4743 = vunpack.c.h.b16 %v4152
        %v4744 = vunpack.c.l.b16 %v4153
        %v4745 = vunpack.c.h.b16 %v4153
        %v4746 = vunpack.c.l.b16 %v4154
        %v4747 = vunpack.c.h.b16 %v4154
        %v4748 = vunpack.c.l.b16 %v4155
        %v4749 = vunpack.c.h.b16 %v4155
        %v4750 = vunpack.c.l.b16 %v4156
        %v4751 = vunpack.c.h.b16 %v4156
        %v4752 = vunpack.c.l.b16 %v4157
        %v4753 = vunpack.c.h.b16 %v4157
        %v4754 = vunpack.c.l.b16 %v4158
        %v4755 = vunpack.c.h.b16 %v4158
        %v4756 = vunpack.c.l.b16 %v4159
        %v4757 = vunpack.c.h.b16 %v4159
        %v4758 = vunpack.c.l.b16 %v4160
        %v4759 = vunpack.c.h.b16 %v4160
        %v4760 = vunpack.c.l.b16 %v4161
        %v4761 = vunpack.c.h.b16 %v4161
        %v4762 = vunpack.c.l.b16 %v4162
        %v4763 = vunpack.c.h.b16 %v4162
        %v4764 = vunpack.c.l.b16 %v4163
        %v4765 = vunpack.c.h.b16 %v4163
        %v4766 = vunpack.c.l.b16 %v4164
        %v4767 = vunpack.c.h.b16 %v4164
        %v4768 = vunpack.c.l.b16 %v4165
        %v4769 = vunpack.c.h.b16 %v4165
        %v4770 = vunpack.c.l.b16 %v4166
        %v4771 = vunpack.c.h.b16 %v4166
        %v4772 = vunpack.c.l.b16 %v4167
        %v4773 = vunpack.c.h.b16 %v4167
        %v4774 = vunpack.c.l.b16 %v4168
        %v4775 = vunpack.c.h.b16 %v4168
        %v4776 = vunpack.c.l.b16 %v4169
        %v4777 = vunpack.c.h.b16 %v4169
        %v4778 = vunpack.c.l.b16 %v4170
        %v4779 = vunpack.c.h.b16 %v4170
        %v4780 = vunpack.c.l.b16 %v4171
        %v4781 = vunpack.c.h.b16 %v4171
        %v4782 = vunpack.c.l.b16 %v4172
        %v4783 = vunpack.c.h.b16 %v4172
        %v4784 = vunpack.c.l.b16 %v4173
        %v4785 = vunpack.c.h.b16 %v4173
        %v4786 = vunpack.c.l.b16 %v4174
        %v4787 = vunpack.c.h.b16 %v4174
        %v4788 = vunpack.c.l.b16 %v4175
        %v4789 = vunpack.c.h.b16 %v4175
        %v4790 = vunpack.c.l.b16 %v4176
        %v4791 = vunpack.c.h.b16 %v4176
        %v4792 = vunpack.c.l.b16 %v4177
        %v4793 = vunpack.c.h.b16 %v4177
        %v4794 = vpack.c.b16 %v4508, %v4506
        %v4795 = vpack.c.b16 %v4509, %v4507
        %v4796 = vpack.c.b16 %v4512, %v4510
        %v4797 = vpack.c.b16 %v4513, %v4511
        %v4798 = vpack.c.b16 %v4516, %v4514
        %v4799 = vpack.c.b16 %v4517, %v4515
        %v4800 = vpack.c.b16 %v4520, %v4518
        %v4801 = vpack.c.b16 %v4521, %v4519
        %v4802 = vpack.c.b16 %v4524, %v4522
        %v4803 = vpack.c.b16 %v4525, %v4523
        %v4804 = vpack.c.b16 %v4528, %v4526
        %v4805 = vpack.c.b16 %v4529, %v4527
        %v4806 = vpack.c.b16 %v4532, %v4530
        %v4807 = vpack.c.b16 %v4533, %v4531
        %v4808 = vpack.c.b16 %v4536, %v4534
        %v4809 = vpack.c.b16 %v4537, %v4535
        %v4810 = vpack.c.b16 %v4540, %v4538
        %v4811 = vpack.c.b16 %v4541, %v4539
        %v4812 = vpack.c.b16 %v4544, %v4542
        %v4813 = vpack.c.b16 %v4545, %v4543
        %v4814 = vpack.c.b16 %v4548, %v4546
        %v4815 = vpack.c.b16 %v4549, %v4547
        %v4816 = vpack.c.b16 %v4552, %v4550
        %v4817 = vpack.c.b16 %v4553, %v4551
        %v4818 = vpack.c.b16 %v4556, %v4554
        %v4819 = vpack.c.b16 %v4557, %v4555
        %v4820 = vpack.c.b16 %v4560, %v4558
        %v4821 = vpack.c.b16 %v4561, %v4559
        %v4822 = vpack.c.b16 %v4564, %v4562
        %v4823 = vpack.c.b16 %v4565, %v4563
        %v4824 = vpack.c.b16 %v4568, %v4566
        %v4825 = vpack.c.b16 %v4569, %v4567
        %v4826 = vpack.c.b16 %v4572, %v4570
        %v4827 = vpack.c.b16 %v4573, %v4571
        %v4828 = vpack.c.b16 %v4576, %v4574
        %v4829 = vpack.c.b16 %v4577, %v4575
        %v4830 = vpack.c.b16 %v4580, %v4578
        %v4831 = vpack.c.b16 %v4581, %v4579
        %v4832 = vpack.c.b16 %v4584, %v4582
        %v4833 = vpack.c.b16 %v4585, %v4583
        %v4834 = vpack.c.b16 %v4588, %v4586
        %v4835 = vpack.c.b16 %v4589, %v4587
        %v4836 = vpack.c.b16 %v4592, %v4590
        %v4837 = vpack.c.b16 %v4593, %v4591
        %v4838 = vpack.c.b16 %v4596, %v4594
        %v4839 = vpack.c.b16 %v4597, %v4595
        %v4840 = vpack.c.b16 %v4600, %v4598
        %v4841 = vpack.c.b16 %v4601, %v4599
        %v4842 = vpack.c.b16 %v4604, %v4602
        %v4843 = vpack.c.b16 %v4605, %v4603
        %v4844 = vpack.c.b16 %v4608, %v4606
        %v4845 = vpack.c.b16 %v4609, %v4607
        %v4846 = vpack.c.b16 %v4612, %v4610
        %v4847 = vpack.c.b16 %v4613, %v4611
        %v4848 = vpack.c.b16 %v4616, %v4614
        %v4849 = vpack.c.b16 %v4617, %v4615
        %v4850 = vpack.c.b16 %v4620, %v4618
        %v4851 = vpack.c.b16 %v4621, %v4619
        %v4852 = vpack.c.b16 %v4624, %v4622
        %v4853 = vpack.c.b16 %v4625, %v4623
        %v4854 = vpack.c.b16 %v4628, %v4626
        %v4855 = vpack.c.b16 %v4629, %v4627
        %v4856 = vpack.c.b16 %v4632, %v4630
        %v4857 = vpack.c.b16 %v4633, %v4631
        %v4858 = vpack.c.b16 %v4636, %v4634
        %v4859 = vpack.c.b16 %v4637, %v4635
        %v4860 = vpack.c.b16 %v4640, %v4638
        %v4861 = vpack.c.b16 %v4641, %v4639
        %v4862 = vpack.c.b16 %v4644, %v4642
        %v4863 = vpack.c.b16 %v4645, %v4643
        %v4864 = vpack.c.b16 %v4648, %v4646
        %v4865 = vpack.c.b16 %v4649, %v4647
        %v4866 = vpack.c.b16 %v4652, %v4650
        %v4867 = vpack.c.b16 %v4653, %v4651
        %v4868 = vpack.c.b16 %v4656, %v4654
        %v4869 = vpack.c.b16 %v4657, %v4655
        %v4870 = vpack.c.b16 %v4660, %v4658
        %v4871 = vpack.c.b16 %v4661, %v4659
        %v4872 = vpack.c.b16 %v4664, %v4662
        %v4873 = vpack.c.b16 %v4665, %v4663
        %v4874 = vpack.c.b16 %v4668, %v4666
        %v4875 = vpack.c.b16 %v4669, %v4667
        %v4876 = vpack.c.b16 %v4672, %v4670
        %v4877 = vpack.c.b16 %v4673, %v4671
        %v4878 = vpack.c.b16 %v4676, %v4674
        %v4879 = vpack.c.b16 %v4677, %v4675
        %v4880 = vpack.c.b16 %v4680, %v4678
        %v4881 = vpack.c.b16 %v4681, %v4679
        %v4882 = vpack.c.b16 %v4684, %v4682
        %v4883 = vpack.c.b16 %v4685, %v4683
        %v4884 = vpack.c.b16 %v4688, %v4686
        %v4885 = vpack.c.b16 %v4689, %v4687
        %v4886 = vpack.c.b16 %v4692, %v4690
        %v4887 = vpack.c.b16 %v4693, %v4691
        %v4888 = vpack.c.b16 %v4696, %v4694
        %v4889 = vpack.c.b16 %v4697, %v4695
        %v4890 = vpack.c.b16 %v4700, %v4698
        %v4891 = vpack.c.b16 %v4701, %v4699
        %v4892 = vpack.c.b16 %v4704, %v4702
        %v4893 = vpack.c.b16 %v4705, %v4703
        %v4894 = vpack.c.b16 %v4708, %v4706
        %v4895 = vpack.c.b16 %v4709, %v4707
        %v4896 = vpack.c.b16 %v4712, %v4710
        %v4897 = vpack.c.b16 %v4713, %v4711
        %v4898 = vpack.c.b16 %v4716, %v4714
        %v4899 = vpack.c.b16 %v4717, %v4715
        %v4900 = vpack.c.b16 %v4720, %v4718
        %v4901 = vpack.c.b16 %v4721, %v4719
        %v4902 = vpack.c.b16 %v4724, %v4722
        %v4903 = vpack.c.b16 %v4725, %v4723
        %v4904 = vpack.c.b16 %v4728, %v4726
        %v4905 = vpack.c.b16 %v4729, %v4727
        %v4906 = vpack.c.b16 %v4732, %v4730
        %v4907 = vpack.c.b16 %v4733, %v4731
        %v4908 = vpack.c.b16 %v4736, %v4734
        %v4909 = vpack.c.b16 %v4737, %v4735
        %v4910 = vpack.c.b16 %v4740, %v4738
        %v4911 = vpack.c.b16 %v4741, %v4739
        %v4912 = vpack.c.b16 %v4744, %v4742
        %v4913 = vpack.c.b16 %v4745, %v4743
        %v4914 = vpack.c.b16 %v4748, %v4746
        %v4915 = vpack.c.b16 %v4749, %v4747
        %v4916 = vpack.c.b16 %v4752, %v4750
        %v4917 = vpack.c.b16 %v4753, %v4751
        %v4918 = vpack.c.b16 %v4756, %v4754
        %v4919 = vpack.c.b16 %v4757, %v4755
        %v4920 = vpack.c.b16 %v4760, %v4758
        %v4921 = vpack.c.b16 %v4761, %v4759
        %v4922 = vpack.c.b16 %v4764, %v4762
        %v4923 = vpack.c.b16 %v4765, %v4763
        %v4924 = vpack.c.b16 %v4768, %v4766
        %v4925 = vpack.c.b16 %v4769, %v4767
        %v4926 = vpack.c.b16 %v4772, %v4770
        %v4927 = vpack.c.b16 %v4773, %v4771
        %v4928 = vpack.c.b16 %v4776, %v4774
        %v4929 = vpack.c.b16 %v4777, %v4775
        %v4930 = vpack.c.b16 %v4780, %v4778
        %v4931 = vpack.c.b16 %v4781, %v4779
        %v4932 = vpack.c.b16 %v4784, %v4782
        %v4933 = vpack.c.b16 %v4785, %v4783
        %v4934 = vpack.c.b16 %v4788, %v4786
        %v4935 = vpack.c.b16 %v4789, %v4787
        %v4936 = vpack.c.b16 %v4792, %v4790
        %v4937 = vpack.c.b16 %v4793, %v4791
        %5082 = vmatpush.bf16.msra.mxu0 %v4808
        %5083 = vmatpush.bf16.msra.mxu0 %v4806
        %5084 = vmatpush.bf16.msra.mxu0 %v4804
        %5085 = vmatpush.bf16.msra.mxu0 %v4802
        %5086 = vmatpush.bf16.msra.mxu0 %v4800
        %5087 = vmatpush.bf16.msra.mxu0 %v4798
        %5088 = vmatpush.bf16.msra.mxu0 %v4796
        %5089 = vmatpush.bf16.msra.mxu0 %v4794
        %5090 = vmatmul.bf16.gmra.mxu0 %v4290
        %v5091 = vpop.f32.mrf.mxu0
        %v5092 = vadd.f32 0.0, %v5091
        %v5093 = vpop.f32.mrf.mxu0
        %v5094 = vadd.f32 0.0, %v5093
        %5095 = vmatmul.bf16.gmra.mxu0 %v4299
        %v5096 = vpop.f32.mrf.mxu0
        %v5097 = vadd.f32 0.0, %v5096
        %v5098 = vpop.f32.mrf.mxu0
        %v5099 = vadd.f32 0.0, %v5098
        %5100 = vmatmul.bf16.gmra.mxu0 %v4308
        %v5101 = vpop.f32.mrf.mxu0
        %v5102 = vadd.f32 0.0, %v5101
        %v5103 = vpop.f32.mrf.mxu0
        %v5104 = vadd.f32 0.0, %v5103
        %5105 = vmatmul.bf16.gmra.mxu0 %v4317
        %v5106 = vpop.f32.mrf.mxu0
        %v5107 = vadd.f32 0.0, %v5106
        %v5108 = vpop.f32.mrf.mxu0
        %v5109 = vadd.f32 0.0, %v5108
        %5110 = vdwg.mxu0
        %5111 = vmatpush.bf16.msra.mxu0 %v4824
        %5112 = vmatpush.bf16.msra.mxu0 %v4822
        %5113 = vmatpush.bf16.msra.mxu0 %v4820
        %5114 = vmatpush.bf16.msra.mxu0 %v4818
        %5115 = vmatpush.bf16.msra.mxu0 %v4816
        %5116 = vmatpush.bf16.msra.mxu0 %v4814
        %5117 = vmatpush.bf16.msra.mxu0 %v4812
        %5118 = vmatpush.bf16.msra.mxu0 %v4810
        %5119 = vmatmul.bf16.gmra.mxu0 %v4291
        %v5120 = vpop.f32.mrf.mxu0
        %v5121 = vadd.f32 %v5092, %v5120
        %v5122 = vpop.f32.mrf.mxu0
        %v5123 = vadd.f32 %v5094, %v5122
        %5124 = vmatmul.bf16.gmra.mxu0 %v4300
        %v5125 = vpop.f32.mrf.mxu0
        %v5126 = vadd.f32 %v5097, %v5125
        %v5127 = vpop.f32.mrf.mxu0
        %v5128 = vadd.f32 %v5099, %v5127
        %5129 = vmatmul.bf16.gmra.mxu0 %v4309
        %v5130 = vpop.f32.mrf.mxu0
        %v5131 = vadd.f32 %v5102, %v5130
        %v5132 = vpop.f32.mrf.mxu0
        %v5133 = vadd.f32 %v5104, %v5132
        %5134 = vmatmul.bf16.gmra.mxu0 %v4318
        %v5135 = vpop.f32.mrf.mxu0
        %v5136 = vadd.f32 %v5107, %v5135
        %v5137 = vpop.f32.mrf.mxu0
        %v5138 = vadd.f32 %v5109, %v5137
        %5139 = vdwg.mxu0
        %5140 = vmatpush.bf16.msra.mxu0 %v4840
        %5141 = vmatpush.bf16.msra.mxu0 %v4838
        %5142 = vmatpush.bf16.msra.mxu0 %v4836
        %5143 = vmatpush.bf16.msra.mxu0 %v4834
        %5144 = vmatpush.bf16.msra.mxu0 %v4832
        %5145 = vmatpush.bf16.msra.mxu0 %v4830
        %5146 = vmatpush.bf16.msra.mxu0 %v4828
        %5147 = vmatpush.bf16.msra.mxu0 %v4826
        %5148 = vmatmul.bf16.gmra.mxu0 %v4292
        %v5149 = vpop.f32.mrf.mxu0
        %v5150 = vadd.f32 %v5121, %v5149
        %v5151 = vpop.f32.mrf.mxu0
        %v5152 = vadd.f32 %v5123, %v5151
        %5153 = vmatmul.bf16.gmra.mxu0 %v4301
        %v5154 = vpop.f32.mrf.mxu0
        %v5155 = vadd.f32 %v5126, %v5154
        %v5156 = vpop.f32.mrf.mxu0
        %v5157 = vadd.f32 %v5128, %v5156
        %5158 = vmatmul.bf16.gmra.mxu0 %v4310
        %v5159 = vpop.f32.mrf.mxu0
        %v5160 = vadd.f32 %v5131, %v5159
        %v5161 = vpop.f32.mrf.mxu0
        %v5162 = vadd.f32 %v5133, %v5161
        %5163 = vmatmul.bf16.gmra.mxu0 %v4319
        %v5164 = vpop.f32.mrf.mxu0
        %v5165 = vadd.f32 %v5136, %v5164
        %v5166 = vpop.f32.mrf.mxu0
        %v5167 = vadd.f32 %v5138, %v5166
        %5168 = vdwg.mxu0
        %5169 = vmatpush.bf16.msra.mxu0 %v4856
        %5170 = vmatpush.bf16.msra.mxu0 %v4854
        %5171 = vmatpush.bf16.msra.mxu0 %v4852
        %5172 = vmatpush.bf16.msra.mxu0 %v4850
        %5173 = vmatpush.bf16.msra.mxu0 %v4848
        %5174 = vmatpush.bf16.msra.mxu0 %v4846
        %5175 = vmatpush.bf16.msra.mxu0 %v4844
        %5176 = vmatpush.bf16.msra.mxu0 %v4842
        %5177 = vmatmul.bf16.gmra.mxu0 %v4293
        %v5178 = vpop.f32.mrf.mxu0
        %v5179 = vadd.f32 %v5150, %v5178
        %v5180 = vpop.f32.mrf.mxu0
        %v5181 = vadd.f32 %v5152, %v5180
        %5182 = vmatmul.bf16.gmra.mxu0 %v4302
        %v5183 = vpop.f32.mrf.mxu0
        %v5184 = vadd.f32 %v5155, %v5183
        %v5185 = vpop.f32.mrf.mxu0
        %v5186 = vadd.f32 %v5157, %v5185
        %5187 = vmatmul.bf16.gmra.mxu0 %v4311
        %v5188 = vpop.f32.mrf.mxu0
        %v5189 = vadd.f32 %v5160, %v5188
        %v5190 = vpop.f32.mrf.mxu0
        %v5191 = vadd.f32 %v5162, %v5190
        %5192 = vmatmul.bf16.gmra.mxu0 %v4320
        %v5193 = vpop.f32.mrf.mxu0
        %v5194 = vadd.f32 %v5165, %v5193
        %v5195 = vpop.f32.mrf.mxu0
        %v5196 = vadd.f32 %v5167, %v5195
        %5197 = vdwg.mxu0
        %5198 = vmatpush.bf16.msra.mxu0 %v4872
        %5199 = vmatpush.bf16.msra.mxu0 %v4870
        %5200 = vmatpush.bf16.msra.mxu0 %v4868
        %5201 = vmatpush.bf16.msra.mxu0 %v4866
        %5202 = vmatpush.bf16.msra.mxu0 %v4864
        %5203 = vmatpush.bf16.msra.mxu0 %v4862
        %5204 = vmatpush.bf16.msra.mxu0 %v4860
        %5205 = vmatpush.bf16.msra.mxu0 %v4858
        %5206 = vmatmul.bf16.gmra.mxu0 %v4294
        %v5207 = vpop.f32.mrf.mxu0
        %v5208 = vadd.f32 %v5179, %v5207
        %v5209 = vpop.f32.mrf.mxu0
        %v5210 = vadd.f32 %v5181, %v5209
        %5211 = vmatmul.bf16.gmra.mxu0 %v4303
        %v5212 = vpop.f32.mrf.mxu0
        %v5213 = vadd.f32 %v5184, %v5212
        %v5214 = vpop.f32.mrf.mxu0
        %v5215 = vadd.f32 %v5186, %v5214
        %5216 = vmatmul.bf16.gmra.mxu0 %v4312
        %v5217 = vpop.f32.mrf.mxu0
        %v5218 = vadd.f32 %v5189, %v5217
        %v5219 = vpop.f32.mrf.mxu0
        %v5220 = vadd.f32 %v5191, %v5219
        %5221 = vmatmul.bf16.gmra.mxu0 %v4321
        %v5222 = vpop.f32.mrf.mxu0
        %v5223 = vadd.f32 %v5194, %v5222
        %v5224 = vpop.f32.mrf.mxu0
        %v5225 = vadd.f32 %v5196, %v5224
        %5226 = vdwg.mxu0
        %5227 = vmatpush.bf16.msra.mxu0 %v4888
        %5228 = vmatpush.bf16.msra.mxu0 %v4886
        %5229 = vmatpush.bf16.msra.mxu0 %v4884
        %5230 = vmatpush.bf16.msra.mxu0 %v4882
        %5231 = vmatpush.bf16.msra.mxu0 %v4880
        %5232 = vmatpush.bf16.msra.mxu0 %v4878
        %5233 = vmatpush.bf16.msra.mxu0 %v4876
        %5234 = vmatpush.bf16.msra.mxu0 %v4874
        %5235 = vmatmul.bf16.gmra.mxu0 %v4295
        %v5236 = vpop.f32.mrf.mxu0
        %v5237 = vadd.f32 %v5208, %v5236
        %v5238 = vpop.f32.mrf.mxu0
        %v5239 = vadd.f32 %v5210, %v5238
        %5240 = vmatmul.bf16.gmra.mxu0 %v4304
        %v5241 = vpop.f32.mrf.mxu0
        %v5242 = vadd.f32 %v5213, %v5241
        %v5243 = vpop.f32.mrf.mxu0
        %v5244 = vadd.f32 %v5215, %v5243
        %5245 = vmatmul.bf16.gmra.mxu0 %v4313
        %v5246 = vpop.f32.mrf.mxu0
        %v5247 = vadd.f32 %v5218, %v5246
        %v5248 = vpop.f32.mrf.mxu0
        %v5249 = vadd.f32 %v5220, %v5248
        %5250 = vmatmul.bf16.gmra.mxu0 %v4322
        %v5251 = vpop.f32.mrf.mxu0
        %v5252 = vadd.f32 %v5223, %v5251
        %v5253 = vpop.f32.mrf.mxu0
        %v5254 = vadd.f32 %v5225, %v5253
        %5255 = vdwg.mxu0
        %5256 = vmatpush.bf16.msra.mxu0 %v4904
        %5257 = vmatpush.bf16.msra.mxu0 %v4902
        %5258 = vmatpush.bf16.msra.mxu0 %v4900
        %5259 = vmatpush.bf16.msra.mxu0 %v4898
        %5260 = vmatpush.bf16.msra.mxu0 %v4896
        %5261 = vmatpush.bf16.msra.mxu0 %v4894
        %5262 = vmatpush.bf16.msra.mxu0 %v4892
        %5263 = vmatpush.bf16.msra.mxu0 %v4890
        %5264 = vmatmul.bf16.gmra.mxu0 %v4296
        %v5265 = vpop.f32.mrf.mxu0
        %v5266 = vadd.f32 %v5237, %v5265
        %v5267 = vpop.f32.mrf.mxu0
        %v5268 = vadd.f32 %v5239, %v5267
        %5269 = vmatmul.bf16.gmra.mxu0 %v4305
        %v5270 = vpop.f32.mrf.mxu0
        %v5271 = vadd.f32 %v5242, %v5270
        %v5272 = vpop.f32.mrf.mxu0
        %v5273 = vadd.f32 %v5244, %v5272
        %5274 = vmatmul.bf16.gmra.mxu0 %v4314
        %v5275 = vpop.f32.mrf.mxu0
        %v5276 = vadd.f32 %v5247, %v5275
        %v5277 = vpop.f32.mrf.mxu0
        %v5278 = vadd.f32 %v5249, %v5277
        %5279 = vmatmul.bf16.gmra.mxu0 %v4323
        %v5280 = vpop.f32.mrf.mxu0
        %v5281 = vadd.f32 %v5252, %v5280
        %v5282 = vpop.f32.mrf.mxu0
        %v5283 = vadd.f32 %v5254, %v5282
        %5284 = vdwg.mxu0
        %5285 = vmatpush.bf16.msra.mxu0 %v4920
        %5286 = vmatpush.bf16.msra.mxu0 %v4918
        %5287 = vmatpush.bf16.msra.mxu0 %v4916
        %5288 = vmatpush.bf16.msra.mxu0 %v4914
        %5289 = vmatpush.bf16.msra.mxu0 %v4912
        %5290 = vmatpush.bf16.msra.mxu0 %v4910
        %5291 = vmatpush.bf16.msra.mxu0 %v4908
        %5292 = vmatpush.bf16.msra.mxu0 %v4906
        %5293 = vmatmul.bf16.gmra.mxu0 %v4297
        %v5294 = vpop.f32.mrf.mxu0
        %v5295 = vadd.f32 %v5266, %v5294
        %v5296 = vpop.f32.mrf.mxu0
        %v5297 = vadd.f32 %v5268, %v5296
        %5298 = vmatmul.bf16.gmra.mxu0 %v4306
        %v5299 = vpop.f32.mrf.mxu0
        %v5300 = vadd.f32 %v5271, %v5299
        %v5301 = vpop.f32.mrf.mxu0
        %v5302 = vadd.f32 %v5273, %v5301
        %5303 = vmatmul.bf16.gmra.mxu0 %v4315
        %v5304 = vpop.f32.mrf.mxu0
        %v5305 = vadd.f32 %v5276, %v5304
        %v5306 = vpop.f32.mrf.mxu0
        %v5307 = vadd.f32 %v5278, %v5306
        %5308 = vmatmul.bf16.gmra.mxu0 %v4324
        %v5309 = vpop.f32.mrf.mxu0
        %v5310 = vadd.f32 %v5281, %v5309
        %v5311 = vpop.f32.mrf.mxu0
        %v5312 = vadd.f32 %v5283, %v5311
        %5313 = vdwg.mxu0
        %5314 = vmatpush.bf16.msra.mxu0 %v4936
        %5315 = vmatpush.bf16.msra.mxu0 %v4934
        %5316 = vmatpush.bf16.msra.mxu0 %v4932
        %5317 = vmatpush.bf16.msra.mxu0 %v4930
        %5318 = vmatpush.bf16.msra.mxu0 %v4928
        %5319 = vmatpush.bf16.msra.mxu0 %v4926
        %5320 = vmatpush.bf16.msra.mxu0 %v4924
        %5321 = vmatpush.bf16.msra.mxu0 %v4922
        %5322 = vmatmul.bf16.gmra.mxu0 %v4298
        %v5323 = vpop.f32.mrf.mxu0
        %v5324 = vadd.f32 %v5295, %v5323
        %v5325 = vpop.f32.mrf.mxu0
        %v5326 = vadd.f32 %v5297, %v5325
        %5327 = vmatmul.bf16.gmra.mxu0 %v4307
        %v5328 = vpop.f32.mrf.mxu0
        %v5329 = vadd.f32 %v5300, %v5328
        %v5330 = vpop.f32.mrf.mxu0
        %v5331 = vadd.f32 %v5302, %v5330
        %5332 = vmatmul.bf16.gmra.mxu0 %v4316
        %v5333 = vpop.f32.mrf.mxu0
        %v5334 = vadd.f32 %v5305, %v5333
        %v5335 = vpop.f32.mrf.mxu0
        %v5336 = vadd.f32 %v5307, %v5335
        %5337 = vmatmul.bf16.gmra.mxu0 %v4325
        %v5338 = vpop.f32.mrf.mxu0
        %v5339 = vadd.f32 %v5310, %v5338
        %v5340 = vpop.f32.mrf.mxu0
        %v5341 = vadd.f32 %v5312, %v5340
        %5342 = vdwg.mxu0
        %5343 = vmatpush.bf16.msra.mxu0 %v4809
        %5344 = vmatpush.bf16.msra.mxu0 %v4807
        %5345 = vmatpush.bf16.msra.mxu0 %v4805
        %5346 = vmatpush.bf16.msra.mxu0 %v4803
        %5347 = vmatpush.bf16.msra.mxu0 %v4801
        %5348 = vmatpush.bf16.msra.mxu0 %v4799
        %5349 = vmatpush.bf16.msra.mxu0 %v4797
        %5350 = vmatpush.bf16.msra.mxu0 %v4795
        %5351 = vmatmul.bf16.gmra.mxu0 %v4290
        %v5352 = vpop.f32.mrf.mxu0
        %v5353 = vadd.f32 0.0, %v5352
        %v5354 = vpop.f32.mrf.mxu0
        %v5355 = vadd.f32 0.0, %v5354
        %5356 = vmatmul.bf16.gmra.mxu0 %v4299
        %v5357 = vpop.f32.mrf.mxu0
        %v5358 = vadd.f32 0.0, %v5357
        %v5359 = vpop.f32.mrf.mxu0
        %v5360 = vadd.f32 0.0, %v5359
        %5361 = vmatmul.bf16.gmra.mxu0 %v4308
        %v5362 = vpop.f32.mrf.mxu0
        %v5363 = vadd.f32 0.0, %v5362
        %v5364 = vpop.f32.mrf.mxu0
        %v5365 = vadd.f32 0.0, %v5364
        %5366 = vmatmul.bf16.gmra.mxu0 %v4317
        %v5367 = vpop.f32.mrf.mxu0
        %v5368 = vadd.f32 0.0, %v5367
        %v5369 = vpop.f32.mrf.mxu0
        %v5370 = vadd.f32 0.0, %v5369
        %5371 = vdwg.mxu0
        %5372 = vmatpush.bf16.msra.mxu0 %v4825
        %5373 = vmatpush.bf16.msra.mxu0 %v4823
        %5374 = vmatpush.bf16.msra.mxu0 %v4821
        %5375 = vmatpush.bf16.msra.mxu0 %v4819
        %5376 = vmatpush.bf16.msra.mxu0 %v4817
        %5377 = vmatpush.bf16.msra.mxu0 %v4815
        %5378 = vmatpush.bf16.msra.mxu0 %v4813
        %5379 = vmatpush.bf16.msra.mxu0 %v4811
        %5380 = vmatmul.bf16.gmra.mxu0 %v4291
        %v5381 = vpop.f32.mrf.mxu0
        %v5382 = vadd.f32 %v5353, %v5381
        %v5383 = vpop.f32.mrf.mxu0
        %v5384 = vadd.f32 %v5355, %v5383
        %5385 = vmatmul.bf16.gmra.mxu0 %v4300
        %v5386 = vpop.f32.mrf.mxu0
        %v5387 = vadd.f32 %v5358, %v5386
        %v5388 = vpop.f32.mrf.mxu0
        %v5389 = vadd.f32 %v5360, %v5388
        %5390 = vmatmul.bf16.gmra.mxu0 %v4309
        %v5391 = vpop.f32.mrf.mxu0
        %v5392 = vadd.f32 %v5363, %v5391
        %v5393 = vpop.f32.mrf.mxu0
        %v5394 = vadd.f32 %v5365, %v5393
        %5395 = vmatmul.bf16.gmra.mxu0 %v4318
        %v5396 = vpop.f32.mrf.mxu0
        %v5397 = vadd.f32 %v5368, %v5396
        %v5398 = vpop.f32.mrf.mxu0
        %v5399 = vadd.f32 %v5370, %v5398
        %5400 = vdwg.mxu0
        %5401 = vmatpush.bf16.msra.mxu0 %v4841
        %5402 = vmatpush.bf16.msra.mxu0 %v4839
        %5403 = vmatpush.bf16.msra.mxu0 %v4837
        %5404 = vmatpush.bf16.msra.mxu0 %v4835
        %5405 = vmatpush.bf16.msra.mxu0 %v4833
        %5406 = vmatpush.bf16.msra.mxu0 %v4831
        %5407 = vmatpush.bf16.msra.mxu0 %v4829
        %5408 = vmatpush.bf16.msra.mxu0 %v4827
        %5409 = vmatmul.bf16.gmra.mxu0 %v4292
        %v5410 = vpop.f32.mrf.mxu0
        %v5411 = vadd.f32 %v5382, %v5410
        %v5412 = vpop.f32.mrf.mxu0
        %v5413 = vadd.f32 %v5384, %v5412
        %5414 = vmatmul.bf16.gmra.mxu0 %v4301
        %v5415 = vpop.f32.mrf.mxu0
        %v5416 = vadd.f32 %v5387, %v5415
        %v5417 = vpop.f32.mrf.mxu0
        %v5418 = vadd.f32 %v5389, %v5417
        %5419 = vmatmul.bf16.gmra.mxu0 %v4310
        %v5420 = vpop.f32.mrf.mxu0
        %v5421 = vadd.f32 %v5392, %v5420
        %v5422 = vpop.f32.mrf.mxu0
        %v5423 = vadd.f32 %v5394, %v5422
        %5424 = vmatmul.bf16.gmra.mxu0 %v4319
        %v5425 = vpop.f32.mrf.mxu0
        %v5426 = vadd.f32 %v5397, %v5425
        %v5427 = vpop.f32.mrf.mxu0
        %v5428 = vadd.f32 %v5399, %v5427
        %5429 = vdwg.mxu0
        %5430 = vmatpush.bf16.msra.mxu0 %v4857
        %5431 = vmatpush.bf16.msra.mxu0 %v4855
        %5432 = vmatpush.bf16.msra.mxu0 %v4853
        %5433 = vmatpush.bf16.msra.mxu0 %v4851
        %5434 = vmatpush.bf16.msra.mxu0 %v4849
        %5435 = vmatpush.bf16.msra.mxu0 %v4847
        %5436 = vmatpush.bf16.msra.mxu0 %v4845
        %5437 = vmatpush.bf16.msra.mxu0 %v4843
        %5438 = vmatmul.bf16.gmra.mxu0 %v4293
        %v5439 = vpop.f32.mrf.mxu0
        %v5440 = vadd.f32 %v5411, %v5439
        %v5441 = vpop.f32.mrf.mxu0
        %v5442 = vadd.f32 %v5413, %v5441
        %5443 = vmatmul.bf16.gmra.mxu0 %v4302
        %v5444 = vpop.f32.mrf.mxu0
        %v5445 = vadd.f32 %v5416, %v5444
        %v5446 = vpop.f32.mrf.mxu0
        %v5447 = vadd.f32 %v5418, %v5446
        %5448 = vmatmul.bf16.gmra.mxu0 %v4311
        %v5449 = vpop.f32.mrf.mxu0
        %v5450 = vadd.f32 %v5421, %v5449
        %v5451 = vpop.f32.mrf.mxu0
        %v5452 = vadd.f32 %v5423, %v5451
        %5453 = vmatmul.bf16.gmra.mxu0 %v4320
        %v5454 = vpop.f32.mrf.mxu0
        %v5455 = vadd.f32 %v5426, %v5454
        %v5456 = vpop.f32.mrf.mxu0
        %v5457 = vadd.f32 %v5428, %v5456
        %5458 = vdwg.mxu0
        %5459 = vmatpush.bf16.msra.mxu0 %v4873
        %5460 = vmatpush.bf16.msra.mxu0 %v4871
        %5461 = vmatpush.bf16.msra.mxu0 %v4869
        %5462 = vmatpush.bf16.msra.mxu0 %v4867
        %5463 = vmatpush.bf16.msra.mxu0 %v4865
        %5464 = vmatpush.bf16.msra.mxu0 %v4863
        %5465 = vmatpush.bf16.msra.mxu0 %v4861
        %5466 = vmatpush.bf16.msra.mxu0 %v4859
        %5467 = vmatmul.bf16.gmra.mxu0 %v4294
        %v5468 = vpop.f32.mrf.mxu0
        %v5469 = vadd.f32 %v5440, %v5468
        %v5470 = vpop.f32.mrf.mxu0
        %v5471 = vadd.f32 %v5442, %v5470
        %5472 = vmatmul.bf16.gmra.mxu0 %v4303
        %v5473 = vpop.f32.mrf.mxu0
        %v5474 = vadd.f32 %v5445, %v5473
        %v5475 = vpop.f32.mrf.mxu0
        %v5476 = vadd.f32 %v5447, %v5475
        %5477 = vmatmul.bf16.gmra.mxu0 %v4312
        %v5478 = vpop.f32.mrf.mxu0
        %v5479 = vadd.f32 %v5450, %v5478
        %v5480 = vpop.f32.mrf.mxu0
        %v5481 = vadd.f32 %v5452, %v5480
        %5482 = vmatmul.bf16.gmra.mxu0 %v4321
        %v5483 = vpop.f32.mrf.mxu0
        %v5484 = vadd.f32 %v5455, %v5483
        %v5485 = vpop.f32.mrf.mxu0
        %v5486 = vadd.f32 %v5457, %v5485
        %5487 = vdwg.mxu0
        %5488 = vmatpush.bf16.msra.mxu0 %v4889
        %5489 = vmatpush.bf16.msra.mxu0 %v4887
        %5490 = vmatpush.bf16.msra.mxu0 %v4885
        %5491 = vmatpush.bf16.msra.mxu0 %v4883
        %5492 = vmatpush.bf16.msra.mxu0 %v4881
        %5493 = vmatpush.bf16.msra.mxu0 %v4879
        %5494 = vmatpush.bf16.msra.mxu0 %v4877
        %5495 = vmatpush.bf16.msra.mxu0 %v4875
        %5496 = vmatmul.bf16.gmra.mxu0 %v4295
        %v5497 = vpop.f32.mrf.mxu0
        %v5498 = vadd.f32 %v5469, %v5497
        %v5499 = vpop.f32.mrf.mxu0
        %v5500 = vadd.f32 %v5471, %v5499
        %5501 = vmatmul.bf16.gmra.mxu0 %v4304
        %v5502 = vpop.f32.mrf.mxu0
        %v5503 = vadd.f32 %v5474, %v5502
        %v5504 = vpop.f32.mrf.mxu0
        %v5505 = vadd.f32 %v5476, %v5504
        %5506 = vmatmul.bf16.gmra.mxu0 %v4313
        %v5507 = vpop.f32.mrf.mxu0
        %v5508 = vadd.f32 %v5479, %v5507
        %v5509 = vpop.f32.mrf.mxu0
        %v5510 = vadd.f32 %v5481, %v5509
        %5511 = vmatmul.bf16.gmra.mxu0 %v4322
        %v5512 = vpop.f32.mrf.mxu0
        %v5513 = vadd.f32 %v5484, %v5512
        %v5514 = vpop.f32.mrf.mxu0
        %v5515 = vadd.f32 %v5486, %v5514
        %5516 = vdwg.mxu0
        %5517 = vmatpush.bf16.msra.mxu0 %v4905
        %5518 = vmatpush.bf16.msra.mxu0 %v4903
        %5519 = vmatpush.bf16.msra.mxu0 %v4901
        %5520 = vmatpush.bf16.msra.mxu0 %v4899
        %5521 = vmatpush.bf16.msra.mxu0 %v4897
        %5522 = vmatpush.bf16.msra.mxu0 %v4895
        %5523 = vmatpush.bf16.msra.mxu0 %v4893
        %5524 = vmatpush.bf16.msra.mxu0 %v4891
        %5525 = vmatmul.bf16.gmra.mxu0 %v4296
        %v5526 = vpop.f32.mrf.mxu0
        %v5527 = vadd.f32 %v5498, %v5526
        %v5528 = vpop.f32.mrf.mxu0
        %v5529 = vadd.f32 %v5500, %v5528
        %5530 = vmatmul.bf16.gmra.mxu0 %v4305
        %v5531 = vpop.f32.mrf.mxu0
        %v5532 = vadd.f32 %v5503, %v5531
        %v5533 = vpop.f32.mrf.mxu0
        %v5534 = vadd.f32 %v5505, %v5533
        %5535 = vmatmul.bf16.gmra.mxu0 %v4314
        %v5536 = vpop.f32.mrf.mxu0
        %v5537 = vadd.f32 %v5508, %v5536
        %v5538 = vpop.f32.mrf.mxu0
        %v5539 = vadd.f32 %v5510, %v5538
        %5540 = vmatmul.bf16.gmra.mxu0 %v4323
        %v5541 = vpop.f32.mrf.mxu0
        %v5542 = vadd.f32 %v5513, %v5541
        %v5543 = vpop.f32.mrf.mxu0
        %v5544 = vadd.f32 %v5515, %v5543
        %5545 = vdwg.mxu0
        %5546 = vmatpush.bf16.msra.mxu0 %v4921
        %5547 = vmatpush.bf16.msra.mxu0 %v4919
        %5548 = vmatpush.bf16.msra.mxu0 %v4917
        %5549 = vmatpush.bf16.msra.mxu0 %v4915
        %5550 = vmatpush.bf16.msra.mxu0 %v4913
        %5551 = vmatpush.bf16.msra.mxu0 %v4911
        %5552 = vmatpush.bf16.msra.mxu0 %v4909
        %5553 = vmatpush.bf16.msra.mxu0 %v4907
        %5554 = vmatmul.bf16.gmra.mxu0 %v4297
        %v5555 = vpop.f32.mrf.mxu0
        %v5556 = vadd.f32 %v5527, %v5555
        %v5557 = vpop.f32.mrf.mxu0
        %v5558 = vadd.f32 %v5529, %v5557
        %5559 = vmatmul.bf16.gmra.mxu0 %v4306
        %v5560 = vpop.f32.mrf.mxu0
        %v5561 = vadd.f32 %v5532, %v5560
        %v5562 = vpop.f32.mrf.mxu0
        %v5563 = vadd.f32 %v5534, %v5562
        %5564 = vmatmul.bf16.gmra.mxu0 %v4315
        %v5565 = vpop.f32.mrf.mxu0
        %v5566 = vadd.f32 %v5537, %v5565
        %v5567 = vpop.f32.mrf.mxu0
        %v5568 = vadd.f32 %v5539, %v5567
        %5569 = vmatmul.bf16.gmra.mxu0 %v4324
        %v5570 = vpop.f32.mrf.mxu0
        %v5571 = vadd.f32 %v5542, %v5570
        %v5572 = vpop.f32.mrf.mxu0
        %v5573 = vadd.f32 %v5544, %v5572
        %5574 = vdwg.mxu0
        %5575 = vmatpush.bf16.msra.mxu0 %v4937
        %5576 = vmatpush.bf16.msra.mxu0 %v4935
        %5577 = vmatpush.bf16.msra.mxu0 %v4933
        %5578 = vmatpush.bf16.msra.mxu0 %v4931
        %5579 = vmatpush.bf16.msra.mxu0 %v4929
        %5580 = vmatpush.bf16.msra.mxu0 %v4927
        %5581 = vmatpush.bf16.msra.mxu0 %v4925
        %5582 = vmatpush.bf16.msra.mxu0 %v4923
        %5583 = vmatmul.bf16.gmra.mxu0 %v4298
        %v5584 = vpop.f32.mrf.mxu0
        %v5585 = vadd.f32 %v5556, %v5584
        %v5586 = vpop.f32.mrf.mxu0
        %v5587 = vadd.f32 %v5558, %v5586
        %5588 = vmatmul.bf16.gmra.mxu0 %v4307
        %v5589 = vpop.f32.mrf.mxu0
        %v5590 = vadd.f32 %v5561, %v5589
        %v5591 = vpop.f32.mrf.mxu0
        %v5592 = vadd.f32 %v5563, %v5591
        %5593 = vmatmul.bf16.gmra.mxu0 %v4316
        %v5594 = vpop.f32.mrf.mxu0
        %v5595 = vadd.f32 %v5566, %v5594
        %v5596 = vpop.f32.mrf.mxu0
        %v5597 = vadd.f32 %v5568, %v5596
        %5598 = vmatmul.bf16.gmra.mxu0 %v4325
        %v5599 = vpop.f32.mrf.mxu0
        %v5600 = vadd.f32 %v5571, %v5599
        %v5601 = vpop.f32.mrf.mxu0
        %v5602 = vadd.f32 %v5573, %v5601
        %5603 = vdwg.mxu0
        %v5604 = vld [vmem:[%s5] sm:$0x3]
        %v5606 = vperm.slane %v5604, 0
        %v5607 = vperm.slane %v5604, 1
        %v5610 = vmul.f32 %v5324, %v5606
        %v5611 = vmul.f32 %v5585, %v5607
        %v5612 = vmul.f32 %v5326, %v5606
        %v5613 = vmul.f32 %v5587, %v5607
        %v5614 = vmul.f32 %v5329, %v5606
        %v5615 = vmul.f32 %v5590, %v5607
        %v5616 = vmul.f32 %v5331, %v5606
        %v5617 = vmul.f32 %v5592, %v5607
        %v5618 = vmul.f32 %v5334, %v5606
        %v5619 = vmul.f32 %v5595, %v5607
        %v5620 = vmul.f32 %v5336, %v5606
        %v5621 = vmul.f32 %v5597, %v5607
        %v5622 = vmul.f32 %v5339, %v5606
        %v5623 = vmul.f32 %v5600, %v5607
        %v5624 = vmul.f32 %v5341, %v5606
        %v5625 = vmul.f32 %v5602, %v5607
        %v5626 = vld [vmem:[%s6] sm:$0x3]
        %v5628 = vperm.slane %v5626, 0
        %v5629 = vperm.slane %v5626, 1
        %v5632 = vadd.f32 %v5610, %v5628
        %v5633 = vadd.f32 %v5611, %v5629
        %v5634 = vadd.f32 %v5612, %v5628
        %v5635 = vadd.f32 %v5613, %v5629
        %v5636 = vadd.f32 %v5614, %v5628
        %v5637 = vadd.f32 %v5615, %v5629
        %v5638 = vadd.f32 %v5616, %v5628
        %v5639 = vadd.f32 %v5617, %v5629
        %v5640 = vadd.f32 %v5618, %v5628
        %v5641 = vadd.f32 %v5619, %v5629
        %v5642 = vadd.f32 %v5620, %v5628
        %v5643 = vadd.f32 %v5621, %v5629
        %v5644 = vadd.f32 %v5622, %v5628
        %v5645 = vadd.f32 %v5623, %v5629
        %v5646 = vadd.f32 %v5624, %v5628
        %v5647 = vadd.f32 %v5625, %v5629
        %v5648 = vmul.f32 %v5632, 0.16666667
        %v5649 = vmul.f32 %v5633, 0.16666667
        %v5650 = vmul.f32 %v5634, 0.16666667
        %v5651 = vmul.f32 %v5635, 0.16666667
        %v5652 = vmul.f32 %v5636, 0.16666667
        %v5653 = vmul.f32 %v5637, 0.16666667
        %v5654 = vmul.f32 %v5638, 0.16666667
        %v5655 = vmul.f32 %v5639, 0.16666667
        %v5656 = vmul.f32 %v5640, 0.16666667
        %v5657 = vmul.f32 %v5641, 0.16666667
        %v5658 = vmul.f32 %v5642, 0.16666667
        %v5659 = vmul.f32 %v5643, 0.16666667
        %v5660 = vmul.f32 %v5644, 0.16666667
        %v5661 = vmul.f32 %v5645, 0.16666667
        %v5662 = vmul.f32 %v5646, 0.16666667
        %v5663 = vmul.f32 %v5647, 0.16666667
        %v5664 = vadd.f32 %v5648, 0.5
        %v5665 = vadd.f32 %v5649, 0.5
        %v5666 = vadd.f32 %v5650, 0.5
        %v5667 = vadd.f32 %v5651, 0.5
        %v5668 = vadd.f32 %v5652, 0.5
        %v5669 = vadd.f32 %v5653, 0.5
        %v5670 = vadd.f32 %v5654, 0.5
        %v5671 = vadd.f32 %v5655, 0.5
        %v5672 = vadd.f32 %v5656, 0.5
        %v5673 = vadd.f32 %v5657, 0.5
        %v5674 = vadd.f32 %v5658, 0.5
        %v5675 = vadd.f32 %v5659, 0.5
        %v5676 = vadd.f32 %v5660, 0.5
        %v5677 = vadd.f32 %v5661, 0.5
        %v5678 = vadd.f32 %v5662, 0.5
        %v5679 = vadd.f32 %v5663, 0.5
        %v5680 = vmax.f32 %v5664, 0.0
        %v5681 = vmax.f32 %v5665, 0.0
        %v5682 = vmax.f32 %v5666, 0.0
        %v5683 = vmax.f32 %v5667, 0.0
        %v5684 = vmax.f32 %v5668, 0.0
        %v5685 = vmax.f32 %v5669, 0.0
        %v5686 = vmax.f32 %v5670, 0.0
        %v5687 = vmax.f32 %v5671, 0.0
        %v5688 = vmax.f32 %v5672, 0.0
        %v5689 = vmax.f32 %v5673, 0.0
        %v5690 = vmax.f32 %v5674, 0.0
        %v5691 = vmax.f32 %v5675, 0.0
        %v5692 = vmax.f32 %v5676, 0.0
        %v5693 = vmax.f32 %v5677, 0.0
        %v5694 = vmax.f32 %v5678, 0.0
        %v5695 = vmax.f32 %v5679, 0.0
        %v5696 = vmin.f32 %v5680, 1.0
        %v5697 = vmin.f32 %v5681, 1.0
        %v5698 = vmin.f32 %v5682, 1.0
        %v5699 = vmin.f32 %v5683, 1.0
        %v5700 = vmin.f32 %v5684, 1.0
        %v5701 = vmin.f32 %v5685, 1.0
        %v5702 = vmin.f32 %v5686, 1.0
        %v5703 = vmin.f32 %v5687, 1.0
        %v5704 = vmin.f32 %v5688, 1.0
        %v5705 = vmin.f32 %v5689, 1.0
        %v5706 = vmin.f32 %v5690, 1.0
        %v5707 = vmin.f32 %v5691, 1.0
        %v5708 = vmin.f32 %v5692, 1.0
        %v5709 = vmin.f32 %v5693, 1.0
        %v5710 = vmin.f32 %v5694, 1.0
        %v5711 = vmin.f32 %v5695, 1.0
        %v5712 = vmul.f32 %v5632, %v5696
        %v5713 = vmul.f32 %v5633, %v5697
        %v5714 = vmul.f32 %v5634, %v5698
        %v5715 = vmul.f32 %v5635, %v5699
        %v5716 = vmul.f32 %v5636, %v5700
        %v5717 = vmul.f32 %v5637, %v5701
        %v5718 = vmul.f32 %v5638, %v5702
        %v5719 = vmul.f32 %v5639, %v5703
        %v5720 = vmul.f32 %v5640, %v5704
        %v5721 = vmul.f32 %v5641, %v5705
        %v5722 = vmul.f32 %v5642, %v5706
        %v5723 = vmul.f32 %v5643, %v5707
        %v5724 = vmul.f32 %v5644, %v5708
        %v5725 = vmul.f32 %v5645, %v5709
        %v5726 = vmul.f32 %v5646, %v5710
        %v5727 = vmul.f32 %v5647, %v5711
        %v5728 = vld [vmem:[%s881] sm:$0xff]
        %v5729 = vld [vmem:[%s881 + $0x8] sm:$0xff]
        %v5730 = vld [vmem:[%s881 + $0x10] sm:$0xff]
        %v5731 = vld [vmem:[%s881 + $0x18] sm:$0xff]
        %v5732 = vld [vmem:[%s881 + $0x20] sm:$0xff]
        %v5733 = vld [vmem:[%s881 + $0x28] sm:$0xff]
        %v5734 = vld [vmem:[%s881 + $0x30] sm:$0xff]
        %v5735 = vld [vmem:[%s881 + $0x38] sm:$0xff]
        %v5736 = vunpack.c.l.bf16 %v5728
        %v5737 = vunpack.c.h.bf16 %v5728
        %v5738 = vunpack.c.l.bf16 %v5729
        %v5739 = vunpack.c.h.bf16 %v5729
        %v5740 = vunpack.c.l.bf16 %v5730
        %v5741 = vunpack.c.h.bf16 %v5730
        %v5742 = vunpack.c.l.bf16 %v5731
        %v5743 = vunpack.c.h.bf16 %v5731
        %v5744 = vunpack.c.l.bf16 %v5732
        %v5745 = vunpack.c.h.bf16 %v5732
        %v5746 = vunpack.c.l.bf16 %v5733
        %v5747 = vunpack.c.h.bf16 %v5733
        %v5748 = vunpack.c.l.bf16 %v5734
        %v5749 = vunpack.c.h.bf16 %v5734
        %v5750 = vunpack.c.l.bf16 %v5735
        %v5751 = vunpack.c.h.bf16 %v5735
        %v5752 = vadd.f32 %v5712, %v5736
        %v5753 = vadd.f32 %v5713, %v5737
        %v5754 = vadd.f32 %v5714, %v5738
        %v5755 = vadd.f32 %v5715, %v5739
        %v5756 = vadd.f32 %v5716, %v5740
        %v5757 = vadd.f32 %v5717, %v5741
        %v5758 = vadd.f32 %v5718, %v5742
        %v5759 = vadd.f32 %v5719, %v5743
        %v5760 = vadd.f32 %v5720, %v5744
        %v5761 = vadd.f32 %v5721, %v5745
        %v5762 = vadd.f32 %v5722, %v5746
        %v5763 = vadd.f32 %v5723, %v5747
        %v5764 = vadd.f32 %v5724, %v5748
        %v5765 = vadd.f32 %v5725, %v5749
        %v5766 = vadd.f32 %v5726, %v5750
        %v5767 = vadd.f32 %v5727, %v5751
        %s5768 = scalar_lea.vmem %s271, 128 [#allocation3]
        %5769 = vst [vmem:[%s5768] sm:$0xff] %v5752
        %5770 = vst [vmem:[%s5768 + $0x8] sm:$0xff] %v5753
        %5771 = vst [vmem:[%s5768 + $0x10] sm:$0xff] %v5754
        %5772 = vst [vmem:[%s5768 + $0x18] sm:$0xff] %v5755
        %5773 = vst [vmem:[%s5768 + $0x20] sm:$0xff] %v5756
        %5774 = vst [vmem:[%s5768 + $0x28] sm:$0xff] %v5757
        %5775 = vst [vmem:[%s5768 + $0x30] sm:$0xff] %v5758
        %5776 = vst [vmem:[%s5768 + $0x38] sm:$0xff] %v5759
        %5777 = vst [vmem:[%s5768 + $0x40] sm:$0xff] %v5760
        %5778 = vst [vmem:[%s5768 + $0x48] sm:$0xff] %v5761
        %5779 = vst [vmem:[%s5768 + $0x50] sm:$0xff] %v5762
        %5780 = vst [vmem:[%s5768 + $0x58] sm:$0xff] %v5763
        %5781 = vst [vmem:[%s5768 + $0x60] sm:$0xff] %v5764
        %5782 = vst [vmem:[%s5768 + $0x68] sm:$0xff] %v5765
        %5783 = vst [vmem:[%s5768 + $0x70] sm:$0xff] %v5766
        %5784 = vst [vmem:[%s5768 + $0x78] sm:$0xff] %v5767
        %v5785 = vld [vmem:[#allocation2 + $0x240] sm:$0xff]
        %v5786 = vld [vmem:[#allocation2 + $0x248] sm:$0xff]
        %v5787 = vld [vmem:[#allocation2 + $0x250] sm:$0xff]
        %v5788 = vld [vmem:[#allocation2 + $0x258] sm:$0xff]
        %v5789 = vld [vmem:[#allocation2 + $0x260] sm:$0xf]
        %v5790 = vld [vmem:[#allocation2 + $0x264] sm:$0xff]
        %v5791 = vld [vmem:[#allocation2 + $0x26c] sm:$0xff]
        %v5792 = vld [vmem:[#allocation2 + $0x274] sm:$0xff]
        %v5793 = vld [vmem:[#allocation2 + $0x27c] sm:$0xff]
        %v5794 = vld [vmem:[#allocation2 + $0x284] sm:$0xf]
        %v5795 = vld [vmem:[#allocation2 + $0x288] sm:$0xff]
        %v5796 = vld [vmem:[#allocation2 + $0x290] sm:$0xff]
        %v5797 = vld [vmem:[#allocation2 + $0x298] sm:$0xff]
        %v5798 = vld [vmem:[#allocation2 + $0x2a0] sm:$0xff]
        %v5799 = vld [vmem:[#allocation2 + $0x2a8] sm:$0xf]
        %v5800 = vld [vmem:[#allocation2 + $0x2ac] sm:$0xff]
        %v5801 = vld [vmem:[#allocation2 + $0x2b4] sm:$0xff]
        %v5802 = vld [vmem:[#allocation2 + $0x2bc] sm:$0xff]
        %v5803 = vld [vmem:[#allocation2 + $0x2c4] sm:$0xff]
        %v5804 = vld [vmem:[#allocation2 + $0x2cc] sm:$0xf]
        %v5805 = vld [vmem:[#allocation2 + $0x2d0] sm:$0xff]
        %v5806 = vld [vmem:[#allocation2 + $0x2d8] sm:$0xff]
        %v5807 = vld [vmem:[#allocation2 + $0x2e0] sm:$0xff]
        %v5808 = vld [vmem:[#allocation2 + $0x2e8] sm:$0xff]
        %v5809 = vld [vmem:[#allocation2 + $0x2f0] sm:$0xf]
        %v5810 = vld [vmem:[#allocation2 + $0x2f4] sm:$0xff]
        %v5811 = vld [vmem:[#allocation2 + $0x2fc] sm:$0xff]
        %v5812 = vld [vmem:[#allocation2 + $0x304] sm:$0xff]
        %v5813 = vld [vmem:[#allocation2 + $0x30c] sm:$0xff]
        %v5814 = vld [vmem:[#allocation2 + $0x314] sm:$0xf]
        %v5815 = vld [vmem:[#allocation2 + $0x318] sm:$0xff]
        %v5816 = vld [vmem:[#allocation2 + $0x320] sm:$0xff]
        %v5817 = vld [vmem:[#allocation2 + $0x328] sm:$0xff]
        %v5818 = vld [vmem:[#allocation2 + $0x330] sm:$0xff]
        %v5819 = vld [vmem:[#allocation2 + $0x338] sm:$0xf]
        %v5820 = vld [vmem:[#allocation2 + $0x33c] sm:$0xff]
        %v5821 = vld [vmem:[#allocation2 + $0x344] sm:$0xff]
        %v5822 = vld [vmem:[#allocation2 + $0x34c] sm:$0xff]
        %v5823 = vld [vmem:[#allocation2 + $0x354] sm:$0xff]
        %v5824 = vld [vmem:[#allocation2 + $0x35c] sm:$0xf]
        %v5825 = vld [vmem:[%s4] sm:$0xff]
        %v5826 = vld [vmem:[%s4 + $0x8] sm:$0xff]
        %v5827 = vld [vmem:[%s4 + $0x10] sm:$0xff]
        %v5828 = vld [vmem:[%s4 + $0x18] sm:$0xff]
        %v5829 = vld [vmem:[%s4 + $0x20] sm:$0xff]
        %v5830 = vld [vmem:[%s4 + $0x28] sm:$0xff]
        %v5831 = vld [vmem:[%s4 + $0x30] sm:$0xff]
        %v5832 = vld [vmem:[%s4 + $0x38] sm:$0xff]
        %v5833 = vld [vmem:[%s4 + $0x40] sm:$0xff]
        %v5834 = vld [vmem:[%s4 + $0x48] sm:$0xff]
        %v5835 = vld [vmem:[%s4 + $0x50] sm:$0xff]
        %v5836 = vld [vmem:[%s4 + $0x58] sm:$0xff]
        %v5837 = vld [vmem:[%s4 + $0x60] sm:$0xff]
        %v5838 = vld [vmem:[%s4 + $0x68] sm:$0xff]
        %v5839 = vld [vmem:[%s4 + $0x70] sm:$0xff]
        %v5840 = vld [vmem:[%s4 + $0x78] sm:$0xff]
        %v5841 = vld [vmem:[%s4 + $0x80] sm:$0xff]
        %v5842 = vld [vmem:[%s4 + $0x88] sm:$0xff]
        %v5843 = vld [vmem:[%s4 + $0x90] sm:$0xff]
        %v5844 = vld [vmem:[%s4 + $0x98] sm:$0xff]
        %v5845 = vld [vmem:[%s4 + $0xa0] sm:$0xff]
        %v5846 = vld [vmem:[%s4 + $0xa8] sm:$0xff]
        %v5847 = vld [vmem:[%s4 + $0xb0] sm:$0xff]
        %v5848 = vld [vmem:[%s4 + $0xb8] sm:$0xff]
        %v5849 = vld [vmem:[%s4 + $0xc0] sm:$0xff]
        %v5850 = vld [vmem:[%s4 + $0xc8] sm:$0xff]
        %v5851 = vld [vmem:[%s4 + $0xd0] sm:$0xff]
        %v5852 = vld [vmem:[%s4 + $0xd8] sm:$0xff]
        %v5853 = vld [vmem:[%s4 + $0xe0] sm:$0xff]
        %v5854 = vld [vmem:[%s4 + $0xe8] sm:$0xff]
        %v5855 = vld [vmem:[%s4 + $0xf0] sm:$0xff]
        %v5856 = vld [vmem:[%s4 + $0xf8] sm:$0xff]
        %v5857 = vld [vmem:[%s4 + $0x100] sm:$0xff]
        %v5858 = vld [vmem:[%s4 + $0x108] sm:$0xff]
        %v5859 = vld [vmem:[%s4 + $0x110] sm:$0xff]
        %v5860 = vld [vmem:[%s4 + $0x118] sm:$0xff]
        %v5861 = vld [vmem:[%s4 + $0x120] sm:$0xff]
        %v5862 = vld [vmem:[%s4 + $0x128] sm:$0xff]
        %v5863 = vld [vmem:[%s4 + $0x130] sm:$0xff]
        %v5864 = vld [vmem:[%s4 + $0x138] sm:$0xff]
        %v5865 = vld [vmem:[%s4 + $0x140] sm:$0xff]
        %v5866 = vld [vmem:[%s4 + $0x148] sm:$0xff]
        %v5867 = vld [vmem:[%s4 + $0x150] sm:$0xff]
        %v5868 = vld [vmem:[%s4 + $0x158] sm:$0xff]
        %v5869 = vld [vmem:[%s4 + $0x160] sm:$0xff]
        %v5870 = vld [vmem:[%s4 + $0x168] sm:$0xff]
        %v5871 = vld [vmem:[%s4 + $0x170] sm:$0xff]
        %v5872 = vld [vmem:[%s4 + $0x178] sm:$0xff]
        %v5873 = vld [vmem:[%s4 + $0x180] sm:$0xff]
        %v5874 = vld [vmem:[%s4 + $0x188] sm:$0xff]
        %v5875 = vld [vmem:[%s4 + $0x190] sm:$0xff]
        %v5876 = vld [vmem:[%s4 + $0x198] sm:$0xff]
        %v5877 = vld [vmem:[%s4 + $0x1a0] sm:$0xff]
        %v5878 = vld [vmem:[%s4 + $0x1a8] sm:$0xff]
        %v5879 = vld [vmem:[%s4 + $0x1b0] sm:$0xff]
        %v5880 = vld [vmem:[%s4 + $0x1b8] sm:$0xff]
        %v5881 = vld [vmem:[%s4 + $0x1c0] sm:$0xff]
        %v5882 = vld [vmem:[%s4 + $0x1c8] sm:$0xff]
        %v5883 = vld [vmem:[%s4 + $0x1d0] sm:$0xff]
        %v5884 = vld [vmem:[%s4 + $0x1d8] sm:$0xff]
        %v5885 = vld [vmem:[%s4 + $0x1e0] sm:$0xff]
        %v5886 = vld [vmem:[%s4 + $0x1e8] sm:$0xff]
        %v5887 = vld [vmem:[%s4 + $0x1f0] sm:$0xff]
        %v5888 = vld [vmem:[%s4 + $0x1f8] sm:$0xff]
        %v5889 = vld [vmem:[%s4 + $0x200] sm:$0xff]
        %v5890 = vld [vmem:[%s4 + $0x208] sm:$0xff]
        %v5891 = vld [vmem:[%s4 + $0x210] sm:$0xff]
        %v5892 = vld [vmem:[%s4 + $0x218] sm:$0xff]
        %v5893 = vld [vmem:[%s4 + $0x220] sm:$0xff]
        %v5894 = vld [vmem:[%s4 + $0x228] sm:$0xff]
        %v5895 = vld [vmem:[%s4 + $0x230] sm:$0xff]
        %v5896 = vld [vmem:[%s4 + $0x238] sm:$0xff]
        %v5897 = vld [vmem:[%s4 + $0x240] sm:$0xff]
        %v5898 = vld [vmem:[%s4 + $0x248] sm:$0xff]
        %v5899 = vld [vmem:[%s4 + $0x250] sm:$0xff]
        %v5900 = vld [vmem:[%s4 + $0x258] sm:$0xff]
        %v5901 = vld [vmem:[%s4 + $0x260] sm:$0xff]
        %v5902 = vld [vmem:[%s4 + $0x268] sm:$0xff]
        %v5903 = vld [vmem:[%s4 + $0x270] sm:$0xff]
        %v5904 = vld [vmem:[%s4 + $0x278] sm:$0xff]
        %v5905 = vld [vmem:[%s4 + $0x280] sm:$0xff]
        %v5906 = vld [vmem:[%s4 + $0x288] sm:$0xff]
        %v5907 = vld [vmem:[%s4 + $0x290] sm:$0xff]
        %v5908 = vld [vmem:[%s4 + $0x298] sm:$0xff]
        %v5909 = vld [vmem:[%s4 + $0x2a0] sm:$0xff]
        %v5910 = vld [vmem:[%s4 + $0x2a8] sm:$0xff]
        %v5911 = vld [vmem:[%s4 + $0x2b0] sm:$0xff]
        %v5912 = vld [vmem:[%s4 + $0x2b8] sm:$0xff]
        %v5913 = vld [vmem:[%s4 + $0x2c0] sm:$0xff]
        %v5914 = vld [vmem:[%s4 + $0x2c8] sm:$0xff]
        %v5915 = vld [vmem:[%s4 + $0x2d0] sm:$0xff]
        %v5916 = vld [vmem:[%s4 + $0x2d8] sm:$0xff]
        %v5917 = vld [vmem:[%s4 + $0x2e0] sm:$0xff]
        %v5918 = vld [vmem:[%s4 + $0x2e8] sm:$0xff]
        %v5919 = vld [vmem:[%s4 + $0x2f0] sm:$0xff]
        %v5920 = vld [vmem:[%s4 + $0x2f8] sm:$0xff]
        %v5921 = vld [vmem:[%s4 + $0x300] sm:$0xff]
        %v5922 = vld [vmem:[%s4 + $0x308] sm:$0xff]
        %v5923 = vld [vmem:[%s4 + $0x310] sm:$0xff]
        %v5924 = vld [vmem:[%s4 + $0x318] sm:$0xff]
        %v5925 = vld [vmem:[%s4 + $0x320] sm:$0xff]
        %v5926 = vld [vmem:[%s4 + $0x328] sm:$0xff]
        %v5927 = vld [vmem:[%s4 + $0x330] sm:$0xff]
        %v5928 = vld [vmem:[%s4 + $0x338] sm:$0xff]
        %v5929 = vld [vmem:[%s4 + $0x340] sm:$0xff]
        %v5930 = vld [vmem:[%s4 + $0x348] sm:$0xff]
        %v5931 = vld [vmem:[%s4 + $0x350] sm:$0xff]
        %v5932 = vld [vmem:[%s4 + $0x358] sm:$0xff]
        %v5933 = vld [vmem:[%s4 + $0x360] sm:$0xff]
        %v5934 = vld [vmem:[%s4 + $0x368] sm:$0xff]
        %v5935 = vld [vmem:[%s4 + $0x370] sm:$0xff]
        %v5936 = vld [vmem:[%s4 + $0x378] sm:$0xff]
        %v5937 = vld [vmem:[%s4 + $0x380] sm:$0xff]
        %v5938 = vld [vmem:[%s4 + $0x388] sm:$0xff]
        %v5939 = vld [vmem:[%s4 + $0x390] sm:$0xff]
        %v5940 = vld [vmem:[%s4 + $0x398] sm:$0xff]
        %v5941 = vld [vmem:[%s4 + $0x3a0] sm:$0xff]
        %v5942 = vld [vmem:[%s4 + $0x3a8] sm:$0xff]
        %v5943 = vld [vmem:[%s4 + $0x3b0] sm:$0xff]
        %v5944 = vld [vmem:[%s4 + $0x3b8] sm:$0xff]
        %v5945 = vld [vmem:[%s4 + $0x3c0] sm:$0xff]
        %v5946 = vld [vmem:[%s4 + $0x3c8] sm:$0xff]
        %v5947 = vld [vmem:[%s4 + $0x3d0] sm:$0xff]
        %v5948 = vld [vmem:[%s4 + $0x3d8] sm:$0xff]
        %v5949 = vld [vmem:[%s4 + $0x3e0] sm:$0xff]
        %v5950 = vld [vmem:[%s4 + $0x3e8] sm:$0xff]
        %v5951 = vld [vmem:[%s4 + $0x3f0] sm:$0xff]
        %v5952 = vld [vmem:[%s4 + $0x3f8] sm:$0xff]
        %v5953 = vld [vmem:[%s4 + $0x400] sm:$0xff]
        %v5954 = vld [vmem:[%s4 + $0x408] sm:$0xff]
        %v5955 = vld [vmem:[%s4 + $0x410] sm:$0xff]
        %v5956 = vld [vmem:[%s4 + $0x418] sm:$0xff]
        %v5957 = vld [vmem:[%s4 + $0x420] sm:$0xff]
        %v5958 = vld [vmem:[%s4 + $0x428] sm:$0xff]
        %v5959 = vld [vmem:[%s4 + $0x430] sm:$0xff]
        %v5960 = vld [vmem:[%s4 + $0x438] sm:$0xff]
        %v5961 = vld [vmem:[%s4 + $0x440] sm:$0xff]
        %v5962 = vld [vmem:[%s4 + $0x448] sm:$0xff]
        %v5963 = vld [vmem:[%s4 + $0x450] sm:$0xff]
        %v5964 = vld [vmem:[%s4 + $0x458] sm:$0xff]
        %v5965 = vld [vmem:[%s4 + $0x460] sm:$0xff]
        %v5966 = vld [vmem:[%s4 + $0x468] sm:$0xff]
        %v5967 = vld [vmem:[%s4 + $0x470] sm:$0xff]
        %v5968 = vld [vmem:[%s4 + $0x478] sm:$0xff]
        %v6009 = vunpack.c.l.b16 %v5785
        %v6010 = vunpack.c.h.b16 %v5785
        %v6011 = vunpack.c.l.b16 %v5786
        %v6012 = vunpack.c.h.b16 %v5786
        %v6013 = vunpack.c.l.b16 %v5787
        %v6014 = vunpack.c.h.b16 %v5787
        %v6015 = vunpack.c.l.b16 %v5788
        %v6016 = vunpack.c.h.b16 %v5788
        %v6017 = vunpack.c.l.b16 %v5789
        %v6018 = vunpack.c.l.b16 %v5790
        %v6019 = vunpack.c.h.b16 %v5790
        %v6020 = vunpack.c.l.b16 %v5791
        %v6021 = vunpack.c.h.b16 %v5791
        %v6022 = vunpack.c.l.b16 %v5792
        %v6023 = vunpack.c.h.b16 %v5792
        %v6024 = vunpack.c.l.b16 %v5793
        %v6025 = vunpack.c.h.b16 %v5793
        %v6026 = vunpack.c.l.b16 %v5794
        %v6027 = vunpack.c.l.b16 %v5795
        %v6028 = vunpack.c.h.b16 %v5795
        %v6029 = vunpack.c.l.b16 %v5796
        %v6030 = vunpack.c.h.b16 %v5796
        %v6031 = vunpack.c.l.b16 %v5797
        %v6032 = vunpack.c.h.b16 %v5797
        %v6033 = vunpack.c.l.b16 %v5798
        %v6034 = vunpack.c.h.b16 %v5798
        %v6035 = vunpack.c.l.b16 %v5799
        %v6036 = vunpack.c.l.b16 %v5800
        %v6037 = vunpack.c.h.b16 %v5800
        %v6038 = vunpack.c.l.b16 %v5801
        %v6039 = vunpack.c.h.b16 %v5801
        %v6040 = vunpack.c.l.b16 %v5802
        %v6041 = vunpack.c.h.b16 %v5802
        %v6042 = vunpack.c.l.b16 %v5803
        %v6043 = vunpack.c.h.b16 %v5803
        %v6044 = vunpack.c.l.b16 %v5804
        %v6045 = vunpack.c.l.b16 %v5805
        %v6046 = vunpack.c.h.b16 %v5805
        %v6047 = vunpack.c.l.b16 %v5806
        %v6048 = vunpack.c.h.b16 %v5806
        %v6049 = vunpack.c.l.b16 %v5807
        %v6050 = vunpack.c.h.b16 %v5807
        %v6051 = vunpack.c.l.b16 %v5808
        %v6052 = vunpack.c.h.b16 %v5808
        %v6053 = vunpack.c.l.b16 %v5809
        %v6054 = vunpack.c.l.b16 %v5810
        %v6055 = vunpack.c.h.b16 %v5810
        %v6056 = vunpack.c.l.b16 %v5811
        %v6057 = vunpack.c.h.b16 %v5811
        %v6058 = vunpack.c.l.b16 %v5812
        %v6059 = vunpack.c.h.b16 %v5812
        %v6060 = vunpack.c.l.b16 %v5813
        %v6061 = vunpack.c.h.b16 %v5813
        %v6062 = vunpack.c.l.b16 %v5814
        %v6063 = vunpack.c.l.b16 %v5815
        %v6064 = vunpack.c.h.b16 %v5815
        %v6065 = vunpack.c.l.b16 %v5816
        %v6066 = vunpack.c.h.b16 %v5816
        %v6067 = vunpack.c.l.b16 %v5817
        %v6068 = vunpack.c.h.b16 %v5817
        %v6069 = vunpack.c.l.b16 %v5818
        %v6070 = vunpack.c.h.b16 %v5818
        %v6071 = vunpack.c.l.b16 %v5819
        %v6072 = vunpack.c.l.b16 %v5820
        %v6073 = vunpack.c.h.b16 %v5820
        %v6074 = vunpack.c.l.b16 %v5821
        %v6075 = vunpack.c.h.b16 %v5821
        %v6076 = vunpack.c.l.b16 %v5822
        %v6077 = vunpack.c.h.b16 %v5822
        %v6078 = vunpack.c.l.b16 %v5823
        %v6079 = vunpack.c.h.b16 %v5823
        %v6080 = vunpack.c.l.b16 %v5824
        %v6081 = vpack.c.b16 %v6018, %v6009
        %v6082 = vpack.c.b16 %v6019, %v6010
        %v6083 = vpack.c.b16 %v6020, %v6011
        %v6084 = vpack.c.b16 %v6021, %v6012
        %v6085 = vpack.c.b16 %v6022, %v6013
        %v6086 = vpack.c.b16 %v6023, %v6014
        %v6087 = vpack.c.b16 %v6024, %v6015
        %v6088 = vpack.c.b16 %v6025, %v6016
        %v6089 = vpack.c.b16 %v6026, %v6017
        %v6090 = vpack.c.b16 %v6036, %v6027
        %v6091 = vpack.c.b16 %v6037, %v6028
        %v6092 = vpack.c.b16 %v6038, %v6029
        %v6093 = vpack.c.b16 %v6039, %v6030
        %v6094 = vpack.c.b16 %v6040, %v6031
        %v6095 = vpack.c.b16 %v6041, %v6032
        %v6096 = vpack.c.b16 %v6042, %v6033
        %v6097 = vpack.c.b16 %v6043, %v6034
        %v6098 = vpack.c.b16 %v6044, %v6035
        %v6099 = vpack.c.b16 %v6054, %v6045
        %v6100 = vpack.c.b16 %v6055, %v6046
        %v6101 = vpack.c.b16 %v6056, %v6047
        %v6102 = vpack.c.b16 %v6057, %v6048
        %v6103 = vpack.c.b16 %v6058, %v6049
        %v6104 = vpack.c.b16 %v6059, %v6050
        %v6105 = vpack.c.b16 %v6060, %v6051
        %v6106 = vpack.c.b16 %v6061, %v6052
        %v6107 = vpack.c.b16 %v6062, %v6053
        %v6108 = vpack.c.b16 %v6072, %v6063
        %v6109 = vpack.c.b16 %v6073, %v6064
        %v6110 = vpack.c.b16 %v6074, %v6065
        %v6111 = vpack.c.b16 %v6075, %v6066
        %v6112 = vpack.c.b16 %v6076, %v6067
        %v6113 = vpack.c.b16 %v6077, %v6068
        %v6114 = vpack.c.b16 %v6078, %v6069
        %v6115 = vpack.c.b16 %v6079, %v6070
        %v6116 = vpack.c.b16 %v6080, %v6071
        %v6297 = vunpack.c.l.b16 %v5825
        %v6298 = vunpack.c.h.b16 %v5825
        %v6299 = vunpack.c.l.b16 %v5826
        %v6300 = vunpack.c.h.b16 %v5826
        %v6301 = vunpack.c.l.b16 %v5827
        %v6302 = vunpack.c.h.b16 %v5827
        %v6303 = vunpack.c.l.b16 %v5828
        %v6304 = vunpack.c.h.b16 %v5828
        %v6305 = vunpack.c.l.b16 %v5829
        %v6306 = vunpack.c.h.b16 %v5829
        %v6307 = vunpack.c.l.b16 %v5830
        %v6308 = vunpack.c.h.b16 %v5830
        %v6309 = vunpack.c.l.b16 %v5831
        %v6310 = vunpack.c.h.b16 %v5831
        %v6311 = vunpack.c.l.b16 %v5832
        %v6312 = vunpack.c.h.b16 %v5832
        %v6313 = vunpack.c.l.b16 %v5833
        %v6314 = vunpack.c.h.b16 %v5833
        %v6315 = vunpack.c.l.b16 %v5834
        %v6316 = vunpack.c.h.b16 %v5834
        %v6317 = vunpack.c.l.b16 %v5835
        %v6318 = vunpack.c.h.b16 %v5835
        %v6319 = vunpack.c.l.b16 %v5836
        %v6320 = vunpack.c.h.b16 %v5836
        %v6321 = vunpack.c.l.b16 %v5837
        %v6322 = vunpack.c.h.b16 %v5837
        %v6323 = vunpack.c.l.b16 %v5838
        %v6324 = vunpack.c.h.b16 %v5838
        %v6325 = vunpack.c.l.b16 %v5839
        %v6326 = vunpack.c.h.b16 %v5839
        %v6327 = vunpack.c.l.b16 %v5840
        %v6328 = vunpack.c.h.b16 %v5840
        %v6329 = vunpack.c.l.b16 %v5841
        %v6330 = vunpack.c.h.b16 %v5841
        %v6331 = vunpack.c.l.b16 %v5842
        %v6332 = vunpack.c.h.b16 %v5842
        %v6333 = vunpack.c.l.b16 %v5843
        %v6334 = vunpack.c.h.b16 %v5843
        %v6335 = vunpack.c.l.b16 %v5844
        %v6336 = vunpack.c.h.b16 %v5844
        %v6337 = vunpack.c.l.b16 %v5845
        %v6338 = vunpack.c.h.b16 %v5845
        %v6339 = vunpack.c.l.b16 %v5846
        %v6340 = vunpack.c.h.b16 %v5846
        %v6341 = vunpack.c.l.b16 %v5847
        %v6342 = vunpack.c.h.b16 %v5847
        %v6343 = vunpack.c.l.b16 %v5848
        %v6344 = vunpack.c.h.b16 %v5848
        %v6345 = vunpack.c.l.b16 %v5849
        %v6346 = vunpack.c.h.b16 %v5849
        %v6347 = vunpack.c.l.b16 %v5850
        %v6348 = vunpack.c.h.b16 %v5850
        %v6349 = vunpack.c.l.b16 %v5851
        %v6350 = vunpack.c.h.b16 %v5851
        %v6351 = vunpack.c.l.b16 %v5852
        %v6352 = vunpack.c.h.b16 %v5852
        %v6353 = vunpack.c.l.b16 %v5853
        %v6354 = vunpack.c.h.b16 %v5853
        %v6355 = vunpack.c.l.b16 %v5854
        %v6356 = vunpack.c.h.b16 %v5854
        %v6357 = vunpack.c.l.b16 %v5855
        %v6358 = vunpack.c.h.b16 %v5855
        %v6359 = vunpack.c.l.b16 %v5856
        %v6360 = vunpack.c.h.b16 %v5856
        %v6361 = vunpack.c.l.b16 %v5857
        %v6362 = vunpack.c.h.b16 %v5857
        %v6363 = vunpack.c.l.b16 %v5858
        %v6364 = vunpack.c.h.b16 %v5858
        %v6365 = vunpack.c.l.b16 %v5859
        %v6366 = vunpack.c.h.b16 %v5859
        %v6367 = vunpack.c.l.b16 %v5860
        %v6368 = vunpack.c.h.b16 %v5860
        %v6369 = vunpack.c.l.b16 %v5861
        %v6370 = vunpack.c.h.b16 %v5861
        %v6371 = vunpack.c.l.b16 %v5862
        %v6372 = vunpack.c.h.b16 %v5862
        %v6373 = vunpack.c.l.b16 %v5863
        %v6374 = vunpack.c.h.b16 %v5863
        %v6375 = vunpack.c.l.b16 %v5864
        %v6376 = vunpack.c.h.b16 %v5864
        %v6377 = vunpack.c.l.b16 %v5865
        %v6378 = vunpack.c.h.b16 %v5865
        %v6379 = vunpack.c.l.b16 %v5866
        %v6380 = vunpack.c.h.b16 %v5866
        %v6381 = vunpack.c.l.b16 %v5867
        %v6382 = vunpack.c.h.b16 %v5867
        %v6383 = vunpack.c.l.b16 %v5868
        %v6384 = vunpack.c.h.b16 %v5868
        %v6385 = vunpack.c.l.b16 %v5869
        %v6386 = vunpack.c.h.b16 %v5869
        %v6387 = vunpack.c.l.b16 %v5870
        %v6388 = vunpack.c.h.b16 %v5870
        %v6389 = vunpack.c.l.b16 %v5871
        %v6390 = vunpack.c.h.b16 %v5871
        %v6391 = vunpack.c.l.b16 %v5872
        %v6392 = vunpack.c.h.b16 %v5872
        %v6393 = vunpack.c.l.b16 %v5873
        %v6394 = vunpack.c.h.b16 %v5873
        %v6395 = vunpack.c.l.b16 %v5874
        %v6396 = vunpack.c.h.b16 %v5874
        %v6397 = vunpack.c.l.b16 %v5875
        %v6398 = vunpack.c.h.b16 %v5875
        %v6399 = vunpack.c.l.b16 %v5876
        %v6400 = vunpack.c.h.b16 %v5876
        %v6401 = vunpack.c.l.b16 %v5877
        %v6402 = vunpack.c.h.b16 %v5877
        %v6403 = vunpack.c.l.b16 %v5878
        %v6404 = vunpack.c.h.b16 %v5878
        %v6405 = vunpack.c.l.b16 %v5879
        %v6406 = vunpack.c.h.b16 %v5879
        %v6407 = vunpack.c.l.b16 %v5880
        %v6408 = vunpack.c.h.b16 %v5880
        %v6409 = vunpack.c.l.b16 %v5881
        %v6410 = vunpack.c.h.b16 %v5881
        %v6411 = vunpack.c.l.b16 %v5882
        %v6412 = vunpack.c.h.b16 %v5882
        %v6413 = vunpack.c.l.b16 %v5883
        %v6414 = vunpack.c.h.b16 %v5883
        %v6415 = vunpack.c.l.b16 %v5884
        %v6416 = vunpack.c.h.b16 %v5884
        %v6417 = vunpack.c.l.b16 %v5885
        %v6418 = vunpack.c.h.b16 %v5885
        %v6419 = vunpack.c.l.b16 %v5886
        %v6420 = vunpack.c.h.b16 %v5886
        %v6421 = vunpack.c.l.b16 %v5887
        %v6422 = vunpack.c.h.b16 %v5887
        %v6423 = vunpack.c.l.b16 %v5888
        %v6424 = vunpack.c.h.b16 %v5888
        %v6425 = vunpack.c.l.b16 %v5889
        %v6426 = vunpack.c.h.b16 %v5889
        %v6427 = vunpack.c.l.b16 %v5890
        %v6428 = vunpack.c.h.b16 %v5890
        %v6429 = vunpack.c.l.b16 %v5891
        %v6430 = vunpack.c.h.b16 %v5891
        %v6431 = vunpack.c.l.b16 %v5892
        %v6432 = vunpack.c.h.b16 %v5892
        %v6433 = vunpack.c.l.b16 %v5893
        %v6434 = vunpack.c.h.b16 %v5893
        %v6435 = vunpack.c.l.b16 %v5894
        %v6436 = vunpack.c.h.b16 %v5894
        %v6437 = vunpack.c.l.b16 %v5895
        %v6438 = vunpack.c.h.b16 %v5895
        %v6439 = vunpack.c.l.b16 %v5896
        %v6440 = vunpack.c.h.b16 %v5896
        %v6441 = vunpack.c.l.b16 %v5897
        %v6442 = vunpack.c.h.b16 %v5897
        %v6443 = vunpack.c.l.b16 %v5898
        %v6444 = vunpack.c.h.b16 %v5898
        %v6445 = vunpack.c.l.b16 %v5899
        %v6446 = vunpack.c.h.b16 %v5899
        %v6447 = vunpack.c.l.b16 %v5900
        %v6448 = vunpack.c.h.b16 %v5900
        %v6449 = vunpack.c.l.b16 %v5901
        %v6450 = vunpack.c.h.b16 %v5901
        %v6451 = vunpack.c.l.b16 %v5902
        %v6452 = vunpack.c.h.b16 %v5902
        %v6453 = vunpack.c.l.b16 %v5903
        %v6454 = vunpack.c.h.b16 %v5903
        %v6455 = vunpack.c.l.b16 %v5904
        %v6456 = vunpack.c.h.b16 %v5904
        %v6457 = vunpack.c.l.b16 %v5905
        %v6458 = vunpack.c.h.b16 %v5905
        %v6459 = vunpack.c.l.b16 %v5906
        %v6460 = vunpack.c.h.b16 %v5906
        %v6461 = vunpack.c.l.b16 %v5907
        %v6462 = vunpack.c.h.b16 %v5907
        %v6463 = vunpack.c.l.b16 %v5908
        %v6464 = vunpack.c.h.b16 %v5908
        %v6465 = vunpack.c.l.b16 %v5909
        %v6466 = vunpack.c.h.b16 %v5909
        %v6467 = vunpack.c.l.b16 %v5910
        %v6468 = vunpack.c.h.b16 %v5910
        %v6469 = vunpack.c.l.b16 %v5911
        %v6470 = vunpack.c.h.b16 %v5911
        %v6471 = vunpack.c.l.b16 %v5912
        %v6472 = vunpack.c.h.b16 %v5912
        %v6473 = vunpack.c.l.b16 %v5913
        %v6474 = vunpack.c.h.b16 %v5913
        %v6475 = vunpack.c.l.b16 %v5914
        %v6476 = vunpack.c.h.b16 %v5914
        %v6477 = vunpack.c.l.b16 %v5915
        %v6478 = vunpack.c.h.b16 %v5915
        %v6479 = vunpack.c.l.b16 %v5916
        %v6480 = vunpack.c.h.b16 %v5916
        %v6481 = vunpack.c.l.b16 %v5917
        %v6482 = vunpack.c.h.b16 %v5917
        %v6483 = vunpack.c.l.b16 %v5918
        %v6484 = vunpack.c.h.b16 %v5918
        %v6485 = vunpack.c.l.b16 %v5919
        %v6486 = vunpack.c.h.b16 %v5919
        %v6487 = vunpack.c.l.b16 %v5920
        %v6488 = vunpack.c.h.b16 %v5920
        %v6489 = vunpack.c.l.b16 %v5921
        %v6490 = vunpack.c.h.b16 %v5921
        %v6491 = vunpack.c.l.b16 %v5922
        %v6492 = vunpack.c.h.b16 %v5922
        %v6493 = vunpack.c.l.b16 %v5923
        %v6494 = vunpack.c.h.b16 %v5923
        %v6495 = vunpack.c.l.b16 %v5924
        %v6496 = vunpack.c.h.b16 %v5924
        %v6497 = vunpack.c.l.b16 %v5925
        %v6498 = vunpack.c.h.b16 %v5925
        %v6499 = vunpack.c.l.b16 %v5926
        %v6500 = vunpack.c.h.b16 %v5926
        %v6501 = vunpack.c.l.b16 %v5927
        %v6502 = vunpack.c.h.b16 %v5927
        %v6503 = vunpack.c.l.b16 %v5928
        %v6504 = vunpack.c.h.b16 %v5928
        %v6505 = vunpack.c.l.b16 %v5929
        %v6506 = vunpack.c.h.b16 %v5929
        %v6507 = vunpack.c.l.b16 %v5930
        %v6508 = vunpack.c.h.b16 %v5930
        %v6509 = vunpack.c.l.b16 %v5931
        %v6510 = vunpack.c.h.b16 %v5931
        %v6511 = vunpack.c.l.b16 %v5932
        %v6512 = vunpack.c.h.b16 %v5932
        %v6513 = vunpack.c.l.b16 %v5933
        %v6514 = vunpack.c.h.b16 %v5933
        %v6515 = vunpack.c.l.b16 %v5934
        %v6516 = vunpack.c.h.b16 %v5934
        %v6517 = vunpack.c.l.b16 %v5935
        %v6518 = vunpack.c.h.b16 %v5935
        %v6519 = vunpack.c.l.b16 %v5936
        %v6520 = vunpack.c.h.b16 %v5936
        %v6521 = vunpack.c.l.b16 %v5937
        %v6522 = vunpack.c.h.b16 %v5937
        %v6523 = vunpack.c.l.b16 %v5938
        %v6524 = vunpack.c.h.b16 %v5938
        %v6525 = vunpack.c.l.b16 %v5939
        %v6526 = vunpack.c.h.b16 %v5939
        %v6527 = vunpack.c.l.b16 %v5940
        %v6528 = vunpack.c.h.b16 %v5940
        %v6529 = vunpack.c.l.b16 %v5941
        %v6530 = vunpack.c.h.b16 %v5941
        %v6531 = vunpack.c.l.b16 %v5942
        %v6532 = vunpack.c.h.b16 %v5942
        %v6533 = vunpack.c.l.b16 %v5943
        %v6534 = vunpack.c.h.b16 %v5943
        %v6535 = vunpack.c.l.b16 %v5944
        %v6536 = vunpack.c.h.b16 %v5944
        %v6537 = vunpack.c.l.b16 %v5945
        %v6538 = vunpack.c.h.b16 %v5945
        %v6539 = vunpack.c.l.b16 %v5946
        %v6540 = vunpack.c.h.b16 %v5946
        %v6541 = vunpack.c.l.b16 %v5947
        %v6542 = vunpack.c.h.b16 %v5947
        %v6543 = vunpack.c.l.b16 %v5948
        %v6544 = vunpack.c.h.b16 %v5948
        %v6545 = vunpack.c.l.b16 %v5949
        %v6546 = vunpack.c.h.b16 %v5949
        %v6547 = vunpack.c.l.b16 %v5950
        %v6548 = vunpack.c.h.b16 %v5950
        %v6549 = vunpack.c.l.b16 %v5951
        %v6550 = vunpack.c.h.b16 %v5951
        %v6551 = vunpack.c.l.b16 %v5952
        %v6552 = vunpack.c.h.b16 %v5952
        %v6553 = vunpack.c.l.b16 %v5953
        %v6554 = vunpack.c.h.b16 %v5953
        %v6555 = vunpack.c.l.b16 %v5954
        %v6556 = vunpack.c.h.b16 %v5954
        %v6557 = vunpack.c.l.b16 %v5955
        %v6558 = vunpack.c.h.b16 %v5955
        %v6559 = vunpack.c.l.b16 %v5956
        %v6560 = vunpack.c.h.b16 %v5956
        %v6561 = vunpack.c.l.b16 %v5957
        %v6562 = vunpack.c.h.b16 %v5957
        %v6563 = vunpack.c.l.b16 %v5958
        %v6564 = vunpack.c.h.b16 %v5958
        %v6565 = vunpack.c.l.b16 %v5959
        %v6566 = vunpack.c.h.b16 %v5959
        %v6567 = vunpack.c.l.b16 %v5960
        %v6568 = vunpack.c.h.b16 %v5960
        %v6569 = vunpack.c.l.b16 %v5961
        %v6570 = vunpack.c.h.b16 %v5961
        %v6571 = vunpack.c.l.b16 %v5962
        %v6572 = vunpack.c.h.b16 %v5962
        %v6573 = vunpack.c.l.b16 %v5963
        %v6574 = vunpack.c.h.b16 %v5963
        %v6575 = vunpack.c.l.b16 %v5964
        %v6576 = vunpack.c.h.b16 %v5964
        %v6577 = vunpack.c.l.b16 %v5965
        %v6578 = vunpack.c.h.b16 %v5965
        %v6579 = vunpack.c.l.b16 %v5966
        %v6580 = vunpack.c.h.b16 %v5966
        %v6581 = vunpack.c.l.b16 %v5967
        %v6582 = vunpack.c.h.b16 %v5967
        %v6583 = vunpack.c.l.b16 %v5968
        %v6584 = vunpack.c.h.b16 %v5968
        %v6585 = vpack.c.b16 %v6299, %v6297
        %v6586 = vpack.c.b16 %v6300, %v6298
        %v6587 = vpack.c.b16 %v6303, %v6301
        %v6588 = vpack.c.b16 %v6304, %v6302
        %v6589 = vpack.c.b16 %v6307, %v6305
        %v6590 = vpack.c.b16 %v6308, %v6306
        %v6591 = vpack.c.b16 %v6311, %v6309
        %v6592 = vpack.c.b16 %v6312, %v6310
        %v6593 = vpack.c.b16 %v6315, %v6313
        %v6594 = vpack.c.b16 %v6316, %v6314
        %v6595 = vpack.c.b16 %v6319, %v6317
        %v6596 = vpack.c.b16 %v6320, %v6318
        %v6597 = vpack.c.b16 %v6323, %v6321
        %v6598 = vpack.c.b16 %v6324, %v6322
        %v6599 = vpack.c.b16 %v6327, %v6325
        %v6600 = vpack.c.b16 %v6328, %v6326
        %v6601 = vpack.c.b16 %v6331, %v6329
        %v6602 = vpack.c.b16 %v6332, %v6330
        %v6603 = vpack.c.b16 %v6335, %v6333
        %v6604 = vpack.c.b16 %v6336, %v6334
        %v6605 = vpack.c.b16 %v6339, %v6337
        %v6606 = vpack.c.b16 %v6340, %v6338
        %v6607 = vpack.c.b16 %v6343, %v6341
        %v6608 = vpack.c.b16 %v6344, %v6342
        %v6609 = vpack.c.b16 %v6347, %v6345
        %v6610 = vpack.c.b16 %v6348, %v6346
        %v6611 = vpack.c.b16 %v6351, %v6349
        %v6612 = vpack.c.b16 %v6352, %v6350
        %v6613 = vpack.c.b16 %v6355, %v6353
        %v6614 = vpack.c.b16 %v6356, %v6354
        %v6615 = vpack.c.b16 %v6359, %v6357
        %v6616 = vpack.c.b16 %v6360, %v6358
        %v6617 = vpack.c.b16 %v6363, %v6361
        %v6618 = vpack.c.b16 %v6364, %v6362
        %v6619 = vpack.c.b16 %v6367, %v6365
        %v6620 = vpack.c.b16 %v6368, %v6366
        %v6621 = vpack.c.b16 %v6371, %v6369
        %v6622 = vpack.c.b16 %v6372, %v6370
        %v6623 = vpack.c.b16 %v6375, %v6373
        %v6624 = vpack.c.b16 %v6376, %v6374
        %v6625 = vpack.c.b16 %v6379, %v6377
        %v6626 = vpack.c.b16 %v6380, %v6378
        %v6627 = vpack.c.b16 %v6383, %v6381
        %v6628 = vpack.c.b16 %v6384, %v6382
        %v6629 = vpack.c.b16 %v6387, %v6385
        %v6630 = vpack.c.b16 %v6388, %v6386
        %v6631 = vpack.c.b16 %v6391, %v6389
        %v6632 = vpack.c.b16 %v6392, %v6390
        %v6633 = vpack.c.b16 %v6395, %v6393
        %v6634 = vpack.c.b16 %v6396, %v6394
        %v6635 = vpack.c.b16 %v6399, %v6397
        %v6636 = vpack.c.b16 %v6400, %v6398
        %v6637 = vpack.c.b16 %v6403, %v6401
        %v6638 = vpack.c.b16 %v6404, %v6402
        %v6639 = vpack.c.b16 %v6407, %v6405
        %v6640 = vpack.c.b16 %v6408, %v6406
        %v6641 = vpack.c.b16 %v6411, %v6409
        %v6642 = vpack.c.b16 %v6412, %v6410
        %v6643 = vpack.c.b16 %v6415, %v6413
        %v6644 = vpack.c.b16 %v6416, %v6414
        %v6645 = vpack.c.b16 %v6419, %v6417
        %v6646 = vpack.c.b16 %v6420, %v6418
        %v6647 = vpack.c.b16 %v6423, %v6421
        %v6648 = vpack.c.b16 %v6424, %v6422
        %v6649 = vpack.c.b16 %v6427, %v6425
        %v6650 = vpack.c.b16 %v6428, %v6426
        %v6651 = vpack.c.b16 %v6431, %v6429
        %v6652 = vpack.c.b16 %v6432, %v6430
        %v6653 = vpack.c.b16 %v6435, %v6433
        %v6654 = vpack.c.b16 %v6436, %v6434
        %v6655 = vpack.c.b16 %v6439, %v6437
        %v6656 = vpack.c.b16 %v6440, %v6438
        %v6657 = vpack.c.b16 %v6443, %v6441
        %v6658 = vpack.c.b16 %v6444, %v6442
        %v6659 = vpack.c.b16 %v6447, %v6445
        %v6660 = vpack.c.b16 %v6448, %v6446
        %v6661 = vpack.c.b16 %v6451, %v6449
        %v6662 = vpack.c.b16 %v6452, %v6450
        %v6663 = vpack.c.b16 %v6455, %v6453
        %v6664 = vpack.c.b16 %v6456, %v6454
        %v6665 = vpack.c.b16 %v6459, %v6457
        %v6666 = vpack.c.b16 %v6460, %v6458
        %v6667 = vpack.c.b16 %v6463, %v6461
        %v6668 = vpack.c.b16 %v6464, %v6462
        %v6669 = vpack.c.b16 %v6467, %v6465
        %v6670 = vpack.c.b16 %v6468, %v6466
        %v6671 = vpack.c.b16 %v6471, %v6469
        %v6672 = vpack.c.b16 %v6472, %v6470
        %v6673 = vpack.c.b16 %v6475, %v6473
        %v6674 = vpack.c.b16 %v6476, %v6474
        %v6675 = vpack.c.b16 %v6479, %v6477
        %v6676 = vpack.c.b16 %v6480, %v6478
        %v6677 = vpack.c.b16 %v6483, %v6481
        %v6678 = vpack.c.b16 %v6484, %v6482
        %v6679 = vpack.c.b16 %v6487, %v6485
        %v6680 = vpack.c.b16 %v6488, %v6486
        %v6681 = vpack.c.b16 %v6491, %v6489
        %v6682 = vpack.c.b16 %v6492, %v6490
        %v6683 = vpack.c.b16 %v6495, %v6493
        %v6684 = vpack.c.b16 %v6496, %v6494
        %v6685 = vpack.c.b16 %v6499, %v6497
        %v6686 = vpack.c.b16 %v6500, %v6498
        %v6687 = vpack.c.b16 %v6503, %v6501
        %v6688 = vpack.c.b16 %v6504, %v6502
        %v6689 = vpack.c.b16 %v6507, %v6505
        %v6690 = vpack.c.b16 %v6508, %v6506
        %v6691 = vpack.c.b16 %v6511, %v6509
        %v6692 = vpack.c.b16 %v6512, %v6510
        %v6693 = vpack.c.b16 %v6515, %v6513
        %v6694 = vpack.c.b16 %v6516, %v6514
        %v6695 = vpack.c.b16 %v6519, %v6517
        %v6696 = vpack.c.b16 %v6520, %v6518
        %v6697 = vpack.c.b16 %v6523, %v6521
        %v6698 = vpack.c.b16 %v6524, %v6522
        %v6699 = vpack.c.b16 %v6527, %v6525
        %v6700 = vpack.c.b16 %v6528, %v6526
        %v6701 = vpack.c.b16 %v6531, %v6529
        %v6702 = vpack.c.b16 %v6532, %v6530
        %v6703 = vpack.c.b16 %v6535, %v6533
        %v6704 = vpack.c.b16 %v6536, %v6534
        %v6705 = vpack.c.b16 %v6539, %v6537
        %v6706 = vpack.c.b16 %v6540, %v6538
        %v6707 = vpack.c.b16 %v6543, %v6541
        %v6708 = vpack.c.b16 %v6544, %v6542
        %v6709 = vpack.c.b16 %v6547, %v6545
        %v6710 = vpack.c.b16 %v6548, %v6546
        %v6711 = vpack.c.b16 %v6551, %v6549
        %v6712 = vpack.c.b16 %v6552, %v6550
        %v6713 = vpack.c.b16 %v6555, %v6553
        %v6714 = vpack.c.b16 %v6556, %v6554
        %v6715 = vpack.c.b16 %v6559, %v6557
        %v6716 = vpack.c.b16 %v6560, %v6558
        %v6717 = vpack.c.b16 %v6563, %v6561
        %v6718 = vpack.c.b16 %v6564, %v6562
        %v6719 = vpack.c.b16 %v6567, %v6565
        %v6720 = vpack.c.b16 %v6568, %v6566
        %v6721 = vpack.c.b16 %v6571, %v6569
        %v6722 = vpack.c.b16 %v6572, %v6570
        %v6723 = vpack.c.b16 %v6575, %v6573
        %v6724 = vpack.c.b16 %v6576, %v6574
        %v6725 = vpack.c.b16 %v6579, %v6577
        %v6726 = vpack.c.b16 %v6580, %v6578
        %v6727 = vpack.c.b16 %v6583, %v6581
        %v6728 = vpack.c.b16 %v6584, %v6582
        %6873 = vmatpush.bf16.msra.mxu0 %v6599
        %6874 = vmatpush.bf16.msra.mxu0 %v6597
        %6875 = vmatpush.bf16.msra.mxu0 %v6595
        %6876 = vmatpush.bf16.msra.mxu0 %v6593
        %6877 = vmatpush.bf16.msra.mxu0 %v6591
        %6878 = vmatpush.bf16.msra.mxu0 %v6589
        %6879 = vmatpush.bf16.msra.mxu0 %v6587
        %6880 = vmatpush.bf16.msra.mxu0 %v6585
        %6881 = vmatmul.bf16.gmra.mxu0 %v6081
        %v6882 = vpop.f32.mrf.mxu0
        %v6883 = vadd.f32 0.0, %v6882
        %v6884 = vpop.f32.mrf.mxu0
        %v6885 = vadd.f32 0.0, %v6884
        %6886 = vmatmul.bf16.gmra.mxu0 %v6090
        %v6887 = vpop.f32.mrf.mxu0
        %v6888 = vadd.f32 0.0, %v6887
        %v6889 = vpop.f32.mrf.mxu0
        %v6890 = vadd.f32 0.0, %v6889
        %6891 = vmatmul.bf16.gmra.mxu0 %v6099
        %v6892 = vpop.f32.mrf.mxu0
        %v6893 = vadd.f32 0.0, %v6892
        %v6894 = vpop.f32.mrf.mxu0
        %v6895 = vadd.f32 0.0, %v6894
        %6896 = vmatmul.bf16.gmra.mxu0 %v6108
        %v6897 = vpop.f32.mrf.mxu0
        %v6898 = vadd.f32 0.0, %v6897
        %v6899 = vpop.f32.mrf.mxu0
        %v6900 = vadd.f32 0.0, %v6899
        %6901 = vdwg.mxu0
        %6902 = vmatpush.bf16.msra.mxu0 %v6615
        %6903 = vmatpush.bf16.msra.mxu0 %v6613
        %6904 = vmatpush.bf16.msra.mxu0 %v6611
        %6905 = vmatpush.bf16.msra.mxu0 %v6609
        %6906 = vmatpush.bf16.msra.mxu0 %v6607
        %6907 = vmatpush.bf16.msra.mxu0 %v6605
        %6908 = vmatpush.bf16.msra.mxu0 %v6603
        %6909 = vmatpush.bf16.msra.mxu0 %v6601
        %6910 = vmatmul.bf16.gmra.mxu0 %v6082
        %v6911 = vpop.f32.mrf.mxu0
        %v6912 = vadd.f32 %v6883, %v6911
        %v6913 = vpop.f32.mrf.mxu0
        %v6914 = vadd.f32 %v6885, %v6913
        %6915 = vmatmul.bf16.gmra.mxu0 %v6091
        %v6916 = vpop.f32.mrf.mxu0
        %v6917 = vadd.f32 %v6888, %v6916
        %v6918 = vpop.f32.mrf.mxu0
        %v6919 = vadd.f32 %v6890, %v6918
        %6920 = vmatmul.bf16.gmra.mxu0 %v6100
        %v6921 = vpop.f32.mrf.mxu0
        %v6922 = vadd.f32 %v6893, %v6921
        %v6923 = vpop.f32.mrf.mxu0
        %v6924 = vadd.f32 %v6895, %v6923
        %6925 = vmatmul.bf16.gmra.mxu0 %v6109
        %v6926 = vpop.f32.mrf.mxu0
        %v6927 = vadd.f32 %v6898, %v6926
        %v6928 = vpop.f32.mrf.mxu0
        %v6929 = vadd.f32 %v6900, %v6928
        %6930 = vdwg.mxu0
        %6931 = vmatpush.bf16.msra.mxu0 %v6631
        %6932 = vmatpush.bf16.msra.mxu0 %v6629
        %6933 = vmatpush.bf16.msra.mxu0 %v6627
        %6934 = vmatpush.bf16.msra.mxu0 %v6625
        %6935 = vmatpush.bf16.msra.mxu0 %v6623
        %6936 = vmatpush.bf16.msra.mxu0 %v6621
        %6937 = vmatpush.bf16.msra.mxu0 %v6619
        %6938 = vmatpush.bf16.msra.mxu0 %v6617
        %6939 = vmatmul.bf16.gmra.mxu0 %v6083
        %v6940 = vpop.f32.mrf.mxu0
        %v6941 = vadd.f32 %v6912, %v6940
        %v6942 = vpop.f32.mrf.mxu0
        %v6943 = vadd.f32 %v6914, %v6942
        %6944 = vmatmul.bf16.gmra.mxu0 %v6092
        %v6945 = vpop.f32.mrf.mxu0
        %v6946 = vadd.f32 %v6917, %v6945
        %v6947 = vpop.f32.mrf.mxu0
        %v6948 = vadd.f32 %v6919, %v6947
        %6949 = vmatmul.bf16.gmra.mxu0 %v6101
        %v6950 = vpop.f32.mrf.mxu0
        %v6951 = vadd.f32 %v6922, %v6950
        %v6952 = vpop.f32.mrf.mxu0
        %v6953 = vadd.f32 %v6924, %v6952
        %6954 = vmatmul.bf16.gmra.mxu0 %v6110
        %v6955 = vpop.f32.mrf.mxu0
        %v6956 = vadd.f32 %v6927, %v6955
        %v6957 = vpop.f32.mrf.mxu0
        %v6958 = vadd.f32 %v6929, %v6957
        %6959 = vdwg.mxu0
        %6960 = vmatpush.bf16.msra.mxu0 %v6647
        %6961 = vmatpush.bf16.msra.mxu0 %v6645
        %6962 = vmatpush.bf16.msra.mxu0 %v6643
        %6963 = vmatpush.bf16.msra.mxu0 %v6641
        %6964 = vmatpush.bf16.msra.mxu0 %v6639
        %6965 = vmatpush.bf16.msra.mxu0 %v6637
        %6966 = vmatpush.bf16.msra.mxu0 %v6635
        %6967 = vmatpush.bf16.msra.mxu0 %v6633
        %6968 = vmatmul.bf16.gmra.mxu0 %v6084
        %v6969 = vpop.f32.mrf.mxu0
        %v6970 = vadd.f32 %v6941, %v6969
        %v6971 = vpop.f32.mrf.mxu0
        %v6972 = vadd.f32 %v6943, %v6971
        %6973 = vmatmul.bf16.gmra.mxu0 %v6093
        %v6974 = vpop.f32.mrf.mxu0
        %v6975 = vadd.f32 %v6946, %v6974
        %v6976 = vpop.f32.mrf.mxu0
        %v6977 = vadd.f32 %v6948, %v6976
        %6978 = vmatmul.bf16.gmra.mxu0 %v6102
        %v6979 = vpop.f32.mrf.mxu0
        %v6980 = vadd.f32 %v6951, %v6979
        %v6981 = vpop.f32.mrf.mxu0
        %v6982 = vadd.f32 %v6953, %v6981
        %6983 = vmatmul.bf16.gmra.mxu0 %v6111
        %v6984 = vpop.f32.mrf.mxu0
        %v6985 = vadd.f32 %v6956, %v6984
        %v6986 = vpop.f32.mrf.mxu0
        %v6987 = vadd.f32 %v6958, %v6986
        %6988 = vdwg.mxu0
        %6989 = vmatpush.bf16.msra.mxu0 %v6663
        %6990 = vmatpush.bf16.msra.mxu0 %v6661
        %6991 = vmatpush.bf16.msra.mxu0 %v6659
        %6992 = vmatpush.bf16.msra.mxu0 %v6657
        %6993 = vmatpush.bf16.msra.mxu0 %v6655
        %6994 = vmatpush.bf16.msra.mxu0 %v6653
        %6995 = vmatpush.bf16.msra.mxu0 %v6651
        %6996 = vmatpush.bf16.msra.mxu0 %v6649
        %6997 = vmatmul.bf16.gmra.mxu0 %v6085
        %v6998 = vpop.f32.mrf.mxu0
        %v6999 = vadd.f32 %v6970, %v6998
        %v7000 = vpop.f32.mrf.mxu0
        %v7001 = vadd.f32 %v6972, %v7000
        %7002 = vmatmul.bf16.gmra.mxu0 %v6094
        %v7003 = vpop.f32.mrf.mxu0
        %v7004 = vadd.f32 %v6975, %v7003
        %v7005 = vpop.f32.mrf.mxu0
        %v7006 = vadd.f32 %v6977, %v7005
        %7007 = vmatmul.bf16.gmra.mxu0 %v6103
        %v7008 = vpop.f32.mrf.mxu0
        %v7009 = vadd.f32 %v6980, %v7008
        %v7010 = vpop.f32.mrf.mxu0
        %v7011 = vadd.f32 %v6982, %v7010
        %7012 = vmatmul.bf16.gmra.mxu0 %v6112
        %v7013 = vpop.f32.mrf.mxu0
        %v7014 = vadd.f32 %v6985, %v7013
        %v7015 = vpop.f32.mrf.mxu0
        %v7016 = vadd.f32 %v6987, %v7015
        %7017 = vdwg.mxu0
        %7018 = vmatpush.bf16.msra.mxu0 %v6679
        %7019 = vmatpush.bf16.msra.mxu0 %v6677
        %7020 = vmatpush.bf16.msra.mxu0 %v6675
        %7021 = vmatpush.bf16.msra.mxu0 %v6673
        %7022 = vmatpush.bf16.msra.mxu0 %v6671
        %7023 = vmatpush.bf16.msra.mxu0 %v6669
        %7024 = vmatpush.bf16.msra.mxu0 %v6667
        %7025 = vmatpush.bf16.msra.mxu0 %v6665
        %7026 = vmatmul.bf16.gmra.mxu0 %v6086
        %v7027 = vpop.f32.mrf.mxu0
        %v7028 = vadd.f32 %v6999, %v7027
        %v7029 = vpop.f32.mrf.mxu0
        %v7030 = vadd.f32 %v7001, %v7029
        %7031 = vmatmul.bf16.gmra.mxu0 %v6095
        %v7032 = vpop.f32.mrf.mxu0
        %v7033 = vadd.f32 %v7004, %v7032
        %v7034 = vpop.f32.mrf.mxu0
        %v7035 = vadd.f32 %v7006, %v7034
        %7036 = vmatmul.bf16.gmra.mxu0 %v6104
        %v7037 = vpop.f32.mrf.mxu0
        %v7038 = vadd.f32 %v7009, %v7037
        %v7039 = vpop.f32.mrf.mxu0
        %v7040 = vadd.f32 %v7011, %v7039
        %7041 = vmatmul.bf16.gmra.mxu0 %v6113
        %v7042 = vpop.f32.mrf.mxu0
        %v7043 = vadd.f32 %v7014, %v7042
        %v7044 = vpop.f32.mrf.mxu0
        %v7045 = vadd.f32 %v7016, %v7044
        %7046 = vdwg.mxu0
        %7047 = vmatpush.bf16.msra.mxu0 %v6695
        %7048 = vmatpush.bf16.msra.mxu0 %v6693
        %7049 = vmatpush.bf16.msra.mxu0 %v6691
        %7050 = vmatpush.bf16.msra.mxu0 %v6689
        %7051 = vmatpush.bf16.msra.mxu0 %v6687
        %7052 = vmatpush.bf16.msra.mxu0 %v6685
        %7053 = vmatpush.bf16.msra.mxu0 %v6683
        %7054 = vmatpush.bf16.msra.mxu0 %v6681
        %7055 = vmatmul.bf16.gmra.mxu0 %v6087
        %v7056 = vpop.f32.mrf.mxu0
        %v7057 = vadd.f32 %v7028, %v7056
        %v7058 = vpop.f32.mrf.mxu0
        %v7059 = vadd.f32 %v7030, %v7058
        %7060 = vmatmul.bf16.gmra.mxu0 %v6096
        %v7061 = vpop.f32.mrf.mxu0
        %v7062 = vadd.f32 %v7033, %v7061
        %v7063 = vpop.f32.mrf.mxu0
        %v7064 = vadd.f32 %v7035, %v7063
        %7065 = vmatmul.bf16.gmra.mxu0 %v6105
        %v7066 = vpop.f32.mrf.mxu0
        %v7067 = vadd.f32 %v7038, %v7066
        %v7068 = vpop.f32.mrf.mxu0
        %v7069 = vadd.f32 %v7040, %v7068
        %7070 = vmatmul.bf16.gmra.mxu0 %v6114
        %v7071 = vpop.f32.mrf.mxu0
        %v7072 = vadd.f32 %v7043, %v7071
        %v7073 = vpop.f32.mrf.mxu0
        %v7074 = vadd.f32 %v7045, %v7073
        %7075 = vdwg.mxu0
        %7076 = vmatpush.bf16.msra.mxu0 %v6711
        %7077 = vmatpush.bf16.msra.mxu0 %v6709
        %7078 = vmatpush.bf16.msra.mxu0 %v6707
        %7079 = vmatpush.bf16.msra.mxu0 %v6705
        %7080 = vmatpush.bf16.msra.mxu0 %v6703
        %7081 = vmatpush.bf16.msra.mxu0 %v6701
        %7082 = vmatpush.bf16.msra.mxu0 %v6699
        %7083 = vmatpush.bf16.msra.mxu0 %v6697
        %7084 = vmatmul.bf16.gmra.mxu0 %v6088
        %v7085 = vpop.f32.mrf.mxu0
        %v7086 = vadd.f32 %v7057, %v7085
        %v7087 = vpop.f32.mrf.mxu0
        %v7088 = vadd.f32 %v7059, %v7087
        %7089 = vmatmul.bf16.gmra.mxu0 %v6097
        %v7090 = vpop.f32.mrf.mxu0
        %v7091 = vadd.f32 %v7062, %v7090
        %v7092 = vpop.f32.mrf.mxu0
        %v7093 = vadd.f32 %v7064, %v7092
        %7094 = vmatmul.bf16.gmra.mxu0 %v6106
        %v7095 = vpop.f32.mrf.mxu0
        %v7096 = vadd.f32 %v7067, %v7095
        %v7097 = vpop.f32.mrf.mxu0
        %v7098 = vadd.f32 %v7069, %v7097
        %7099 = vmatmul.bf16.gmra.mxu0 %v6115
        %v7100 = vpop.f32.mrf.mxu0
        %v7101 = vadd.f32 %v7072, %v7100
        %v7102 = vpop.f32.mrf.mxu0
        %v7103 = vadd.f32 %v7074, %v7102
        %7104 = vdwg.mxu0
        %7105 = vmatpush.bf16.msra.mxu0 %v6727
        %7106 = vmatpush.bf16.msra.mxu0 %v6725
        %7107 = vmatpush.bf16.msra.mxu0 %v6723
        %7108 = vmatpush.bf16.msra.mxu0 %v6721
        %7109 = vmatpush.bf16.msra.mxu0 %v6719
        %7110 = vmatpush.bf16.msra.mxu0 %v6717
        %7111 = vmatpush.bf16.msra.mxu0 %v6715
        %7112 = vmatpush.bf16.msra.mxu0 %v6713
        %7113 = vmatmul.bf16.gmra.mxu0 %v6089
        %v7114 = vpop.f32.mrf.mxu0
        %v7115 = vadd.f32 %v7086, %v7114
        %v7116 = vpop.f32.mrf.mxu0
        %v7117 = vadd.f32 %v7088, %v7116
        %7118 = vmatmul.bf16.gmra.mxu0 %v6098
        %v7119 = vpop.f32.mrf.mxu0
        %v7120 = vadd.f32 %v7091, %v7119
        %v7121 = vpop.f32.mrf.mxu0
        %v7122 = vadd.f32 %v7093, %v7121
        %7123 = vmatmul.bf16.gmra.mxu0 %v6107
        %v7124 = vpop.f32.mrf.mxu0
        %v7125 = vadd.f32 %v7096, %v7124
        %v7126 = vpop.f32.mrf.mxu0
        %v7127 = vadd.f32 %v7098, %v7126
        %7128 = vmatmul.bf16.gmra.mxu0 %v6116
        %v7129 = vpop.f32.mrf.mxu0
        %v7130 = vadd.f32 %v7101, %v7129
        %v7131 = vpop.f32.mrf.mxu0
        %v7132 = vadd.f32 %v7103, %v7131
        %7133 = vdwg.mxu0
        %7134 = vmatpush.bf16.msra.mxu0 %v6600
        %7135 = vmatpush.bf16.msra.mxu0 %v6598
        %7136 = vmatpush.bf16.msra.mxu0 %v6596
        %7137 = vmatpush.bf16.msra.mxu0 %v6594
        %7138 = vmatpush.bf16.msra.mxu0 %v6592
        %7139 = vmatpush.bf16.msra.mxu0 %v6590
        %7140 = vmatpush.bf16.msra.mxu0 %v6588
        %7141 = vmatpush.bf16.msra.mxu0 %v6586
        %7142 = vmatmul.bf16.gmra.mxu0 %v6081
        %v7143 = vpop.f32.mrf.mxu0
        %v7144 = vadd.f32 0.0, %v7143
        %v7145 = vpop.f32.mrf.mxu0
        %v7146 = vadd.f32 0.0, %v7145
        %7147 = vmatmul.bf16.gmra.mxu0 %v6090
        %v7148 = vpop.f32.mrf.mxu0
        %v7149 = vadd.f32 0.0, %v7148
        %v7150 = vpop.f32.mrf.mxu0
        %v7151 = vadd.f32 0.0, %v7150
        %7152 = vmatmul.bf16.gmra.mxu0 %v6099
        %v7153 = vpop.f32.mrf.mxu0
        %v7154 = vadd.f32 0.0, %v7153
        %v7155 = vpop.f32.mrf.mxu0
        %v7156 = vadd.f32 0.0, %v7155
        %7157 = vmatmul.bf16.gmra.mxu0 %v6108
        %v7158 = vpop.f32.mrf.mxu0
        %v7159 = vadd.f32 0.0, %v7158
        %v7160 = vpop.f32.mrf.mxu0
        %v7161 = vadd.f32 0.0, %v7160
        %7162 = vdwg.mxu0
        %7163 = vmatpush.bf16.msra.mxu0 %v6616
        %7164 = vmatpush.bf16.msra.mxu0 %v6614
        %7165 = vmatpush.bf16.msra.mxu0 %v6612
        %7166 = vmatpush.bf16.msra.mxu0 %v6610
        %7167 = vmatpush.bf16.msra.mxu0 %v6608
        %7168 = vmatpush.bf16.msra.mxu0 %v6606
        %7169 = vmatpush.bf16.msra.mxu0 %v6604
        %7170 = vmatpush.bf16.msra.mxu0 %v6602
        %7171 = vmatmul.bf16.gmra.mxu0 %v6082
        %v7172 = vpop.f32.mrf.mxu0
        %v7173 = vadd.f32 %v7144, %v7172
        %v7174 = vpop.f32.mrf.mxu0
        %v7175 = vadd.f32 %v7146, %v7174
        %7176 = vmatmul.bf16.gmra.mxu0 %v6091
        %v7177 = vpop.f32.mrf.mxu0
        %v7178 = vadd.f32 %v7149, %v7177
        %v7179 = vpop.f32.mrf.mxu0
        %v7180 = vadd.f32 %v7151, %v7179
        %7181 = vmatmul.bf16.gmra.mxu0 %v6100
        %v7182 = vpop.f32.mrf.mxu0
        %v7183 = vadd.f32 %v7154, %v7182
        %v7184 = vpop.f32.mrf.mxu0
        %v7185 = vadd.f32 %v7156, %v7184
        %7186 = vmatmul.bf16.gmra.mxu0 %v6109
        %v7187 = vpop.f32.mrf.mxu0
        %v7188 = vadd.f32 %v7159, %v7187
        %v7189 = vpop.f32.mrf.mxu0
        %v7190 = vadd.f32 %v7161, %v7189
        %7191 = vdwg.mxu0
        %7192 = vmatpush.bf16.msra.mxu0 %v6632
        %7193 = vmatpush.bf16.msra.mxu0 %v6630
        %7194 = vmatpush.bf16.msra.mxu0 %v6628
        %7195 = vmatpush.bf16.msra.mxu0 %v6626
        %7196 = vmatpush.bf16.msra.mxu0 %v6624
        %7197 = vmatpush.bf16.msra.mxu0 %v6622
        %7198 = vmatpush.bf16.msra.mxu0 %v6620
        %7199 = vmatpush.bf16.msra.mxu0 %v6618
        %7200 = vmatmul.bf16.gmra.mxu0 %v6083
        %v7201 = vpop.f32.mrf.mxu0
        %v7202 = vadd.f32 %v7173, %v7201
        %v7203 = vpop.f32.mrf.mxu0
        %v7204 = vadd.f32 %v7175, %v7203
        %7205 = vmatmul.bf16.gmra.mxu0 %v6092
        %v7206 = vpop.f32.mrf.mxu0
        %v7207 = vadd.f32 %v7178, %v7206
        %v7208 = vpop.f32.mrf.mxu0
        %v7209 = vadd.f32 %v7180, %v7208
        %7210 = vmatmul.bf16.gmra.mxu0 %v6101
        %v7211 = vpop.f32.mrf.mxu0
        %v7212 = vadd.f32 %v7183, %v7211
        %v7213 = vpop.f32.mrf.mxu0
        %v7214 = vadd.f32 %v7185, %v7213
        %7215 = vmatmul.bf16.gmra.mxu0 %v6110
        %v7216 = vpop.f32.mrf.mxu0
        %v7217 = vadd.f32 %v7188, %v7216
        %v7218 = vpop.f32.mrf.mxu0
        %v7219 = vadd.f32 %v7190, %v7218
        %7220 = vdwg.mxu0
        %7221 = vmatpush.bf16.msra.mxu0 %v6648
        %7222 = vmatpush.bf16.msra.mxu0 %v6646
        %7223 = vmatpush.bf16.msra.mxu0 %v6644
        %7224 = vmatpush.bf16.msra.mxu0 %v6642
        %7225 = vmatpush.bf16.msra.mxu0 %v6640
        %7226 = vmatpush.bf16.msra.mxu0 %v6638
        %7227 = vmatpush.bf16.msra.mxu0 %v6636
        %7228 = vmatpush.bf16.msra.mxu0 %v6634
        %7229 = vmatmul.bf16.gmra.mxu0 %v6084
        %v7230 = vpop.f32.mrf.mxu0
        %v7231 = vadd.f32 %v7202, %v7230
        %v7232 = vpop.f32.mrf.mxu0
        %v7233 = vadd.f32 %v7204, %v7232
        %7234 = vmatmul.bf16.gmra.mxu0 %v6093
        %v7235 = vpop.f32.mrf.mxu0
        %v7236 = vadd.f32 %v7207, %v7235
        %v7237 = vpop.f32.mrf.mxu0
        %v7238 = vadd.f32 %v7209, %v7237
        %7239 = vmatmul.bf16.gmra.mxu0 %v6102
        %v7240 = vpop.f32.mrf.mxu0
        %v7241 = vadd.f32 %v7212, %v7240
        %v7242 = vpop.f32.mrf.mxu0
        %v7243 = vadd.f32 %v7214, %v7242
        %7244 = vmatmul.bf16.gmra.mxu0 %v6111
        %v7245 = vpop.f32.mrf.mxu0
        %v7246 = vadd.f32 %v7217, %v7245
        %v7247 = vpop.f32.mrf.mxu0
        %v7248 = vadd.f32 %v7219, %v7247
        %7249 = vdwg.mxu0
        %7250 = vmatpush.bf16.msra.mxu0 %v6664
        %7251 = vmatpush.bf16.msra.mxu0 %v6662
        %7252 = vmatpush.bf16.msra.mxu0 %v6660
        %7253 = vmatpush.bf16.msra.mxu0 %v6658
        %7254 = vmatpush.bf16.msra.mxu0 %v6656
        %7255 = vmatpush.bf16.msra.mxu0 %v6654
        %7256 = vmatpush.bf16.msra.mxu0 %v6652
        %7257 = vmatpush.bf16.msra.mxu0 %v6650
        %7258 = vmatmul.bf16.gmra.mxu0 %v6085
        %v7259 = vpop.f32.mrf.mxu0
        %v7260 = vadd.f32 %v7231, %v7259
        %v7261 = vpop.f32.mrf.mxu0
        %v7262 = vadd.f32 %v7233, %v7261
        %7263 = vmatmul.bf16.gmra.mxu0 %v6094
        %v7264 = vpop.f32.mrf.mxu0
        %v7265 = vadd.f32 %v7236, %v7264
        %v7266 = vpop.f32.mrf.mxu0
        %v7267 = vadd.f32 %v7238, %v7266
        %7268 = vmatmul.bf16.gmra.mxu0 %v6103
        %v7269 = vpop.f32.mrf.mxu0
        %v7270 = vadd.f32 %v7241, %v7269
        %v7271 = vpop.f32.mrf.mxu0
        %v7272 = vadd.f32 %v7243, %v7271
        %7273 = vmatmul.bf16.gmra.mxu0 %v6112
        %v7274 = vpop.f32.mrf.mxu0
        %v7275 = vadd.f32 %v7246, %v7274
        %v7276 = vpop.f32.mrf.mxu0
        %v7277 = vadd.f32 %v7248, %v7276
        %7278 = vdwg.mxu0
        %7279 = vmatpush.bf16.msra.mxu0 %v6680
        %7280 = vmatpush.bf16.msra.mxu0 %v6678
        %7281 = vmatpush.bf16.msra.mxu0 %v6676
        %7282 = vmatpush.bf16.msra.mxu0 %v6674
        %7283 = vmatpush.bf16.msra.mxu0 %v6672
        %7284 = vmatpush.bf16.msra.mxu0 %v6670
        %7285 = vmatpush.bf16.msra.mxu0 %v6668
        %7286 = vmatpush.bf16.msra.mxu0 %v6666
        %7287 = vmatmul.bf16.gmra.mxu0 %v6086
        %v7288 = vpop.f32.mrf.mxu0
        %v7289 = vadd.f32 %v7260, %v7288
        %v7290 = vpop.f32.mrf.mxu0
        %v7291 = vadd.f32 %v7262, %v7290
        %7292 = vmatmul.bf16.gmra.mxu0 %v6095
        %v7293 = vpop.f32.mrf.mxu0
        %v7294 = vadd.f32 %v7265, %v7293
        %v7295 = vpop.f32.mrf.mxu0
        %v7296 = vadd.f32 %v7267, %v7295
        %7297 = vmatmul.bf16.gmra.mxu0 %v6104
        %v7298 = vpop.f32.mrf.mxu0
        %v7299 = vadd.f32 %v7270, %v7298
        %v7300 = vpop.f32.mrf.mxu0
        %v7301 = vadd.f32 %v7272, %v7300
        %7302 = vmatmul.bf16.gmra.mxu0 %v6113
        %v7303 = vpop.f32.mrf.mxu0
        %v7304 = vadd.f32 %v7275, %v7303
        %v7305 = vpop.f32.mrf.mxu0
        %v7306 = vadd.f32 %v7277, %v7305
        %7307 = vdwg.mxu0
        %7308 = vmatpush.bf16.msra.mxu0 %v6696
        %7309 = vmatpush.bf16.msra.mxu0 %v6694
        %7310 = vmatpush.bf16.msra.mxu0 %v6692
        %7311 = vmatpush.bf16.msra.mxu0 %v6690
        %7312 = vmatpush.bf16.msra.mxu0 %v6688
        %7313 = vmatpush.bf16.msra.mxu0 %v6686
        %7314 = vmatpush.bf16.msra.mxu0 %v6684
        %7315 = vmatpush.bf16.msra.mxu0 %v6682
        %7316 = vmatmul.bf16.gmra.mxu0 %v6087
        %v7317 = vpop.f32.mrf.mxu0
        %v7318 = vadd.f32 %v7289, %v7317
        %v7319 = vpop.f32.mrf.mxu0
        %v7320 = vadd.f32 %v7291, %v7319
        %7321 = vmatmul.bf16.gmra.mxu0 %v6096
        %v7322 = vpop.f32.mrf.mxu0
        %v7323 = vadd.f32 %v7294, %v7322
        %v7324 = vpop.f32.mrf.mxu0
        %v7325 = vadd.f32 %v7296, %v7324
        %7326 = vmatmul.bf16.gmra.mxu0 %v6105
        %v7327 = vpop.f32.mrf.mxu0
        %v7328 = vadd.f32 %v7299, %v7327
        %v7329 = vpop.f32.mrf.mxu0
        %v7330 = vadd.f32 %v7301, %v7329
        %7331 = vmatmul.bf16.gmra.mxu0 %v6114
        %v7332 = vpop.f32.mrf.mxu0
        %v7333 = vadd.f32 %v7304, %v7332
        %v7334 = vpop.f32.mrf.mxu0
        %v7335 = vadd.f32 %v7306, %v7334
        %7336 = vdwg.mxu0
        %7337 = vmatpush.bf16.msra.mxu0 %v6712
        %7338 = vmatpush.bf16.msra.mxu0 %v6710
        %7339 = vmatpush.bf16.msra.mxu0 %v6708
        %7340 = vmatpush.bf16.msra.mxu0 %v6706
        %7341 = vmatpush.bf16.msra.mxu0 %v6704
        %7342 = vmatpush.bf16.msra.mxu0 %v6702
        %7343 = vmatpush.bf16.msra.mxu0 %v6700
        %7344 = vmatpush.bf16.msra.mxu0 %v6698
        %7345 = vmatmul.bf16.gmra.mxu0 %v6088
        %v7346 = vpop.f32.mrf.mxu0
        %v7347 = vadd.f32 %v7318, %v7346
        %v7348 = vpop.f32.mrf.mxu0
        %v7349 = vadd.f32 %v7320, %v7348
        %7350 = vmatmul.bf16.gmra.mxu0 %v6097
        %v7351 = vpop.f32.mrf.mxu0
        %v7352 = vadd.f32 %v7323, %v7351
        %v7353 = vpop.f32.mrf.mxu0
        %v7354 = vadd.f32 %v7325, %v7353
        %7355 = vmatmul.bf16.gmra.mxu0 %v6106
        %v7356 = vpop.f32.mrf.mxu0
        %v7357 = vadd.f32 %v7328, %v7356
        %v7358 = vpop.f32.mrf.mxu0
        %v7359 = vadd.f32 %v7330, %v7358
        %7360 = vmatmul.bf16.gmra.mxu0 %v6115
        %v7361 = vpop.f32.mrf.mxu0
        %v7362 = vadd.f32 %v7333, %v7361
        %v7363 = vpop.f32.mrf.mxu0
        %v7364 = vadd.f32 %v7335, %v7363
        %7365 = vdwg.mxu0
        %7366 = vmatpush.bf16.msra.mxu0 %v6728
        %7367 = vmatpush.bf16.msra.mxu0 %v6726
        %7368 = vmatpush.bf16.msra.mxu0 %v6724
        %7369 = vmatpush.bf16.msra.mxu0 %v6722
        %7370 = vmatpush.bf16.msra.mxu0 %v6720
        %7371 = vmatpush.bf16.msra.mxu0 %v6718
        %7372 = vmatpush.bf16.msra.mxu0 %v6716
        %7373 = vmatpush.bf16.msra.mxu0 %v6714
        %7374 = vmatmul.bf16.gmra.mxu0 %v6089
        %v7375 = vpop.f32.mrf.mxu0
        %v7376 = vadd.f32 %v7347, %v7375
        %v7377 = vpop.f32.mrf.mxu0
        %v7378 = vadd.f32 %v7349, %v7377
        %7379 = vmatmul.bf16.gmra.mxu0 %v6098
        %v7380 = vpop.f32.mrf.mxu0
        %v7381 = vadd.f32 %v7352, %v7380
        %v7382 = vpop.f32.mrf.mxu0
        %v7383 = vadd.f32 %v7354, %v7382
        %7384 = vmatmul.bf16.gmra.mxu0 %v6107
        %v7385 = vpop.f32.mrf.mxu0
        %v7386 = vadd.f32 %v7357, %v7385
        %v7387 = vpop.f32.mrf.mxu0
        %v7388 = vadd.f32 %v7359, %v7387
        %7389 = vmatmul.bf16.gmra.mxu0 %v6116
        %v7390 = vpop.f32.mrf.mxu0
        %v7391 = vadd.f32 %v7362, %v7390
        %v7392 = vpop.f32.mrf.mxu0
        %v7393 = vadd.f32 %v7364, %v7392
        %7394 = vdwg.mxu0
        %v7395 = vld [vmem:[%s5] sm:$0x3]
        %v7397 = vperm.slane %v7395, 0
        %v7398 = vperm.slane %v7395, 1
        %v7401 = vmul.f32 %v7115, %v7397
        %v7402 = vmul.f32 %v7376, %v7398
        %v7403 = vmul.f32 %v7117, %v7397
        %v7404 = vmul.f32 %v7378, %v7398
        %v7405 = vmul.f32 %v7120, %v7397
        %v7406 = vmul.f32 %v7381, %v7398
        %v7407 = vmul.f32 %v7122, %v7397
        %v7408 = vmul.f32 %v7383, %v7398
        %v7409 = vmul.f32 %v7125, %v7397
        %v7410 = vmul.f32 %v7386, %v7398
        %v7411 = vmul.f32 %v7127, %v7397
        %v7412 = vmul.f32 %v7388, %v7398
        %v7413 = vmul.f32 %v7130, %v7397
        %v7414 = vmul.f32 %v7391, %v7398
        %v7415 = vmul.f32 %v7132, %v7397
        %v7416 = vmul.f32 %v7393, %v7398
        %v7417 = vld [vmem:[%s6] sm:$0x3]
        %v7419 = vperm.slane %v7417, 0
        %v7420 = vperm.slane %v7417, 1
        %v7423 = vadd.f32 %v7401, %v7419
        %v7424 = vadd.f32 %v7402, %v7420
        %v7425 = vadd.f32 %v7403, %v7419
        %v7426 = vadd.f32 %v7404, %v7420
        %v7427 = vadd.f32 %v7405, %v7419
        %v7428 = vadd.f32 %v7406, %v7420
        %v7429 = vadd.f32 %v7407, %v7419
        %v7430 = vadd.f32 %v7408, %v7420
        %v7431 = vadd.f32 %v7409, %v7419
        %v7432 = vadd.f32 %v7410, %v7420
        %v7433 = vadd.f32 %v7411, %v7419
        %v7434 = vadd.f32 %v7412, %v7420
        %v7435 = vadd.f32 %v7413, %v7419
        %v7436 = vadd.f32 %v7414, %v7420
        %v7437 = vadd.f32 %v7415, %v7419
        %v7438 = vadd.f32 %v7416, %v7420
        %v7439 = vmul.f32 %v7423, 0.16666667
        %v7440 = vmul.f32 %v7424, 0.16666667
        %v7441 = vmul.f32 %v7425, 0.16666667
        %v7442 = vmul.f32 %v7426, 0.16666667
        %v7443 = vmul.f32 %v7427, 0.16666667
        %v7444 = vmul.f32 %v7428, 0.16666667
        %v7445 = vmul.f32 %v7429, 0.16666667
        %v7446 = vmul.f32 %v7430, 0.16666667
        %v7447 = vmul.f32 %v7431, 0.16666667
        %v7448 = vmul.f32 %v7432, 0.16666667
        %v7449 = vmul.f32 %v7433, 0.16666667
        %v7450 = vmul.f32 %v7434, 0.16666667
        %v7451 = vmul.f32 %v7435, 0.16666667
        %v7452 = vmul.f32 %v7436, 0.16666667
        %v7453 = vmul.f32 %v7437, 0.16666667
        %v7454 = vmul.f32 %v7438, 0.16666667
        %v7455 = vadd.f32 %v7439, 0.5
        %v7456 = vadd.f32 %v7440, 0.5
        %v7457 = vadd.f32 %v7441, 0.5
        %v7458 = vadd.f32 %v7442, 0.5
        %v7459 = vadd.f32 %v7443, 0.5
        %v7460 = vadd.f32 %v7444, 0.5
        %v7461 = vadd.f32 %v7445, 0.5
        %v7462 = vadd.f32 %v7446, 0.5
        %v7463 = vadd.f32 %v7447, 0.5
        %v7464 = vadd.f32 %v7448, 0.5
        %v7465 = vadd.f32 %v7449, 0.5
        %v7466 = vadd.f32 %v7450, 0.5
        %v7467 = vadd.f32 %v7451, 0.5
        %v7468 = vadd.f32 %v7452, 0.5
        %v7469 = vadd.f32 %v7453, 0.5
        %v7470 = vadd.f32 %v7454, 0.5
        %v7471 = vmax.f32 %v7455, 0.0
        %v7472 = vmax.f32 %v7456, 0.0
        %v7473 = vmax.f32 %v7457, 0.0
        %v7474 = vmax.f32 %v7458, 0.0
        %v7475 = vmax.f32 %v7459, 0.0
        %v7476 = vmax.f32 %v7460, 0.0
        %v7477 = vmax.f32 %v7461, 0.0
        %v7478 = vmax.f32 %v7462, 0.0
        %v7479 = vmax.f32 %v7463, 0.0
        %v7480 = vmax.f32 %v7464, 0.0
        %v7481 = vmax.f32 %v7465, 0.0
        %v7482 = vmax.f32 %v7466, 0.0
        %v7483 = vmax.f32 %v7467, 0.0
        %v7484 = vmax.f32 %v7468, 0.0
        %v7485 = vmax.f32 %v7469, 0.0
        %v7486 = vmax.f32 %v7470, 0.0
        %v7487 = vmin.f32 %v7471, 1.0
        %v7488 = vmin.f32 %v7472, 1.0
        %v7489 = vmin.f32 %v7473, 1.0
        %v7490 = vmin.f32 %v7474, 1.0
        %v7491 = vmin.f32 %v7475, 1.0
        %v7492 = vmin.f32 %v7476, 1.0
        %v7493 = vmin.f32 %v7477, 1.0
        %v7494 = vmin.f32 %v7478, 1.0
        %v7495 = vmin.f32 %v7479, 1.0
        %v7496 = vmin.f32 %v7480, 1.0
        %v7497 = vmin.f32 %v7481, 1.0
        %v7498 = vmin.f32 %v7482, 1.0
        %v7499 = vmin.f32 %v7483, 1.0
        %v7500 = vmin.f32 %v7484, 1.0
        %v7501 = vmin.f32 %v7485, 1.0
        %v7502 = vmin.f32 %v7486, 1.0
        %v7503 = vmul.f32 %v7423, %v7487
        %v7504 = vmul.f32 %v7424, %v7488
        %v7505 = vmul.f32 %v7425, %v7489
        %v7506 = vmul.f32 %v7426, %v7490
        %v7507 = vmul.f32 %v7427, %v7491
        %v7508 = vmul.f32 %v7428, %v7492
        %v7509 = vmul.f32 %v7429, %v7493
        %v7510 = vmul.f32 %v7430, %v7494
        %v7511 = vmul.f32 %v7431, %v7495
        %v7512 = vmul.f32 %v7432, %v7496
        %v7513 = vmul.f32 %v7433, %v7497
        %v7514 = vmul.f32 %v7434, %v7498
        %v7515 = vmul.f32 %v7435, %v7499
        %v7516 = vmul.f32 %v7436, %v7500
        %v7517 = vmul.f32 %v7437, %v7501
        %v7518 = vmul.f32 %v7438, %v7502
        %v7519 = vld [vmem:[%s1324] sm:$0xff]
        %v7520 = vld [vmem:[%s1324 + $0x8] sm:$0xff]
        %v7521 = vld [vmem:[%s1324 + $0x10] sm:$0xff]
        %v7522 = vld [vmem:[%s1324 + $0x18] sm:$0xff]
        %v7523 = vld [vmem:[%s1324 + $0x20] sm:$0xff]
        %v7524 = vld [vmem:[%s1324 + $0x28] sm:$0xff]
        %v7525 = vld [vmem:[%s1324 + $0x30] sm:$0xff]
        %v7526 = vld [vmem:[%s1324 + $0x38] sm:$0xff]
        %v7527 = vunpack.c.l.bf16 %v7519
        %v7528 = vunpack.c.h.bf16 %v7519
        %v7529 = vunpack.c.l.bf16 %v7520
        %v7530 = vunpack.c.h.bf16 %v7520
        %v7531 = vunpack.c.l.bf16 %v7521
        %v7532 = vunpack.c.h.bf16 %v7521
        %v7533 = vunpack.c.l.bf16 %v7522
        %v7534 = vunpack.c.h.bf16 %v7522
        %v7535 = vunpack.c.l.bf16 %v7523
        %v7536 = vunpack.c.h.bf16 %v7523
        %v7537 = vunpack.c.l.bf16 %v7524
        %v7538 = vunpack.c.h.bf16 %v7524
        %v7539 = vunpack.c.l.bf16 %v7525
        %v7540 = vunpack.c.h.bf16 %v7525
        %v7541 = vunpack.c.l.bf16 %v7526
        %v7542 = vunpack.c.h.bf16 %v7526
        %v7543 = vadd.f32 %v7503, %v7527
        %v7544 = vadd.f32 %v7504, %v7528
        %v7545 = vadd.f32 %v7505, %v7529
        %v7546 = vadd.f32 %v7506, %v7530
        %v7547 = vadd.f32 %v7507, %v7531
        %v7548 = vadd.f32 %v7508, %v7532
        %v7549 = vadd.f32 %v7509, %v7533
        %v7550 = vadd.f32 %v7510, %v7534
        %v7551 = vadd.f32 %v7511, %v7535
        %v7552 = vadd.f32 %v7512, %v7536
        %v7553 = vadd.f32 %v7513, %v7537
        %v7554 = vadd.f32 %v7514, %v7538
        %v7555 = vadd.f32 %v7515, %v7539
        %v7556 = vadd.f32 %v7516, %v7540
        %v7557 = vadd.f32 %v7517, %v7541
        %v7558 = vadd.f32 %v7518, %v7542
        %s7559 = scalar_lea.vmem %s271, 256 [#allocation3]
        %7560 = vst [vmem:[%s7559] sm:$0xff] %v7543
        %7561 = vst [vmem:[%s7559 + $0x8] sm:$0xff] %v7544
        %7562 = vst [vmem:[%s7559 + $0x10] sm:$0xff] %v7545
        %7563 = vst [vmem:[%s7559 + $0x18] sm:$0xff] %v7546
        %7564 = vst [vmem:[%s7559 + $0x20] sm:$0xff] %v7547
        %7565 = vst [vmem:[%s7559 + $0x28] sm:$0xff] %v7548
        %7566 = vst [vmem:[%s7559 + $0x30] sm:$0xff] %v7549
        %7567 = vst [vmem:[%s7559 + $0x38] sm:$0xff] %v7550
        %7568 = vst [vmem:[%s7559 + $0x40] sm:$0xff] %v7551
        %7569 = vst [vmem:[%s7559 + $0x48] sm:$0xff] %v7552
        %7570 = vst [vmem:[%s7559 + $0x50] sm:$0xff] %v7553
        %7571 = vst [vmem:[%s7559 + $0x58] sm:$0xff] %v7554
        %7572 = vst [vmem:[%s7559 + $0x60] sm:$0xff] %v7555
        %7573 = vst [vmem:[%s7559 + $0x68] sm:$0xff] %v7556
        %7574 = vst [vmem:[%s7559 + $0x70] sm:$0xff] %v7557
        %7575 = vst [vmem:[%s7559 + $0x78] sm:$0xff] %v7558
        %v7576 = vld [vmem:[#allocation2 + $0x360] sm:$0xff]
        %v7577 = vld [vmem:[#allocation2 + $0x368] sm:$0xff]
        %v7578 = vld [vmem:[#allocation2 + $0x370] sm:$0xff]
        %v7579 = vld [vmem:[#allocation2 + $0x378] sm:$0xff]
        %v7580 = vld [vmem:[#allocation2 + $0x380] sm:$0xf]
        %v7581 = vld [vmem:[#allocation2 + $0x384] sm:$0xff]
        %v7582 = vld [vmem:[#allocation2 + $0x38c] sm:$0xff]
        %v7583 = vld [vmem:[#allocation2 + $0x394] sm:$0xff]
        %v7584 = vld [vmem:[#allocation2 + $0x39c] sm:$0xff]
        %v7585 = vld [vmem:[#allocation2 + $0x3a4] sm:$0xf]
        %v7586 = vld [vmem:[#allocation2 + $0x3a8] sm:$0xff]
        %v7587 = vld [vmem:[#allocation2 + $0x3b0] sm:$0xff]
        %v7588 = vld [vmem:[#allocation2 + $0x3b8] sm:$0xff]
        %v7589 = vld [vmem:[#allocation2 + $0x3c0] sm:$0xff]
        %v7590 = vld [vmem:[#allocation2 + $0x3c8] sm:$0xf]
        %v7591 = vld [vmem:[#allocation2 + $0x3cc] sm:$0xff]
        %v7592 = vld [vmem:[#allocation2 + $0x3d4] sm:$0xff]
        %v7593 = vld [vmem:[#allocation2 + $0x3dc] sm:$0xff]
        %v7594 = vld [vmem:[#allocation2 + $0x3e4] sm:$0xff]
        %v7595 = vld [vmem:[#allocation2 + $0x3ec] sm:$0xf]
        %v7596 = vld [vmem:[#allocation2 + $0x3f0] sm:$0xff]
        %v7597 = vld [vmem:[#allocation2 + $0x3f8] sm:$0xff]
        %v7598 = vld [vmem:[#allocation2 + $0x400] sm:$0xff]
        %v7599 = vld [vmem:[#allocation2 + $0x408] sm:$0xff]
        %v7600 = vld [vmem:[#allocation2 + $0x410] sm:$0xf]
        %v7601 = vld [vmem:[#allocation2 + $0x414] sm:$0xff]
        %v7602 = vld [vmem:[#allocation2 + $0x41c] sm:$0xff]
        %v7603 = vld [vmem:[#allocation2 + $0x424] sm:$0xff]
        %v7604 = vld [vmem:[#allocation2 + $0x42c] sm:$0xff]
        %v7605 = vld [vmem:[#allocation2 + $0x434] sm:$0xf]
        %v7606 = vld [vmem:[#allocation2 + $0x438] sm:$0xff]
        %v7607 = vld [vmem:[#allocation2 + $0x440] sm:$0xff]
        %v7608 = vld [vmem:[#allocation2 + $0x448] sm:$0xff]
        %v7609 = vld [vmem:[#allocation2 + $0x450] sm:$0xff]
        %v7610 = vld [vmem:[#allocation2 + $0x458] sm:$0xf]
        %v7611 = vld [vmem:[#allocation2 + $0x45c] sm:$0xff]
        %v7612 = vld [vmem:[#allocation2 + $0x464] sm:$0xff]
        %v7613 = vld [vmem:[#allocation2 + $0x46c] sm:$0xff]
        %v7614 = vld [vmem:[#allocation2 + $0x474] sm:$0xff]
        %v7615 = vld [vmem:[#allocation2 + $0x47c] sm:$0xf]
        %v7616 = vld [vmem:[%s4] sm:$0xff]
        %v7617 = vld [vmem:[%s4 + $0x8] sm:$0xff]
        %v7618 = vld [vmem:[%s4 + $0x10] sm:$0xff]
        %v7619 = vld [vmem:[%s4 + $0x18] sm:$0xff]
        %v7620 = vld [vmem:[%s4 + $0x20] sm:$0xff]
        %v7621 = vld [vmem:[%s4 + $0x28] sm:$0xff]
        %v7622 = vld [vmem:[%s4 + $0x30] sm:$0xff]
        %v7623 = vld [vmem:[%s4 + $0x38] sm:$0xff]
        %v7624 = vld [vmem:[%s4 + $0x40] sm:$0xff]
        %v7625 = vld [vmem:[%s4 + $0x48] sm:$0xff]
        %v7626 = vld [vmem:[%s4 + $0x50] sm:$0xff]
        %v7627 = vld [vmem:[%s4 + $0x58] sm:$0xff]
        %v7628 = vld [vmem:[%s4 + $0x60] sm:$0xff]
        %v7629 = vld [vmem:[%s4 + $0x68] sm:$0xff]
        %v7630 = vld [vmem:[%s4 + $0x70] sm:$0xff]
        %v7631 = vld [vmem:[%s4 + $0x78] sm:$0xff]
        %v7632 = vld [vmem:[%s4 + $0x80] sm:$0xff]
        %v7633 = vld [vmem:[%s4 + $0x88] sm:$0xff]
        %v7634 = vld [vmem:[%s4 + $0x90] sm:$0xff]
        %v7635 = vld [vmem:[%s4 + $0x98] sm:$0xff]
        %v7636 = vld [vmem:[%s4 + $0xa0] sm:$0xff]
        %v7637 = vld [vmem:[%s4 + $0xa8] sm:$0xff]
        %v7638 = vld [vmem:[%s4 + $0xb0] sm:$0xff]
        %v7639 = vld [vmem:[%s4 + $0xb8] sm:$0xff]
        %v7640 = vld [vmem:[%s4 + $0xc0] sm:$0xff]
        %v7641 = vld [vmem:[%s4 + $0xc8] sm:$0xff]
        %v7642 = vld [vmem:[%s4 + $0xd0] sm:$0xff]
        %v7643 = vld [vmem:[%s4 + $0xd8] sm:$0xff]
        %v7644 = vld [vmem:[%s4 + $0xe0] sm:$0xff]
        %v7645 = vld [vmem:[%s4 + $0xe8] sm:$0xff]
        %v7646 = vld [vmem:[%s4 + $0xf0] sm:$0xff]
        %v7647 = vld [vmem:[%s4 + $0xf8] sm:$0xff]
        %v7648 = vld [vmem:[%s4 + $0x100] sm:$0xff]
        %v7649 = vld [vmem:[%s4 + $0x108] sm:$0xff]
        %v7650 = vld [vmem:[%s4 + $0x110] sm:$0xff]
        %v7651 = vld [vmem:[%s4 + $0x118] sm:$0xff]
        %v7652 = vld [vmem:[%s4 + $0x120] sm:$0xff]
        %v7653 = vld [vmem:[%s4 + $0x128] sm:$0xff]
        %v7654 = vld [vmem:[%s4 + $0x130] sm:$0xff]
        %v7655 = vld [vmem:[%s4 + $0x138] sm:$0xff]
        %v7656 = vld [vmem:[%s4 + $0x140] sm:$0xff]
        %v7657 = vld [vmem:[%s4 + $0x148] sm:$0xff]
        %v7658 = vld [vmem:[%s4 + $0x150] sm:$0xff]
        %v7659 = vld [vmem:[%s4 + $0x158] sm:$0xff]
        %v7660 = vld [vmem:[%s4 + $0x160] sm:$0xff]
        %v7661 = vld [vmem:[%s4 + $0x168] sm:$0xff]
        %v7662 = vld [vmem:[%s4 + $0x170] sm:$0xff]
        %v7663 = vld [vmem:[%s4 + $0x178] sm:$0xff]
        %v7664 = vld [vmem:[%s4 + $0x180] sm:$0xff]
        %v7665 = vld [vmem:[%s4 + $0x188] sm:$0xff]
        %v7666 = vld [vmem:[%s4 + $0x190] sm:$0xff]
        %v7667 = vld [vmem:[%s4 + $0x198] sm:$0xff]
        %v7668 = vld [vmem:[%s4 + $0x1a0] sm:$0xff]
        %v7669 = vld [vmem:[%s4 + $0x1a8] sm:$0xff]
        %v7670 = vld [vmem:[%s4 + $0x1b0] sm:$0xff]
        %v7671 = vld [vmem:[%s4 + $0x1b8] sm:$0xff]
        %v7672 = vld [vmem:[%s4 + $0x1c0] sm:$0xff]
        %v7673 = vld [vmem:[%s4 + $0x1c8] sm:$0xff]
        %v7674 = vld [vmem:[%s4 + $0x1d0] sm:$0xff]
        %v7675 = vld [vmem:[%s4 + $0x1d8] sm:$0xff]
        %v7676 = vld [vmem:[%s4 + $0x1e0] sm:$0xff]
        %v7677 = vld [vmem:[%s4 + $0x1e8] sm:$0xff]
        %v7678 = vld [vmem:[%s4 + $0x1f0] sm:$0xff]
        %v7679 = vld [vmem:[%s4 + $0x1f8] sm:$0xff]
        %v7680 = vld [vmem:[%s4 + $0x200] sm:$0xff]
        %v7681 = vld [vmem:[%s4 + $0x208] sm:$0xff]
        %v7682 = vld [vmem:[%s4 + $0x210] sm:$0xff]
        %v7683 = vld [vmem:[%s4 + $0x218] sm:$0xff]
        %v7684 = vld [vmem:[%s4 + $0x220] sm:$0xff]
        %v7685 = vld [vmem:[%s4 + $0x228] sm:$0xff]
        %v7686 = vld [vmem:[%s4 + $0x230] sm:$0xff]
        %v7687 = vld [vmem:[%s4 + $0x238] sm:$0xff]
        %v7688 = vld [vmem:[%s4 + $0x240] sm:$0xff]
        %v7689 = vld [vmem:[%s4 + $0x248] sm:$0xff]
        %v7690 = vld [vmem:[%s4 + $0x250] sm:$0xff]
        %v7691 = vld [vmem:[%s4 + $0x258] sm:$0xff]
        %v7692 = vld [vmem:[%s4 + $0x260] sm:$0xff]
        %v7693 = vld [vmem:[%s4 + $0x268] sm:$0xff]
        %v7694 = vld [vmem:[%s4 + $0x270] sm:$0xff]
        %v7695 = vld [vmem:[%s4 + $0x278] sm:$0xff]
        %v7696 = vld [vmem:[%s4 + $0x280] sm:$0xff]
        %v7697 = vld [vmem:[%s4 + $0x288] sm:$0xff]
        %v7698 = vld [vmem:[%s4 + $0x290] sm:$0xff]
        %v7699 = vld [vmem:[%s4 + $0x298] sm:$0xff]
        %v7700 = vld [vmem:[%s4 + $0x2a0] sm:$0xff]
        %v7701 = vld [vmem:[%s4 + $0x2a8] sm:$0xff]
        %v7702 = vld [vmem:[%s4 + $0x2b0] sm:$0xff]
        %v7703 = vld [vmem:[%s4 + $0x2b8] sm:$0xff]
        %v7704 = vld [vmem:[%s4 + $0x2c0] sm:$0xff]
        %v7705 = vld [vmem:[%s4 + $0x2c8] sm:$0xff]
        %v7706 = vld [vmem:[%s4 + $0x2d0] sm:$0xff]
        %v7707 = vld [vmem:[%s4 + $0x2d8] sm:$0xff]
        %v7708 = vld [vmem:[%s4 + $0x2e0] sm:$0xff]
        %v7709 = vld [vmem:[%s4 + $0x2e8] sm:$0xff]
        %v7710 = vld [vmem:[%s4 + $0x2f0] sm:$0xff]
        %v7711 = vld [vmem:[%s4 + $0x2f8] sm:$0xff]
        %v7712 = vld [vmem:[%s4 + $0x300] sm:$0xff]
        %v7713 = vld [vmem:[%s4 + $0x308] sm:$0xff]
        %v7714 = vld [vmem:[%s4 + $0x310] sm:$0xff]
        %v7715 = vld [vmem:[%s4 + $0x318] sm:$0xff]
        %v7716 = vld [vmem:[%s4 + $0x320] sm:$0xff]
        %v7717 = vld [vmem:[%s4 + $0x328] sm:$0xff]
        %v7718 = vld [vmem:[%s4 + $0x330] sm:$0xff]
        %v7719 = vld [vmem:[%s4 + $0x338] sm:$0xff]
        %v7720 = vld [vmem:[%s4 + $0x340] sm:$0xff]
        %v7721 = vld [vmem:[%s4 + $0x348] sm:$0xff]
        %v7722 = vld [vmem:[%s4 + $0x350] sm:$0xff]
        %v7723 = vld [vmem:[%s4 + $0x358] sm:$0xff]
        %v7724 = vld [vmem:[%s4 + $0x360] sm:$0xff]
        %v7725 = vld [vmem:[%s4 + $0x368] sm:$0xff]
        %v7726 = vld [vmem:[%s4 + $0x370] sm:$0xff]
        %v7727 = vld [vmem:[%s4 + $0x378] sm:$0xff]
        %v7728 = vld [vmem:[%s4 + $0x380] sm:$0xff]
        %v7729 = vld [vmem:[%s4 + $0x388] sm:$0xff]
        %v7730 = vld [vmem:[%s4 + $0x390] sm:$0xff]
        %v7731 = vld [vmem:[%s4 + $0x398] sm:$0xff]
        %v7732 = vld [vmem:[%s4 + $0x3a0] sm:$0xff]
        %v7733 = vld [vmem:[%s4 + $0x3a8] sm:$0xff]
        %v7734 = vld [vmem:[%s4 + $0x3b0] sm:$0xff]
        %v7735 = vld [vmem:[%s4 + $0x3b8] sm:$0xff]
        %v7736 = vld [vmem:[%s4 + $0x3c0] sm:$0xff]
        %v7737 = vld [vmem:[%s4 + $0x3c8] sm:$0xff]
        %v7738 = vld [vmem:[%s4 + $0x3d0] sm:$0xff]
        %v7739 = vld [vmem:[%s4 + $0x3d8] sm:$0xff]
        %v7740 = vld [vmem:[%s4 + $0x3e0] sm:$0xff]
        %v7741 = vld [vmem:[%s4 + $0x3e8] sm:$0xff]
        %v7742 = vld [vmem:[%s4 + $0x3f0] sm:$0xff]
        %v7743 = vld [vmem:[%s4 + $0x3f8] sm:$0xff]
        %v7744 = vld [vmem:[%s4 + $0x400] sm:$0xff]
        %v7745 = vld [vmem:[%s4 + $0x408] sm:$0xff]
        %v7746 = vld [vmem:[%s4 + $0x410] sm:$0xff]
        %v7747 = vld [vmem:[%s4 + $0x418] sm:$0xff]
        %v7748 = vld [vmem:[%s4 + $0x420] sm:$0xff]
        %v7749 = vld [vmem:[%s4 + $0x428] sm:$0xff]
        %v7750 = vld [vmem:[%s4 + $0x430] sm:$0xff]
        %v7751 = vld [vmem:[%s4 + $0x438] sm:$0xff]
        %v7752 = vld [vmem:[%s4 + $0x440] sm:$0xff]
        %v7753 = vld [vmem:[%s4 + $0x448] sm:$0xff]
        %v7754 = vld [vmem:[%s4 + $0x450] sm:$0xff]
        %v7755 = vld [vmem:[%s4 + $0x458] sm:$0xff]
        %v7756 = vld [vmem:[%s4 + $0x460] sm:$0xff]
        %v7757 = vld [vmem:[%s4 + $0x468] sm:$0xff]
        %v7758 = vld [vmem:[%s4 + $0x470] sm:$0xff]
        %v7759 = vld [vmem:[%s4 + $0x478] sm:$0xff]
        %v7800 = vunpack.c.l.b16 %v7576
        %v7801 = vunpack.c.h.b16 %v7576
        %v7802 = vunpack.c.l.b16 %v7577
        %v7803 = vunpack.c.h.b16 %v7577
        %v7804 = vunpack.c.l.b16 %v7578
        %v7805 = vunpack.c.h.b16 %v7578
        %v7806 = vunpack.c.l.b16 %v7579
        %v7807 = vunpack.c.h.b16 %v7579
        %v7808 = vunpack.c.l.b16 %v7580
        %v7809 = vunpack.c.l.b16 %v7581
        %v7810 = vunpack.c.h.b16 %v7581
        %v7811 = vunpack.c.l.b16 %v7582
        %v7812 = vunpack.c.h.b16 %v7582
        %v7813 = vunpack.c.l.b16 %v7583
        %v7814 = vunpack.c.h.b16 %v7583
        %v7815 = vunpack.c.l.b16 %v7584
        %v7816 = vunpack.c.h.b16 %v7584
        %v7817 = vunpack.c.l.b16 %v7585
        %v7818 = vunpack.c.l.b16 %v7586
        %v7819 = vunpack.c.h.b16 %v7586
        %v7820 = vunpack.c.l.b16 %v7587
        %v7821 = vunpack.c.h.b16 %v7587
        %v7822 = vunpack.c.l.b16 %v7588
        %v7823 = vunpack.c.h.b16 %v7588
        %v7824 = vunpack.c.l.b16 %v7589
        %v7825 = vunpack.c.h.b16 %v7589
        %v7826 = vunpack.c.l.b16 %v7590
        %v7827 = vunpack.c.l.b16 %v7591
        %v7828 = vunpack.c.h.b16 %v7591
        %v7829 = vunpack.c.l.b16 %v7592
        %v7830 = vunpack.c.h.b16 %v7592
        %v7831 = vunpack.c.l.b16 %v7593
        %v7832 = vunpack.c.h.b16 %v7593
        %v7833 = vunpack.c.l.b16 %v7594
        %v7834 = vunpack.c.h.b16 %v7594
        %v7835 = vunpack.c.l.b16 %v7595
        %v7836 = vunpack.c.l.b16 %v7596
        %v7837 = vunpack.c.h.b16 %v7596
        %v7838 = vunpack.c.l.b16 %v7597
        %v7839 = vunpack.c.h.b16 %v7597
        %v7840 = vunpack.c.l.b16 %v7598
        %v7841 = vunpack.c.h.b16 %v7598
        %v7842 = vunpack.c.l.b16 %v7599
        %v7843 = vunpack.c.h.b16 %v7599
        %v7844 = vunpack.c.l.b16 %v7600
        %v7845 = vunpack.c.l.b16 %v7601
        %v7846 = vunpack.c.h.b16 %v7601
        %v7847 = vunpack.c.l.b16 %v7602
        %v7848 = vunpack.c.h.b16 %v7602
        %v7849 = vunpack.c.l.b16 %v7603
        %v7850 = vunpack.c.h.b16 %v7603
        %v7851 = vunpack.c.l.b16 %v7604
        %v7852 = vunpack.c.h.b16 %v7604
        %v7853 = vunpack.c.l.b16 %v7605
        %v7854 = vunpack.c.l.b16 %v7606
        %v7855 = vunpack.c.h.b16 %v7606
        %v7856 = vunpack.c.l.b16 %v7607
        %v7857 = vunpack.c.h.b16 %v7607
        %v7858 = vunpack.c.l.b16 %v7608
        %v7859 = vunpack.c.h.b16 %v7608
        %v7860 = vunpack.c.l.b16 %v7609
        %v7861 = vunpack.c.h.b16 %v7609
        %v7862 = vunpack.c.l.b16 %v7610
        %v7863 = vunpack.c.l.b16 %v7611
        %v7864 = vunpack.c.h.b16 %v7611
        %v7865 = vunpack.c.l.b16 %v7612
        %v7866 = vunpack.c.h.b16 %v7612
        %v7867 = vunpack.c.l.b16 %v7613
        %v7868 = vunpack.c.h.b16 %v7613
        %v7869 = vunpack.c.l.b16 %v7614
        %v7870 = vunpack.c.h.b16 %v7614
        %v7871 = vunpack.c.l.b16 %v7615
        %v7872 = vpack.c.b16 %v7809, %v7800
        %v7873 = vpack.c.b16 %v7810, %v7801
        %v7874 = vpack.c.b16 %v7811, %v7802
        %v7875 = vpack.c.b16 %v7812, %v7803
        %v7876 = vpack.c.b16 %v7813, %v7804
        %v7877 = vpack.c.b16 %v7814, %v7805
        %v7878 = vpack.c.b16 %v7815, %v7806
        %v7879 = vpack.c.b16 %v7816, %v7807
        %v7880 = vpack.c.b16 %v7817, %v7808
        %v7881 = vpack.c.b16 %v7827, %v7818
        %v7882 = vpack.c.b16 %v7828, %v7819
        %v7883 = vpack.c.b16 %v7829, %v7820
        %v7884 = vpack.c.b16 %v7830, %v7821
        %v7885 = vpack.c.b16 %v7831, %v7822
        %v7886 = vpack.c.b16 %v7832, %v7823
        %v7887 = vpack.c.b16 %v7833, %v7824
        %v7888 = vpack.c.b16 %v7834, %v7825
        %v7889 = vpack.c.b16 %v7835, %v7826
        %v7890 = vpack.c.b16 %v7845, %v7836
        %v7891 = vpack.c.b16 %v7846, %v7837
        %v7892 = vpack.c.b16 %v7847, %v7838
        %v7893 = vpack.c.b16 %v7848, %v7839
        %v7894 = vpack.c.b16 %v7849, %v7840
        %v7895 = vpack.c.b16 %v7850, %v7841
        %v7896 = vpack.c.b16 %v7851, %v7842
        %v7897 = vpack.c.b16 %v7852, %v7843
        %v7898 = vpack.c.b16 %v7853, %v7844
        %v7899 = vpack.c.b16 %v7863, %v7854
        %v7900 = vpack.c.b16 %v7864, %v7855
        %v7901 = vpack.c.b16 %v7865, %v7856
        %v7902 = vpack.c.b16 %v7866, %v7857
        %v7903 = vpack.c.b16 %v7867, %v7858
        %v7904 = vpack.c.b16 %v7868, %v7859
        %v7905 = vpack.c.b16 %v7869, %v7860
        %v7906 = vpack.c.b16 %v7870, %v7861
        %v7907 = vpack.c.b16 %v7871, %v7862
        %v8088 = vunpack.c.l.b16 %v7616
        %v8089 = vunpack.c.h.b16 %v7616
        %v8090 = vunpack.c.l.b16 %v7617
        %v8091 = vunpack.c.h.b16 %v7617
        %v8092 = vunpack.c.l.b16 %v7618
        %v8093 = vunpack.c.h.b16 %v7618
        %v8094 = vunpack.c.l.b16 %v7619
        %v8095 = vunpack.c.h.b16 %v7619
        %v8096 = vunpack.c.l.b16 %v7620
        %v8097 = vunpack.c.h.b16 %v7620
        %v8098 = vunpack.c.l.b16 %v7621
        %v8099 = vunpack.c.h.b16 %v7621
        %v8100 = vunpack.c.l.b16 %v7622
        %v8101 = vunpack.c.h.b16 %v7622
        %v8102 = vunpack.c.l.b16 %v7623
        %v8103 = vunpack.c.h.b16 %v7623
        %v8104 = vunpack.c.l.b16 %v7624
        %v8105 = vunpack.c.h.b16 %v7624
        %v8106 = vunpack.c.l.b16 %v7625
        %v8107 = vunpack.c.h.b16 %v7625
        %v8108 = vunpack.c.l.b16 %v7626
        %v8109 = vunpack.c.h.b16 %v7626
        %v8110 = vunpack.c.l.b16 %v7627
        %v8111 = vunpack.c.h.b16 %v7627
        %v8112 = vunpack.c.l.b16 %v7628
        %v8113 = vunpack.c.h.b16 %v7628
        %v8114 = vunpack.c.l.b16 %v7629
        %v8115 = vunpack.c.h.b16 %v7629
        %v8116 = vunpack.c.l.b16 %v7630
        %v8117 = vunpack.c.h.b16 %v7630
        %v8118 = vunpack.c.l.b16 %v7631
        %v8119 = vunpack.c.h.b16 %v7631
        %v8120 = vunpack.c.l.b16 %v7632
        %v8121 = vunpack.c.h.b16 %v7632
        %v8122 = vunpack.c.l.b16 %v7633
        %v8123 = vunpack.c.h.b16 %v7633
        %v8124 = vunpack.c.l.b16 %v7634
        %v8125 = vunpack.c.h.b16 %v7634
        %v8126 = vunpack.c.l.b16 %v7635
        %v8127 = vunpack.c.h.b16 %v7635
        %v8128 = vunpack.c.l.b16 %v7636
        %v8129 = vunpack.c.h.b16 %v7636
        %v8130 = vunpack.c.l.b16 %v7637
        %v8131 = vunpack.c.h.b16 %v7637
        %v8132 = vunpack.c.l.b16 %v7638
        %v8133 = vunpack.c.h.b16 %v7638
        %v8134 = vunpack.c.l.b16 %v7639
        %v8135 = vunpack.c.h.b16 %v7639
        %v8136 = vunpack.c.l.b16 %v7640
        %v8137 = vunpack.c.h.b16 %v7640
        %v8138 = vunpack.c.l.b16 %v7641
        %v8139 = vunpack.c.h.b16 %v7641
        %v8140 = vunpack.c.l.b16 %v7642
        %v8141 = vunpack.c.h.b16 %v7642
        %v8142 = vunpack.c.l.b16 %v7643
        %v8143 = vunpack.c.h.b16 %v7643
        %v8144 = vunpack.c.l.b16 %v7644
        %v8145 = vunpack.c.h.b16 %v7644
        %v8146 = vunpack.c.l.b16 %v7645
        %v8147 = vunpack.c.h.b16 %v7645
        %v8148 = vunpack.c.l.b16 %v7646
        %v8149 = vunpack.c.h.b16 %v7646
        %v8150 = vunpack.c.l.b16 %v7647
        %v8151 = vunpack.c.h.b16 %v7647
        %v8152 = vunpack.c.l.b16 %v7648
        %v8153 = vunpack.c.h.b16 %v7648
        %v8154 = vunpack.c.l.b16 %v7649
        %v8155 = vunpack.c.h.b16 %v7649
        %v8156 = vunpack.c.l.b16 %v7650
        %v8157 = vunpack.c.h.b16 %v7650
        %v8158 = vunpack.c.l.b16 %v7651
        %v8159 = vunpack.c.h.b16 %v7651
        %v8160 = vunpack.c.l.b16 %v7652
        %v8161 = vunpack.c.h.b16 %v7652
        %v8162 = vunpack.c.l.b16 %v7653
        %v8163 = vunpack.c.h.b16 %v7653
        %v8164 = vunpack.c.l.b16 %v7654
        %v8165 = vunpack.c.h.b16 %v7654
        %v8166 = vunpack.c.l.b16 %v7655
        %v8167 = vunpack.c.h.b16 %v7655
        %v8168 = vunpack.c.l.b16 %v7656
        %v8169 = vunpack.c.h.b16 %v7656
        %v8170 = vunpack.c.l.b16 %v7657
        %v8171 = vunpack.c.h.b16 %v7657
        %v8172 = vunpack.c.l.b16 %v7658
        %v8173 = vunpack.c.h.b16 %v7658
        %v8174 = vunpack.c.l.b16 %v7659
        %v8175 = vunpack.c.h.b16 %v7659
        %v8176 = vunpack.c.l.b16 %v7660
        %v8177 = vunpack.c.h.b16 %v7660
        %v8178 = vunpack.c.l.b16 %v7661
        %v8179 = vunpack.c.h.b16 %v7661
        %v8180 = vunpack.c.l.b16 %v7662
        %v8181 = vunpack.c.h.b16 %v7662
        %v8182 = vunpack.c.l.b16 %v7663
        %v8183 = vunpack.c.h.b16 %v7663
        %v8184 = vunpack.c.l.b16 %v7664
        %v8185 = vunpack.c.h.b16 %v7664
        %v8186 = vunpack.c.l.b16 %v7665
        %v8187 = vunpack.c.h.b16 %v7665
        %v8188 = vunpack.c.l.b16 %v7666
        %v8189 = vunpack.c.h.b16 %v7666
        %v8190 = vunpack.c.l.b16 %v7667
        %v8191 = vunpack.c.h.b16 %v7667
        %v8192 = vunpack.c.l.b16 %v7668
        %v8193 = vunpack.c.h.b16 %v7668
        %v8194 = vunpack.c.l.b16 %v7669
        %v8195 = vunpack.c.h.b16 %v7669
        %v8196 = vunpack.c.l.b16 %v7670
        %v8197 = vunpack.c.h.b16 %v7670
        %v8198 = vunpack.c.l.b16 %v7671
        %v8199 = vunpack.c.h.b16 %v7671
        %v8200 = vunpack.c.l.b16 %v7672
        %v8201 = vunpack.c.h.b16 %v7672
        %v8202 = vunpack.c.l.b16 %v7673
        %v8203 = vunpack.c.h.b16 %v7673
        %v8204 = vunpack.c.l.b16 %v7674
        %v8205 = vunpack.c.h.b16 %v7674
        %v8206 = vunpack.c.l.b16 %v7675
        %v8207 = vunpack.c.h.b16 %v7675
        %v8208 = vunpack.c.l.b16 %v7676
        %v8209 = vunpack.c.h.b16 %v7676
        %v8210 = vunpack.c.l.b16 %v7677
        %v8211 = vunpack.c.h.b16 %v7677
        %v8212 = vunpack.c.l.b16 %v7678
        %v8213 = vunpack.c.h.b16 %v7678
        %v8214 = vunpack.c.l.b16 %v7679
        %v8215 = vunpack.c.h.b16 %v7679
        %v8216 = vunpack.c.l.b16 %v7680
        %v8217 = vunpack.c.h.b16 %v7680
        %v8218 = vunpack.c.l.b16 %v7681
        %v8219 = vunpack.c.h.b16 %v7681
        %v8220 = vunpack.c.l.b16 %v7682
        %v8221 = vunpack.c.h.b16 %v7682
        %v8222 = vunpack.c.l.b16 %v7683
        %v8223 = vunpack.c.h.b16 %v7683
        %v8224 = vunpack.c.l.b16 %v7684
        %v8225 = vunpack.c.h.b16 %v7684
        %v8226 = vunpack.c.l.b16 %v7685
        %v8227 = vunpack.c.h.b16 %v7685
        %v8228 = vunpack.c.l.b16 %v7686
        %v8229 = vunpack.c.h.b16 %v7686
        %v8230 = vunpack.c.l.b16 %v7687
        %v8231 = vunpack.c.h.b16 %v7687
        %v8232 = vunpack.c.l.b16 %v7688
        %v8233 = vunpack.c.h.b16 %v7688
        %v8234 = vunpack.c.l.b16 %v7689
        %v8235 = vunpack.c.h.b16 %v7689
        %v8236 = vunpack.c.l.b16 %v7690
        %v8237 = vunpack.c.h.b16 %v7690
        %v8238 = vunpack.c.l.b16 %v7691
        %v8239 = vunpack.c.h.b16 %v7691
        %v8240 = vunpack.c.l.b16 %v7692
        %v8241 = vunpack.c.h.b16 %v7692
        %v8242 = vunpack.c.l.b16 %v7693
        %v8243 = vunpack.c.h.b16 %v7693
        %v8244 = vunpack.c.l.b16 %v7694
        %v8245 = vunpack.c.h.b16 %v7694
        %v8246 = vunpack.c.l.b16 %v7695
        %v8247 = vunpack.c.h.b16 %v7695
        %v8248 = vunpack.c.l.b16 %v7696
        %v8249 = vunpack.c.h.b16 %v7696
        %v8250 = vunpack.c.l.b16 %v7697
        %v8251 = vunpack.c.h.b16 %v7697
        %v8252 = vunpack.c.l.b16 %v7698
        %v8253 = vunpack.c.h.b16 %v7698
        %v8254 = vunpack.c.l.b16 %v7699
        %v8255 = vunpack.c.h.b16 %v7699
        %v8256 = vunpack.c.l.b16 %v7700
        %v8257 = vunpack.c.h.b16 %v7700
        %v8258 = vunpack.c.l.b16 %v7701
        %v8259 = vunpack.c.h.b16 %v7701
        %v8260 = vunpack.c.l.b16 %v7702
        %v8261 = vunpack.c.h.b16 %v7702
        %v8262 = vunpack.c.l.b16 %v7703
        %v8263 = vunpack.c.h.b16 %v7703
        %v8264 = vunpack.c.l.b16 %v7704
        %v8265 = vunpack.c.h.b16 %v7704
        %v8266 = vunpack.c.l.b16 %v7705
        %v8267 = vunpack.c.h.b16 %v7705
        %v8268 = vunpack.c.l.b16 %v7706
        %v8269 = vunpack.c.h.b16 %v7706
        %v8270 = vunpack.c.l.b16 %v7707
        %v8271 = vunpack.c.h.b16 %v7707
        %v8272 = vunpack.c.l.b16 %v7708
        %v8273 = vunpack.c.h.b16 %v7708
        %v8274 = vunpack.c.l.b16 %v7709
        %v8275 = vunpack.c.h.b16 %v7709
        %v8276 = vunpack.c.l.b16 %v7710
        %v8277 = vunpack.c.h.b16 %v7710
        %v8278 = vunpack.c.l.b16 %v7711
        %v8279 = vunpack.c.h.b16 %v7711
        %v8280 = vunpack.c.l.b16 %v7712
        %v8281 = vunpack.c.h.b16 %v7712
        %v8282 = vunpack.c.l.b16 %v7713
        %v8283 = vunpack.c.h.b16 %v7713
        %v8284 = vunpack.c.l.b16 %v7714
        %v8285 = vunpack.c.h.b16 %v7714
        %v8286 = vunpack.c.l.b16 %v7715
        %v8287 = vunpack.c.h.b16 %v7715
        %v8288 = vunpack.c.l.b16 %v7716
        %v8289 = vunpack.c.h.b16 %v7716
        %v8290 = vunpack.c.l.b16 %v7717
        %v8291 = vunpack.c.h.b16 %v7717
        %v8292 = vunpack.c.l.b16 %v7718
        %v8293 = vunpack.c.h.b16 %v7718
        %v8294 = vunpack.c.l.b16 %v7719
        %v8295 = vunpack.c.h.b16 %v7719
        %v8296 = vunpack.c.l.b16 %v7720
        %v8297 = vunpack.c.h.b16 %v7720
        %v8298 = vunpack.c.l.b16 %v7721
        %v8299 = vunpack.c.h.b16 %v7721
        %v8300 = vunpack.c.l.b16 %v7722
        %v8301 = vunpack.c.h.b16 %v7722
        %v8302 = vunpack.c.l.b16 %v7723
        %v8303 = vunpack.c.h.b16 %v7723
        %v8304 = vunpack.c.l.b16 %v7724
        %v8305 = vunpack.c.h.b16 %v7724
        %v8306 = vunpack.c.l.b16 %v7725
        %v8307 = vunpack.c.h.b16 %v7725
        %v8308 = vunpack.c.l.b16 %v7726
        %v8309 = vunpack.c.h.b16 %v7726
        %v8310 = vunpack.c.l.b16 %v7727
        %v8311 = vunpack.c.h.b16 %v7727
        %v8312 = vunpack.c.l.b16 %v7728
        %v8313 = vunpack.c.h.b16 %v7728
        %v8314 = vunpack.c.l.b16 %v7729
        %v8315 = vunpack.c.h.b16 %v7729
        %v8316 = vunpack.c.l.b16 %v7730
        %v8317 = vunpack.c.h.b16 %v7730
        %v8318 = vunpack.c.l.b16 %v7731
        %v8319 = vunpack.c.h.b16 %v7731
        %v8320 = vunpack.c.l.b16 %v7732
        %v8321 = vunpack.c.h.b16 %v7732
        %v8322 = vunpack.c.l.b16 %v7733
        %v8323 = vunpack.c.h.b16 %v7733
        %v8324 = vunpack.c.l.b16 %v7734
        %v8325 = vunpack.c.h.b16 %v7734
        %v8326 = vunpack.c.l.b16 %v7735
        %v8327 = vunpack.c.h.b16 %v7735
        %v8328 = vunpack.c.l.b16 %v7736
        %v8329 = vunpack.c.h.b16 %v7736
        %v8330 = vunpack.c.l.b16 %v7737
        %v8331 = vunpack.c.h.b16 %v7737
        %v8332 = vunpack.c.l.b16 %v7738
        %v8333 = vunpack.c.h.b16 %v7738
        %v8334 = vunpack.c.l.b16 %v7739
        %v8335 = vunpack.c.h.b16 %v7739
        %v8336 = vunpack.c.l.b16 %v7740
        %v8337 = vunpack.c.h.b16 %v7740
        %v8338 = vunpack.c.l.b16 %v7741
        %v8339 = vunpack.c.h.b16 %v7741
        %v8340 = vunpack.c.l.b16 %v7742
        %v8341 = vunpack.c.h.b16 %v7742
        %v8342 = vunpack.c.l.b16 %v7743
        %v8343 = vunpack.c.h.b16 %v7743
        %v8344 = vunpack.c.l.b16 %v7744
        %v8345 = vunpack.c.h.b16 %v7744
        %v8346 = vunpack.c.l.b16 %v7745
        %v8347 = vunpack.c.h.b16 %v7745
        %v8348 = vunpack.c.l.b16 %v7746
        %v8349 = vunpack.c.h.b16 %v7746
        %v8350 = vunpack.c.l.b16 %v7747
        %v8351 = vunpack.c.h.b16 %v7747
        %v8352 = vunpack.c.l.b16 %v7748
        %v8353 = vunpack.c.h.b16 %v7748
        %v8354 = vunpack.c.l.b16 %v7749
        %v8355 = vunpack.c.h.b16 %v7749
        %v8356 = vunpack.c.l.b16 %v7750
        %v8357 = vunpack.c.h.b16 %v7750
        %v8358 = vunpack.c.l.b16 %v7751
        %v8359 = vunpack.c.h.b16 %v7751
        %v8360 = vunpack.c.l.b16 %v7752
        %v8361 = vunpack.c.h.b16 %v7752
        %v8362 = vunpack.c.l.b16 %v7753
        %v8363 = vunpack.c.h.b16 %v7753
        %v8364 = vunpack.c.l.b16 %v7754
        %v8365 = vunpack.c.h.b16 %v7754
        %v8366 = vunpack.c.l.b16 %v7755
        %v8367 = vunpack.c.h.b16 %v7755
        %v8368 = vunpack.c.l.b16 %v7756
        %v8369 = vunpack.c.h.b16 %v7756
        %v8370 = vunpack.c.l.b16 %v7757
        %v8371 = vunpack.c.h.b16 %v7757
        %v8372 = vunpack.c.l.b16 %v7758
        %v8373 = vunpack.c.h.b16 %v7758
        %v8374 = vunpack.c.l.b16 %v7759
        %v8375 = vunpack.c.h.b16 %v7759
        %v8376 = vpack.c.b16 %v8090, %v8088
        %v8377 = vpack.c.b16 %v8091, %v8089
        %v8378 = vpack.c.b16 %v8094, %v8092
        %v8379 = vpack.c.b16 %v8095, %v8093
        %v8380 = vpack.c.b16 %v8098, %v8096
        %v8381 = vpack.c.b16 %v8099, %v8097
        %v8382 = vpack.c.b16 %v8102, %v8100
        %v8383 = vpack.c.b16 %v8103, %v8101
        %v8384 = vpack.c.b16 %v8106, %v8104
        %v8385 = vpack.c.b16 %v8107, %v8105
        %v8386 = vpack.c.b16 %v8110, %v8108
        %v8387 = vpack.c.b16 %v8111, %v8109
        %v8388 = vpack.c.b16 %v8114, %v8112
        %v8389 = vpack.c.b16 %v8115, %v8113
        %v8390 = vpack.c.b16 %v8118, %v8116
        %v8391 = vpack.c.b16 %v8119, %v8117
        %v8392 = vpack.c.b16 %v8122, %v8120
        %v8393 = vpack.c.b16 %v8123, %v8121
        %v8394 = vpack.c.b16 %v8126, %v8124
        %v8395 = vpack.c.b16 %v8127, %v8125
        %v8396 = vpack.c.b16 %v8130, %v8128
        %v8397 = vpack.c.b16 %v8131, %v8129
        %v8398 = vpack.c.b16 %v8134, %v8132
        %v8399 = vpack.c.b16 %v8135, %v8133
        %v8400 = vpack.c.b16 %v8138, %v8136
        %v8401 = vpack.c.b16 %v8139, %v8137
        %v8402 = vpack.c.b16 %v8142, %v8140
        %v8403 = vpack.c.b16 %v8143, %v8141
        %v8404 = vpack.c.b16 %v8146, %v8144
        %v8405 = vpack.c.b16 %v8147, %v8145
        %v8406 = vpack.c.b16 %v8150, %v8148
        %v8407 = vpack.c.b16 %v8151, %v8149
        %v8408 = vpack.c.b16 %v8154, %v8152
        %v8409 = vpack.c.b16 %v8155, %v8153
        %v8410 = vpack.c.b16 %v8158, %v8156
        %v8411 = vpack.c.b16 %v8159, %v8157
        %v8412 = vpack.c.b16 %v8162, %v8160
        %v8413 = vpack.c.b16 %v8163, %v8161
        %v8414 = vpack.c.b16 %v8166, %v8164
        %v8415 = vpack.c.b16 %v8167, %v8165
        %v8416 = vpack.c.b16 %v8170, %v8168
        %v8417 = vpack.c.b16 %v8171, %v8169
        %v8418 = vpack.c.b16 %v8174, %v8172
        %v8419 = vpack.c.b16 %v8175, %v8173
        %v8420 = vpack.c.b16 %v8178, %v8176
        %v8421 = vpack.c.b16 %v8179, %v8177
        %v8422 = vpack.c.b16 %v8182, %v8180
        %v8423 = vpack.c.b16 %v8183, %v8181
        %v8424 = vpack.c.b16 %v8186, %v8184
        %v8425 = vpack.c.b16 %v8187, %v8185
        %v8426 = vpack.c.b16 %v8190, %v8188
        %v8427 = vpack.c.b16 %v8191, %v8189
        %v8428 = vpack.c.b16 %v8194, %v8192
        %v8429 = vpack.c.b16 %v8195, %v8193
        %v8430 = vpack.c.b16 %v8198, %v8196
        %v8431 = vpack.c.b16 %v8199, %v8197
        %v8432 = vpack.c.b16 %v8202, %v8200
        %v8433 = vpack.c.b16 %v8203, %v8201
        %v8434 = vpack.c.b16 %v8206, %v8204
        %v8435 = vpack.c.b16 %v8207, %v8205
        %v8436 = vpack.c.b16 %v8210, %v8208
        %v8437 = vpack.c.b16 %v8211, %v8209
        %v8438 = vpack.c.b16 %v8214, %v8212
        %v8439 = vpack.c.b16 %v8215, %v8213
        %v8440 = vpack.c.b16 %v8218, %v8216
        %v8441 = vpack.c.b16 %v8219, %v8217
        %v8442 = vpack.c.b16 %v8222, %v8220
        %v8443 = vpack.c.b16 %v8223, %v8221
        %v8444 = vpack.c.b16 %v8226, %v8224
        %v8445 = vpack.c.b16 %v8227, %v8225
        %v8446 = vpack.c.b16 %v8230, %v8228
        %v8447 = vpack.c.b16 %v8231, %v8229
        %v8448 = vpack.c.b16 %v8234, %v8232
        %v8449 = vpack.c.b16 %v8235, %v8233
        %v8450 = vpack.c.b16 %v8238, %v8236
        %v8451 = vpack.c.b16 %v8239, %v8237
        %v8452 = vpack.c.b16 %v8242, %v8240
        %v8453 = vpack.c.b16 %v8243, %v8241
        %v8454 = vpack.c.b16 %v8246, %v8244
        %v8455 = vpack.c.b16 %v8247, %v8245
        %v8456 = vpack.c.b16 %v8250, %v8248
        %v8457 = vpack.c.b16 %v8251, %v8249
        %v8458 = vpack.c.b16 %v8254, %v8252
        %v8459 = vpack.c.b16 %v8255, %v8253
        %v8460 = vpack.c.b16 %v8258, %v8256
        %v8461 = vpack.c.b16 %v8259, %v8257
        %v8462 = vpack.c.b16 %v8262, %v8260
        %v8463 = vpack.c.b16 %v8263, %v8261
        %v8464 = vpack.c.b16 %v8266, %v8264
        %v8465 = vpack.c.b16 %v8267, %v8265
        %v8466 = vpack.c.b16 %v8270, %v8268
        %v8467 = vpack.c.b16 %v8271, %v8269
        %v8468 = vpack.c.b16 %v8274, %v8272
        %v8469 = vpack.c.b16 %v8275, %v8273
        %v8470 = vpack.c.b16 %v8278, %v8276
        %v8471 = vpack.c.b16 %v8279, %v8277
        %v8472 = vpack.c.b16 %v8282, %v8280
        %v8473 = vpack.c.b16 %v8283, %v8281
        %v8474 = vpack.c.b16 %v8286, %v8284
        %v8475 = vpack.c.b16 %v8287, %v8285
        %v8476 = vpack.c.b16 %v8290, %v8288
        %v8477 = vpack.c.b16 %v8291, %v8289
        %v8478 = vpack.c.b16 %v8294, %v8292
        %v8479 = vpack.c.b16 %v8295, %v8293
        %v8480 = vpack.c.b16 %v8298, %v8296
        %v8481 = vpack.c.b16 %v8299, %v8297
        %v8482 = vpack.c.b16 %v8302, %v8300
        %v8483 = vpack.c.b16 %v8303, %v8301
        %v8484 = vpack.c.b16 %v8306, %v8304
        %v8485 = vpack.c.b16 %v8307, %v8305
        %v8486 = vpack.c.b16 %v8310, %v8308
        %v8487 = vpack.c.b16 %v8311, %v8309
        %v8488 = vpack.c.b16 %v8314, %v8312
        %v8489 = vpack.c.b16 %v8315, %v8313
        %v8490 = vpack.c.b16 %v8318, %v8316
        %v8491 = vpack.c.b16 %v8319, %v8317
        %v8492 = vpack.c.b16 %v8322, %v8320
        %v8493 = vpack.c.b16 %v8323, %v8321
        %v8494 = vpack.c.b16 %v8326, %v8324
        %v8495 = vpack.c.b16 %v8327, %v8325
        %v8496 = vpack.c.b16 %v8330, %v8328
        %v8497 = vpack.c.b16 %v8331, %v8329
        %v8498 = vpack.c.b16 %v8334, %v8332
        %v8499 = vpack.c.b16 %v8335, %v8333
        %v8500 = vpack.c.b16 %v8338, %v8336
        %v8501 = vpack.c.b16 %v8339, %v8337
        %v8502 = vpack.c.b16 %v8342, %v8340
        %v8503 = vpack.c.b16 %v8343, %v8341
        %v8504 = vpack.c.b16 %v8346, %v8344
        %v8505 = vpack.c.b16 %v8347, %v8345
        %v8506 = vpack.c.b16 %v8350, %v8348
        %v8507 = vpack.c.b16 %v8351, %v8349
        %v8508 = vpack.c.b16 %v8354, %v8352
        %v8509 = vpack.c.b16 %v8355, %v8353
        %v8510 = vpack.c.b16 %v8358, %v8356
        %v8511 = vpack.c.b16 %v8359, %v8357
        %v8512 = vpack.c.b16 %v8362, %v8360
        %v8513 = vpack.c.b16 %v8363, %v8361
        %v8514 = vpack.c.b16 %v8366, %v8364
        %v8515 = vpack.c.b16 %v8367, %v8365
        %v8516 = vpack.c.b16 %v8370, %v8368
        %v8517 = vpack.c.b16 %v8371, %v8369
        %v8518 = vpack.c.b16 %v8374, %v8372
        %v8519 = vpack.c.b16 %v8375, %v8373
        %8664 = vmatpush.bf16.msra.mxu0 %v8390
        %8665 = vmatpush.bf16.msra.mxu0 %v8388
        %8666 = vmatpush.bf16.msra.mxu0 %v8386
        %8667 = vmatpush.bf16.msra.mxu0 %v8384
        %8668 = vmatpush.bf16.msra.mxu0 %v8382
        %8669 = vmatpush.bf16.msra.mxu0 %v8380
        %8670 = vmatpush.bf16.msra.mxu0 %v8378
        %8671 = vmatpush.bf16.msra.mxu0 %v8376
        %8672 = vmatmul.bf16.gmra.mxu0 %v7872
        %v8673 = vpop.f32.mrf.mxu0
        %v8674 = vadd.f32 0.0, %v8673
        %v8675 = vpop.f32.mrf.mxu0
        %v8676 = vadd.f32 0.0, %v8675
        %8677 = vmatmul.bf16.gmra.mxu0 %v7881
        %v8678 = vpop.f32.mrf.mxu0
        %v8679 = vadd.f32 0.0, %v8678
        %v8680 = vpop.f32.mrf.mxu0
        %v8681 = vadd.f32 0.0, %v8680
        %8682 = vmatmul.bf16.gmra.mxu0 %v7890
        %v8683 = vpop.f32.mrf.mxu0
        %v8684 = vadd.f32 0.0, %v8683
        %v8685 = vpop.f32.mrf.mxu0
        %v8686 = vadd.f32 0.0, %v8685
        %8687 = vmatmul.bf16.gmra.mxu0 %v7899
        %v8688 = vpop.f32.mrf.mxu0
        %v8689 = vadd.f32 0.0, %v8688
        %v8690 = vpop.f32.mrf.mxu0
        %v8691 = vadd.f32 0.0, %v8690
        %8692 = vdwg.mxu0
        %8693 = vmatpush.bf16.msra.mxu0 %v8406
        %8694 = vmatpush.bf16.msra.mxu0 %v8404
        %8695 = vmatpush.bf16.msra.mxu0 %v8402
        %8696 = vmatpush.bf16.msra.mxu0 %v8400
        %8697 = vmatpush.bf16.msra.mxu0 %v8398
        %8698 = vmatpush.bf16.msra.mxu0 %v8396
        %8699 = vmatpush.bf16.msra.mxu0 %v8394
        %8700 = vmatpush.bf16.msra.mxu0 %v8392
        %8701 = vmatmul.bf16.gmra.mxu0 %v7873
        %v8702 = vpop.f32.mrf.mxu0
        %v8703 = vadd.f32 %v8674, %v8702
        %v8704 = vpop.f32.mrf.mxu0
        %v8705 = vadd.f32 %v8676, %v8704
        %8706 = vmatmul.bf16.gmra.mxu0 %v7882
        %v8707 = vpop.f32.mrf.mxu0
        %v8708 = vadd.f32 %v8679, %v8707
        %v8709 = vpop.f32.mrf.mxu0
        %v8710 = vadd.f32 %v8681, %v8709
        %8711 = vmatmul.bf16.gmra.mxu0 %v7891
        %v8712 = vpop.f32.mrf.mxu0
        %v8713 = vadd.f32 %v8684, %v8712
        %v8714 = vpop.f32.mrf.mxu0
        %v8715 = vadd.f32 %v8686, %v8714
        %8716 = vmatmul.bf16.gmra.mxu0 %v7900
        %v8717 = vpop.f32.mrf.mxu0
        %v8718 = vadd.f32 %v8689, %v8717
        %v8719 = vpop.f32.mrf.mxu0
        %v8720 = vadd.f32 %v8691, %v8719
        %8721 = vdwg.mxu0
        %8722 = vmatpush.bf16.msra.mxu0 %v8422
        %8723 = vmatpush.bf16.msra.mxu0 %v8420
        %8724 = vmatpush.bf16.msra.mxu0 %v8418
        %8725 = vmatpush.bf16.msra.mxu0 %v8416
        %8726 = vmatpush.bf16.msra.mxu0 %v8414
        %8727 = vmatpush.bf16.msra.mxu0 %v8412
        %8728 = vmatpush.bf16.msra.mxu0 %v8410
        %8729 = vmatpush.bf16.msra.mxu0 %v8408
        %8730 = vmatmul.bf16.gmra.mxu0 %v7874
        %v8731 = vpop.f32.mrf.mxu0
        %v8732 = vadd.f32 %v8703, %v8731
        %v8733 = vpop.f32.mrf.mxu0
        %v8734 = vadd.f32 %v8705, %v8733
        %8735 = vmatmul.bf16.gmra.mxu0 %v7883
        %v8736 = vpop.f32.mrf.mxu0
        %v8737 = vadd.f32 %v8708, %v8736
        %v8738 = vpop.f32.mrf.mxu0
        %v8739 = vadd.f32 %v8710, %v8738
        %8740 = vmatmul.bf16.gmra.mxu0 %v7892
        %v8741 = vpop.f32.mrf.mxu0
        %v8742 = vadd.f32 %v8713, %v8741
        %v8743 = vpop.f32.mrf.mxu0
        %v8744 = vadd.f32 %v8715, %v8743
        %8745 = vmatmul.bf16.gmra.mxu0 %v7901
        %v8746 = vpop.f32.mrf.mxu0
        %v8747 = vadd.f32 %v8718, %v8746
        %v8748 = vpop.f32.mrf.mxu0
        %v8749 = vadd.f32 %v8720, %v8748
        %8750 = vdwg.mxu0
        %8751 = vmatpush.bf16.msra.mxu0 %v8438
        %8752 = vmatpush.bf16.msra.mxu0 %v8436
        %8753 = vmatpush.bf16.msra.mxu0 %v8434
        %8754 = vmatpush.bf16.msra.mxu0 %v8432
        %8755 = vmatpush.bf16.msra.mxu0 %v8430
        %8756 = vmatpush.bf16.msra.mxu0 %v8428
        %8757 = vmatpush.bf16.msra.mxu0 %v8426
        %8758 = vmatpush.bf16.msra.mxu0 %v8424
        %8759 = vmatmul.bf16.gmra.mxu0 %v7875
        %v8760 = vpop.f32.mrf.mxu0
        %v8761 = vadd.f32 %v8732, %v8760
        %v8762 = vpop.f32.mrf.mxu0
        %v8763 = vadd.f32 %v8734, %v8762
        %8764 = vmatmul.bf16.gmra.mxu0 %v7884
        %v8765 = vpop.f32.mrf.mxu0
        %v8766 = vadd.f32 %v8737, %v8765
        %v8767 = vpop.f32.mrf.mxu0
        %v8768 = vadd.f32 %v8739, %v8767
        %8769 = vmatmul.bf16.gmra.mxu0 %v7893
        %v8770 = vpop.f32.mrf.mxu0
        %v8771 = vadd.f32 %v8742, %v8770
        %v8772 = vpop.f32.mrf.mxu0
        %v8773 = vadd.f32 %v8744, %v8772
        %8774 = vmatmul.bf16.gmra.mxu0 %v7902
        %v8775 = vpop.f32.mrf.mxu0
        %v8776 = vadd.f32 %v8747, %v8775
        %v8777 = vpop.f32.mrf.mxu0
        %v8778 = vadd.f32 %v8749, %v8777
        %8779 = vdwg.mxu0
        %8780 = vmatpush.bf16.msra.mxu0 %v8454
        %8781 = vmatpush.bf16.msra.mxu0 %v8452
        %8782 = vmatpush.bf16.msra.mxu0 %v8450
        %8783 = vmatpush.bf16.msra.mxu0 %v8448
        %8784 = vmatpush.bf16.msra.mxu0 %v8446
        %8785 = vmatpush.bf16.msra.mxu0 %v8444
        %8786 = vmatpush.bf16.msra.mxu0 %v8442
        %8787 = vmatpush.bf16.msra.mxu0 %v8440
        %8788 = vmatmul.bf16.gmra.mxu0 %v7876
        %v8789 = vpop.f32.mrf.mxu0
        %v8790 = vadd.f32 %v8761, %v8789
        %v8791 = vpop.f32.mrf.mxu0
        %v8792 = vadd.f32 %v8763, %v8791
        %8793 = vmatmul.bf16.gmra.mxu0 %v7885
        %v8794 = vpop.f32.mrf.mxu0
        %v8795 = vadd.f32 %v8766, %v8794
        %v8796 = vpop.f32.mrf.mxu0
        %v8797 = vadd.f32 %v8768, %v8796
        %8798 = vmatmul.bf16.gmra.mxu0 %v7894
        %v8799 = vpop.f32.mrf.mxu0
        %v8800 = vadd.f32 %v8771, %v8799
        %v8801 = vpop.f32.mrf.mxu0
        %v8802 = vadd.f32 %v8773, %v8801
        %8803 = vmatmul.bf16.gmra.mxu0 %v7903
        %v8804 = vpop.f32.mrf.mxu0
        %v8805 = vadd.f32 %v8776, %v8804
        %v8806 = vpop.f32.mrf.mxu0
        %v8807 = vadd.f32 %v8778, %v8806
        %8808 = vdwg.mxu0
        %8809 = vmatpush.bf16.msra.mxu0 %v8470
        %8810 = vmatpush.bf16.msra.mxu0 %v8468
        %8811 = vmatpush.bf16.msra.mxu0 %v8466
        %8812 = vmatpush.bf16.msra.mxu0 %v8464
        %8813 = vmatpush.bf16.msra.mxu0 %v8462
        %8814 = vmatpush.bf16.msra.mxu0 %v8460
        %8815 = vmatpush.bf16.msra.mxu0 %v8458
        %8816 = vmatpush.bf16.msra.mxu0 %v8456
        %8817 = vmatmul.bf16.gmra.mxu0 %v7877
        %v8818 = vpop.f32.mrf.mxu0
        %v8819 = vadd.f32 %v8790, %v8818
        %v8820 = vpop.f32.mrf.mxu0
        %v8821 = vadd.f32 %v8792, %v8820
        %8822 = vmatmul.bf16.gmra.mxu0 %v7886
        %v8823 = vpop.f32.mrf.mxu0
        %v8824 = vadd.f32 %v8795, %v8823
        %v8825 = vpop.f32.mrf.mxu0
        %v8826 = vadd.f32 %v8797, %v8825
        %8827 = vmatmul.bf16.gmra.mxu0 %v7895
        %v8828 = vpop.f32.mrf.mxu0
        %v8829 = vadd.f32 %v8800, %v8828
        %v8830 = vpop.f32.mrf.mxu0
        %v8831 = vadd.f32 %v8802, %v8830
        %8832 = vmatmul.bf16.gmra.mxu0 %v7904
        %v8833 = vpop.f32.mrf.mxu0
        %v8834 = vadd.f32 %v8805, %v8833
        %v8835 = vpop.f32.mrf.mxu0
        %v8836 = vadd.f32 %v8807, %v8835
        %8837 = vdwg.mxu0
        %8838 = vmatpush.bf16.msra.mxu0 %v8486
        %8839 = vmatpush.bf16.msra.mxu0 %v8484
        %8840 = vmatpush.bf16.msra.mxu0 %v8482
        %8841 = vmatpush.bf16.msra.mxu0 %v8480
        %8842 = vmatpush.bf16.msra.mxu0 %v8478
        %8843 = vmatpush.bf16.msra.mxu0 %v8476
        %8844 = vmatpush.bf16.msra.mxu0 %v8474
        %8845 = vmatpush.bf16.msra.mxu0 %v8472
        %8846 = vmatmul.bf16.gmra.mxu0 %v7878
        %v8847 = vpop.f32.mrf.mxu0
        %v8848 = vadd.f32 %v8819, %v8847
        %v8849 = vpop.f32.mrf.mxu0
        %v8850 = vadd.f32 %v8821, %v8849
        %8851 = vmatmul.bf16.gmra.mxu0 %v7887
        %v8852 = vpop.f32.mrf.mxu0
        %v8853 = vadd.f32 %v8824, %v8852
        %v8854 = vpop.f32.mrf.mxu0
        %v8855 = vadd.f32 %v8826, %v8854
        %8856 = vmatmul.bf16.gmra.mxu0 %v7896
        %v8857 = vpop.f32.mrf.mxu0
        %v8858 = vadd.f32 %v8829, %v8857
        %v8859 = vpop.f32.mrf.mxu0
        %v8860 = vadd.f32 %v8831, %v8859
        %8861 = vmatmul.bf16.gmra.mxu0 %v7905
        %v8862 = vpop.f32.mrf.mxu0
        %v8863 = vadd.f32 %v8834, %v8862
        %v8864 = vpop.f32.mrf.mxu0
        %v8865 = vadd.f32 %v8836, %v8864
        %8866 = vdwg.mxu0
        %8867 = vmatpush.bf16.msra.mxu0 %v8502
        %8868 = vmatpush.bf16.msra.mxu0 %v8500
        %8869 = vmatpush.bf16.msra.mxu0 %v8498
        %8870 = vmatpush.bf16.msra.mxu0 %v8496
        %8871 = vmatpush.bf16.msra.mxu0 %v8494
        %8872 = vmatpush.bf16.msra.mxu0 %v8492
        %8873 = vmatpush.bf16.msra.mxu0 %v8490
        %8874 = vmatpush.bf16.msra.mxu0 %v8488
        %8875 = vmatmul.bf16.gmra.mxu0 %v7879
        %v8876 = vpop.f32.mrf.mxu0
        %v8877 = vadd.f32 %v8848, %v8876
        %v8878 = vpop.f32.mrf.mxu0
        %v8879 = vadd.f32 %v8850, %v8878
        %8880 = vmatmul.bf16.gmra.mxu0 %v7888
        %v8881 = vpop.f32.mrf.mxu0
        %v8882 = vadd.f32 %v8853, %v8881
        %v8883 = vpop.f32.mrf.mxu0
        %v8884 = vadd.f32 %v8855, %v8883
        %8885 = vmatmul.bf16.gmra.mxu0 %v7897
        %v8886 = vpop.f32.mrf.mxu0
        %v8887 = vadd.f32 %v8858, %v8886
        %v8888 = vpop.f32.mrf.mxu0
        %v8889 = vadd.f32 %v8860, %v8888
        %8890 = vmatmul.bf16.gmra.mxu0 %v7906
        %v8891 = vpop.f32.mrf.mxu0
        %v8892 = vadd.f32 %v8863, %v8891
        %v8893 = vpop.f32.mrf.mxu0
        %v8894 = vadd.f32 %v8865, %v8893
        %8895 = vdwg.mxu0
        %8896 = vmatpush.bf16.msra.mxu0 %v8518
        %8897 = vmatpush.bf16.msra.mxu0 %v8516
        %8898 = vmatpush.bf16.msra.mxu0 %v8514
        %8899 = vmatpush.bf16.msra.mxu0 %v8512
        %8900 = vmatpush.bf16.msra.mxu0 %v8510
        %8901 = vmatpush.bf16.msra.mxu0 %v8508
        %8902 = vmatpush.bf16.msra.mxu0 %v8506
        %8903 = vmatpush.bf16.msra.mxu0 %v8504
        %8904 = vmatmul.bf16.gmra.mxu0 %v7880
        %v8905 = vpop.f32.mrf.mxu0
        %v8906 = vadd.f32 %v8877, %v8905
        %v8907 = vpop.f32.mrf.mxu0
        %v8908 = vadd.f32 %v8879, %v8907
        %8909 = vmatmul.bf16.gmra.mxu0 %v7889
        %v8910 = vpop.f32.mrf.mxu0
        %v8911 = vadd.f32 %v8882, %v8910
        %v8912 = vpop.f32.mrf.mxu0
        %v8913 = vadd.f32 %v8884, %v8912
        %8914 = vmatmul.bf16.gmra.mxu0 %v7898
        %v8915 = vpop.f32.mrf.mxu0
        %v8916 = vadd.f32 %v8887, %v8915
        %v8917 = vpop.f32.mrf.mxu0
        %v8918 = vadd.f32 %v8889, %v8917
        %8919 = vmatmul.bf16.gmra.mxu0 %v7907
        %v8920 = vpop.f32.mrf.mxu0
        %v8921 = vadd.f32 %v8892, %v8920
        %v8922 = vpop.f32.mrf.mxu0
        %v8923 = vadd.f32 %v8894, %v8922
        %8924 = vdwg.mxu0
        %8925 = vmatpush.bf16.msra.mxu0 %v8391
        %8926 = vmatpush.bf16.msra.mxu0 %v8389
        %8927 = vmatpush.bf16.msra.mxu0 %v8387
        %8928 = vmatpush.bf16.msra.mxu0 %v8385
        %8929 = vmatpush.bf16.msra.mxu0 %v8383
        %8930 = vmatpush.bf16.msra.mxu0 %v8381
        %8931 = vmatpush.bf16.msra.mxu0 %v8379
        %8932 = vmatpush.bf16.msra.mxu0 %v8377
        %8933 = vmatmul.bf16.gmra.mxu0 %v7872
        %v8934 = vpop.f32.mrf.mxu0
        %v8935 = vadd.f32 0.0, %v8934
        %v8936 = vpop.f32.mrf.mxu0
        %v8937 = vadd.f32 0.0, %v8936
        %8938 = vmatmul.bf16.gmra.mxu0 %v7881
        %v8939 = vpop.f32.mrf.mxu0
        %v8940 = vadd.f32 0.0, %v8939
        %v8941 = vpop.f32.mrf.mxu0
        %v8942 = vadd.f32 0.0, %v8941
        %8943 = vmatmul.bf16.gmra.mxu0 %v7890
        %v8944 = vpop.f32.mrf.mxu0
        %v8945 = vadd.f32 0.0, %v8944
        %v8946 = vpop.f32.mrf.mxu0
        %v8947 = vadd.f32 0.0, %v8946
        %8948 = vmatmul.bf16.gmra.mxu0 %v7899
        %v8949 = vpop.f32.mrf.mxu0
        %v8950 = vadd.f32 0.0, %v8949
        %v8951 = vpop.f32.mrf.mxu0
        %v8952 = vadd.f32 0.0, %v8951
        %8953 = vdwg.mxu0
        %8954 = vmatpush.bf16.msra.mxu0 %v8407
        %8955 = vmatpush.bf16.msra.mxu0 %v8405
        %8956 = vmatpush.bf16.msra.mxu0 %v8403
        %8957 = vmatpush.bf16.msra.mxu0 %v8401
        %8958 = vmatpush.bf16.msra.mxu0 %v8399
        %8959 = vmatpush.bf16.msra.mxu0 %v8397
        %8960 = vmatpush.bf16.msra.mxu0 %v8395
        %8961 = vmatpush.bf16.msra.mxu0 %v8393
        %8962 = vmatmul.bf16.gmra.mxu0 %v7873
        %v8963 = vpop.f32.mrf.mxu0
        %v8964 = vadd.f32 %v8935, %v8963
        %v8965 = vpop.f32.mrf.mxu0
        %v8966 = vadd.f32 %v8937, %v8965
        %8967 = vmatmul.bf16.gmra.mxu0 %v7882
        %v8968 = vpop.f32.mrf.mxu0
        %v8969 = vadd.f32 %v8940, %v8968
        %v8970 = vpop.f32.mrf.mxu0
        %v8971 = vadd.f32 %v8942, %v8970
        %8972 = vmatmul.bf16.gmra.mxu0 %v7891
        %v8973 = vpop.f32.mrf.mxu0
        %v8974 = vadd.f32 %v8945, %v8973
        %v8975 = vpop.f32.mrf.mxu0
        %v8976 = vadd.f32 %v8947, %v8975
        %8977 = vmatmul.bf16.gmra.mxu0 %v7900
        %v8978 = vpop.f32.mrf.mxu0
        %v8979 = vadd.f32 %v8950, %v8978
        %v8980 = vpop.f32.mrf.mxu0
        %v8981 = vadd.f32 %v8952, %v8980
        %8982 = vdwg.mxu0
        %8983 = vmatpush.bf16.msra.mxu0 %v8423
        %8984 = vmatpush.bf16.msra.mxu0 %v8421
        %8985 = vmatpush.bf16.msra.mxu0 %v8419
        %8986 = vmatpush.bf16.msra.mxu0 %v8417
        %8987 = vmatpush.bf16.msra.mxu0 %v8415
        %8988 = vmatpush.bf16.msra.mxu0 %v8413
        %8989 = vmatpush.bf16.msra.mxu0 %v8411
        %8990 = vmatpush.bf16.msra.mxu0 %v8409
        %8991 = vmatmul.bf16.gmra.mxu0 %v7874
        %v8992 = vpop.f32.mrf.mxu0
        %v8993 = vadd.f32 %v8964, %v8992
        %v8994 = vpop.f32.mrf.mxu0
        %v8995 = vadd.f32 %v8966, %v8994
        %8996 = vmatmul.bf16.gmra.mxu0 %v7883
        %v8997 = vpop.f32.mrf.mxu0
        %v8998 = vadd.f32 %v8969, %v8997
        %v8999 = vpop.f32.mrf.mxu0
        %v9000 = vadd.f32 %v8971, %v8999
        %9001 = vmatmul.bf16.gmra.mxu0 %v7892
        %v9002 = vpop.f32.mrf.mxu0
        %v9003 = vadd.f32 %v8974, %v9002
        %v9004 = vpop.f32.mrf.mxu0
        %v9005 = vadd.f32 %v8976, %v9004
        %9006 = vmatmul.bf16.gmra.mxu0 %v7901
        %v9007 = vpop.f32.mrf.mxu0
        %v9008 = vadd.f32 %v8979, %v9007
        %v9009 = vpop.f32.mrf.mxu0
        %v9010 = vadd.f32 %v8981, %v9009
        %9011 = vdwg.mxu0
        %9012 = vmatpush.bf16.msra.mxu0 %v8439
        %9013 = vmatpush.bf16.msra.mxu0 %v8437
        %9014 = vmatpush.bf16.msra.mxu0 %v8435
        %9015 = vmatpush.bf16.msra.mxu0 %v8433
        %9016 = vmatpush.bf16.msra.mxu0 %v8431
        %9017 = vmatpush.bf16.msra.mxu0 %v8429
        %9018 = vmatpush.bf16.msra.mxu0 %v8427
        %9019 = vmatpush.bf16.msra.mxu0 %v8425
        %9020 = vmatmul.bf16.gmra.mxu0 %v7875
        %v9021 = vpop.f32.mrf.mxu0
        %v9022 = vadd.f32 %v8993, %v9021
        %v9023 = vpop.f32.mrf.mxu0
        %v9024 = vadd.f32 %v8995, %v9023
        %9025 = vmatmul.bf16.gmra.mxu0 %v7884
        %v9026 = vpop.f32.mrf.mxu0
        %v9027 = vadd.f32 %v8998, %v9026
        %v9028 = vpop.f32.mrf.mxu0
        %v9029 = vadd.f32 %v9000, %v9028
        %9030 = vmatmul.bf16.gmra.mxu0 %v7893
        %v9031 = vpop.f32.mrf.mxu0
        %v9032 = vadd.f32 %v9003, %v9031
        %v9033 = vpop.f32.mrf.mxu0
        %v9034 = vadd.f32 %v9005, %v9033
        %9035 = vmatmul.bf16.gmra.mxu0 %v7902
        %v9036 = vpop.f32.mrf.mxu0
        %v9037 = vadd.f32 %v9008, %v9036
        %v9038 = vpop.f32.mrf.mxu0
        %v9039 = vadd.f32 %v9010, %v9038
        %9040 = vdwg.mxu0
        %9041 = vmatpush.bf16.msra.mxu0 %v8455
        %9042 = vmatpush.bf16.msra.mxu0 %v8453
        %9043 = vmatpush.bf16.msra.mxu0 %v8451
        %9044 = vmatpush.bf16.msra.mxu0 %v8449
        %9045 = vmatpush.bf16.msra.mxu0 %v8447
        %9046 = vmatpush.bf16.msra.mxu0 %v8445
        %9047 = vmatpush.bf16.msra.mxu0 %v8443
        %9048 = vmatpush.bf16.msra.mxu0 %v8441
        %9049 = vmatmul.bf16.gmra.mxu0 %v7876
        %v9050 = vpop.f32.mrf.mxu0
        %v9051 = vadd.f32 %v9022, %v9050
        %v9052 = vpop.f32.mrf.mxu0
        %v9053 = vadd.f32 %v9024, %v9052
        %9054 = vmatmul.bf16.gmra.mxu0 %v7885
        %v9055 = vpop.f32.mrf.mxu0
        %v9056 = vadd.f32 %v9027, %v9055
        %v9057 = vpop.f32.mrf.mxu0
        %v9058 = vadd.f32 %v9029, %v9057
        %9059 = vmatmul.bf16.gmra.mxu0 %v7894
        %v9060 = vpop.f32.mrf.mxu0
        %v9061 = vadd.f32 %v9032, %v9060
        %v9062 = vpop.f32.mrf.mxu0
        %v9063 = vadd.f32 %v9034, %v9062
        %9064 = vmatmul.bf16.gmra.mxu0 %v7903
        %v9065 = vpop.f32.mrf.mxu0
        %v9066 = vadd.f32 %v9037, %v9065
        %v9067 = vpop.f32.mrf.mxu0
        %v9068 = vadd.f32 %v9039, %v9067
        %9069 = vdwg.mxu0
        %9070 = vmatpush.bf16.msra.mxu0 %v8471
        %9071 = vmatpush.bf16.msra.mxu0 %v8469
        %9072 = vmatpush.bf16.msra.mxu0 %v8467
        %9073 = vmatpush.bf16.msra.mxu0 %v8465
        %9074 = vmatpush.bf16.msra.mxu0 %v8463
        %9075 = vmatpush.bf16.msra.mxu0 %v8461
        %9076 = vmatpush.bf16.msra.mxu0 %v8459
        %9077 = vmatpush.bf16.msra.mxu0 %v8457
        %9078 = vmatmul.bf16.gmra.mxu0 %v7877
        %v9079 = vpop.f32.mrf.mxu0
        %v9080 = vadd.f32 %v9051, %v9079
        %v9081 = vpop.f32.mrf.mxu0
        %v9082 = vadd.f32 %v9053, %v9081
        %9083 = vmatmul.bf16.gmra.mxu0 %v7886
        %v9084 = vpop.f32.mrf.mxu0
        %v9085 = vadd.f32 %v9056, %v9084
        %v9086 = vpop.f32.mrf.mxu0
        %v9087 = vadd.f32 %v9058, %v9086
        %9088 = vmatmul.bf16.gmra.mxu0 %v7895
        %v9089 = vpop.f32.mrf.mxu0
        %v9090 = vadd.f32 %v9061, %v9089
        %v9091 = vpop.f32.mrf.mxu0
        %v9092 = vadd.f32 %v9063, %v9091
        %9093 = vmatmul.bf16.gmra.mxu0 %v7904
        %v9094 = vpop.f32.mrf.mxu0
        %v9095 = vadd.f32 %v9066, %v9094
        %v9096 = vpop.f32.mrf.mxu0
        %v9097 = vadd.f32 %v9068, %v9096
        %9098 = vdwg.mxu0
        %9099 = vmatpush.bf16.msra.mxu0 %v8487
        %9100 = vmatpush.bf16.msra.mxu0 %v8485
        %9101 = vmatpush.bf16.msra.mxu0 %v8483
        %9102 = vmatpush.bf16.msra.mxu0 %v8481
        %9103 = vmatpush.bf16.msra.mxu0 %v8479
        %9104 = vmatpush.bf16.msra.mxu0 %v8477
        %9105 = vmatpush.bf16.msra.mxu0 %v8475
        %9106 = vmatpush.bf16.msra.mxu0 %v8473
        %9107 = vmatmul.bf16.gmra.mxu0 %v7878
        %v9108 = vpop.f32.mrf.mxu0
        %v9109 = vadd.f32 %v9080, %v9108
        %v9110 = vpop.f32.mrf.mxu0
        %v9111 = vadd.f32 %v9082, %v9110
        %9112 = vmatmul.bf16.gmra.mxu0 %v7887
        %v9113 = vpop.f32.mrf.mxu0
        %v9114 = vadd.f32 %v9085, %v9113
        %v9115 = vpop.f32.mrf.mxu0
        %v9116 = vadd.f32 %v9087, %v9115
        %9117 = vmatmul.bf16.gmra.mxu0 %v7896
        %v9118 = vpop.f32.mrf.mxu0
        %v9119 = vadd.f32 %v9090, %v9118
        %v9120 = vpop.f32.mrf.mxu0
        %v9121 = vadd.f32 %v9092, %v9120
        %9122 = vmatmul.bf16.gmra.mxu0 %v7905
        %v9123 = vpop.f32.mrf.mxu0
        %v9124 = vadd.f32 %v9095, %v9123
        %v9125 = vpop.f32.mrf.mxu0
        %v9126 = vadd.f32 %v9097, %v9125
        %9127 = vdwg.mxu0
        %9128 = vmatpush.bf16.msra.mxu0 %v8503
        %9129 = vmatpush.bf16.msra.mxu0 %v8501
        %9130 = vmatpush.bf16.msra.mxu0 %v8499
        %9131 = vmatpush.bf16.msra.mxu0 %v8497
        %9132 = vmatpush.bf16.msra.mxu0 %v8495
        %9133 = vmatpush.bf16.msra.mxu0 %v8493
        %9134 = vmatpush.bf16.msra.mxu0 %v8491
        %9135 = vmatpush.bf16.msra.mxu0 %v8489
        %9136 = vmatmul.bf16.gmra.mxu0 %v7879
        %v9137 = vpop.f32.mrf.mxu0
        %v9138 = vadd.f32 %v9109, %v9137
        %v9139 = vpop.f32.mrf.mxu0
        %v9140 = vadd.f32 %v9111, %v9139
        %9141 = vmatmul.bf16.gmra.mxu0 %v7888
        %v9142 = vpop.f32.mrf.mxu0
        %v9143 = vadd.f32 %v9114, %v9142
        %v9144 = vpop.f32.mrf.mxu0
        %v9145 = vadd.f32 %v9116, %v9144
        %9146 = vmatmul.bf16.gmra.mxu0 %v7897
        %v9147 = vpop.f32.mrf.mxu0
        %v9148 = vadd.f32 %v9119, %v9147
        %v9149 = vpop.f32.mrf.mxu0
        %v9150 = vadd.f32 %v9121, %v9149
        %9151 = vmatmul.bf16.gmra.mxu0 %v7906
        %v9152 = vpop.f32.mrf.mxu0
        %v9153 = vadd.f32 %v9124, %v9152
        %v9154 = vpop.f32.mrf.mxu0
        %v9155 = vadd.f32 %v9126, %v9154
        %9156 = vdwg.mxu0
        %9157 = vmatpush.bf16.msra.mxu0 %v8519
        %9158 = vmatpush.bf16.msra.mxu0 %v8517
        %9159 = vmatpush.bf16.msra.mxu0 %v8515
        %9160 = vmatpush.bf16.msra.mxu0 %v8513
        %9161 = vmatpush.bf16.msra.mxu0 %v8511
        %9162 = vmatpush.bf16.msra.mxu0 %v8509
        %9163 = vmatpush.bf16.msra.mxu0 %v8507
        %9164 = vmatpush.bf16.msra.mxu0 %v8505
        %9165 = vmatmul.bf16.gmra.mxu0 %v7880
        %v9166 = vpop.f32.mrf.mxu0
        %v9167 = vadd.f32 %v9138, %v9166
        %v9168 = vpop.f32.mrf.mxu0
        %v9169 = vadd.f32 %v9140, %v9168
        %9170 = vmatmul.bf16.gmra.mxu0 %v7889
        %v9171 = vpop.f32.mrf.mxu0
        %v9172 = vadd.f32 %v9143, %v9171
        %v9173 = vpop.f32.mrf.mxu0
        %v9174 = vadd.f32 %v9145, %v9173
        %9175 = vmatmul.bf16.gmra.mxu0 %v7898
        %v9176 = vpop.f32.mrf.mxu0
        %v9177 = vadd.f32 %v9148, %v9176
        %v9178 = vpop.f32.mrf.mxu0
        %v9179 = vadd.f32 %v9150, %v9178
        %9180 = vmatmul.bf16.gmra.mxu0 %v7907
        %v9181 = vpop.f32.mrf.mxu0
        %v9182 = vadd.f32 %v9153, %v9181
        %v9183 = vpop.f32.mrf.mxu0
        %v9184 = vadd.f32 %v9155, %v9183
        %9185 = vdwg.mxu0
        %v9186 = vld [vmem:[%s5] sm:$0x3]
        %v9188 = vperm.slane %v9186, 0
        %v9189 = vperm.slane %v9186, 1
        %v9192 = vmul.f32 %v8906, %v9188
        %v9193 = vmul.f32 %v9167, %v9189
        %v9194 = vmul.f32 %v8908, %v9188
        %v9195 = vmul.f32 %v9169, %v9189
        %v9196 = vmul.f32 %v8911, %v9188
        %v9197 = vmul.f32 %v9172, %v9189
        %v9198 = vmul.f32 %v8913, %v9188
        %v9199 = vmul.f32 %v9174, %v9189
        %v9200 = vmul.f32 %v8916, %v9188
        %v9201 = vmul.f32 %v9177, %v9189
        %v9202 = vmul.f32 %v8918, %v9188
        %v9203 = vmul.f32 %v9179, %v9189
        %v9204 = vmul.f32 %v8921, %v9188
        %v9205 = vmul.f32 %v9182, %v9189
        %v9206 = vmul.f32 %v8923, %v9188
        %v9207 = vmul.f32 %v9184, %v9189
        %v9208 = vld [vmem:[%s6] sm:$0x3]
        %v9210 = vperm.slane %v9208, 0
        %v9211 = vperm.slane %v9208, 1
        %v9214 = vadd.f32 %v9192, %v9210
        %v9215 = vadd.f32 %v9193, %v9211
        %v9216 = vadd.f32 %v9194, %v9210
        %v9217 = vadd.f32 %v9195, %v9211
        %v9218 = vadd.f32 %v9196, %v9210
        %v9219 = vadd.f32 %v9197, %v9211
        %v9220 = vadd.f32 %v9198, %v9210
        %v9221 = vadd.f32 %v9199, %v9211
        %v9222 = vadd.f32 %v9200, %v9210
        %v9223 = vadd.f32 %v9201, %v9211
        %v9224 = vadd.f32 %v9202, %v9210
        %v9225 = vadd.f32 %v9203, %v9211
        %v9226 = vadd.f32 %v9204, %v9210
        %v9227 = vadd.f32 %v9205, %v9211
        %v9228 = vadd.f32 %v9206, %v9210
        %v9229 = vadd.f32 %v9207, %v9211
        %v9230 = vmul.f32 %v9214, 0.16666667
        %v9231 = vmul.f32 %v9215, 0.16666667
        %v9232 = vmul.f32 %v9216, 0.16666667
        %v9233 = vmul.f32 %v9217, 0.16666667
        %v9234 = vmul.f32 %v9218, 0.16666667
        %v9235 = vmul.f32 %v9219, 0.16666667
        %v9236 = vmul.f32 %v9220, 0.16666667
        %v9237 = vmul.f32 %v9221, 0.16666667
        %v9238 = vmul.f32 %v9222, 0.16666667
        %v9239 = vmul.f32 %v9223, 0.16666667
        %v9240 = vmul.f32 %v9224, 0.16666667
        %v9241 = vmul.f32 %v9225, 0.16666667
        %v9242 = vmul.f32 %v9226, 0.16666667
        %v9243 = vmul.f32 %v9227, 0.16666667
        %v9244 = vmul.f32 %v9228, 0.16666667
        %v9245 = vmul.f32 %v9229, 0.16666667
        %v9246 = vadd.f32 %v9230, 0.5
        %v9247 = vadd.f32 %v9231, 0.5
        %v9248 = vadd.f32 %v9232, 0.5
        %v9249 = vadd.f32 %v9233, 0.5
        %v9250 = vadd.f32 %v9234, 0.5
        %v9251 = vadd.f32 %v9235, 0.5
        %v9252 = vadd.f32 %v9236, 0.5
        %v9253 = vadd.f32 %v9237, 0.5
        %v9254 = vadd.f32 %v9238, 0.5
        %v9255 = vadd.f32 %v9239, 0.5
        %v9256 = vadd.f32 %v9240, 0.5
        %v9257 = vadd.f32 %v9241, 0.5
        %v9258 = vadd.f32 %v9242, 0.5
        %v9259 = vadd.f32 %v9243, 0.5
        %v9260 = vadd.f32 %v9244, 0.5
        %v9261 = vadd.f32 %v9245, 0.5
        %v9262 = vmax.f32 %v9246, 0.0
        %v9263 = vmax.f32 %v9247, 0.0
        %v9264 = vmax.f32 %v9248, 0.0
        %v9265 = vmax.f32 %v9249, 0.0
        %v9266 = vmax.f32 %v9250, 0.0
        %v9267 = vmax.f32 %v9251, 0.0
        %v9268 = vmax.f32 %v9252, 0.0
        %v9269 = vmax.f32 %v9253, 0.0
        %v9270 = vmax.f32 %v9254, 0.0
        %v9271 = vmax.f32 %v9255, 0.0
        %v9272 = vmax.f32 %v9256, 0.0
        %v9273 = vmax.f32 %v9257, 0.0
        %v9274 = vmax.f32 %v9258, 0.0
        %v9275 = vmax.f32 %v9259, 0.0
        %v9276 = vmax.f32 %v9260, 0.0
        %v9277 = vmax.f32 %v9261, 0.0
        %v9278 = vmin.f32 %v9262, 1.0
        %v9279 = vmin.f32 %v9263, 1.0
        %v9280 = vmin.f32 %v9264, 1.0
        %v9281 = vmin.f32 %v9265, 1.0
        %v9282 = vmin.f32 %v9266, 1.0
        %v9283 = vmin.f32 %v9267, 1.0
        %v9284 = vmin.f32 %v9268, 1.0
        %v9285 = vmin.f32 %v9269, 1.0
        %v9286 = vmin.f32 %v9270, 1.0
        %v9287 = vmin.f32 %v9271, 1.0
        %v9288 = vmin.f32 %v9272, 1.0
        %v9289 = vmin.f32 %v9273, 1.0
        %v9290 = vmin.f32 %v9274, 1.0
        %v9291 = vmin.f32 %v9275, 1.0
        %v9292 = vmin.f32 %v9276, 1.0
        %v9293 = vmin.f32 %v9277, 1.0
        %v9294 = vmul.f32 %v9214, %v9278
        %v9295 = vmul.f32 %v9215, %v9279
        %v9296 = vmul.f32 %v9216, %v9280
        %v9297 = vmul.f32 %v9217, %v9281
        %v9298 = vmul.f32 %v9218, %v9282
        %v9299 = vmul.f32 %v9219, %v9283
        %v9300 = vmul.f32 %v9220, %v9284
        %v9301 = vmul.f32 %v9221, %v9285
        %v9302 = vmul.f32 %v9222, %v9286
        %v9303 = vmul.f32 %v9223, %v9287
        %v9304 = vmul.f32 %v9224, %v9288
        %v9305 = vmul.f32 %v9225, %v9289
        %v9306 = vmul.f32 %v9226, %v9290
        %v9307 = vmul.f32 %v9227, %v9291
        %v9308 = vmul.f32 %v9228, %v9292
        %v9309 = vmul.f32 %v9229, %v9293
        %v9310 = vld [vmem:[%s1767] sm:$0xff]
        %v9311 = vld [vmem:[%s1767 + $0x8] sm:$0xff]
        %v9312 = vld [vmem:[%s1767 + $0x10] sm:$0xff]
        %v9313 = vld [vmem:[%s1767 + $0x18] sm:$0xff]
        %v9314 = vld [vmem:[%s1767 + $0x20] sm:$0xff]
        %v9315 = vld [vmem:[%s1767 + $0x28] sm:$0xff]
        %v9316 = vld [vmem:[%s1767 + $0x30] sm:$0xff]
        %v9317 = vld [vmem:[%s1767 + $0x38] sm:$0xff]
        %v9318 = vunpack.c.l.bf16 %v9310
        %v9319 = vunpack.c.h.bf16 %v9310
        %v9320 = vunpack.c.l.bf16 %v9311
        %v9321 = vunpack.c.h.bf16 %v9311
        %v9322 = vunpack.c.l.bf16 %v9312
        %v9323 = vunpack.c.h.bf16 %v9312
        %v9324 = vunpack.c.l.bf16 %v9313
        %v9325 = vunpack.c.h.bf16 %v9313
        %v9326 = vunpack.c.l.bf16 %v9314
        %v9327 = vunpack.c.h.bf16 %v9314
        %v9328 = vunpack.c.l.bf16 %v9315
        %v9329 = vunpack.c.h.bf16 %v9315
        %v9330 = vunpack.c.l.bf16 %v9316
        %v9331 = vunpack.c.h.bf16 %v9316
        %v9332 = vunpack.c.l.bf16 %v9317
        %v9333 = vunpack.c.h.bf16 %v9317
        %v9334 = vadd.f32 %v9294, %v9318
        %v9335 = vadd.f32 %v9295, %v9319
        %v9336 = vadd.f32 %v9296, %v9320
        %v9337 = vadd.f32 %v9297, %v9321
        %v9338 = vadd.f32 %v9298, %v9322
        %v9339 = vadd.f32 %v9299, %v9323
        %v9340 = vadd.f32 %v9300, %v9324
        %v9341 = vadd.f32 %v9301, %v9325
        %v9342 = vadd.f32 %v9302, %v9326
        %v9343 = vadd.f32 %v9303, %v9327
        %v9344 = vadd.f32 %v9304, %v9328
        %v9345 = vadd.f32 %v9305, %v9329
        %v9346 = vadd.f32 %v9306, %v9330
        %v9347 = vadd.f32 %v9307, %v9331
        %v9348 = vadd.f32 %v9308, %v9332
        %v9349 = vadd.f32 %v9309, %v9333
        %s9350 = scalar_lea.vmem %s271, 384 [#allocation3]
        %9351 = vst [vmem:[%s9350] sm:$0xff] %v9334
        %9352 = vst [vmem:[%s9350 + $0x8] sm:$0xff] %v9335
        %9353 = vst [vmem:[%s9350 + $0x10] sm:$0xff] %v9336
        %9354 = vst [vmem:[%s9350 + $0x18] sm:$0xff] %v9337
        %9355 = vst [vmem:[%s9350 + $0x20] sm:$0xff] %v9338
        %9356 = vst [vmem:[%s9350 + $0x28] sm:$0xff] %v9339
        %9357 = vst [vmem:[%s9350 + $0x30] sm:$0xff] %v9340
        %9358 = vst [vmem:[%s9350 + $0x38] sm:$0xff] %v9341
        %9359 = vst [vmem:[%s9350 + $0x40] sm:$0xff] %v9342
        %9360 = vst [vmem:[%s9350 + $0x48] sm:$0xff] %v9343
        %9361 = vst [vmem:[%s9350 + $0x50] sm:$0xff] %v9344
        %9362 = vst [vmem:[%s9350 + $0x58] sm:$0xff] %v9345
        %9363 = vst [vmem:[%s9350 + $0x60] sm:$0xff] %v9346
        %9364 = vst [vmem:[%s9350 + $0x68] sm:$0xff] %v9347
        %9365 = vst [vmem:[%s9350 + $0x70] sm:$0xff] %v9348
        %9366 = vst [vmem:[%s9350 + $0x78] sm:$0xff] %v9349
        %s9367 = sand.u32 %s181, 1
        %s9368 = scalar_lea.sflag [#allocation4], %s9367
        %s9369 = sand.u32 %s181, 1
        %s9370 = smul.addr %s9369, 512
        %s9371 = scalar_lea.vmem [#allocation3], %s9370
        // Predicated region
        $region49: #{_lambda_.1} parent=47 // pred_check
          %p9372 = pneg %p191
        $region50: #{_lambda_.1} parent=47 // pred_check_branch
          %9374 = sbr.rel (%p9372) target = $region52
        $region51: #{_lambda_.1} parent=47 // pred_region
          %9376 = vsyncadd %s9368, 0
          %s9377 = smul.addr %s21, 64
          %s9378 = smul.addr %s9377, 8
          %s9379 = scalar_lea.hbm %s7, %s9378
          %s9380 = sshll.u32 %s9371, 4
          %s9381 = int_to_ptr.vmem [resolvable:$true] %s9380
          %s9382 = sshll.u32 %s9379, 4
          %s9383 = int_to_ptr.hbm [resolvable:$true] %s9382
          %9388 = dma.vmem_to_hbm [thread:$0]  %s9381, 8192, %s9383, %s9368, 256, 256, 16
        $region52: #{_lambda_.1} parent=47 // pred_fallthru
          _
      $region48: #{_lambda_.1} parent=5 // pred_fallthru
        _
      %p9389 = scmp.le.s32.totalorder 2, %s16
      // Predicated region
      $region53: #{_lambda_.1} parent=5 // pred_check
        %p9390 = pneg %p9389
      $region54: #{_lambda_.1} parent=5 // pred_check_branch
        %9392 = sbr.rel (%p9390) target = $region56
      $region55: #{_lambda_.1} parent=5 // pred_region
        %s9393 = ssub.s32 %s16, 2
        // Predicated region
        $region57: #{_lambda_.1} parent=55 // pred_check
          %p9394 = pneg %p197
        $region58: #{_lambda_.1} parent=55 // pred_check_branch
          %9396 = sbr.rel (%p9394) target = $region60
        $region59: #{_lambda_.1} parent=55 // pred_region
          %s9397 = sand.u32 %s182, 1
          %s9398 = scalar_lea.sflag [#allocation4], %s9397
          %s9399 = sand.u32 %s182, 1
          %s9400 = smul.addr %s9399, 512
          %s9401 = scalar_lea.vmem [#allocation3], %s9400
          %9403 = dma.done %s9398, 8192
        $region60: #{_lambda_.1} parent=55 // pred_fallthru
          _
      $region56: #{_lambda_.1} parent=5 // pred_fallthru
        _
    $region6: #{_lambda_.1} parent=1 // loop_footer
      %s20 = sadd.s32 1, %s16
    $region7: #{_lambda_.1} parent=1 // loop_footer_branch
      %15 = sbr.rel target = $region3
    $region8: #{_lambda_.1} parent=1 // loop_exit
      _
    %9404 = vsyncpa [#allocation4], 1
    %s9405 = scalar_lea.sflag [#allocation4], 1
    %9406 = vsyncpa %s9405, 1

</llo_original>
